<compile_context>
chip_gen: v7x
topology: tpu7x:2x2x1
jax: 0.10.0
libtpu: 0.0.40
codegen_flags: <defaults>
</compile_context>

<pallas_src>
import functools

import jax
import jax.numpy as jnp
from jax.experimental import pallas as pl
from jax.experimental.pallas import tpu as pltpu

# ---------------- model hyper-parameters (small, synthetic) ----------------
BATCH = 2
IN_CHANS = 3
IMG = 16
PATCH = 4                          # dino.patch_size
EMBED_DIM = 32                     # dino.embed_dim == dino.num_features
NUM_HEADS = 2
HEAD_DIM = EMBED_DIM // NUM_HEADS
MLP_DIM = 4 * EMBED_DIM            # 128
DEPTH = 3
LAYER_1 = 1                        # hooked layer for dino_1
LAYER_2 = 2                        # hooked layer for dino_2
N_PATCH_SIDE = IMG // PATCH        # 4
NUM_PATCHES = N_PATCH_SIDE * N_PATCH_SIDE
SEQ = 1 + NUM_PATCHES              # 17 tokens (cls + patches)
PATCH_FEAT = IN_CHANS * PATCH * PATCH  # 48

assert 0 <= LAYER_1 < DEPTH and 0 <= LAYER_2 < DEPTH


# --------------------------- small math helpers ----------------------------
def _ln(x, w, b, eps=1e-6):
    mu = jnp.mean(x, axis=-1, keepdims=True)
    var = jnp.mean((x - mu) ** 2, axis=-1, keepdims=True)
    return (x - mu) * jax.lax.rsqrt(var + eps) * w + b


def _l2(x, eps=1e-12):
    # x / max(||x||, eps)  ==  x * rsqrt(max(||x||^2, eps^2))
    ss = jnp.sum(x * x, axis=-1, keepdims=True)
    return x * jax.lax.rsqrt(jnp.maximum(ss, eps * eps))


def _patchify(img):
    """(B, C, H, W) NCHW -> (B, nP, C*P*P) patch rows (raster order)."""
    b, c, hh, ww = img.shape
    nh, nw = hh // PATCH, ww // PATCH
    p = img.reshape(b, c, nh, PATCH, nw, PATCH)
    return p.transpose(0, 2, 4, 1, 3, 5).reshape(b, nh * nw, c * PATCH * PATCH)


def _patchify_ext(img):
    """Patch rows with an all-zero row 0 (cls slot) -> (B, SEQ, C*P*P)."""
    p = _patchify(img)
    zeros = jnp.zeros((p.shape[0], 1, p.shape[2]), p.dtype)
    return jnp.concatenate([zeros, p], axis=1)


# ============================ fused Pallas kernel ===========================
def _fused_dino_kernel(
        layers_ref,                                     # SMEM (n_dino,) int32
        patches_ref, pw_ref, posc_ref,
        wqkv_ref, bqkv_ref, wproj_ref,
        wfc1_ref, bfc1_ref, wfc2_ref, vecs_ref,
        feats_ref,                                      # single output slab
        *, depth, num_heads, batch, seq):
    """Full DINO forward (all batch elements) for one dino per grid cell."""
    d_idx = pl.program_id(0)
    hook_layer = layers_ref[d_idx]                      # hooked block index

    D = pw_ref.shape[-1]
    dh = D // num_heads
    scale = 1.0 / float(dh) ** 0.5

    vecs = vecs_ref[0]                                  # (6*depth + 2, D)

    # ---- patch embed + cls token + positional embedding (all folded) ------
    # patches row b*seq is all-zero; posc row b*seq = cls_token + pos[0],
    # other rows = pos[s] + patch_bias  =>  x == concat([cls, patch_emb]) + pos
    x = (jnp.dot(patches_ref[0], pw_ref[0],
                 preferred_element_type=jnp.float32) + posc_ref[0])  # (B*SEQ,D)

    for i in range(depth):
        ln1w = vecs[6 * i + 0: 6 * i + 1]
        ln1b = vecs[6 * i + 1: 6 * i + 2]
        ln2w = vecs[6 * i + 2: 6 * i + 3]
        ln2b = vecs[6 * i + 3: 6 * i + 4]
        bproj = vecs[6 * i + 4: 6 * i + 5]
        bfc2 = vecs[6 * i + 5: 6 * i + 6]

        # ---------- attention: ONE fused qkv matmul (also the hook value) ---
        h1 = _ln(x, ln1w, ln1b)
        qkv = (jnp.dot(h1, wqkv_ref[0, i], preferred_element_type=jnp.float32)
               + bqkv_ref[0, i])                        # (B*SEQ, 3D)

        per_b = []
        for b in range(batch):
            qkv_b = qkv[b * seq:(b + 1) * seq]          # (SEQ, 3D)
            heads = []
            for h in range(num_heads):
                qh = qkv_b[:, 0 * D + h * dh: 0 * D + (h + 1) * dh]
                kh = qkv_b[:, 1 * D + h * dh: 1 * D + (h + 1) * dh]
                vh = qkv_b[:, 2 * D + h * dh: 2 * D + (h + 1) * dh]
                s = jax.lax.dot_general(
                    qh, kh, (((1,), (1,)), ((), ())),
                    preferred_element_type=jnp.float32) * scale
                s = s - jnp.max(s, axis=-1, keepdims=True)
                p = jnp.exp(s)
                p = p * pl.reciprocal(jnp.sum(p, axis=-1, keepdims=True),
                                      approx=True)
                heads.append(jnp.dot(p, vh,
                                     preferred_element_type=jnp.float32))
            per_b.append(jnp.concatenate(heads, axis=-1))   # (SEQ, D)
        o = jnp.concatenate(per_b, axis=0)                  # (B*SEQ, D)
        # single fused output projection (un-split wproj)
        x = x + (jnp.dot(o, wproj_ref[0, i],
                         preferred_element_type=jnp.float32) + bproj)

        # -------------------------------- MLP -------------------------------
        h2 = _ln(x, ln2w, ln2b)
        h2 = (jnp.dot(h2, wfc1_ref[0, i], preferred_element_type=jnp.float32)
              + bfc1_ref[0, i])
        # TODO(synk): PyTorch nn.GELU defaults to the exact erf form; the tanh
        # approximation is used here for a guaranteed Mosaic lowering.
        h2 = jax.nn.gelu(h2, approximate=True)
        x = x + (jnp.dot(h2, wfc2_ref[0, i], preferred_element_type=jnp.float32)
                 + bfc2)

        # ---- forward hooks of the selected block: qkv output + block output
        @pl.when(hook_layer == i)
        def _(qkv=qkv, x=x):
            # lane-dense 4*D == 128-wide packed store (Q | K | V | token).
            feats_ref[0] = jnp.concatenate(
                [_l2(qkv[:, 0 * D:1 * D]), _l2(qkv[:, 1 * D:2 * D]),
                 _l2(qkv[:, 2 * D:3 * D]), _l2(x)], axis=-1)

    # ---- epilogue: final LayerNorm + L2-normalize of the cls rows only -----
    # Packed into the (discarded-by-wrapper) cls rows of the feats slab so no
    # extra lane-sparse output stream is needed.
    normw = vecs[6 * depth + 0: 6 * depth + 1]
    normb = vecs[6 * depth + 1: 6 * depth + 2]
    for b in range(batch):
        cls_row = x[b * seq: b * seq + 1, :]                 # (1, D)
        r = _l2(_ln(cls_row, normw, normb))                  # (1, D)
        feats_ref[0, b * seq: b * seq + 1, :] = jnp.tile(r, (1, 4))


# ============================ pallas_call wrapper ===========================
def _fused_two_dino(layers, patches, p):
    """layers: (2,) int32; patches: (2, B*SEQ, PATCH_FEAT); p: packed params."""
    n_dino = patches.shape[0]
    rows = patches.shape[1]                  # B * SEQ
    batch = rows // SEQ
    D = EMBED_DIM

    # cls token, positional embedding and patch bias folded into one additive
    # (2, B*SEQ, D) term (cls rows: cls + pos0; other rows: pos + patch_bias).
    posc_one = jnp.concatenate(
        [p["cls_token"] + p["pos_embed"][:, 0:1, :],
         p["pos_embed"][:, 1:, :] + p["patch_b"]], axis=1)       # (2, SEQ, D)
    posc = jnp.tile(posc_one, (1, batch, 1))                     # (2, B*SEQ, D)

    # per-layer D-wide vectors packed into ONE slab:
    #   rows 6i..6i+5 = ln1_w, ln1_b, ln2_w, ln2_b, bproj, bfc2 of layer i
    #   rows 6*DEPTH, 6*DEPTH+1 = final norm_w, norm_b
    per_layer = jnp.stack(
        [p["ln1_w"][:, :, 0], p["ln1_b"][:, :, 0],
         p["ln2_w"][:, :, 0], p["ln2_b"][:, :, 0],
         p["bproj"][:, :, 0], p["bfc2"][:, :, 0]], axis=2)   # (2, DEPTH, 6, D)
    vecs = jnp.concatenate(
        [per_layer.reshape(n_dino, 6 * DEPTH, D), p["norm_w"], p["norm_b"]],
        axis=1)                                              # (2, 6*DEPTH+2, D)

    operands = [patches, p["patch_w"], posc,
                p["wqkv"], p["bqkv"], p["wproj"],
                p["wfc1"], p["bfc1"], p["wfc2"], vecs]

    def dino_spec(a):
        """Whole-array block per dino (all batch elements in one block)."""
        nd = a.ndim
        return pl.BlockSpec((1,) + tuple(a.shape[1:]),
                            lambda d, *_: (d,) + (0,) * (nd - 1))

    in_specs = [dino_spec(a) for a in operands]
    out_spec = pl.BlockSpec((1, rows, 4 * D), lambda d, *_: (d, 0, 0))
    out_shape = jax.ShapeDtypeStruct((n_dino, rows, 4 * D), jnp.float32)

    kernel = functools.partial(_fused_dino_kernel, depth=DEPTH,
                               num_heads=NUM_HEADS, batch=batch, seq=SEQ)

    feats = pl.pallas_call(
        kernel,
        grid_spec=pltpu.PrefetchScalarGridSpec(
            num_scalar_prefetch=1,                      # hooked-layer indices
            grid=(n_dino,),
            in_specs=in_specs,
            out_specs=out_spec,
        ),
        out_shape=out_shape,
        compiler_params=pltpu.CompilerParams(
            # 2-wide dino axis "parallel": each v7x TensorCore runs one
            # backbone; neutral (serial 2-step loop) on v5e/v6e.
            dimension_semantics=("parallel",)),
    )(layers, *operands)
    return feats


# ============================ TwoDino forward ===============================
@jax.jit
def two_dino_forward(img_1, img_2, params_1, params_2):
    """Pallas-fused TwoDino.forward; also returns both (Q, K, V, token)."""
    packed = jax.tree_util.tree_map(
        lambda a, b: jnp.stack([a, b], axis=0), params_1, params_2)
    batch = img_1.shape[0]
    patches = jnp.stack(
        [_patchify_ext(img_1).reshape(batch * SEQ, PATCH_FEAT),
         _patchify_ext(img_2).reshape(batch * SEQ, PATCH_FEAT)], axis=0)
    layers = jnp.array([LAYER_1, LAYER_2], dtype=jnp.int32)

    feats = _fused_two_dino(layers, patches, packed)
    feats = feats.reshape(2, batch, SEQ, 4 * EMBED_DIM)

    nh, nw = img_1.shape[2] // PATCH, img_1.shape[3] // PATCH
    D = EMBED_DIM

    def facets(f):                    # f: (B, SEQ, 4D) for one dino
        f = f[:, 1:, :]               # strip cls row
        return tuple(f[..., j * D:(j + 1) * D].reshape(batch, nh, nw, D)
                     for j in range(4))   # Q, K, V, token

    qkv_tok_1 = facets(feats[0])
    qkv_tok_2 = facets(feats[1])
    x1 = feats[0, :, 0, 0:D]          # epilogue-packed normalized cls feature
    x2 = feats[1, :, 0, 0:D]
    return (x1, x2), qkv_tok_1, qkv_tok_2


# ============================ parameter setup ===============================
def make_dino_params(seed):
    key = jax.random.PRNGKey(seed)
    ks = jax.random.split(key, 10)

    def nrm(k, shape, scale=0.02):
        return scale * jax.random.normal(k, shape, dtype=jnp.float32)

    D = EMBED_DIM
    return {
        "patch_w": nrm(ks[0], (PATCH_FEAT, D)),
        "patch_b": nrm(ks[1], (1, D)),
        "cls_token": nrm(ks[2], (1, D)),
        "pos_embed": nrm(ks[3], (SEQ, D)),
        "norm_w": jnp.ones((1, D), jnp.float32),
        "norm_b": jnp.zeros((1, D), jnp.float32),
        "ln1_w": jnp.ones((DEPTH, 1, D), jnp.float32),
        "ln1_b": jnp.zeros((DEPTH, 1, D), jnp.float32),
        "wqkv": nrm(ks[4], (DEPTH, D, 3 * D)),
        "bqkv": nrm(ks[5], (DEPTH, 1, 3 * D)),
        "wproj": nrm(ks[6], (DEPTH, D, D)),
        "bproj": jnp.zeros((DEPTH, 1, D), jnp.float32),
        "ln2_w": jnp.ones((DEPTH, 1, D), jnp.float32),
        "ln2_b": jnp.zeros((DEPTH, 1, D), jnp.float32),
        "wfc1": nrm(ks[7], (DEPTH, D, MLP_DIM)),
        "bfc1": jnp.zeros((DEPTH, 1, MLP_DIM), jnp.float32),
        "wfc2": nrm(ks[8], (DEPTH, MLP_DIM, D)),
        "bfc2": jnp.zeros((DEPTH, 1, D), jnp.float32),
    }


# ===================== pure-JAX reference (correctness) =====================
def _reference_extract(img, p, layer):
    batch = img.shape[0]
    nh, nw = img.shape[2] // PATCH, img.shape[3] // PATCH
    D, H, dh = EMBED_DIM, NUM_HEADS, HEAD_DIM

    tok = _patchify(img) @ p["patch_w"] + p["patch_b"]
    cls = jnp.broadcast_to(p["cls_token"][None], (batch, 1, D))
    x = jnp.concatenate([cls, tok], axis=1) + p["pos_embed"][None]

    qkv_hook = tok_hook = None
    for i in range(DEPTH):
        h1 = _ln(x, p["ln1_w"][i], p["ln1_b"][i])
        qkv = h1 @ p["wqkv"][i] + p["bqkv"][i]
        q, k, v = jnp.split(qkv, 3, axis=-1)

        def heads(t):
            return t.reshape(batch, SEQ, H, dh).transpose(0, 2, 1, 3)

        s = jnp.einsum("bhqd,bhkd->bhqk", heads(q), heads(k)) * (1.0 / dh ** 0.5)
        a = jax.nn.softmax(s, axis=-1)
        o = jnp.einsum("bhqk,bhkd->bhqd", a, heads(v))
        o = o.transpose(0, 2, 1, 3).reshape(batch, SEQ, D)
        x = x + o @ p["wproj"][i] + p["bproj"][i]

        h2 = _ln(x, p["ln2_w"][i], p["ln2_b"][i])
        h2 = jax.nn.gelu(h2 @ p["wfc1"][i] + p["bfc1"][i], approximate=True)
        x = x + h2 @ p["wfc2"][i] + p["bfc2"][i]
        if i == layer:
            qkv_hook, tok_hook = qkv, x

    res = _l2(_ln(x, p["norm_w"], p["norm_b"])[:, 0])
    qkv_p, tok_p = qkv_hook[:, 1:], tok_hook[:, 1:]
    shp = (batch, nh, nw, D)
    Q = _l2(qkv_p[..., :D]).reshape(shp)
    K = _l2(qkv_p[..., D:2 * D]).reshape(shp)
    V = _l2(qkv_p[..., 2 * D:]).reshape(shp)
    T = _l2(tok_p).reshape(shp)
    return res, (Q, K, V, T)


@jax.jit
def _reference_two_dino(img_1, img_2, p1, p2):
    r1, f1 = _reference_extract(img_1, p1, LAYER_1)
    r2, f2 = _reference_extract(img_2, p2, LAYER_2)
    return (r1, r2), f1, f2


# =================================== main ===================================
if __name__ == "__main__":
    key = jax.random.PRNGKey(0)
    k1, k2 = jax.random.split(key)
    img_1 = jax.random.normal(k1, (BATCH, IN_CHANS, IMG, IMG), dtype=jnp.float32)
    img_2 = jax.random.normal(k2, (BATCH, IN_CHANS, IMG, IMG), dtype=jnp.float32)

    params_1 = make_dino_params(seed=1)
    params_2 = make_dino_params(seed=2)

    (x1, x2), (Q1, K1, V1, T1), (Q2, K2, V2, T2) = two_dino_forward(
        img_1, img_2, params_1, params_2)
    jax.block_until_ready((x1, x2, Q1, K1, V1, T1, Q2, K2, V2, T2))

    # shape checks (match ExtractDINO / TwoDino semantics)
    assert x1.shape == (BATCH, EMBED_DIM) and x2.shape == (BATCH, EMBED_DIM)
    for t in (Q1, K1, V1, T1, Q2, K2, V2, T2):
        assert t.shape == (BATCH, N_PATCH_SIDE, N_PATCH_SIDE, EMBED_DIM)

    # numerical check against a pure-JAX reference (tolerance leaves headroom
    # for the EUP approximate-reciprocal softmax denominator)
    (rx1, rx2), rf1, rf2 = _reference_two_dino(img_1, img_2, params_1, params_2)

    def maxerr(a, b):
        return float(jnp.max(jnp.abs(a - b)))

    pairs = ([(x1, rx1), (x2, rx2)]
             + list(zip((Q1, K1, V1, T1), rf1))
             + list(zip((Q2, K2, V2, T2), rf2)))
    errs = [maxerr(a, b) for a, b in pairs]
    assert all(e < 3e-3 for e in errs), errs

    print("KERNEL_OK")
</pallas_src>

<mosaic_0001>
module attributes {stable_mosaic.version = 11 : i64} {
  func.func @_fused_dino_kernel(%arg0: i32, %arg1: memref<2xi32, #tpu.memory_space<smem>>, %arg2: memref<1x34x48xf32, #tpu.memory_space<vmem>>, %arg3: memref<1x48x32xf32, #tpu.memory_space<vmem>>, %arg4: memref<1x34x32xf32, #tpu.memory_space<vmem>>, %arg5: memref<1x3x32x96xf32, #tpu.memory_space<vmem>>, %arg6: memref<1x3x1x96xf32, #tpu.memory_space<vmem>>, %arg7: memref<1x3x32x32xf32, #tpu.memory_space<vmem>>, %arg8: memref<1x3x32x128xf32, #tpu.memory_space<vmem>>, %arg9: memref<1x3x1x128xf32, #tpu.memory_space<vmem>>, %arg10: memref<1x3x128x32xf32, #tpu.memory_space<vmem>>, %arg11: memref<1x20x32xf32, #tpu.memory_space<vmem>>, %arg12: memref<1x34x128xf32, #tpu.memory_space<vmem>>) attributes {dimension_semantics = [#tpu.dimension_semantics<parallel>], iteration_bounds = array<i64: 2>, scalar_prefetch = 1 : i64, scratch_operands = 0 : i64, tpu.core_type = #tpu.core_type<tc>, window_params = [{transform_indices = @transform_0, window_bounds = array<i64: 1, 34, 48>}, {transform_indices = @transform_1, window_bounds = array<i64: 1, 48, 32>}, {transform_indices = @transform_2, window_bounds = array<i64: 1, 34, 32>}, {transform_indices = @transform_3, window_bounds = array<i64: 1, 3, 32, 96>}, {transform_indices = @transform_4, window_bounds = array<i64: 1, 3, 1, 96>}, {transform_indices = @transform_5, window_bounds = array<i64: 1, 3, 32, 32>}, {transform_indices = @transform_6, window_bounds = array<i64: 1, 3, 32, 128>}, {transform_indices = @transform_7, window_bounds = array<i64: 1, 3, 1, 128>}, {transform_indices = @transform_8, window_bounds = array<i64: 1, 3, 128, 32>}, {transform_indices = @transform_9, window_bounds = array<i64: 1, 20, 32>}, {transform_indices = @transform_10, window_bounds = array<i64: 1, 34, 128>}]} {
    %0 = arith.index_cast %arg0 : i32 to index
    %1 = memref.load %arg1[%0] : memref<2xi32, #tpu.memory_space<smem>>
    %c0 = arith.constant 0 : index
    %c0_0 = arith.constant 0 : index
    %c0_1 = arith.constant 0 : index
    %2 = vector.load %arg11[%c0, %c0_0, %c0_1] : memref<1x20x32xf32, #tpu.memory_space<vmem>>, vector<1x20x32xf32>
    %3 = vector.shape_cast %2 : vector<1x20x32xf32> to vector<20x32xf32>
    %c0_2 = arith.constant 0 : index
    %c0_3 = arith.constant 0 : index
    %c0_4 = arith.constant 0 : index
    %4 = vector.load %arg2[%c0_2, %c0_3, %c0_4] : memref<1x34x48xf32, #tpu.memory_space<vmem>>, vector<1x34x48xf32>
    %5 = vector.shape_cast %4 : vector<1x34x48xf32> to vector<34x48xf32>
    %c0_5 = arith.constant 0 : index
    %c0_6 = arith.constant 0 : index
    %c0_7 = arith.constant 0 : index
    %6 = vector.load %arg3[%c0_5, %c0_6, %c0_7] : memref<1x48x32xf32, #tpu.memory_space<vmem>>, vector<1x48x32xf32>
    %7 = vector.shape_cast %6 : vector<1x48x32xf32> to vector<48x32xf32>
    %cst = arith.constant dense<0.000000e+00> : vector<34x32xf32>
    %8 = tpu.matmul %5, %7, %cst {dimension_numbers = #tpu.dot_dimension_numbers<[1], [0], [0], [1], [0, 0, 1, 1], [], []>} : vector<34x48xf32>, vector<48x32xf32>, vector<34x32xf32> -> vector<34x32xf32>
    %c0_8 = arith.constant 0 : index
    %c0_9 = arith.constant 0 : index
    %c0_10 = arith.constant 0 : index
    %9 = vector.load %arg4[%c0_8, %c0_9, %c0_10] : memref<1x34x32xf32, #tpu.memory_space<vmem>>, vector<1x34x32xf32>
    %10 = vector.shape_cast %9 : vector<1x34x32xf32> to vector<34x32xf32>
    %11 = arith.addf %8, %10 : vector<34x32xf32>
    %12 = vector.extract_strided_slice %3 {offsets = [0, 0], sizes = [1, 32], strides = [1, 1]} : vector<20x32xf32> to vector<1x32xf32>
    %13 = vector.extract_strided_slice %3 {offsets = [1, 0], sizes = [1, 32], strides = [1, 1]} : vector<20x32xf32> to vector<1x32xf32>
    %14 = vector.extract_strided_slice %3 {offsets = [2, 0], sizes = [1, 32], strides = [1, 1]} : vector<20x32xf32> to vector<1x32xf32>
    %15 = vector.extract_strided_slice %3 {offsets = [3, 0], sizes = [1, 32], strides = [1, 1]} : vector<20x32xf32> to vector<1x32xf32>
    %16 = vector.extract_strided_slice %3 {offsets = [4, 0], sizes = [1, 32], strides = [1, 1]} : vector<20x32xf32> to vector<1x32xf32>
    %17 = vector.extract_strided_slice %3 {offsets = [5, 0], sizes = [1, 32], strides = [1, 1]} : vector<20x32xf32> to vector<1x32xf32>
    %cst_11 = arith.constant dense<0.000000e+00> : vector<34xf32>
    %18 = vector.multi_reduction <add>, %11, %cst_11 [1] : vector<34x32xf32> to vector<34xf32>
    %19 = vector.shape_cast %18 : vector<34xf32> to vector<34x1xf32>
    %cst_12 = arith.constant 3.200000e+01 : f32
    %20 = vector.broadcast %cst_12 : f32 to vector<34x1xf32>
    %21 = arith.divf %19, %20 : vector<34x1xf32>
    %22 = vector.broadcast %21 : vector<34x1xf32> to vector<34x32xf32>
    %23 = arith.subf %11, %22 : vector<34x32xf32>
    %24 = arith.mulf %23, %23 : vector<34x32xf32>
    %cst_13 = arith.constant dense<0.000000e+00> : vector<34xf32>
    %25 = vector.multi_reduction <add>, %24, %cst_13 [1] : vector<34x32xf32> to vector<34xf32>
    %26 = vector.shape_cast %25 : vector<34xf32> to vector<34x1xf32>
    %cst_14 = arith.constant 3.200000e+01 : f32
    %27 = vector.broadcast %cst_14 : f32 to vector<34x1xf32>
    %28 = arith.divf %26, %27 : vector<34x1xf32>
    %29 = vector.broadcast %21 : vector<34x1xf32> to vector<34x32xf32>
    %30 = arith.subf %11, %29 : vector<34x32xf32>
    %cst_15 = arith.constant 9.99999997E-7 : f32
    %31 = vector.broadcast %cst_15 : f32 to vector<34x1xf32>
    %32 = arith.addf %28, %31 : vector<34x1xf32>
    %33 = math.rsqrt %32 : vector<34x1xf32>
    %34 = vector.broadcast %33 : vector<34x1xf32> to vector<34x32xf32>
    %35 = arith.mulf %30, %34 : vector<34x32xf32>
    %36 = vector.broadcast %12 : vector<1x32xf32> to vector<34x32xf32>
    %37 = arith.mulf %35, %36 : vector<34x32xf32>
    %38 = vector.broadcast %13 : vector<1x32xf32> to vector<34x32xf32>
    %39 = arith.addf %37, %38 : vector<34x32xf32>
    %c0_16 = arith.constant 0 : index
    %c0_17 = arith.constant 0 : index
    %c0_18 = arith.constant 0 : index
    %c0_19 = arith.constant 0 : index
    %40 = vector.load %arg5[%c0_16, %c0_17, %c0_18, %c0_19] : memref<1x3x32x96xf32, #tpu.memory_space<vmem>>, vector<1x1x32x96xf32>
    %41 = vector.shape_cast %40 : vector<1x1x32x96xf32> to vector<32x96xf32>
    %cst_20 = arith.constant dense<0.000000e+00> : vector<34x96xf32>
    %42 = tpu.matmul %39, %41, %cst_20 {dimension_numbers = #tpu.dot_dimension_numbers<[1], [0], [0], [1], [0, 0, 1, 1], [], []>} : vector<34x32xf32>, vector<32x96xf32>, vector<34x96xf32> -> vector<34x96xf32>
    %c0_21 = arith.constant 0 : index
    %c0_22 = arith.constant 0 : index
    %c0_23 = arith.constant 0 : index
    %c0_24 = arith.constant 0 : index
    %43 = vector.load %arg6[%c0_21, %c0_22, %c0_23, %c0_24] : memref<1x3x1x96xf32, #tpu.memory_space<vmem>>, vector<1x1x1x96xf32>
    %44 = vector.shape_cast %43 : vector<1x1x1x96xf32> to vector<1x96xf32>
    %45 = vector.broadcast %44 : vector<1x96xf32> to vector<34x96xf32>
    %46 = arith.addf %42, %45 : vector<34x96xf32>
    %47 = vector.extract_strided_slice %46 {offsets = [0, 0], sizes = [17, 96], strides = [1, 1]} : vector<34x96xf32> to vector<17x96xf32>
    %48 = vector.extract_strided_slice %47 {offsets = [0, 0], sizes = [17, 16], strides = [1, 1]} : vector<17x96xf32> to vector<17x16xf32>
    %49 = vector.extract_strided_slice %47 {offsets = [0, 32], sizes = [17, 16], strides = [1, 1]} : vector<17x96xf32> to vector<17x16xf32>
    %50 = vector.extract_strided_slice %47 {offsets = [0, 64], sizes = [17, 16], strides = [1, 1]} : vector<17x96xf32> to vector<17x16xf32>
    %cst_25 = arith.constant dense<0.000000e+00> : vector<17x17xf32>
    %51 = tpu.matmul %48, %49, %cst_25 {dimension_numbers = #tpu.dot_dimension_numbers<[1], [1], [0], [0], [0, 0, 1, 0], [], []>} : vector<17x16xf32>, vector<17x16xf32>, vector<17x17xf32> -> vector<17x17xf32>
    %cst_26 = arith.constant 2.500000e-01 : f32
    %52 = vector.broadcast %cst_26 : f32 to vector<17x17xf32>
    %53 = arith.mulf %51, %52 : vector<17x17xf32>
    %cst_27 = arith.constant dense<0xFF800000> : vector<17xf32>
    %54 = vector.multi_reduction <maximumf>, %53, %cst_27 [1] : vector<17x17xf32> to vector<17xf32>
    %55 = vector.shape_cast %54 : vector<17xf32> to vector<17x1xf32>
    %56 = vector.broadcast %55 : vector<17x1xf32> to vector<17x17xf32>
    %57 = arith.subf %53, %56 : vector<17x17xf32>
    %58 = math.exp %57 : vector<17x17xf32>
    %cst_28 = arith.constant dense<0.000000e+00> : vector<17xf32>
    %59 = vector.multi_reduction <add>, %58, %cst_28 [1] : vector<17x17xf32> to vector<17xf32>
    %60 = vector.shape_cast %59 : vector<17xf32> to vector<17x1xf32>
    %61 = tpu.reciprocal %60 {approx = true} : vector<17x1xf32> -> vector<17x1xf32>
    %62 = vector.broadcast %61 : vector<17x1xf32> to vector<17x17xf32>
    %63 = arith.mulf %58, %62 : vector<17x17xf32>
    %cst_29 = arith.constant dense<0.000000e+00> : vector<17x16xf32>
    %64 = tpu.matmul %63, %50, %cst_29 {dimension_numbers = #tpu.dot_dimension_numbers<[1], [0], [0], [1], [0, 0, 1, 1], [], []>} : vector<17x17xf32>, vector<17x16xf32>, vector<17x16xf32> -> vector<17x16xf32>
    %65 = vector.extract_strided_slice %47 {offsets = [0, 16], sizes = [17, 16], strides = [1, 1]} : vector<17x96xf32> to vector<17x16xf32>
    %66 = vector.extract_strided_slice %47 {offsets = [0, 48], sizes = [17, 16], strides = [1, 1]} : vector<17x96xf32> to vector<17x16xf32>
    %67 = vector.extract_strided_slice %47 {offsets = [0, 80], sizes = [17, 16], strides = [1, 1]} : vector<17x96xf32> to vector<17x16xf32>
    %cst_30 = arith.constant dense<0.000000e+00> : vector<17x17xf32>
    %68 = tpu.matmul %65, %66, %cst_30 {dimension_numbers = #tpu.dot_dimension_numbers<[1], [1], [0], [0], [0, 0, 1, 0], [], []>} : vector<17x16xf32>, vector<17x16xf32>, vector<17x17xf32> -> vector<17x17xf32>
    %cst_31 = arith.constant 2.500000e-01 : f32
    %69 = vector.broadcast %cst_31 : f32 to vector<17x17xf32>
    %70 = arith.mulf %68, %69 : vector<17x17xf32>
    %cst_32 = arith.constant dense<0xFF800000> : vector<17xf32>
    %71 = vector.multi_reduction <maximumf>, %70, %cst_32 [1] : vector<17x17xf32> to vector<17xf32>
    %72 = vector.shape_cast %71 : vector<17xf32> to vector<17x1xf32>
    %73 = vector.broadcast %72 : vector<17x1xf32> to vector<17x17xf32>
    %74 = arith.subf %70, %73 : vector<17x17xf32>
    %75 = math.exp %74 : vector<17x17xf32>
    %cst_33 = arith.constant dense<0.000000e+00> : vector<17xf32>
    %76 = vector.multi_reduction <add>, %75, %cst_33 [1] : vector<17x17xf32> to vector<17xf32>
    %77 = vector.shape_cast %76 : vector<17xf32> to vector<17x1xf32>
    %78 = tpu.reciprocal %77 {approx = true} : vector<17x1xf32> -> vector<17x1xf32>
    %79 = vector.broadcast %78 : vector<17x1xf32> to vector<17x17xf32>
    %80 = arith.mulf %75, %79 : vector<17x17xf32>
    %cst_34 = arith.constant dense<0.000000e+00> : vector<17x16xf32>
    %81 = tpu.matmul %80, %67, %cst_34 {dimension_numbers = #tpu.dot_dimension_numbers<[1], [0], [0], [1], [0, 0, 1, 1], [], []>} : vector<17x17xf32>, vector<17x16xf32>, vector<17x16xf32> -> vector<17x16xf32>
    %82 = tpu.concatenate %64, %81 in 1 : vector<17x16xf32>, vector<17x16xf32> -> vector<17x32xf32>
    %83 = vector.extract_strided_slice %46 {offsets = [17, 0], sizes = [17, 96], strides = [1, 1]} : vector<34x96xf32> to vector<17x96xf32>
    %84 = vector.extract_strided_slice %83 {offsets = [0, 0], sizes = [17, 16], strides = [1, 1]} : vector<17x96xf32> to vector<17x16xf32>
    %85 = vector.extract_strided_slice %83 {offsets = [0, 32], sizes = [17, 16], strides = [1, 1]} : vector<17x96xf32> to vector<17x16xf32>
    %86 = vector.extract_strided_slice %83 {offsets = [0, 64], sizes = [17, 16], strides = [1, 1]} : vector<17x96xf32> to vector<17x16xf32>
    %cst_35 = arith.constant dense<0.000000e+00> : vector<17x17xf32>
    %87 = tpu.matmul %84, %85, %cst_35 {dimension_numbers = #tpu.dot_dimension_numbers<[1], [1], [0], [0], [0, 0, 1, 0], [], []>} : vector<17x16xf32>, vector<17x16xf32>, vector<17x17xf32> -> vector<17x17xf32>
    %cst_36 = arith.constant 2.500000e-01 : f32
    %88 = vector.broadcast %cst_36 : f32 to vector<17x17xf32>
    %89 = arith.mulf %87, %88 : vector<17x17xf32>
    %cst_37 = arith.constant dense<0xFF800000> : vector<17xf32>
    %90 = vector.multi_reduction <maximumf>, %89, %cst_37 [1] : vector<17x17xf32> to vector<17xf32>
    %91 = vector.shape_cast %90 : vector<17xf32> to vector<17x1xf32>
    %92 = vector.broadcast %91 : vector<17x1xf32> to vector<17x17xf32>
    %93 = arith.subf %89, %92 : vector<17x17xf32>
    %94 = math.exp %93 : vector<17x17xf32>
    %cst_38 = arith.constant dense<0.000000e+00> : vector<17xf32>
    %95 = vector.multi_reduction <add>, %94, %cst_38 [1] : vector<17x17xf32> to vector<17xf32>
    %96 = vector.shape_cast %95 : vector<17xf32> to vector<17x1xf32>
    %97 = tpu.reciprocal %96 {approx = true} : vector<17x1xf32> -> vector<17x1xf32>
    %98 = vector.broadcast %97 : vector<17x1xf32> to vector<17x17xf32>
    %99 = arith.mulf %94, %98 : vector<17x17xf32>
    %cst_39 = arith.constant dense<0.000000e+00> : vector<17x16xf32>
    %100 = tpu.matmul %99, %86, %cst_39 {dimension_numbers = #tpu.dot_dimension_numbers<[1], [0], [0], [1], [0, 0, 1, 1], [], []>} : vector<17x17xf32>, vector<17x16xf32>, vector<17x16xf32> -> vector<17x16xf32>
    %101 = vector.extract_strided_slice %83 {offsets = [0, 16], sizes = [17, 16], strides = [1, 1]} : vector<17x96xf32> to vector<17x16xf32>
    %102 = vector.extract_strided_slice %83 {offsets = [0, 48], sizes = [17, 16], strides = [1, 1]} : vector<17x96xf32> to vector<17x16xf32>
    %103 = vector.extract_strided_slice %83 {offsets = [0, 80], sizes = [17, 16], strides = [1, 1]} : vector<17x96xf32> to vector<17x16xf32>
    %cst_40 = arith.constant dense<0.000000e+00> : vector<17x17xf32>
    %104 = tpu.matmul %101, %102, %cst_40 {dimension_numbers = #tpu.dot_dimension_numbers<[1], [1], [0], [0], [0, 0, 1, 0], [], []>} : vector<17x16xf32>, vector<17x16xf32>, vector<17x17xf32> -> vector<17x17xf32>
    %cst_41 = arith.constant 2.500000e-01 : f32
    %105 = vector.broadcast %cst_41 : f32 to vector<17x17xf32>
    %106 = arith.mulf %104, %105 : vector<17x17xf32>
    %cst_42 = arith.constant dense<0xFF800000> : vector<17xf32>
    %107 = vector.multi_reduction <maximumf>, %106, %cst_42 [1] : vector<17x17xf32> to vector<17xf32>
    %108 = vector.shape_cast %107 : vector<17xf32> to vector<17x1xf32>
    %109 = vector.broadcast %108 : vector<17x1xf32> to vector<17x17xf32>
    %110 = arith.subf %106, %109 : vector<17x17xf32>
    %111 = math.exp %110 : vector<17x17xf32>
    %cst_43 = arith.constant dense<0.000000e+00> : vector<17xf32>
    %112 = vector.multi_reduction <add>, %111, %cst_43 [1] : vector<17x17xf32> to vector<17xf32>
    %113 = vector.shape_cast %112 : vector<17xf32> to vector<17x1xf32>
    %114 = tpu.reciprocal %113 {approx = true} : vector<17x1xf32> -> vector<17x1xf32>
    %115 = vector.broadcast %114 : vector<17x1xf32> to vector<17x17xf32>
    %116 = arith.mulf %111, %115 : vector<17x17xf32>
    %cst_44 = arith.constant dense<0.000000e+00> : vector<17x16xf32>
    %117 = tpu.matmul %116, %103, %cst_44 {dimension_numbers = #tpu.dot_dimension_numbers<[1], [0], [0], [1], [0, 0, 1, 1], [], []>} : vector<17x17xf32>, vector<17x16xf32>, vector<17x16xf32> -> vector<17x16xf32>
    %118 = tpu.concatenate %100, %117 in 1 : vector<17x16xf32>, vector<17x16xf32> -> vector<17x32xf32>
    %119 = tpu.concatenate %82, %118 in 0 : vector<17x32xf32>, vector<17x32xf32> -> vector<34x32xf32>
    %c0_45 = arith.constant 0 : index
    %c0_46 = arith.constant 0 : index
    %c0_47 = arith.constant 0 : index
    %c0_48 = arith.constant 0 : index
    %120 = vector.load %arg7[%c0_45, %c0_46, %c0_47, %c0_48] : memref<1x3x32x32xf32, #tpu.memory_space<vmem>>, vector<1x1x32x32xf32>
    %121 = vector.shape_cast %120 : vector<1x1x32x32xf32> to vector<32x32xf32>
    %cst_49 = arith.constant dense<0.000000e+00> : vector<34x32xf32>
    %122 = tpu.matmul %119, %121, %cst_49 {dimension_numbers = #tpu.dot_dimension_numbers<[1], [0], [0], [1], [0, 0, 1, 1], [], []>} : vector<34x32xf32>, vector<32x32xf32>, vector<34x32xf32> -> vector<34x32xf32>
    %123 = vector.broadcast %16 : vector<1x32xf32> to vector<34x32xf32>
    %124 = arith.addf %122, %123 : vector<34x32xf32>
    %125 = arith.addf %11, %124 : vector<34x32xf32>
    %cst_50 = arith.constant dense<0.000000e+00> : vector<34xf32>
    %126 = vector.multi_reduction <add>, %125, %cst_50 [1] : vector<34x32xf32> to vector<34xf32>
    %127 = vector.shape_cast %126 : vector<34xf32> to vector<34x1xf32>
    %cst_51 = arith.constant 3.200000e+01 : f32
    %128 = vector.broadcast %cst_51 : f32 to vector<34x1xf32>
    %129 = arith.divf %127, %128 : vector<34x1xf32>
    %130 = vector.broadcast %129 : vector<34x1xf32> to vector<34x32xf32>
    %131 = arith.subf %125, %130 : vector<34x32xf32>
    %132 = arith.mulf %131, %131 : vector<34x32xf32>
    %cst_52 = arith.constant dense<0.000000e+00> : vector<34xf32>
    %133 = vector.multi_reduction <add>, %132, %cst_52 [1] : vector<34x32xf32> to vector<34xf32>
    %134 = vector.shape_cast %133 : vector<34xf32> to vector<34x1xf32>
    %cst_53 = arith.constant 3.200000e+01 : f32
    %135 = vector.broadcast %cst_53 : f32 to vector<34x1xf32>
    %136 = arith.divf %134, %135 : vector<34x1xf32>
    %137 = vector.broadcast %129 : vector<34x1xf32> to vector<34x32xf32>
    %138 = arith.subf %125, %137 : vector<34x32xf32>
    %cst_54 = arith.constant 9.99999997E-7 : f32
    %139 = vector.broadcast %cst_54 : f32 to vector<34x1xf32>
    %140 = arith.addf %136, %139 : vector<34x1xf32>
    %141 = math.rsqrt %140 : vector<34x1xf32>
    %142 = vector.broadcast %141 : vector<34x1xf32> to vector<34x32xf32>
    %143 = arith.mulf %138, %142 : vector<34x32xf32>
    %144 = vector.broadcast %14 : vector<1x32xf32> to vector<34x32xf32>
    %145 = arith.mulf %143, %144 : vector<34x32xf32>
    %146 = vector.broadcast %15 : vector<1x32xf32> to vector<34x32xf32>
    %147 = arith.addf %145, %146 : vector<34x32xf32>
    %c0_55 = arith.constant 0 : index
    %c0_56 = arith.constant 0 : index
    %c0_57 = arith.constant 0 : index
    %c0_58 = arith.constant 0 : index
    %148 = vector.load %arg8[%c0_55, %c0_56, %c0_57, %c0_58] : memref<1x3x32x128xf32, #tpu.memory_space<vmem>>, vector<1x1x32x128xf32>
    %149 = vector.shape_cast %148 : vector<1x1x32x128xf32> to vector<32x128xf32>
    %cst_59 = arith.constant dense<0.000000e+00> : vector<34x128xf32>
    %150 = tpu.matmul %147, %149, %cst_59 {dimension_numbers = #tpu.dot_dimension_numbers<[1], [0], [0], [1], [0, 0, 1, 1], [], []>} : vector<34x32xf32>, vector<32x128xf32>, vector<34x128xf32> -> vector<34x128xf32>
    %c0_60 = arith.constant 0 : index
    %c0_61 = arith.constant 0 : index
    %c0_62 = arith.constant 0 : index
    %c0_63 = arith.constant 0 : index
    %151 = vector.load %arg9[%c0_60, %c0_61, %c0_62, %c0_63] : memref<1x3x1x128xf32, #tpu.memory_space<vmem>>, vector<1x1x1x128xf32>
    %152 = vector.shape_cast %151 : vector<1x1x1x128xf32> to vector<1x128xf32>
    %153 = vector.broadcast %152 : vector<1x128xf32> to vector<34x128xf32>
    %154 = arith.addf %150, %153 : vector<34x128xf32>
    %155 = arith.mulf %154, %154 : vector<34x128xf32>
    %156 = arith.mulf %154, %155 : vector<34x128xf32>
    %cst_64 = arith.constant 4.471500e-02 : f32
    %157 = vector.broadcast %cst_64 : f32 to vector<34x128xf32>
    %158 = arith.mulf %157, %156 : vector<34x128xf32>
    %159 = arith.addf %154, %158 : vector<34x128xf32>
    %cst_65 = arith.constant 0.797884583 : f32
    %160 = vector.broadcast %cst_65 : f32 to vector<34x128xf32>
    %161 = arith.mulf %160, %159 : vector<34x128xf32>
    %162 = math.tanh %161 : vector<34x128xf32>
    %cst_66 = arith.constant 1.000000e+00 : f32
    %163 = vector.broadcast %cst_66 : f32 to vector<34x128xf32>
    %164 = arith.addf %163, %162 : vector<34x128xf32>
    %cst_67 = arith.constant 5.000000e-01 : f32
    %165 = vector.broadcast %cst_67 : f32 to vector<34x128xf32>
    %166 = arith.mulf %165, %164 : vector<34x128xf32>
    %167 = arith.mulf %154, %166 : vector<34x128xf32>
    %c0_68 = arith.constant 0 : index
    %c0_69 = arith.constant 0 : index
    %c0_70 = arith.constant 0 : index
    %c0_71 = arith.constant 0 : index
    %168 = vector.load %arg10[%c0_68, %c0_69, %c0_70, %c0_71] : memref<1x3x128x32xf32, #tpu.memory_space<vmem>>, vector<1x1x128x32xf32>
    %169 = vector.shape_cast %168 : vector<1x1x128x32xf32> to vector<128x32xf32>
    %cst_72 = arith.constant dense<0.000000e+00> : vector<34x32xf32>
    %170 = tpu.matmul %167, %169, %cst_72 {dimension_numbers = #tpu.dot_dimension_numbers<[1], [0], [0], [1], [0, 0, 1, 1], [], []>} : vector<34x128xf32>, vector<128x32xf32>, vector<34x32xf32> -> vector<34x32xf32>
    %171 = vector.broadcast %17 : vector<1x32xf32> to vector<34x32xf32>
    %172 = arith.addf %170, %171 : vector<34x32xf32>
    %173 = arith.addf %125, %172 : vector<34x32xf32>
    %c0_i32 = arith.constant 0 : i32
    %174 = arith.cmpi eq, %1, %c0_i32 : i32
    %175 = arith.extui %174 : i1 to i32
    %c0_i32_73 = arith.constant 0 : i32
    %176 = arith.cmpi ne, %175, %c0_i32_73 : i32
    scf.if %176 {
      %575 = vector.extract_strided_slice %46 {offsets = [0, 0], sizes = [34, 32], strides = [1, 1]} : vector<34x96xf32> to vector<34x32xf32>
      %576 = arith.mulf %575, %575 : vector<34x32xf32>
      %cst_217 = arith.constant dense<0.000000e+00> : vector<34xf32>
      %577 = vector.multi_reduction <add>, %576, %cst_217 [1] : vector<34x32xf32> to vector<34xf32>
      %578 = vector.shape_cast %577 : vector<34xf32> to vector<34x1xf32>
      %cst_218 = arith.constant 1.000000e-24 : f32
      %579 = vector.broadcast %cst_218 : f32 to vector<34x1xf32>
      %580 = arith.maximumf %578, %579 : vector<34x1xf32>
      %581 = math.rsqrt %580 : vector<34x1xf32>
      %582 = vector.broadcast %581 : vector<34x1xf32> to vector<34x32xf32>
      %583 = arith.mulf %575, %582 : vector<34x32xf32>
      %584 = vector.extract_strided_slice %46 {offsets = [0, 32], sizes = [34, 32], strides = [1, 1]} : vector<34x96xf32> to vector<34x32xf32>
      %585 = arith.mulf %584, %584 : vector<34x32xf32>
      %cst_219 = arith.constant dense<0.000000e+00> : vector<34xf32>
      %586 = vector.multi_reduction <add>, %585, %cst_219 [1] : vector<34x32xf32> to vector<34xf32>
      %587 = vector.shape_cast %586 : vector<34xf32> to vector<34x1xf32>
      %cst_220 = arith.constant 1.000000e-24 : f32
      %588 = vector.broadcast %cst_220 : f32 to vector<34x1xf32>
      %589 = arith.maximumf %587, %588 : vector<34x1xf32>
      %590 = math.rsqrt %589 : vector<34x1xf32>
      %591 = vector.broadcast %590 : vector<34x1xf32> to vector<34x32xf32>
      %592 = arith.mulf %584, %591 : vector<34x32xf32>
      %593 = vector.extract_strided_slice %46 {offsets = [0, 64], sizes = [34, 32], strides = [1, 1]} : vector<34x96xf32> to vector<34x32xf32>
      %594 = arith.mulf %593, %593 : vector<34x32xf32>
      %cst_221 = arith.constant dense<0.000000e+00> : vector<34xf32>
      %595 = vector.multi_reduction <add>, %594, %cst_221 [1] : vector<34x32xf32> to vector<34xf32>
      %596 = vector.shape_cast %595 : vector<34xf32> to vector<34x1xf32>
      %cst_222 = arith.constant 1.000000e-24 : f32
      %597 = vector.broadcast %cst_222 : f32 to vector<34x1xf32>
      %598 = arith.maximumf %596, %597 : vector<34x1xf32>
      %599 = math.rsqrt %598 : vector<34x1xf32>
      %600 = vector.broadcast %599 : vector<34x1xf32> to vector<34x32xf32>
      %601 = arith.mulf %593, %600 : vector<34x32xf32>
      %602 = arith.mulf %173, %173 : vector<34x32xf32>
      %cst_223 = arith.constant dense<0.000000e+00> : vector<34xf32>
      %603 = vector.multi_reduction <add>, %602, %cst_223 [1] : vector<34x32xf32> to vector<34xf32>
      %604 = vector.shape_cast %603 : vector<34xf32> to vector<34x1xf32>
      %cst_224 = arith.constant 1.000000e-24 : f32
      %605 = vector.broadcast %cst_224 : f32 to vector<34x1xf32>
      %606 = arith.maximumf %604, %605 : vector<34x1xf32>
      %607 = math.rsqrt %606 : vector<34x1xf32>
      %608 = vector.broadcast %607 : vector<34x1xf32> to vector<34x32xf32>
      %609 = arith.mulf %173, %608 : vector<34x32xf32>
      %610 = tpu.concatenate %583, %592, %601, %609 in 1 : vector<34x32xf32>, vector<34x32xf32>, vector<34x32xf32>, vector<34x32xf32> -> vector<34x128xf32>
      %c0_225 = arith.constant 0 : index
      %c0_226 = arith.constant 0 : index
      %c0_227 = arith.constant 0 : index
      %611 = vector.load %arg12[%c0_225, %c0_226, %c0_227] : memref<1x34x128xf32, #tpu.memory_space<vmem>>, vector<1x34x128xf32>
      %612 = vector.shape_cast %611 : vector<1x34x128xf32> to vector<34x128xf32>
      %613 = vector.shape_cast %610 : vector<34x128xf32> to vector<1x34x128xf32>
      tpu.vector_store %arg12[%c0_225, %c0_226, %c0_227], %613 {strides = array<i32>} : memref<1x34x128xf32, #tpu.memory_space<vmem>>, vector<1x34x128xf32>,
    } else {
    }
    %177 = vector.extract_strided_slice %3 {offsets = [6, 0], sizes = [1, 32], strides = [1, 1]} : vector<20x32xf32> to vector<1x32xf32>
    %178 = vector.extract_strided_slice %3 {offsets = [7, 0], sizes = [1, 32], strides = [1, 1]} : vector<20x32xf32> to vector<1x32xf32>
    %179 = vector.extract_strided_slice %3 {offsets = [8, 0], sizes = [1, 32], strides = [1, 1]} : vector<20x32xf32> to vector<1x32xf32>
    %180 = vector.extract_strided_slice %3 {offsets = [9, 0], sizes = [1, 32], strides = [1, 1]} : vector<20x32xf32> to vector<1x32xf32>
    %181 = vector.extract_strided_slice %3 {offsets = [10, 0], sizes = [1, 32], strides = [1, 1]} : vector<20x32xf32> to vector<1x32xf32>
    %182 = vector.extract_strided_slice %3 {offsets = [11, 0], sizes = [1, 32], strides = [1, 1]} : vector<20x32xf32> to vector<1x32xf32>
    %cst_74 = arith.constant dense<0.000000e+00> : vector<34xf32>
    %183 = vector.multi_reduction <add>, %173, %cst_74 [1] : vector<34x32xf32> to vector<34xf32>
    %184 = vector.shape_cast %183 : vector<34xf32> to vector<34x1xf32>
    %cst_75 = arith.constant 3.200000e+01 : f32
    %185 = vector.broadcast %cst_75 : f32 to vector<34x1xf32>
    %186 = arith.divf %184, %185 : vector<34x1xf32>
    %187 = vector.broadcast %186 : vector<34x1xf32> to vector<34x32xf32>
    %188 = arith.subf %173, %187 : vector<34x32xf32>
    %189 = arith.mulf %188, %188 : vector<34x32xf32>
    %cst_76 = arith.constant dense<0.000000e+00> : vector<34xf32>
    %190 = vector.multi_reduction <add>, %189, %cst_76 [1] : vector<34x32xf32> to vector<34xf32>
    %191 = vector.shape_cast %190 : vector<34xf32> to vector<34x1xf32>
    %cst_77 = arith.constant 3.200000e+01 : f32
    %192 = vector.broadcast %cst_77 : f32 to vector<34x1xf32>
    %193 = arith.divf %191, %192 : vector<34x1xf32>
    %194 = vector.broadcast %186 : vector<34x1xf32> to vector<34x32xf32>
    %195 = arith.subf %173, %194 : vector<34x32xf32>
    %cst_78 = arith.constant 9.99999997E-7 : f32
    %196 = vector.broadcast %cst_78 : f32 to vector<34x1xf32>
    %197 = arith.addf %193, %196 : vector<34x1xf32>
    %198 = math.rsqrt %197 : vector<34x1xf32>
    %199 = vector.broadcast %198 : vector<34x1xf32> to vector<34x32xf32>
    %200 = arith.mulf %195, %199 : vector<34x32xf32>
    %201 = vector.broadcast %177 : vector<1x32xf32> to vector<34x32xf32>
    %202 = arith.mulf %200, %201 : vector<34x32xf32>
    %203 = vector.broadcast %178 : vector<1x32xf32> to vector<34x32xf32>
    %204 = arith.addf %202, %203 : vector<34x32xf32>
    %c0_79 = arith.constant 0 : index
    %c1 = arith.constant 1 : index
    %c0_80 = arith.constant 0 : index
    %c0_81 = arith.constant 0 : index
    %205 = vector.load %arg5[%c0_79, %c1, %c0_80, %c0_81] : memref<1x3x32x96xf32, #tpu.memory_space<vmem>>, vector<1x1x32x96xf32>
    %206 = vector.shape_cast %205 : vector<1x1x32x96xf32> to vector<32x96xf32>
    %cst_82 = arith.constant dense<0.000000e+00> : vector<34x96xf32>
    %207 = tpu.matmul %204, %206, %cst_82 {dimension_numbers = #tpu.dot_dimension_numbers<[1], [0], [0], [1], [0, 0, 1, 1], [], []>} : vector<34x32xf32>, vector<32x96xf32>, vector<34x96xf32> -> vector<34x96xf32>
    %c0_83 = arith.constant 0 : index
    %c1_84 = arith.constant 1 : index
    %c0_85 = arith.constant 0 : index
    %c0_86 = arith.constant 0 : index
    %208 = vector.load %arg6[%c0_83, %c1_84, %c0_85, %c0_86] : memref<1x3x1x96xf32, #tpu.memory_space<vmem>>, vector<1x1x1x96xf32>
    %209 = vector.shape_cast %208 : vector<1x1x1x96xf32> to vector<1x96xf32>
    %210 = vector.broadcast %209 : vector<1x96xf32> to vector<34x96xf32>
    %211 = arith.addf %207, %210 : vector<34x96xf32>
    %212 = vector.extract_strided_slice %211 {offsets = [0, 0], sizes = [17, 96], strides = [1, 1]} : vector<34x96xf32> to vector<17x96xf32>
    %213 = vector.extract_strided_slice %212 {offsets = [0, 0], sizes = [17, 16], strides = [1, 1]} : vector<17x96xf32> to vector<17x16xf32>
    %214 = vector.extract_strided_slice %212 {offsets = [0, 32], sizes = [17, 16], strides = [1, 1]} : vector<17x96xf32> to vector<17x16xf32>
    %215 = vector.extract_strided_slice %212 {offsets = [0, 64], sizes = [17, 16], strides = [1, 1]} : vector<17x96xf32> to vector<17x16xf32>
    %cst_87 = arith.constant dense<0.000000e+00> : vector<17x17xf32>
    %216 = tpu.matmul %213, %214, %cst_87 {dimension_numbers = #tpu.dot_dimension_numbers<[1], [1], [0], [0], [0, 0, 1, 0], [], []>} : vector<17x16xf32>, vector<17x16xf32>, vector<17x17xf32> -> vector<17x17xf32>
    %cst_88 = arith.constant 2.500000e-01 : f32
    %217 = vector.broadcast %cst_88 : f32 to vector<17x17xf32>
    %218 = arith.mulf %216, %217 : vector<17x17xf32>
    %cst_89 = arith.constant dense<0xFF800000> : vector<17xf32>
    %219 = vector.multi_reduction <maximumf>, %218, %cst_89 [1] : vector<17x17xf32> to vector<17xf32>
    %220 = vector.shape_cast %219 : vector<17xf32> to vector<17x1xf32>
    %221 = vector.broadcast %220 : vector<17x1xf32> to vector<17x17xf32>
    %222 = arith.subf %218, %221 : vector<17x17xf32>
    %223 = math.exp %222 : vector<17x17xf32>
    %cst_90 = arith.constant dense<0.000000e+00> : vector<17xf32>
    %224 = vector.multi_reduction <add>, %223, %cst_90 [1] : vector<17x17xf32> to vector<17xf32>
    %225 = vector.shape_cast %224 : vector<17xf32> to vector<17x1xf32>
    %226 = tpu.reciprocal %225 {approx = true} : vector<17x1xf32> -> vector<17x1xf32>
    %227 = vector.broadcast %226 : vector<17x1xf32> to vector<17x17xf32>
    %228 = arith.mulf %223, %227 : vector<17x17xf32>
    %cst_91 = arith.constant dense<0.000000e+00> : vector<17x16xf32>
    %229 = tpu.matmul %228, %215, %cst_91 {dimension_numbers = #tpu.dot_dimension_numbers<[1], [0], [0], [1], [0, 0, 1, 1], [], []>} : vector<17x17xf32>, vector<17x16xf32>, vector<17x16xf32> -> vector<17x16xf32>
    %230 = vector.extract_strided_slice %212 {offsets = [0, 16], sizes = [17, 16], strides = [1, 1]} : vector<17x96xf32> to vector<17x16xf32>
    %231 = vector.extract_strided_slice %212 {offsets = [0, 48], sizes = [17, 16], strides = [1, 1]} : vector<17x96xf32> to vector<17x16xf32>
    %232 = vector.extract_strided_slice %212 {offsets = [0, 80], sizes = [17, 16], strides = [1, 1]} : vector<17x96xf32> to vector<17x16xf32>
    %cst_92 = arith.constant dense<0.000000e+00> : vector<17x17xf32>
    %233 = tpu.matmul %230, %231, %cst_92 {dimension_numbers = #tpu.dot_dimension_numbers<[1], [1], [0], [0], [0, 0, 1, 0], [], []>} : vector<17x16xf32>, vector<17x16xf32>, vector<17x17xf32> -> vector<17x17xf32>
    %cst_93 = arith.constant 2.500000e-01 : f32
    %234 = vector.broadcast %cst_93 : f32 to vector<17x17xf32>
    %235 = arith.mulf %233, %234 : vector<17x17xf32>
    %cst_94 = arith.constant dense<0xFF800000> : vector<17xf32>
    %236 = vector.multi_reduction <maximumf>, %235, %cst_94 [1] : vector<17x17xf32> to vector<17xf32>
    %237 = vector.shape_cast %236 : vector<17xf32> to vector<17x1xf32>
    %238 = vector.broadcast %237 : vector<17x1xf32> to vector<17x17xf32>
    %239 = arith.subf %235, %238 : vector<17x17xf32>
    %240 = math.exp %239 : vector<17x17xf32>
    %cst_95 = arith.constant dense<0.000000e+00> : vector<17xf32>
    %241 = vector.multi_reduction <add>, %240, %cst_95 [1] : vector<17x17xf32> to vector<17xf32>
    %242 = vector.shape_cast %241 : vector<17xf32> to vector<17x1xf32>
    %243 = tpu.reciprocal %242 {approx = true} : vector<17x1xf32> -> vector<17x1xf32>
    %244 = vector.broadcast %243 : vector<17x1xf32> to vector<17x17xf32>
    %245 = arith.mulf %240, %244 : vector<17x17xf32>
    %cst_96 = arith.constant dense<0.000000e+00> : vector<17x16xf32>
    %246 = tpu.matmul %245, %232, %cst_96 {dimension_numbers = #tpu.dot_dimension_numbers<[1], [0], [0], [1], [0, 0, 1, 1], [], []>} : vector<17x17xf32>, vector<17x16xf32>, vector<17x16xf32> -> vector<17x16xf32>
    %247 = tpu.concatenate %229, %246 in 1 : vector<17x16xf32>, vector<17x16xf32> -> vector<17x32xf32>
    %248 = vector.extract_strided_slice %211 {offsets = [17, 0], sizes = [17, 96], strides = [1, 1]} : vector<34x96xf32> to vector<17x96xf32>
    %249 = vector.extract_strided_slice %248 {offsets = [0, 0], sizes = [17, 16], strides = [1, 1]} : vector<17x96xf32> to vector<17x16xf32>
    %250 = vector.extract_strided_slice %248 {offsets = [0, 32], sizes = [17, 16], strides = [1, 1]} : vector<17x96xf32> to vector<17x16xf32>
    %251 = vector.extract_strided_slice %248 {offsets = [0, 64], sizes = [17, 16], strides = [1, 1]} : vector<17x96xf32> to vector<17x16xf32>
    %cst_97 = arith.constant dense<0.000000e+00> : vector<17x17xf32>
    %252 = tpu.matmul %249, %250, %cst_97 {dimension_numbers = #tpu.dot_dimension_numbers<[1], [1], [0], [0], [0, 0, 1, 0], [], []>} : vector<17x16xf32>, vector<17x16xf32>, vector<17x17xf32> -> vector<17x17xf32>
    %cst_98 = arith.constant 2.500000e-01 : f32
    %253 = vector.broadcast %cst_98 : f32 to vector<17x17xf32>
    %254 = arith.mulf %252, %253 : vector<17x17xf32>
    %cst_99 = arith.constant dense<0xFF800000> : vector<17xf32>
    %255 = vector.multi_reduction <maximumf>, %254, %cst_99 [1] : vector<17x17xf32> to vector<17xf32>
    %256 = vector.shape_cast %255 : vector<17xf32> to vector<17x1xf32>
    %257 = vector.broadcast %256 : vector<17x1xf32> to vector<17x17xf32>
    %258 = arith.subf %254, %257 : vector<17x17xf32>
    %259 = math.exp %258 : vector<17x17xf32>
    %cst_100 = arith.constant dense<0.000000e+00> : vector<17xf32>
    %260 = vector.multi_reduction <add>, %259, %cst_100 [1] : vector<17x17xf32> to vector<17xf32>
    %261 = vector.shape_cast %260 : vector<17xf32> to vector<17x1xf32>
    %262 = tpu.reciprocal %261 {approx = true} : vector<17x1xf32> -> vector<17x1xf32>
    %263 = vector.broadcast %262 : vector<17x1xf32> to vector<17x17xf32>
    %264 = arith.mulf %259, %263 : vector<17x17xf32>
    %cst_101 = arith.constant dense<0.000000e+00> : vector<17x16xf32>
    %265 = tpu.matmul %264, %251, %cst_101 {dimension_numbers = #tpu.dot_dimension_numbers<[1], [0], [0], [1], [0, 0, 1, 1], [], []>} : vector<17x17xf32>, vector<17x16xf32>, vector<17x16xf32> -> vector<17x16xf32>
    %266 = vector.extract_strided_slice %248 {offsets = [0, 16], sizes = [17, 16], strides = [1, 1]} : vector<17x96xf32> to vector<17x16xf32>
    %267 = vector.extract_strided_slice %248 {offsets = [0, 48], sizes = [17, 16], strides = [1, 1]} : vector<17x96xf32> to vector<17x16xf32>
    %268 = vector.extract_strided_slice %248 {offsets = [0, 80], sizes = [17, 16], strides = [1, 1]} : vector<17x96xf32> to vector<17x16xf32>
    %cst_102 = arith.constant dense<0.000000e+00> : vector<17x17xf32>
    %269 = tpu.matmul %266, %267, %cst_102 {dimension_numbers = #tpu.dot_dimension_numbers<[1], [1], [0], [0], [0, 0, 1, 0], [], []>} : vector<17x16xf32>, vector<17x16xf32>, vector<17x17xf32> -> vector<17x17xf32>
    %cst_103 = arith.constant 2.500000e-01 : f32
    %270 = vector.broadcast %cst_103 : f32 to vector<17x17xf32>
    %271 = arith.mulf %269, %270 : vector<17x17xf32>
    %cst_104 = arith.constant dense<0xFF800000> : vector<17xf32>
    %272 = vector.multi_reduction <maximumf>, %271, %cst_104 [1] : vector<17x17xf32> to vector<17xf32>
    %273 = vector.shape_cast %272 : vector<17xf32> to vector<17x1xf32>
    %274 = vector.broadcast %273 : vector<17x1xf32> to vector<17x17xf32>
    %275 = arith.subf %271, %274 : vector<17x17xf32>
    %276 = math.exp %275 : vector<17x17xf32>
    %cst_105 = arith.constant dense<0.000000e+00> : vector<17xf32>
    %277 = vector.multi_reduction <add>, %276, %cst_105 [1] : vector<17x17xf32> to vector<17xf32>
    %278 = vector.shape_cast %277 : vector<17xf32> to vector<17x1xf32>
    %279 = tpu.reciprocal %278 {approx = true} : vector<17x1xf32> -> vector<17x1xf32>
    %280 = vector.broadcast %279 : vector<17x1xf32> to vector<17x17xf32>
    %281 = arith.mulf %276, %280 : vector<17x17xf32>
    %cst_106 = arith.constant dense<0.000000e+00> : vector<17x16xf32>
    %282 = tpu.matmul %281, %268, %cst_106 {dimension_numbers = #tpu.dot_dimension_numbers<[1], [0], [0], [1], [0, 0, 1, 1], [], []>} : vector<17x17xf32>, vector<17x16xf32>, vector<17x16xf32> -> vector<17x16xf32>
    %283 = tpu.concatenate %265, %282 in 1 : vector<17x16xf32>, vector<17x16xf32> -> vector<17x32xf32>
    %284 = tpu.concatenate %247, %283 in 0 : vector<17x32xf32>, vector<17x32xf32> -> vector<34x32xf32>
    %c0_107 = arith.constant 0 : index
    %c1_108 = arith.constant 1 : index
    %c0_109 = arith.constant 0 : index
    %c0_110 = arith.constant 0 : index
    %285 = vector.load %arg7[%c0_107, %c1_108, %c0_109, %c0_110] : memref<1x3x32x32xf32, #tpu.memory_space<vmem>>, vector<1x1x32x32xf32>
    %286 = vector.shape_cast %285 : vector<1x1x32x32xf32> to vector<32x32xf32>
    %cst_111 = arith.constant dense<0.000000e+00> : vector<34x32xf32>
    %287 = tpu.matmul %284, %286, %cst_111 {dimension_numbers = #tpu.dot_dimension_numbers<[1], [0], [0], [1], [0, 0, 1, 1], [], []>} : vector<34x32xf32>, vector<32x32xf32>, vector<34x32xf32> -> vector<34x32xf32>
    %288 = vector.broadcast %181 : vector<1x32xf32> to vector<34x32xf32>
    %289 = arith.addf %287, %288 : vector<34x32xf32>
    %290 = arith.addf %173, %289 : vector<34x32xf32>
    %cst_112 = arith.constant dense<0.000000e+00> : vector<34xf32>
    %291 = vector.multi_reduction <add>, %290, %cst_112 [1] : vector<34x32xf32> to vector<34xf32>
    %292 = vector.shape_cast %291 : vector<34xf32> to vector<34x1xf32>
    %cst_113 = arith.constant 3.200000e+01 : f32
    %293 = vector.broadcast %cst_113 : f32 to vector<34x1xf32>
    %294 = arith.divf %292, %293 : vector<34x1xf32>
    %295 = vector.broadcast %294 : vector<34x1xf32> to vector<34x32xf32>
    %296 = arith.subf %290, %295 : vector<34x32xf32>
    %297 = arith.mulf %296, %296 : vector<34x32xf32>
    %cst_114 = arith.constant dense<0.000000e+00> : vector<34xf32>
    %298 = vector.multi_reduction <add>, %297, %cst_114 [1] : vector<34x32xf32> to vector<34xf32>
    %299 = vector.shape_cast %298 : vector<34xf32> to vector<34x1xf32>
    %cst_115 = arith.constant 3.200000e+01 : f32
    %300 = vector.broadcast %cst_115 : f32 to vector<34x1xf32>
    %301 = arith.divf %299, %300 : vector<34x1xf32>
    %302 = vector.broadcast %294 : vector<34x1xf32> to vector<34x32xf32>
    %303 = arith.subf %290, %302 : vector<34x32xf32>
    %cst_116 = arith.constant 9.99999997E-7 : f32
    %304 = vector.broadcast %cst_116 : f32 to vector<34x1xf32>
    %305 = arith.addf %301, %304 : vector<34x1xf32>
    %306 = math.rsqrt %305 : vector<34x1xf32>
    %307 = vector.broadcast %306 : vector<34x1xf32> to vector<34x32xf32>
    %308 = arith.mulf %303, %307 : vector<34x32xf32>
    %309 = vector.broadcast %179 : vector<1x32xf32> to vector<34x32xf32>
    %310 = arith.mulf %308, %309 : vector<34x32xf32>
    %311 = vector.broadcast %180 : vector<1x32xf32> to vector<34x32xf32>
    %312 = arith.addf %310, %311 : vector<34x32xf32>
    %c0_117 = arith.constant 0 : index
    %c1_118 = arith.constant 1 : index
    %c0_119 = arith.constant 0 : index
    %c0_120 = arith.constant 0 : index
    %313 = vector.load %arg8[%c0_117, %c1_118, %c0_119, %c0_120] : memref<1x3x32x128xf32, #tpu.memory_space<vmem>>, vector<1x1x32x128xf32>
    %314 = vector.shape_cast %313 : vector<1x1x32x128xf32> to vector<32x128xf32>
    %cst_121 = arith.constant dense<0.000000e+00> : vector<34x128xf32>
    %315 = tpu.matmul %312, %314, %cst_121 {dimension_numbers = #tpu.dot_dimension_numbers<[1], [0], [0], [1], [0, 0, 1, 1], [], []>} : vector<34x32xf32>, vector<32x128xf32>, vector<34x128xf32> -> vector<34x128xf32>
    %c0_122 = arith.constant 0 : index
    %c1_123 = arith.constant 1 : index
    %c0_124 = arith.constant 0 : index
    %c0_125 = arith.constant 0 : index
    %316 = vector.load %arg9[%c0_122, %c1_123, %c0_124, %c0_125] : memref<1x3x1x128xf32, #tpu.memory_space<vmem>>, vector<1x1x1x128xf32>
    %317 = vector.shape_cast %316 : vector<1x1x1x128xf32> to vector<1x128xf32>
    %318 = vector.broadcast %317 : vector<1x128xf32> to vector<34x128xf32>
    %319 = arith.addf %315, %318 : vector<34x128xf32>
    %320 = arith.mulf %319, %319 : vector<34x128xf32>
    %321 = arith.mulf %319, %320 : vector<34x128xf32>
    %cst_126 = arith.constant 4.471500e-02 : f32
    %322 = vector.broadcast %cst_126 : f32 to vector<34x128xf32>
    %323 = arith.mulf %322, %321 : vector<34x128xf32>
    %324 = arith.addf %319, %323 : vector<34x128xf32>
    %cst_127 = arith.constant 0.797884583 : f32
    %325 = vector.broadcast %cst_127 : f32 to vector<34x128xf32>
    %326 = arith.mulf %325, %324 : vector<34x128xf32>
    %327 = math.tanh %326 : vector<34x128xf32>
    %cst_128 = arith.constant 1.000000e+00 : f32
    %328 = vector.broadcast %cst_128 : f32 to vector<34x128xf32>
    %329 = arith.addf %328, %327 : vector<34x128xf32>
    %cst_129 = arith.constant 5.000000e-01 : f32
    %330 = vector.broadcast %cst_129 : f32 to vector<34x128xf32>
    %331 = arith.mulf %330, %329 : vector<34x128xf32>
    %332 = arith.mulf %319, %331 : vector<34x128xf32>
    %c0_130 = arith.constant 0 : index
    %c1_131 = arith.constant 1 : index
    %c0_132 = arith.constant 0 : index
    %c0_133 = arith.constant 0 : index
    %333 = vector.load %arg10[%c0_130, %c1_131, %c0_132, %c0_133] : memref<1x3x128x32xf32, #tpu.memory_space<vmem>>, vector<1x1x128x32xf32>
    %334 = vector.shape_cast %333 : vector<1x1x128x32xf32> to vector<128x32xf32>
    %cst_134 = arith.constant dense<0.000000e+00> : vector<34x32xf32>
    %335 = tpu.matmul %332, %334, %cst_134 {dimension_numbers = #tpu.dot_dimension_numbers<[1], [0], [0], [1], [0, 0, 1, 1], [], []>} : vector<34x128xf32>, vector<128x32xf32>, vector<34x32xf32> -> vector<34x32xf32>
    %336 = vector.broadcast %182 : vector<1x32xf32> to vector<34x32xf32>
    %337 = arith.addf %335, %336 : vector<34x32xf32>
    %338 = arith.addf %290, %337 : vector<34x32xf32>
    %c1_i32 = arith.constant 1 : i32
    %339 = arith.cmpi eq, %1, %c1_i32 : i32
    %340 = arith.extui %339 : i1 to i32
    %c0_i32_135 = arith.constant 0 : i32
    %341 = arith.cmpi ne, %340, %c0_i32_135 : i32
    scf.if %341 {
      %575 = vector.extract_strided_slice %211 {offsets = [0, 0], sizes = [34, 32], strides = [1, 1]} : vector<34x96xf32> to vector<34x32xf32>
      %576 = arith.mulf %575, %575 : vector<34x32xf32>
      %cst_217 = arith.constant dense<0.000000e+00> : vector<34xf32>
      %577 = vector.multi_reduction <add>, %576, %cst_217 [1] : vector<34x32xf32> to vector<34xf32>
      %578 = vector.shape_cast %577 : vector<34xf32> to vector<34x1xf32>
      %cst_218 = arith.constant 1.000000e-24 : f32
      %579 = vector.broadcast %cst_218 : f32 to vector<34x1xf32>
      %580 = arith.maximumf %578, %579 : vector<34x1xf32>
      %581 = math.rsqrt %580 : vector<34x1xf32>
      %582 = vector.broadcast %581 : vector<34x1xf32> to vector<34x32xf32>
      %583 = arith.mulf %575, %582 : vector<34x32xf32>
      %584 = vector.extract_strided_slice %211 {offsets = [0, 32], sizes = [34, 32], strides = [1, 1]} : vector<34x96xf32> to vector<34x32xf32>
      %585 = arith.mulf %584, %584 : vector<34x32xf32>
      %cst_219 = arith.constant dense<0.000000e+00> : vector<34xf32>
      %586 = vector.multi_reduction <add>, %585, %cst_219 [1] : vector<34x32xf32> to vector<34xf32>
      %587 = vector.shape_cast %586 : vector<34xf32> to vector<34x1xf32>
      %cst_220 = arith.constant 1.000000e-24 : f32
      %588 = vector.broadcast %cst_220 : f32 to vector<34x1xf32>
      %589 = arith.maximumf %587, %588 : vector<34x1xf32>
      %590 = math.rsqrt %589 : vector<34x1xf32>
      %591 = vector.broadcast %590 : vector<34x1xf32> to vector<34x32xf32>
      %592 = arith.mulf %584, %591 : vector<34x32xf32>
      %593 = vector.extract_strided_slice %211 {offsets = [0, 64], sizes = [34, 32], strides = [1, 1]} : vector<34x96xf32> to vector<34x32xf32>
      %594 = arith.mulf %593, %593 : vector<34x32xf32>
      %cst_221 = arith.constant dense<0.000000e+00> : vector<34xf32>
      %595 = vector.multi_reduction <add>, %594, %cst_221 [1] : vector<34x32xf32> to vector<34xf32>
      %596 = vector.shape_cast %595 : vector<34xf32> to vector<34x1xf32>
      %cst_222 = arith.constant 1.000000e-24 : f32
      %597 = vector.broadcast %cst_222 : f32 to vector<34x1xf32>
      %598 = arith.maximumf %596, %597 : vector<34x1xf32>
      %599 = math.rsqrt %598 : vector<34x1xf32>
      %600 = vector.broadcast %599 : vector<34x1xf32> to vector<34x32xf32>
      %601 = arith.mulf %593, %600 : vector<34x32xf32>
      %602 = arith.mulf %338, %338 : vector<34x32xf32>
      %cst_223 = arith.constant dense<0.000000e+00> : vector<34xf32>
      %603 = vector.multi_reduction <add>, %602, %cst_223 [1] : vector<34x32xf32> to vector<34xf32>
      %604 = vector.shape_cast %603 : vector<34xf32> to vector<34x1xf32>
      %cst_224 = arith.constant 1.000000e-24 : f32
      %605 = vector.broadcast %cst_224 : f32 to vector<34x1xf32>
      %606 = arith.maximumf %604, %605 : vector<34x1xf32>
      %607 = math.rsqrt %606 : vector<34x1xf32>
      %608 = vector.broadcast %607 : vector<34x1xf32> to vector<34x32xf32>
      %609 = arith.mulf %338, %608 : vector<34x32xf32>
      %610 = tpu.concatenate %583, %592, %601, %609 in 1 : vector<34x32xf32>, vector<34x32xf32>, vector<34x32xf32>, vector<34x32xf32> -> vector<34x128xf32>
      %c0_225 = arith.constant 0 : index
      %c0_226 = arith.constant 0 : index
      %c0_227 = arith.constant 0 : index
      %611 = vector.load %arg12[%c0_225, %c0_226, %c0_227] : memref<1x34x128xf32, #tpu.memory_space<vmem>>, vector<1x34x128xf32>
      %612 = vector.shape_cast %611 : vector<1x34x128xf32> to vector<34x128xf32>
      %613 = vector.shape_cast %610 : vector<34x128xf32> to vector<1x34x128xf32>
      tpu.vector_store %arg12[%c0_225, %c0_226, %c0_227], %613 {strides = array<i32>} : memref<1x34x128xf32, #tpu.memory_space<vmem>>, vector<1x34x128xf32>,
    } else {
    }
    %342 = vector.extract_strided_slice %3 {offsets = [12, 0], sizes = [1, 32], strides = [1, 1]} : vector<20x32xf32> to vector<1x32xf32>
    %343 = vector.extract_strided_slice %3 {offsets = [13, 0], sizes = [1, 32], strides = [1, 1]} : vector<20x32xf32> to vector<1x32xf32>
    %344 = vector.extract_strided_slice %3 {offsets = [14, 0], sizes = [1, 32], strides = [1, 1]} : vector<20x32xf32> to vector<1x32xf32>
    %345 = vector.extract_strided_slice %3 {offsets = [15, 0], sizes = [1, 32], strides = [1, 1]} : vector<20x32xf32> to vector<1x32xf32>
    %346 = vector.extract_strided_slice %3 {offsets = [16, 0], sizes = [1, 32], strides = [1, 1]} : vector<20x32xf32> to vector<1x32xf32>
    %347 = vector.extract_strided_slice %3 {offsets = [17, 0], sizes = [1, 32], strides = [1, 1]} : vector<20x32xf32> to vector<1x32xf32>
    %cst_136 = arith.constant dense<0.000000e+00> : vector<34xf32>
    %348 = vector.multi_reduction <add>, %338, %cst_136 [1] : vector<34x32xf32> to vector<34xf32>
    %349 = vector.shape_cast %348 : vector<34xf32> to vector<34x1xf32>
    %cst_137 = arith.constant 3.200000e+01 : f32
    %350 = vector.broadcast %cst_137 : f32 to vector<34x1xf32>
    %351 = arith.divf %349, %350 : vector<34x1xf32>
    %352 = vector.broadcast %351 : vector<34x1xf32> to vector<34x32xf32>
    %353 = arith.subf %338, %352 : vector<34x32xf32>
    %354 = arith.mulf %353, %353 : vector<34x32xf32>
    %cst_138 = arith.constant dense<0.000000e+00> : vector<34xf32>
    %355 = vector.multi_reduction <add>, %354, %cst_138 [1] : vector<34x32xf32> to vector<34xf32>
    %356 = vector.shape_cast %355 : vector<34xf32> to vector<34x1xf32>
    %cst_139 = arith.constant 3.200000e+01 : f32
    %357 = vector.broadcast %cst_139 : f32 to vector<34x1xf32>
    %358 = arith.divf %356, %357 : vector<34x1xf32>
    %359 = vector.broadcast %351 : vector<34x1xf32> to vector<34x32xf32>
    %360 = arith.subf %338, %359 : vector<34x32xf32>
    %cst_140 = arith.constant 9.99999997E-7 : f32
    %361 = vector.broadcast %cst_140 : f32 to vector<34x1xf32>
    %362 = arith.addf %358, %361 : vector<34x1xf32>
    %363 = math.rsqrt %362 : vector<34x1xf32>
    %364 = vector.broadcast %363 : vector<34x1xf32> to vector<34x32xf32>
    %365 = arith.mulf %360, %364 : vector<34x32xf32>
    %366 = vector.broadcast %342 : vector<1x32xf32> to vector<34x32xf32>
    %367 = arith.mulf %365, %366 : vector<34x32xf32>
    %368 = vector.broadcast %343 : vector<1x32xf32> to vector<34x32xf32>
    %369 = arith.addf %367, %368 : vector<34x32xf32>
    %c0_141 = arith.constant 0 : index
    %c2 = arith.constant 2 : index
    %c0_142 = arith.constant 0 : index
    %c0_143 = arith.constant 0 : index
    %370 = vector.load %arg5[%c0_141, %c2, %c0_142, %c0_143] : memref<1x3x32x96xf32, #tpu.memory_space<vmem>>, vector<1x1x32x96xf32>
    %371 = vector.shape_cast %370 : vector<1x1x32x96xf32> to vector<32x96xf32>
    %cst_144 = arith.constant dense<0.000000e+00> : vector<34x96xf32>
    %372 = tpu.matmul %369, %371, %cst_144 {dimension_numbers = #tpu.dot_dimension_numbers<[1], [0], [0], [1], [0, 0, 1, 1], [], []>} : vector<34x32xf32>, vector<32x96xf32>, vector<34x96xf32> -> vector<34x96xf32>
    %c0_145 = arith.constant 0 : index
    %c2_146 = arith.constant 2 : index
    %c0_147 = arith.constant 0 : index
    %c0_148 = arith.constant 0 : index
    %373 = vector.load %arg6[%c0_145, %c2_146, %c0_147, %c0_148] : memref<1x3x1x96xf32, #tpu.memory_space<vmem>>, vector<1x1x1x96xf32>
    %374 = vector.shape_cast %373 : vector<1x1x1x96xf32> to vector<1x96xf32>
    %375 = vector.broadcast %374 : vector<1x96xf32> to vector<34x96xf32>
    %376 = arith.addf %372, %375 : vector<34x96xf32>
    %377 = vector.extract_strided_slice %376 {offsets = [0, 0], sizes = [17, 96], strides = [1, 1]} : vector<34x96xf32> to vector<17x96xf32>
    %378 = vector.extract_strided_slice %377 {offsets = [0, 0], sizes = [17, 16], strides = [1, 1]} : vector<17x96xf32> to vector<17x16xf32>
    %379 = vector.extract_strided_slice %377 {offsets = [0, 32], sizes = [17, 16], strides = [1, 1]} : vector<17x96xf32> to vector<17x16xf32>
    %380 = vector.extract_strided_slice %377 {offsets = [0, 64], sizes = [17, 16], strides = [1, 1]} : vector<17x96xf32> to vector<17x16xf32>
    %cst_149 = arith.constant dense<0.000000e+00> : vector<17x17xf32>
    %381 = tpu.matmul %378, %379, %cst_149 {dimension_numbers = #tpu.dot_dimension_numbers<[1], [1], [0], [0], [0, 0, 1, 0], [], []>} : vector<17x16xf32>, vector<17x16xf32>, vector<17x17xf32> -> vector<17x17xf32>
    %cst_150 = arith.constant 2.500000e-01 : f32
    %382 = vector.broadcast %cst_150 : f32 to vector<17x17xf32>
    %383 = arith.mulf %381, %382 : vector<17x17xf32>
    %cst_151 = arith.constant dense<0xFF800000> : vector<17xf32>
    %384 = vector.multi_reduction <maximumf>, %383, %cst_151 [1] : vector<17x17xf32> to vector<17xf32>
    %385 = vector.shape_cast %384 : vector<17xf32> to vector<17x1xf32>
    %386 = vector.broadcast %385 : vector<17x1xf32> to vector<17x17xf32>
    %387 = arith.subf %383, %386 : vector<17x17xf32>
    %388 = math.exp %387 : vector<17x17xf32>
    %cst_152 = arith.constant dense<0.000000e+00> : vector<17xf32>
    %389 = vector.multi_reduction <add>, %388, %cst_152 [1] : vector<17x17xf32> to vector<17xf32>
    %390 = vector.shape_cast %389 : vector<17xf32> to vector<17x1xf32>
    %391 = tpu.reciprocal %390 {approx = true} : vector<17x1xf32> -> vector<17x1xf32>
    %392 = vector.broadcast %391 : vector<17x1xf32> to vector<17x17xf32>
    %393 = arith.mulf %388, %392 : vector<17x17xf32>
    %cst_153 = arith.constant dense<0.000000e+00> : vector<17x16xf32>
    %394 = tpu.matmul %393, %380, %cst_153 {dimension_numbers = #tpu.dot_dimension_numbers<[1], [0], [0], [1], [0, 0, 1, 1], [], []>} : vector<17x17xf32>, vector<17x16xf32>, vector<17x16xf32> -> vector<17x16xf32>
    %395 = vector.extract_strided_slice %377 {offsets = [0, 16], sizes = [17, 16], strides = [1, 1]} : vector<17x96xf32> to vector<17x16xf32>
    %396 = vector.extract_strided_slice %377 {offsets = [0, 48], sizes = [17, 16], strides = [1, 1]} : vector<17x96xf32> to vector<17x16xf32>
    %397 = vector.extract_strided_slice %377 {offsets = [0, 80], sizes = [17, 16], strides = [1, 1]} : vector<17x96xf32> to vector<17x16xf32>
    %cst_154 = arith.constant dense<0.000000e+00> : vector<17x17xf32>
    %398 = tpu.matmul %395, %396, %cst_154 {dimension_numbers = #tpu.dot_dimension_numbers<[1], [1], [0], [0], [0, 0, 1, 0], [], []>} : vector<17x16xf32>, vector<17x16xf32>, vector<17x17xf32> -> vector<17x17xf32>
    %cst_155 = arith.constant 2.500000e-01 : f32
    %399 = vector.broadcast %cst_155 : f32 to vector<17x17xf32>
    %400 = arith.mulf %398, %399 : vector<17x17xf32>
    %cst_156 = arith.constant dense<0xFF800000> : vector<17xf32>
    %401 = vector.multi_reduction <maximumf>, %400, %cst_156 [1] : vector<17x17xf32> to vector<17xf32>
    %402 = vector.shape_cast %401 : vector<17xf32> to vector<17x1xf32>
    %403 = vector.broadcast %402 : vector<17x1xf32> to vector<17x17xf32>
    %404 = arith.subf %400, %403 : vector<17x17xf32>
    %405 = math.exp %404 : vector<17x17xf32>
    %cst_157 = arith.constant dense<0.000000e+00> : vector<17xf32>
    %406 = vector.multi_reduction <add>, %405, %cst_157 [1] : vector<17x17xf32> to vector<17xf32>
    %407 = vector.shape_cast %406 : vector<17xf32> to vector<17x1xf32>
    %408 = tpu.reciprocal %407 {approx = true} : vector<17x1xf32> -> vector<17x1xf32>
    %409 = vector.broadcast %408 : vector<17x1xf32> to vector<17x17xf32>
    %410 = arith.mulf %405, %409 : vector<17x17xf32>
    %cst_158 = arith.constant dense<0.000000e+00> : vector<17x16xf32>
    %411 = tpu.matmul %410, %397, %cst_158 {dimension_numbers = #tpu.dot_dimension_numbers<[1], [0], [0], [1], [0, 0, 1, 1], [], []>} : vector<17x17xf32>, vector<17x16xf32>, vector<17x16xf32> -> vector<17x16xf32>
    %412 = tpu.concatenate %394, %411 in 1 : vector<17x16xf32>, vector<17x16xf32> -> vector<17x32xf32>
    %413 = vector.extract_strided_slice %376 {offsets = [17, 0], sizes = [17, 96], strides = [1, 1]} : vector<34x96xf32> to vector<17x96xf32>
    %414 = vector.extract_strided_slice %413 {offsets = [0, 0], sizes = [17, 16], strides = [1, 1]} : vector<17x96xf32> to vector<17x16xf32>
    %415 = vector.extract_strided_slice %413 {offsets = [0, 32], sizes = [17, 16], strides = [1, 1]} : vector<17x96xf32> to vector<17x16xf32>
    %416 = vector.extract_strided_slice %413 {offsets = [0, 64], sizes = [17, 16], strides = [1, 1]} : vector<17x96xf32> to vector<17x16xf32>
    %cst_159 = arith.constant dense<0.000000e+00> : vector<17x17xf32>
    %417 = tpu.matmul %414, %415, %cst_159 {dimension_numbers = #tpu.dot_dimension_numbers<[1], [1], [0], [0], [0, 0, 1, 0], [], []>} : vector<17x16xf32>, vector<17x16xf32>, vector<17x17xf32> -> vector<17x17xf32>
    %cst_160 = arith.constant 2.500000e-01 : f32
    %418 = vector.broadcast %cst_160 : f32 to vector<17x17xf32>
    %419 = arith.mulf %417, %418 : vector<17x17xf32>
    %cst_161 = arith.constant dense<0xFF800000> : vector<17xf32>
    %420 = vector.multi_reduction <maximumf>, %419, %cst_161 [1] : vector<17x17xf32> to vector<17xf32>
    %421 = vector.shape_cast %420 : vector<17xf32> to vector<17x1xf32>
    %422 = vector.broadcast %421 : vector<17x1xf32> to vector<17x17xf32>
    %423 = arith.subf %419, %422 : vector<17x17xf32>
    %424 = math.exp %423 : vector<17x17xf32>
    %cst_162 = arith.constant dense<0.000000e+00> : vector<17xf32>
    %425 = vector.multi_reduction <add>, %424, %cst_162 [1] : vector<17x17xf32> to vector<17xf32>
    %426 = vector.shape_cast %425 : vector<17xf32> to vector<17x1xf32>
    %427 = tpu.reciprocal %426 {approx = true} : vector<17x1xf32> -> vector<17x1xf32>
    %428 = vector.broadcast %427 : vector<17x1xf32> to vector<17x17xf32>
    %429 = arith.mulf %424, %428 : vector<17x17xf32>
    %cst_163 = arith.constant dense<0.000000e+00> : vector<17x16xf32>
    %430 = tpu.matmul %429, %416, %cst_163 {dimension_numbers = #tpu.dot_dimension_numbers<[1], [0], [0], [1], [0, 0, 1, 1], [], []>} : vector<17x17xf32>, vector<17x16xf32>, vector<17x16xf32> -> vector<17x16xf32>
    %431 = vector.extract_strided_slice %413 {offsets = [0, 16], sizes = [17, 16], strides = [1, 1]} : vector<17x96xf32> to vector<17x16xf32>
    %432 = vector.extract_strided_slice %413 {offsets = [0, 48], sizes = [17, 16], strides = [1, 1]} : vector<17x96xf32> to vector<17x16xf32>
    %433 = vector.extract_strided_slice %413 {offsets = [0, 80], sizes = [17, 16], strides = [1, 1]} : vector<17x96xf32> to vector<17x16xf32>
    %cst_164 = arith.constant dense<0.000000e+00> : vector<17x17xf32>
    %434 = tpu.matmul %431, %432, %cst_164 {dimension_numbers = #tpu.dot_dimension_numbers<[1], [1], [0], [0], [0, 0, 1, 0], [], []>} : vector<17x16xf32>, vector<17x16xf32>, vector<17x17xf32> -> vector<17x17xf32>
    %cst_165 = arith.constant 2.500000e-01 : f32
    %435 = vector.broadcast %cst_165 : f32 to vector<17x17xf32>
    %436 = arith.mulf %434, %435 : vector<17x17xf32>
    %cst_166 = arith.constant dense<0xFF800000> : vector<17xf32>
    %437 = vector.multi_reduction <maximumf>, %436, %cst_166 [1] : vector<17x17xf32> to vector<17xf32>
    %438 = vector.shape_cast %437 : vector<17xf32> to vector<17x1xf32>
    %439 = vector.broadcast %438 : vector<17x1xf32> to vector<17x17xf32>
    %440 = arith.subf %436, %439 : vector<17x17xf32>
    %441 = math.exp %440 : vector<17x17xf32>
    %cst_167 = arith.constant dense<0.000000e+00> : vector<17xf32>
    %442 = vector.multi_reduction <add>, %441, %cst_167 [1] : vector<17x17xf32> to vector<17xf32>
    %443 = vector.shape_cast %442 : vector<17xf32> to vector<17x1xf32>
    %444 = tpu.reciprocal %443 {approx = true} : vector<17x1xf32> -> vector<17x1xf32>
    %445 = vector.broadcast %444 : vector<17x1xf32> to vector<17x17xf32>
    %446 = arith.mulf %441, %445 : vector<17x17xf32>
    %cst_168 = arith.constant dense<0.000000e+00> : vector<17x16xf32>
    %447 = tpu.matmul %446, %433, %cst_168 {dimension_numbers = #tpu.dot_dimension_numbers<[1], [0], [0], [1], [0, 0, 1, 1], [], []>} : vector<17x17xf32>, vector<17x16xf32>, vector<17x16xf32> -> vector<17x16xf32>
    %448 = tpu.concatenate %430, %447 in 1 : vector<17x16xf32>, vector<17x16xf32> -> vector<17x32xf32>
    %449 = tpu.concatenate %412, %448 in 0 : vector<17x32xf32>, vector<17x32xf32> -> vector<34x32xf32>
    %c0_169 = arith.constant 0 : index
    %c2_170 = arith.constant 2 : index
    %c0_171 = arith.constant 0 : index
    %c0_172 = arith.constant 0 : index
    %450 = vector.load %arg7[%c0_169, %c2_170, %c0_171, %c0_172] : memref<1x3x32x32xf32, #tpu.memory_space<vmem>>, vector<1x1x32x32xf32>
    %451 = vector.shape_cast %450 : vector<1x1x32x32xf32> to vector<32x32xf32>
    %cst_173 = arith.constant dense<0.000000e+00> : vector<34x32xf32>
    %452 = tpu.matmul %449, %451, %cst_173 {dimension_numbers = #tpu.dot_dimension_numbers<[1], [0], [0], [1], [0, 0, 1, 1], [], []>} : vector<34x32xf32>, vector<32x32xf32>, vector<34x32xf32> -> vector<34x32xf32>
    %453 = vector.broadcast %346 : vector<1x32xf32> to vector<34x32xf32>
    %454 = arith.addf %452, %453 : vector<34x32xf32>
    %455 = arith.addf %338, %454 : vector<34x32xf32>
    %cst_174 = arith.constant dense<0.000000e+00> : vector<34xf32>
    %456 = vector.multi_reduction <add>, %455, %cst_174 [1] : vector<34x32xf32> to vector<34xf32>
    %457 = vector.shape_cast %456 : vector<34xf32> to vector<34x1xf32>
    %cst_175 = arith.constant 3.200000e+01 : f32
    %458 = vector.broadcast %cst_175 : f32 to vector<34x1xf32>
    %459 = arith.divf %457, %458 : vector<34x1xf32>
    %460 = vector.broadcast %459 : vector<34x1xf32> to vector<34x32xf32>
    %461 = arith.subf %455, %460 : vector<34x32xf32>
    %462 = arith.mulf %461, %461 : vector<34x32xf32>
    %cst_176 = arith.constant dense<0.000000e+00> : vector<34xf32>
    %463 = vector.multi_reduction <add>, %462, %cst_176 [1] : vector<34x32xf32> to vector<34xf32>
    %464 = vector.shape_cast %463 : vector<34xf32> to vector<34x1xf32>
    %cst_177 = arith.constant 3.200000e+01 : f32
    %465 = vector.broadcast %cst_177 : f32 to vector<34x1xf32>
    %466 = arith.divf %464, %465 : vector<34x1xf32>
    %467 = vector.broadcast %459 : vector<34x1xf32> to vector<34x32xf32>
    %468 = arith.subf %455, %467 : vector<34x32xf32>
    %cst_178 = arith.constant 9.99999997E-7 : f32
    %469 = vector.broadcast %cst_178 : f32 to vector<34x1xf32>
    %470 = arith.addf %466, %469 : vector<34x1xf32>
    %471 = math.rsqrt %470 : vector<34x1xf32>
    %472 = vector.broadcast %471 : vector<34x1xf32> to vector<34x32xf32>
    %473 = arith.mulf %468, %472 : vector<34x32xf32>
    %474 = vector.broadcast %344 : vector<1x32xf32> to vector<34x32xf32>
    %475 = arith.mulf %473, %474 : vector<34x32xf32>
    %476 = vector.broadcast %345 : vector<1x32xf32> to vector<34x32xf32>
    %477 = arith.addf %475, %476 : vector<34x32xf32>
    %c0_179 = arith.constant 0 : index
    %c2_180 = arith.constant 2 : index
    %c0_181 = arith.constant 0 : index
    %c0_182 = arith.constant 0 : index
    %478 = vector.load %arg8[%c0_179, %c2_180, %c0_181, %c0_182] : memref<1x3x32x128xf32, #tpu.memory_space<vmem>>, vector<1x1x32x128xf32>
    %479 = vector.shape_cast %478 : vector<1x1x32x128xf32> to vector<32x128xf32>
    %cst_183 = arith.constant dense<0.000000e+00> : vector<34x128xf32>
    %480 = tpu.matmul %477, %479, %cst_183 {dimension_numbers = #tpu.dot_dimension_numbers<[1], [0], [0], [1], [0, 0, 1, 1], [], []>} : vector<34x32xf32>, vector<32x128xf32>, vector<34x128xf32> -> vector<34x128xf32>
    %c0_184 = arith.constant 0 : index
    %c2_185 = arith.constant 2 : index
    %c0_186 = arith.constant 0 : index
    %c0_187 = arith.constant 0 : index
    %481 = vector.load %arg9[%c0_184, %c2_185, %c0_186, %c0_187] : memref<1x3x1x128xf32, #tpu.memory_space<vmem>>, vector<1x1x1x128xf32>
    %482 = vector.shape_cast %481 : vector<1x1x1x128xf32> to vector<1x128xf32>
    %483 = vector.broadcast %482 : vector<1x128xf32> to vector<34x128xf32>
    %484 = arith.addf %480, %483 : vector<34x128xf32>
    %485 = arith.mulf %484, %484 : vector<34x128xf32>
    %486 = arith.mulf %484, %485 : vector<34x128xf32>
    %cst_188 = arith.constant 4.471500e-02 : f32
    %487 = vector.broadcast %cst_188 : f32 to vector<34x128xf32>
    %488 = arith.mulf %487, %486 : vector<34x128xf32>
    %489 = arith.addf %484, %488 : vector<34x128xf32>
    %cst_189 = arith.constant 0.797884583 : f32
    %490 = vector.broadcast %cst_189 : f32 to vector<34x128xf32>
    %491 = arith.mulf %490, %489 : vector<34x128xf32>
    %492 = math.tanh %491 : vector<34x128xf32>
    %cst_190 = arith.constant 1.000000e+00 : f32
    %493 = vector.broadcast %cst_190 : f32 to vector<34x128xf32>
    %494 = arith.addf %493, %492 : vector<34x128xf32>
    %cst_191 = arith.constant 5.000000e-01 : f32
    %495 = vector.broadcast %cst_191 : f32 to vector<34x128xf32>
    %496 = arith.mulf %495, %494 : vector<34x128xf32>
    %497 = arith.mulf %484, %496 : vector<34x128xf32>
    %c0_192 = arith.constant 0 : index
    %c2_193 = arith.constant 2 : index
    %c0_194 = arith.constant 0 : index
    %c0_195 = arith.constant 0 : index
    %498 = vector.load %arg10[%c0_192, %c2_193, %c0_194, %c0_195] : memref<1x3x128x32xf32, #tpu.memory_space<vmem>>, vector<1x1x128x32xf32>
    %499 = vector.shape_cast %498 : vector<1x1x128x32xf32> to vector<128x32xf32>
    %cst_196 = arith.constant dense<0.000000e+00> : vector<34x32xf32>
    %500 = tpu.matmul %497, %499, %cst_196 {dimension_numbers = #tpu.dot_dimension_numbers<[1], [0], [0], [1], [0, 0, 1, 1], [], []>} : vector<34x128xf32>, vector<128x32xf32>, vector<34x32xf32> -> vector<34x32xf32>
    %501 = vector.broadcast %347 : vector<1x32xf32> to vector<34x32xf32>
    %502 = arith.addf %500, %501 : vector<34x32xf32>
    %503 = arith.addf %455, %502 : vector<34x32xf32>
    %c2_i32 = arith.constant 2 : i32
    %504 = arith.cmpi eq, %1, %c2_i32 : i32
    %505 = arith.extui %504 : i1 to i32
    %c0_i32_197 = arith.constant 0 : i32
    %506 = arith.cmpi ne, %505, %c0_i32_197 : i32
    scf.if %506 {
      %575 = vector.extract_strided_slice %376 {offsets = [0, 0], sizes = [34, 32], strides = [1, 1]} : vector<34x96xf32> to vector<34x32xf32>
      %576 = arith.mulf %575, %575 : vector<34x32xf32>
      %cst_217 = arith.constant dense<0.000000e+00> : vector<34xf32>
      %577 = vector.multi_reduction <add>, %576, %cst_217 [1] : vector<34x32xf32> to vector<34xf32>
      %578 = vector.shape_cast %577 : vector<34xf32> to vector<34x1xf32>
      %cst_218 = arith.constant 1.000000e-24 : f32
      %579 = vector.broadcast %cst_218 : f32 to vector<34x1xf32>
      %580 = arith.maximumf %578, %579 : vector<34x1xf32>
      %581 = math.rsqrt %580 : vector<34x1xf32>
      %582 = vector.broadcast %581 : vector<34x1xf32> to vector<34x32xf32>
      %583 = arith.mulf %575, %582 : vector<34x32xf32>
      %584 = vector.extract_strided_slice %376 {offsets = [0, 32], sizes = [34, 32], strides = [1, 1]} : vector<34x96xf32> to vector<34x32xf32>
      %585 = arith.mulf %584, %584 : vector<34x32xf32>
      %cst_219 = arith.constant dense<0.000000e+00> : vector<34xf32>
      %586 = vector.multi_reduction <add>, %585, %cst_219 [1] : vector<34x32xf32> to vector<34xf32>
      %587 = vector.shape_cast %586 : vector<34xf32> to vector<34x1xf32>
      %cst_220 = arith.constant 1.000000e-24 : f32
      %588 = vector.broadcast %cst_220 : f32 to vector<34x1xf32>
      %589 = arith.maximumf %587, %588 : vector<34x1xf32>
      %590 = math.rsqrt %589 : vector<34x1xf32>
      %591 = vector.broadcast %590 : vector<34x1xf32> to vector<34x32xf32>
      %592 = arith.mulf %584, %591 : vector<34x32xf32>
      %593 = vector.extract_strided_slice %376 {offsets = [0, 64], sizes = [34, 32], strides = [1, 1]} : vector<34x96xf32> to vector<34x32xf32>
      %594 = arith.mulf %593, %593 : vector<34x32xf32>
      %cst_221 = arith.constant dense<0.000000e+00> : vector<34xf32>
      %595 = vector.multi_reduction <add>, %594, %cst_221 [1] : vector<34x32xf32> to vector<34xf32>
      %596 = vector.shape_cast %595 : vector<34xf32> to vector<34x1xf32>
      %cst_222 = arith.constant 1.000000e-24 : f32
      %597 = vector.broadcast %cst_222 : f32 to vector<34x1xf32>
      %598 = arith.maximumf %596, %597 : vector<34x1xf32>
      %599 = math.rsqrt %598 : vector<34x1xf32>
      %600 = vector.broadcast %599 : vector<34x1xf32> to vector<34x32xf32>
      %601 = arith.mulf %593, %600 : vector<34x32xf32>
      %602 = arith.mulf %503, %503 : vector<34x32xf32>
      %cst_223 = arith.constant dense<0.000000e+00> : vector<34xf32>
      %603 = vector.multi_reduction <add>, %602, %cst_223 [1] : vector<34x32xf32> to vector<34xf32>
      %604 = vector.shape_cast %603 : vector<34xf32> to vector<34x1xf32>
      %cst_224 = arith.constant 1.000000e-24 : f32
      %605 = vector.broadcast %cst_224 : f32 to vector<34x1xf32>
      %606 = arith.maximumf %604, %605 : vector<34x1xf32>
      %607 = math.rsqrt %606 : vector<34x1xf32>
      %608 = vector.broadcast %607 : vector<34x1xf32> to vector<34x32xf32>
      %609 = arith.mulf %503, %608 : vector<34x32xf32>
      %610 = tpu.concatenate %583, %592, %601, %609 in 1 : vector<34x32xf32>, vector<34x32xf32>, vector<34x32xf32>, vector<34x32xf32> -> vector<34x128xf32>
      %c0_225 = arith.constant 0 : index
      %c0_226 = arith.constant 0 : index
      %c0_227 = arith.constant 0 : index
      %611 = vector.load %arg12[%c0_225, %c0_226, %c0_227] : memref<1x34x128xf32, #tpu.memory_space<vmem>>, vector<1x34x128xf32>
      %612 = vector.shape_cast %611 : vector<1x34x128xf32> to vector<34x128xf32>
      %613 = vector.shape_cast %610 : vector<34x128xf32> to vector<1x34x128xf32>
      tpu.vector_store %arg12[%c0_225, %c0_226, %c0_227], %613 {strides = array<i32>} : memref<1x34x128xf32, #tpu.memory_space<vmem>>, vector<1x34x128xf32>,
    } else {
    }
    %507 = vector.extract_strided_slice %3 {offsets = [18, 0], sizes = [1, 32], strides = [1, 1]} : vector<20x32xf32> to vector<1x32xf32>
    %508 = vector.extract_strided_slice %3 {offsets = [19, 0], sizes = [1, 32], strides = [1, 1]} : vector<20x32xf32> to vector<1x32xf32>
    %509 = vector.extract_strided_slice %503 {offsets = [0, 0], sizes = [1, 32], strides = [1, 1]} : vector<34x32xf32> to vector<1x32xf32>
    %cst_198 = arith.constant dense<0.000000e+00> : vector<1xf32>
    %510 = vector.multi_reduction <add>, %509, %cst_198 [1] : vector<1x32xf32> to vector<1xf32>
    %511 = vector.shape_cast %510 : vector<1xf32> to vector<1x1xf32>
    %cst_199 = arith.constant 3.200000e+01 : f32
    %512 = vector.broadcast %cst_199 : f32 to vector<1x1xf32>
    %513 = arith.divf %511, %512 : vector<1x1xf32>
    %514 = vector.broadcast %513 : vector<1x1xf32> to vector<1x32xf32>
    %515 = arith.subf %509, %514 : vector<1x32xf32>
    %516 = arith.mulf %515, %515 : vector<1x32xf32>
    %cst_200 = arith.constant dense<0.000000e+00> : vector<1xf32>
    %517 = vector.multi_reduction <add>, %516, %cst_200 [1] : vector<1x32xf32> to vector<1xf32>
    %518 = vector.shape_cast %517 : vector<1xf32> to vector<1x1xf32>
    %cst_201 = arith.constant 3.200000e+01 : f32
    %519 = vector.broadcast %cst_201 : f32 to vector<1x1xf32>
    %520 = arith.divf %518, %519 : vector<1x1xf32>
    %521 = vector.broadcast %513 : vector<1x1xf32> to vector<1x32xf32>
    %522 = arith.subf %509, %521 : vector<1x32xf32>
    %cst_202 = arith.constant 9.99999997E-7 : f32
    %523 = vector.broadcast %cst_202 : f32 to vector<1x1xf32>
    %524 = arith.addf %520, %523 : vector<1x1xf32>
    %525 = math.rsqrt %524 : vector<1x1xf32>
    %526 = vector.broadcast %525 : vector<1x1xf32> to vector<1x32xf32>
    %527 = arith.mulf %522, %526 : vector<1x32xf32>
    %528 = arith.mulf %527, %507 : vector<1x32xf32>
    %529 = arith.addf %528, %508 : vector<1x32xf32>
    %530 = arith.mulf %529, %529 : vector<1x32xf32>
    %cst_203 = arith.constant dense<0.000000e+00> : vector<1xf32>
    %531 = vector.multi_reduction <add>, %530, %cst_203 [1] : vector<1x32xf32> to vector<1xf32>
    %532 = vector.shape_cast %531 : vector<1xf32> to vector<1x1xf32>
    %cst_204 = arith.constant 1.000000e-24 : f32
    %533 = vector.broadcast %cst_204 : f32 to vector<1x1xf32>
    %534 = arith.maximumf %532, %533 : vector<1x1xf32>
    %535 = math.rsqrt %534 : vector<1x1xf32>
    %536 = vector.broadcast %535 : vector<1x1xf32> to vector<1x32xf32>
    %537 = arith.mulf %529, %536 : vector<1x32xf32>
    %538 = tpu.concatenate %537, %537, %537, %537 in 1 : vector<1x32xf32>, vector<1x32xf32>, vector<1x32xf32>, vector<1x32xf32> -> vector<1x128xf32>
    %c0_205 = arith.constant 0 : index
    %c0_206 = arith.constant 0 : index
    %c0_207 = arith.constant 0 : index
    %539 = vector.load %arg12[%c0_205, %c0_206, %c0_207] : memref<1x34x128xf32, #tpu.memory_space<vmem>>, vector<1x1x128xf32>
    %540 = vector.shape_cast %539 : vector<1x1x128xf32> to vector<1x128xf32>
    %541 = vector.shape_cast %538 : vector<1x128xf32> to vector<1x1x128xf32>
    tpu.vector_store %arg12[%c0_205, %c0_206, %c0_207], %541 {strides = array<i32>} : memref<1x34x128xf32, #tpu.memory_space<vmem>>, vector<1x1x128xf32>,
    %542 = vector.extract_strided_slice %503 {offsets = [17, 0], sizes = [1, 32], strides = [1, 1]} : vector<34x32xf32> to vector<1x32xf32>
    %cst_208 = arith.constant dense<0.000000e+00> : vector<1xf32>
    %543 = vector.multi_reduction <add>, %542, %cst_208 [1] : vector<1x32xf32> to vector<1xf32>
    %544 = vector.shape_cast %543 : vector<1xf32> to vector<1x1xf32>
    %cst_209 = arith.constant 3.200000e+01 : f32
    %545 = vector.broadcast %cst_209 : f32 to vector<1x1xf32>
    %546 = arith.divf %544, %545 : vector<1x1xf32>
    %547 = vector.broadcast %546 : vector<1x1xf32> to vector<1x32xf32>
    %548 = arith.subf %542, %547 : vector<1x32xf32>
    %549 = arith.mulf %548, %548 : vector<1x32xf32>
    %cst_210 = arith.constant dense<0.000000e+00> : vector<1xf32>
    %550 = vector.multi_reduction <add>, %549, %cst_210 [1] : vector<1x32xf32> to vector<1xf32>
    %551 = vector.shape_cast %550 : vector<1xf32> to vector<1x1xf32>
    %cst_211 = arith.constant 3.200000e+01 : f32
    %552 = vector.broadcast %cst_211 : f32 to vector<1x1xf32>
    %553 = arith.divf %551, %552 : vector<1x1xf32>
    %554 = vector.broadcast %546 : vector<1x1xf32> to vector<1x32xf32>
    %555 = arith.subf %542, %554 : vector<1x32xf32>
    %cst_212 = arith.constant 9.99999997E-7 : f32
    %556 = vector.broadcast %cst_212 : f32 to vector<1x1xf32>
    %557 = arith.addf %553, %556 : vector<1x1xf32>
    %558 = math.rsqrt %557 : vector<1x1xf32>
    %559 = vector.broadcast %558 : vector<1x1xf32> to vector<1x32xf32>
    %560 = arith.mulf %555, %559 : vector<1x32xf32>
    %561 = arith.mulf %560, %507 : vector<1x32xf32>
    %562 = arith.addf %561, %508 : vector<1x32xf32>
    %563 = arith.mulf %562, %562 : vector<1x32xf32>
    %cst_213 = arith.constant dense<0.000000e+00> : vector<1xf32>
    %564 = vector.multi_reduction <add>, %563, %cst_213 [1] : vector<1x32xf32> to vector<1xf32>
    %565 = vector.shape_cast %564 : vector<1xf32> to vector<1x1xf32>
    %cst_214 = arith.constant 1.000000e-24 : f32
    %566 = vector.broadcast %cst_214 : f32 to vector<1x1xf32>
    %567 = arith.maximumf %565, %566 : vector<1x1xf32>
    %568 = math.rsqrt %567 : vector<1x1xf32>
    %569 = vector.broadcast %568 : vector<1x1xf32> to vector<1x32xf32>
    %570 = arith.mulf %562, %569 : vector<1x32xf32>
    %571 = tpu.concatenate %570, %570, %570, %570 in 1 : vector<1x32xf32>, vector<1x32xf32>, vector<1x32xf32>, vector<1x32xf32> -> vector<1x128xf32>
    %c0_215 = arith.constant 0 : index
    %c17 = arith.constant 17 : index
    %c0_216 = arith.constant 0 : index
    %572 = vector.load %arg12[%c0_215, %c17, %c0_216] : memref<1x34x128xf32, #tpu.memory_space<vmem>>, vector<1x1x128xf32>
    %573 = vector.shape_cast %572 : vector<1x1x128xf32> to vector<1x128xf32>
    %574 = vector.shape_cast %571 : vector<1x128xf32> to vector<1x1x128xf32>
    tpu.vector_store %arg12[%c0_215, %c17, %c0_216], %574 {strides = array<i32>} : memref<1x34x128xf32, #tpu.memory_space<vmem>>, vector<1x1x128xf32>,
    return
  }
  func.func @transform_0(%arg0: i32, %arg1: memref<2xi32, #tpu.memory_space<smem>>) -> (i32, i32, i32) {
    %c0_i32 = arith.constant 0 : i32
    %c0_i32_0 = arith.constant 0 : i32
    %c0_i32_1 = arith.constant 0 : i32
    return %arg0, %c0_i32, %c0_i32_0 : i32, i32, i32
  }
  func.func @transform_1(%arg0: i32, %arg1: memref<2xi32, #tpu.memory_space<smem>>) -> (i32, i32, i32) {
    %c0_i32 = arith.constant 0 : i32
    %c0_i32_0 = arith.constant 0 : i32
    %c0_i32_1 = arith.constant 0 : i32
    return %arg0, %c0_i32, %c0_i32_0 : i32, i32, i32
  }
  func.func @transform_2(%arg0: i32, %arg1: memref<2xi32, #tpu.memory_space<smem>>) -> (i32, i32, i32) {
    %c0_i32 = arith.constant 0 : i32
    %c0_i32_0 = arith.constant 0 : i32
    %c0_i32_1 = arith.constant 0 : i32
    return %arg0, %c0_i32, %c0_i32_0 : i32, i32, i32
  }
  func.func @transform_3(%arg0: i32, %arg1: memref<2xi32, #tpu.memory_space<smem>>) -> (i32, i32, i32, i32) {
    %c0_i32 = arith.constant 0 : i32
    %c0_i32_0 = arith.constant 0 : i32
    %c0_i32_1 = arith.constant 0 : i32
    %c0_i32_2 = arith.constant 0 : i32
    return %arg0, %c0_i32, %c0_i32_0, %c0_i32_1 : i32, i32, i32, i32
  }
  func.func @transform_4(%arg0: i32, %arg1: memref<2xi32, #tpu.memory_space<smem>>) -> (i32, i32, i32, i32) {
    %c0_i32 = arith.constant 0 : i32
    %c0_i32_0 = arith.constant 0 : i32
    %c0_i32_1 = arith.constant 0 : i32
    %c0_i32_2 = arith.constant 0 : i32
    return %arg0, %c0_i32, %c0_i32_0, %c0_i32_1 : i32, i32, i32, i32
  }
  func.func @transform_5(%arg0: i32, %arg1: memref<2xi32, #tpu.memory_space<smem>>) -> (i32, i32, i32, i32) {
    %c0_i32 = arith.constant 0 : i32
    %c0_i32_0 = arith.constant 0 : i32
    %c0_i32_1 = arith.constant 0 : i32
    %c0_i32_2 = arith.constant 0 : i32
    return %arg0, %c0_i32, %c0_i32_0, %c0_i32_1 : i32, i32, i32, i32
  }
  func.func @transform_6(%arg0: i32, %arg1: memref<2xi32, #tpu.memory_space<smem>>) -> (i32, i32, i32, i32) {
    %c0_i32 = arith.constant 0 : i32
    %c0_i32_0 = arith.constant 0 : i32
    %c0_i32_1 = arith.constant 0 : i32
    %c0_i32_2 = arith.constant 0 : i32
    return %arg0, %c0_i32, %c0_i32_0, %c0_i32_1 : i32, i32, i32, i32
  }
  func.func @transform_7(%arg0: i32, %arg1: memref<2xi32, #tpu.memory_space<smem>>) -> (i32, i32, i32, i32) {
    %c0_i32 = arith.constant 0 : i32
    %c0_i32_0 = arith.constant 0 : i32
    %c0_i32_1 = arith.constant 0 : i32
    %c0_i32_2 = arith.constant 0 : i32
    return %arg0, %c0_i32, %c0_i32_0, %c0_i32_1 : i32, i32, i32, i32
  }
  func.func @transform_8(%arg0: i32, %arg1: memref<2xi32, #tpu.memory_space<smem>>) -> (i32, i32, i32, i32) {
    %c0_i32 = arith.constant 0 : i32
    %c0_i32_0 = arith.constant 0 : i32
    %c0_i32_1 = arith.constant 0 : i32
    %c0_i32_2 = arith.constant 0 : i32
    return %arg0, %c0_i32, %c0_i32_0, %c0_i32_1 : i32, i32, i32, i32
  }
  func.func @transform_9(%arg0: i32, %arg1: memref<2xi32, #tpu.memory_space<smem>>) -> (i32, i32, i32) {
    %c0_i32 = arith.constant 0 : i32
    %c0_i32_0 = arith.constant 0 : i32
    %c0_i32_1 = arith.constant 0 : i32
    return %arg0, %c0_i32, %c0_i32_0 : i32, i32, i32
  }
  func.func @transform_10(%arg0: i32, %arg1: memref<2xi32, #tpu.memory_space<smem>>) -> (i32, i32, i32) {
    %c0_i32 = arith.constant 0 : i32
    %c0_i32_0 = arith.constant 0 : i32
    %c0_i32_1 = arith.constant 0 : i32
    return %arg0, %c0_i32, %c0_i32_0 : i32, i32, i32
  }
}

</mosaic_0001>

<llo_original>
// kernel: squeeze.4
$region0: #{squeeze.4}
  %s0 = inlined_call_operand.vmem [shape: f32[1,34,128], index: 0, kind: input, shape index: {}]
  %s1 = inlined_call_operand.vmem [shape: f32[2,17,128], index: 1, kind: output, shape index: {}]
  %v2 = vld [vmem:[%s0] sm:$0xff]
  %3 = vst [vmem:[%s1] sm:$0xff] %v2
  %s4 = scalar_lea.vmem %s0, 8
  %v5 = vld [vmem:[%s4] sm:$0xff]
  %s6 = scalar_lea.vmem %s1, 8
  %7 = vst [vmem:[%s6] sm:$0xff] %v5
  %s8 = scalar_lea.vmem %s0, 16
  %v9 = vld [vmem:[%s8] sm:$0xff]
  %s10 = scalar_lea.vmem %s1, 16
  %11 = vst [vmem:[%s10] ss:$8 sm:$0x3] %v9
  %s12 = scalar_lea.vmem %s1, 23
  %13 = vst [vmem:[%s12] sm:$0xfc] %v9
  %s14 = scalar_lea.vmem %s0, 24
  %v15 = vld [vmem:[%s14] sm:$0xff]
  %s16 = scalar_lea.vmem %s1, 31
  %17 = vst [vmem:[%s16] sm:$0xff] %v15
  %s18 = scalar_lea.vmem %s0, 32
  %v19 = vld [vmem:[%s18] sm:$0x3]
  %s20 = scalar_lea.vmem %s1, 39
  %21 = vst [vmem:[%s20] sm:$0x3] %v19

// kernel: two_dino_forward.1
$region0: #{two_dino_forward.1}
  #allocation0 [shape = 'u32[]', space=smem, size = 0x4, offset = 0x4, fixed_abs, tag = 'smem constant byte address 0x4 - core index']
  #allocation1 [shape = 'u32[144,128]{1,0:T(1,128)}', space=vmem, size = 0x12000, scoped, tag = 'internal scratch']
  #allocation2 [shape = 's32[1]{0}', space=sflag, size = 0x4, scoped, tag = 'scoped memory for two_dino_forward.1']
  #allocation3 [shape = 'u8[512]{0}', space=smem, size = 0x200, scoped, tag = 'prefetched SMEM operand 0']
  %s0 = inlined_call_operand.vmem [shape: s32[2], index: 0, kind: input, shape index: {}]
  %s1 = inlined_call_operand.vmem [shape: f32[2,34,48], index: 1, kind: input, shape index: {}]
  %s2 = inlined_call_operand.vmem [shape: f32[2,48,32], index: 2, kind: input, shape index: {}]
  %s3 = inlined_call_operand.vmem [shape: f32[2,34,32], index: 3, kind: input, shape index: {}]
  %s4 = inlined_call_operand.vmem [shape: f32[2,3,32,96], index: 4, kind: input, shape index: {}]
  %s5 = inlined_call_operand.vmem [shape: f32[2,3,1,96], index: 5, kind: input, shape index: {}]
  %s6 = inlined_call_operand.vmem [shape: f32[2,3,32,32], index: 6, kind: input, shape index: {}]
  %s7 = inlined_call_operand.vmem [shape: f32[2,3,32,128], index: 7, kind: input, shape index: {}]
  %s8 = inlined_call_operand.vmem [shape: f32[2,3,1,128], index: 8, kind: input, shape index: {}]
  %s9 = inlined_call_operand.vmem [shape: f32[2,3,128,32], index: 9, kind: input, shape index: {}]
  %s10 = inlined_call_operand.vmem [shape: f32[2,20,32], index: 10, kind: input, shape index: {}]
  %s11 = inlined_call_operand.vmem [shape: f32[2,34,128], index: 11, kind: output, shape index: {}]
  %s12 = sld [smem:[#allocation0]]
  $region85: #{two_dino_forward.1} parent=0
    _
  %s14 = ssub.s32 1, %s12
  %s15 = scalar_select 0, %s14, %s12
  %s16 = sshll.u32 %s0, 4
  %s17 = int_to_ptr.vmem [resolvable:$true] %s16
  %19 = dma.vmem_to_smem %s17, 16, [#allocation3], [#allocation2]
  %20 = dma.done [#allocation2], 16
  %21 = sfence
  loop: start=0, step=1, limit=4
  $region2: #{two_dino_forward.1} parent=0 // loop_pre_header
    _
  $region3: #{two_dino_forward.1} parent=0 // loop_header
    %s23 = sphi 0, %s27
    %p24 = scmp.ge.s32.totalorder %s23, 4
    %s33 = sphi 0, %s35
    %s36 = sphi 0, %s33
    %s37 = sphi 0, %s36
    %s53 = sphi 0, %s37
    %s59 = sphi 0, %s61
    %s62 = sphi 0, %s59
    %s63 = sphi 0, %s62
    %s79 = sphi 0, %s63
    %s85 = sphi 0, %s87
    %s88 = sphi 0, %s85
    %s89 = sphi 0, %s88
    %s105 = sphi 0, %s89
    %s111 = sphi 0, %s113
    %s114 = sphi 0, %s111
    %s115 = sphi 0, %s114
    %s131 = sphi 0, %s115
    %s137 = sphi 0, %s139
    %s140 = sphi 0, %s137
    %s141 = sphi 0, %s140
    %s157 = sphi 0, %s141
    %s163 = sphi 0, %s165
    %s166 = sphi 0, %s163
    %s167 = sphi 0, %s166
    %s183 = sphi 0, %s167
    %s189 = sphi 0, %s191
    %s192 = sphi 0, %s189
    %s193 = sphi 0, %s192
    %s209 = sphi 0, %s193
    %s215 = sphi 0, %s217
    %s218 = sphi 0, %s215
    %s219 = sphi 0, %s218
    %s235 = sphi 0, %s219
    %s241 = sphi 0, %s243
    %s244 = sphi 0, %s241
    %s245 = sphi 0, %s244
    %s261 = sphi 0, %s245
    %s267 = sphi 0, %s269
    %s270 = sphi 0, %s267
    %s271 = sphi 0, %s270
    %s287 = sphi 0, %s271
    %s293 = sphi 0, %s295
    %s296 = sphi 0, %s293
    %s297 = sphi 0, %s296
    %s313 = sphi 0, %s297
  $region4: #{two_dino_forward.1} parent=0 // loop_header_branch
    %26 = sbr.rel (%p24) target = $region8
  $region5: #{two_dino_forward.1} parent=0 // loop_body
    %s28 = ssub.s32 %s23, 1
    %s29 = ssub.s32 %s23, 2
    %s30 = sadd.s32 %s23, 1
    %s31 = ssub.s32 %s23, %s30
    %p32 = scmp.eq.s32.totalorder %s31, 0
    %s34 = sadd.s32 %s33, 1
    %s35 = scalar_select %p32, %s33, %s34
    %p38 = pneg %p32
    %p39 = scmp.eq.s32.totalorder %s23, 1
    %p40 = por %p38, %p39
    %p41 = scmp.ne.s32.totalorder %s33, %s36
    %p42 = scmp.eq.s32.totalorder %s23, 0
    %p43 = por %p41, %p42
    %p44 = scmp.ne.s32.totalorder %s33, %s36
    %p45 = scmp.eq.s32.totalorder %s28, 1
    %p46 = por %p44, %p45
    %p47 = scmp.ne.s32.totalorder %s36, %s37
    %p48 = scmp.eq.s32.totalorder %s28, 0
    %p49 = por %p47, %p48
    %p50 = scmp.ne.s32.totalorder %s36, %s37
    %p51 = scmp.eq.s32.totalorder %s29, 1
    %p52 = por %p50, %p51
    %p54 = scmp.ne.s32.totalorder %s37, %s53
    %p55 = scmp.eq.s32.totalorder %s29, 0
    %p56 = por %p54, %p55
    %s57 = ssub.s32 %s23, %s30
    %p58 = scmp.eq.s32.totalorder %s57, 0
    %s60 = sadd.s32 %s59, 1
    %s61 = scalar_select %p58, %s59, %s60
    %p64 = pneg %p58
    %p65 = scmp.eq.s32.totalorder %s23, 1
    %p66 = por %p64, %p65
    %p67 = scmp.ne.s32.totalorder %s59, %s62
    %p68 = scmp.eq.s32.totalorder %s23, 0
    %p69 = por %p67, %p68
    %p70 = scmp.ne.s32.totalorder %s59, %s62
    %p71 = scmp.eq.s32.totalorder %s28, 1
    %p72 = por %p70, %p71
    %p73 = scmp.ne.s32.totalorder %s62, %s63
    %p74 = scmp.eq.s32.totalorder %s28, 0
    %p75 = por %p73, %p74
    %p76 = scmp.ne.s32.totalorder %s62, %s63
    %p77 = scmp.eq.s32.totalorder %s29, 1
    %p78 = por %p76, %p77
    %p80 = scmp.ne.s32.totalorder %s63, %s79
    %p81 = scmp.eq.s32.totalorder %s29, 0
    %p82 = por %p80, %p81
    %s83 = ssub.s32 %s23, %s30
    %p84 = scmp.eq.s32.totalorder %s83, 0
    %s86 = sadd.s32 %s85, 1
    %s87 = scalar_select %p84, %s85, %s86
    %p90 = pneg %p84
    %p91 = scmp.eq.s32.totalorder %s23, 1
    %p92 = por %p90, %p91
    %p93 = scmp.ne.s32.totalorder %s85, %s88
    %p94 = scmp.eq.s32.totalorder %s23, 0
    %p95 = por %p93, %p94
    %p96 = scmp.ne.s32.totalorder %s85, %s88
    %p97 = scmp.eq.s32.totalorder %s28, 1
    %p98 = por %p96, %p97
    %p99 = scmp.ne.s32.totalorder %s88, %s89
    %p100 = scmp.eq.s32.totalorder %s28, 0
    %p101 = por %p99, %p100
    %p102 = scmp.ne.s32.totalorder %s88, %s89
    %p103 = scmp.eq.s32.totalorder %s29, 1
    %p104 = por %p102, %p103
    %p106 = scmp.ne.s32.totalorder %s89, %s105
    %p107 = scmp.eq.s32.totalorder %s29, 0
    %p108 = por %p106, %p107
    %s109 = ssub.s32 %s23, %s30
    %p110 = scmp.eq.s32.totalorder %s109, 0
    %s112 = sadd.s32 %s111, 1
    %s113 = scalar_select %p110, %s111, %s112
    %p116 = pneg %p110
    %p117 = scmp.eq.s32.totalorder %s23, 1
    %p118 = por %p116, %p117
    %p119 = scmp.ne.s32.totalorder %s111, %s114
    %p120 = scmp.eq.s32.totalorder %s23, 0
    %p121 = por %p119, %p120
    %p122 = scmp.ne.s32.totalorder %s111, %s114
    %p123 = scmp.eq.s32.totalorder %s28, 1
    %p124 = por %p122, %p123
    %p125 = scmp.ne.s32.totalorder %s114, %s115
    %p126 = scmp.eq.s32.totalorder %s28, 0
    %p127 = por %p125, %p126
    %p128 = scmp.ne.s32.totalorder %s114, %s115
    %p129 = scmp.eq.s32.totalorder %s29, 1
    %p130 = por %p128, %p129
    %p132 = scmp.ne.s32.totalorder %s115, %s131
    %p133 = scmp.eq.s32.totalorder %s29, 0
    %p134 = por %p132, %p133
    %s135 = ssub.s32 %s23, %s30
    %p136 = scmp.eq.s32.totalorder %s135, 0
    %s138 = sadd.s32 %s137, 1
    %s139 = scalar_select %p136, %s137, %s138
    %p142 = pneg %p136
    %p143 = scmp.eq.s32.totalorder %s23, 1
    %p144 = por %p142, %p143
    %p145 = scmp.ne.s32.totalorder %s137, %s140
    %p146 = scmp.eq.s32.totalorder %s23, 0
    %p147 = por %p145, %p146
    %p148 = scmp.ne.s32.totalorder %s137, %s140
    %p149 = scmp.eq.s32.totalorder %s28, 1
    %p150 = por %p148, %p149
    %p151 = scmp.ne.s32.totalorder %s140, %s141
    %p152 = scmp.eq.s32.totalorder %s28, 0
    %p153 = por %p151, %p152
    %p154 = scmp.ne.s32.totalorder %s140, %s141
    %p155 = scmp.eq.s32.totalorder %s29, 1
    %p156 = por %p154, %p155
    %p158 = scmp.ne.s32.totalorder %s141, %s157
    %p159 = scmp.eq.s32.totalorder %s29, 0
    %p160 = por %p158, %p159
    %s161 = ssub.s32 %s23, %s30
    %p162 = scmp.eq.s32.totalorder %s161, 0
    %s164 = sadd.s32 %s163, 1
    %s165 = scalar_select %p162, %s163, %s164
    %p168 = pneg %p162
    %p169 = scmp.eq.s32.totalorder %s23, 1
    %p170 = por %p168, %p169
    %p171 = scmp.ne.s32.totalorder %s163, %s166
    %p172 = scmp.eq.s32.totalorder %s23, 0
    %p173 = por %p171, %p172
    %p174 = scmp.ne.s32.totalorder %s163, %s166
    %p175 = scmp.eq.s32.totalorder %s28, 1
    %p176 = por %p174, %p175
    %p177 = scmp.ne.s32.totalorder %s166, %s167
    %p178 = scmp.eq.s32.totalorder %s28, 0
    %p179 = por %p177, %p178
    %p180 = scmp.ne.s32.totalorder %s166, %s167
    %p181 = scmp.eq.s32.totalorder %s29, 1
    %p182 = por %p180, %p181
    %p184 = scmp.ne.s32.totalorder %s167, %s183
    %p185 = scmp.eq.s32.totalorder %s29, 0
    %p186 = por %p184, %p185
    %s187 = ssub.s32 %s23, %s30
    %p188 = scmp.eq.s32.totalorder %s187, 0
    %s190 = sadd.s32 %s189, 1
    %s191 = scalar_select %p188, %s189, %s190
    %p194 = pneg %p188
    %p195 = scmp.eq.s32.totalorder %s23, 1
    %p196 = por %p194, %p195
    %p197 = scmp.ne.s32.totalorder %s189, %s192
    %p198 = scmp.eq.s32.totalorder %s23, 0
    %p199 = por %p197, %p198
    %p200 = scmp.ne.s32.totalorder %s189, %s192
    %p201 = scmp.eq.s32.totalorder %s28, 1
    %p202 = por %p200, %p201
    %p203 = scmp.ne.s32.totalorder %s192, %s193
    %p204 = scmp.eq.s32.totalorder %s28, 0
    %p205 = por %p203, %p204
    %p206 = scmp.ne.s32.totalorder %s192, %s193
    %p207 = scmp.eq.s32.totalorder %s29, 1
    %p208 = por %p206, %p207
    %p210 = scmp.ne.s32.totalorder %s193, %s209
    %p211 = scmp.eq.s32.totalorder %s29, 0
    %p212 = por %p210, %p211
    %s213 = ssub.s32 %s23, %s30
    %p214 = scmp.eq.s32.totalorder %s213, 0
    %s216 = sadd.s32 %s215, 1
    %s217 = scalar_select %p214, %s215, %s216
    %p220 = pneg %p214
    %p221 = scmp.eq.s32.totalorder %s23, 1
    %p222 = por %p220, %p221
    %p223 = scmp.ne.s32.totalorder %s215, %s218
    %p224 = scmp.eq.s32.totalorder %s23, 0
    %p225 = por %p223, %p224
    %p226 = scmp.ne.s32.totalorder %s215, %s218
    %p227 = scmp.eq.s32.totalorder %s28, 1
    %p228 = por %p226, %p227
    %p229 = scmp.ne.s32.totalorder %s218, %s219
    %p230 = scmp.eq.s32.totalorder %s28, 0
    %p231 = por %p229, %p230
    %p232 = scmp.ne.s32.totalorder %s218, %s219
    %p233 = scmp.eq.s32.totalorder %s29, 1
    %p234 = por %p232, %p233
    %p236 = scmp.ne.s32.totalorder %s219, %s235
    %p237 = scmp.eq.s32.totalorder %s29, 0
    %p238 = por %p236, %p237
    %s239 = ssub.s32 %s23, %s30
    %p240 = scmp.eq.s32.totalorder %s239, 0
    %s242 = sadd.s32 %s241, 1
    %s243 = scalar_select %p240, %s241, %s242
    %p246 = pneg %p240
    %p247 = scmp.eq.s32.totalorder %s23, 1
    %p248 = por %p246, %p247
    %p249 = scmp.ne.s32.totalorder %s241, %s244
    %p250 = scmp.eq.s32.totalorder %s23, 0
    %p251 = por %p249, %p250
    %p252 = scmp.ne.s32.totalorder %s241, %s244
    %p253 = scmp.eq.s32.totalorder %s28, 1
    %p254 = por %p252, %p253
    %p255 = scmp.ne.s32.totalorder %s244, %s245
    %p256 = scmp.eq.s32.totalorder %s28, 0
    %p257 = por %p255, %p256
    %p258 = scmp.ne.s32.totalorder %s244, %s245
    %p259 = scmp.eq.s32.totalorder %s29, 1
    %p260 = por %p258, %p259
    %p262 = scmp.ne.s32.totalorder %s245, %s261
    %p263 = scmp.eq.s32.totalorder %s29, 0
    %p264 = por %p262, %p263
    %s265 = ssub.s32 %s23, %s30
    %p266 = scmp.eq.s32.totalorder %s265, 0
    %s268 = sadd.s32 %s267, 1
    %s269 = scalar_select %p266, %s267, %s268
    %p272 = pneg %p266
    %p273 = scmp.eq.s32.totalorder %s23, 1
    %p274 = por %p272, %p273
    %p275 = scmp.ne.s32.totalorder %s267, %s270
    %p276 = scmp.eq.s32.totalorder %s23, 0
    %p277 = por %p275, %p276
    %p278 = scmp.ne.s32.totalorder %s267, %s270
    %p279 = scmp.eq.s32.totalorder %s28, 1
    %p280 = por %p278, %p279
    %p281 = scmp.ne.s32.totalorder %s270, %s271
    %p282 = scmp.eq.s32.totalorder %s28, 0
    %p283 = por %p281, %p282
    %p284 = scmp.ne.s32.totalorder %s270, %s271
    %p285 = scmp.eq.s32.totalorder %s29, 1
    %p286 = por %p284, %p285
    %p288 = scmp.ne.s32.totalorder %s271, %s287
    %p289 = scmp.eq.s32.totalorder %s29, 0
    %p290 = por %p288, %p289
    %s291 = ssub.s32 %s23, %s30
    %p292 = scmp.eq.s32.totalorder %s291, 0
    %s294 = sadd.s32 %s293, 1
    %s295 = scalar_select %p292, %s293, %s294
    %p298 = pneg %p292
    %p299 = scmp.eq.s32.totalorder %s23, 1
    %p300 = por %p298, %p299
    %p301 = scmp.ne.s32.totalorder %s293, %s296
    %p302 = scmp.eq.s32.totalorder %s23, 0
    %p303 = por %p301, %p302
    %p304 = scmp.ne.s32.totalorder %s293, %s296
    %p305 = scmp.eq.s32.totalorder %s28, 1
    %p306 = por %p304, %p305
    %p307 = scmp.ne.s32.totalorder %s296, %s297
    %p308 = scmp.eq.s32.totalorder %s28, 0
    %p309 = por %p307, %p308
    %p310 = scmp.ne.s32.totalorder %s296, %s297
    %p311 = scmp.eq.s32.totalorder %s29, 1
    %p312 = por %p310, %p311
    %p314 = scmp.ne.s32.totalorder %s297, %s313
    %p315 = scmp.eq.s32.totalorder %s29, 0
    %p316 = por %p314, %p315
    %p317 = scmp.le.s32.totalorder 1, %s23
    %p318 = scmp.lt.s32.totalorder %s23, 3
    %p319 = pnand %p317, %p318
    %p320 = pneg %p319
    // Predicated region
    $region9: #{two_dino_forward.1} parent=5 // pred_check
      _
    $region10: #{two_dino_forward.1} parent=5 // pred_check_branch
      %322 = sbr.rel (%p319) target = $region12
    $region11: #{two_dino_forward.1} parent=5 // pred_region
      %s323 = ssub.s32 %s23, 1
    $region12: #{two_dino_forward.1} parent=5 // pred_fallthru
      _
    %p324 = scmp.lt.s32.totalorder %s23, 2
    // Predicated region
    $region13: #{two_dino_forward.1} parent=5 // pred_check
      %p325 = pneg %p324
    $region14: #{two_dino_forward.1} parent=5 // pred_check_branch
      %327 = sbr.rel (%p325) target = $region16
    $region15: #{two_dino_forward.1} parent=5 // pred_region
      // Predicated region
      $region17: #{two_dino_forward.1} parent=15 // pred_check
        %p328 = pneg %p43
      $region18: #{two_dino_forward.1} parent=15 // pred_check_branch
        %330 = sbr.rel (%p328) target = $region20
      $region19: #{two_dino_forward.1} parent=15 // pred_region
        %p331 = scmp.lt.s32.totalorder %s23, 1
        %s332 = scalar_select %p331, %s23, 1
        %s333 = smul.addr %s332, 5
        %s334 = smul.addr %s333, 8
        %s335 = scalar_lea.vmem %s1, %s334
      $region20: #{two_dino_forward.1} parent=15 // pred_fallthru
        _
      // Predicated region
      $region21: #{two_dino_forward.1} parent=15 // pred_check
        %p336 = pneg %p69
      $region22: #{two_dino_forward.1} parent=15 // pred_check_branch
        %338 = sbr.rel (%p336) target = $region24
      $region23: #{two_dino_forward.1} parent=15 // pred_region
        %p339 = scmp.lt.s32.totalorder %s23, 1
        %s340 = scalar_select %p339, %s23, 1
        %s341 = smul.addr %s340, 6
        %s342 = smul.addr %s341, 8
        %s343 = scalar_lea.vmem %s2, %s342
      $region24: #{two_dino_forward.1} parent=15 // pred_fallthru
        _
      // Predicated region
      $region25: #{two_dino_forward.1} parent=15 // pred_check
        %p344 = pneg %p95
      $region26: #{two_dino_forward.1} parent=15 // pred_check_branch
        %346 = sbr.rel (%p344) target = $region28
      $region27: #{two_dino_forward.1} parent=15 // pred_region
        %p347 = scmp.lt.s32.totalorder %s23, 1
        %s348 = scalar_select %p347, %s23, 1
        %s349 = smul.addr %s348, 5
        %s350 = smul.addr %s349, 8
        %s351 = scalar_lea.vmem %s3, %s350
      $region28: #{two_dino_forward.1} parent=15 // pred_fallthru
        _
      // Predicated region
      $region29: #{two_dino_forward.1} parent=15 // pred_check
        %p352 = pneg %p121
      $region30: #{two_dino_forward.1} parent=15 // pred_check_branch
        %354 = sbr.rel (%p352) target = $region32
      $region31: #{two_dino_forward.1} parent=15 // pred_region
        %p355 = scmp.lt.s32.totalorder %s23, 1
        %s356 = scalar_select %p355, %s23, 1
        %s357 = smul.addr %s356, 12
        %s358 = smul.addr %s357, 8
        %s359 = scalar_lea.vmem %s4, %s358
      $region32: #{two_dino_forward.1} parent=15 // pred_fallthru
        _
      // Predicated region
      $region33: #{two_dino_forward.1} parent=15 // pred_check
        %p360 = pneg %p147
      $region34: #{two_dino_forward.1} parent=15 // pred_check_branch
        %362 = sbr.rel (%p360) target = $region36
      $region35: #{two_dino_forward.1} parent=15 // pred_region
        %p363 = scmp.lt.s32.totalorder %s23, 1
        %s364 = scalar_select %p363, %s23, 1
        %s365 = smul.addr %s364, 3
        %s366 = scalar_lea.vmem %s5, %s365
      $region36: #{two_dino_forward.1} parent=15 // pred_fallthru
        _
      // Predicated region
      $region37: #{two_dino_forward.1} parent=15 // pred_check
        %p367 = pneg %p173
      $region38: #{two_dino_forward.1} parent=15 // pred_check_branch
        %369 = sbr.rel (%p367) target = $region40
      $region39: #{two_dino_forward.1} parent=15 // pred_region
        %p370 = scmp.lt.s32.totalorder %s23, 1
        %s371 = scalar_select %p370, %s23, 1
        %s372 = smul.addr %s371, 12
        %s373 = smul.addr %s372, 8
        %s374 = scalar_lea.vmem %s6, %s373
      $region40: #{two_dino_forward.1} parent=15 // pred_fallthru
        _
      // Predicated region
      $region41: #{two_dino_forward.1} parent=15 // pred_check
        %p375 = pneg %p199
      $region42: #{two_dino_forward.1} parent=15 // pred_check_branch
        %377 = sbr.rel (%p375) target = $region44
      $region43: #{two_dino_forward.1} parent=15 // pred_region
        %p378 = scmp.lt.s32.totalorder %s23, 1
        %s379 = scalar_select %p378, %s23, 1
        %s380 = smul.addr %s379, 12
        %s381 = smul.addr %s380, 8
        %s382 = scalar_lea.vmem %s7, %s381
      $region44: #{two_dino_forward.1} parent=15 // pred_fallthru
        _
      // Predicated region
      $region45: #{two_dino_forward.1} parent=15 // pred_check
        %p383 = pneg %p225
      $region46: #{two_dino_forward.1} parent=15 // pred_check_branch
        %385 = sbr.rel (%p383) target = $region48
      $region47: #{two_dino_forward.1} parent=15 // pred_region
        %p386 = scmp.lt.s32.totalorder %s23, 1
        %s387 = scalar_select %p386, %s23, 1
        %s388 = smul.addr %s387, 3
        %s389 = scalar_lea.vmem %s8, %s388
      $region48: #{two_dino_forward.1} parent=15 // pred_fallthru
        _
      // Predicated region
      $region49: #{two_dino_forward.1} parent=15 // pred_check
        %p390 = pneg %p251
      $region50: #{two_dino_forward.1} parent=15 // pred_check_branch
        %392 = sbr.rel (%p390) target = $region52
      $region51: #{two_dino_forward.1} parent=15 // pred_region
        %p393 = scmp.lt.s32.totalorder %s23, 1
        %s394 = scalar_select %p393, %s23, 1
        %s395 = smul.addr %s394, 48
        %s396 = smul.addr %s395, 8
        %s397 = scalar_lea.vmem %s9, %s396
      $region52: #{two_dino_forward.1} parent=15 // pred_fallthru
        _
      // Predicated region
      $region53: #{two_dino_forward.1} parent=15 // pred_check
        %p398 = pneg %p277
      $region54: #{two_dino_forward.1} parent=15 // pred_check_branch
        %400 = sbr.rel (%p398) target = $region56
      $region55: #{two_dino_forward.1} parent=15 // pred_region
        %p401 = scmp.lt.s32.totalorder %s23, 1
        %s402 = scalar_select %p401, %s23, 1
        %s403 = smul.addr %s402, 3
        %s404 = smul.addr %s403, 8
        %s405 = scalar_lea.vmem %s10, %s404
      $region56: #{two_dino_forward.1} parent=15 // pred_fallthru
        _
    $region16: #{two_dino_forward.1} parent=5 // pred_fallthru
      _
    %p406 = scmp.le.s32.totalorder 1, %s23
    %p407 = scmp.lt.s32.totalorder %s23, 3
    %p408 = pnand %p406, %p407
    %p409 = pneg %p408
    // Predicated region
    $region57: #{two_dino_forward.1} parent=5 // pred_check
      _
    $region58: #{two_dino_forward.1} parent=5 // pred_check_branch
      %411 = sbr.rel (%p408) target = $region60
    $region59: #{two_dino_forward.1} parent=5 // pred_region
      %s412 = ssub.s32 %s23, 1
      %p413 = scmp.lt.s32.totalorder %s28, 1
      %s414 = scalar_select %p413, %s28, 1
      %s415 = smul.addr %s414, 5
      %s416 = smul.addr %s415, 8
      %s417 = scalar_lea.vmem %s1, %s416
      %p418 = pneg %p49
      %p419 = pneg %p46
      %p420 = scmp.lt.s32.totalorder %s28, 1
      %s421 = scalar_select %p420, %s28, 1
      %s422 = smul.addr %s421, 6
      %s423 = smul.addr %s422, 8
      %s424 = scalar_lea.vmem %s2, %s423
      %p425 = pneg %p75
      %p426 = pneg %p72
      %p427 = scmp.lt.s32.totalorder %s28, 1
      %s428 = scalar_select %p427, %s28, 1
      %s429 = smul.addr %s428, 5
      %s430 = smul.addr %s429, 8
      %s431 = scalar_lea.vmem %s3, %s430
      %p432 = pneg %p101
      %p433 = pneg %p98
      %p434 = scmp.lt.s32.totalorder %s28, 1
      %s435 = scalar_select %p434, %s28, 1
      %s436 = smul.addr %s435, 12
      %s437 = smul.addr %s436, 8
      %s438 = scalar_lea.vmem %s4, %s437
      %p439 = pneg %p127
      %p440 = pneg %p124
      %p441 = scmp.lt.s32.totalorder %s28, 1
      %s442 = scalar_select %p441, %s28, 1
      %s443 = smul.addr %s442, 3
      %s444 = scalar_lea.vmem %s5, %s443
      %p445 = pneg %p153
      %p446 = pneg %p150
      %p447 = scmp.lt.s32.totalorder %s28, 1
      %s448 = scalar_select %p447, %s28, 1
      %s449 = smul.addr %s448, 12
      %s450 = smul.addr %s449, 8
      %s451 = scalar_lea.vmem %s6, %s450
      %p452 = pneg %p179
      %p453 = pneg %p176
      %p454 = scmp.lt.s32.totalorder %s28, 1
      %s455 = scalar_select %p454, %s28, 1
      %s456 = smul.addr %s455, 12
      %s457 = smul.addr %s456, 8
      %s458 = scalar_lea.vmem %s7, %s457
      %p459 = pneg %p205
      %p460 = pneg %p202
      %p461 = scmp.lt.s32.totalorder %s28, 1
      %s462 = scalar_select %p461, %s28, 1
      %s463 = smul.addr %s462, 3
      %s464 = scalar_lea.vmem %s8, %s463
      %p465 = pneg %p231
      %p466 = pneg %p228
      %p467 = scmp.lt.s32.totalorder %s28, 1
      %s468 = scalar_select %p467, %s28, 1
      %s469 = smul.addr %s468, 48
      %s470 = smul.addr %s469, 8
      %s471 = scalar_lea.vmem %s9, %s470
      %p472 = pneg %p257
      %p473 = pneg %p254
      %p474 = scmp.lt.s32.totalorder %s28, 1
      %s475 = scalar_select %p474, %s28, 1
      %s476 = smul.addr %s475, 3
      %s477 = smul.addr %s476, 8
      %s478 = scalar_lea.vmem %s10, %s477
      %p479 = pneg %p283
      %p480 = pneg %p280
      %p481 = pneg %p309
      %p482 = pneg %p306
      %p483 = scmp.lt.s32.totalorder %s28, 1
      %s484 = scalar_select %p483, %s28, 1
      %s485 = smul.addr %s484, 5
      %s486 = smul.addr %s485, 8
      %s487 = scalar_lea.vmem %s11, %s486
      %p488 = scmp.lt.s32.totalorder %s28, 1
      %s489 = scalar_select %p488, %s28, 1
      %s490 = smul.addr %s489, 5
      %s491 = smul.addr %s490, 8
      %s492 = scalar_lea.vmem %s1, %s491
      %p493 = scmp.lt.s32.totalorder %s28, 1
      %s494 = scalar_select %p493, %s28, 1
      %s495 = smul.addr %s494, 6
      %s496 = smul.addr %s495, 8
      %s497 = scalar_lea.vmem %s2, %s496
      %p498 = scmp.lt.s32.totalorder %s28, 1
      %s499 = scalar_select %p498, %s28, 1
      %s500 = smul.addr %s499, 5
      %s501 = smul.addr %s500, 8
      %s502 = scalar_lea.vmem %s3, %s501
      %p503 = scmp.lt.s32.totalorder %s28, 1
      %s504 = scalar_select %p503, %s28, 1
      %s505 = smul.addr %s504, 12
      %s506 = smul.addr %s505, 8
      %s507 = scalar_lea.vmem %s4, %s506
      %p508 = scmp.lt.s32.totalorder %s28, 1
      %s509 = scalar_select %p508, %s28, 1
      %s510 = smul.addr %s509, 3
      %s511 = scalar_lea.vmem %s5, %s510
      %p512 = scmp.lt.s32.totalorder %s28, 1
      %s513 = scalar_select %p512, %s28, 1
      %s514 = smul.addr %s513, 12
      %s515 = smul.addr %s514, 8
      %s516 = scalar_lea.vmem %s6, %s515
      %p517 = scmp.lt.s32.totalorder %s28, 1
      %s518 = scalar_select %p517, %s28, 1
      %s519 = smul.addr %s518, 12
      %s520 = smul.addr %s519, 8
      %s521 = scalar_lea.vmem %s7, %s520
      %p522 = scmp.lt.s32.totalorder %s28, 1
      %s523 = scalar_select %p522, %s28, 1
      %s524 = smul.addr %s523, 3
      %s525 = scalar_lea.vmem %s8, %s524
      %p526 = scmp.lt.s32.totalorder %s28, 1
      %s527 = scalar_select %p526, %s28, 1
      %s528 = smul.addr %s527, 48
      %s529 = smul.addr %s528, 8
      %s530 = scalar_lea.vmem %s9, %s529
      %p531 = scmp.lt.s32.totalorder %s28, 1
      %s532 = scalar_select %p531, %s28, 1
      %s533 = smul.addr %s532, 3
      %s534 = smul.addr %s533, 8
      %s535 = scalar_lea.vmem %s10, %s534
      %p536 = scmp.lt.s32.totalorder %s28, 1
      %s537 = scalar_select %p536, %s28, 1
      %s538 = smul.addr %s537, 5
      %s539 = smul.addr %s538, 8
      %s540 = scalar_lea.vmem %s11, %s539
      %s541 = sld [smem:[#allocation3 + %s28]]
      %v542 = vld [vmem:[%s535] sm:$0xff]
      %v543 = vld [vmem:[%s535 + $0x8] sm:$0xff]
      %v544 = vld [vmem:[%s535 + $0x10] sm:$0xf]
      %v545 = vld [vmem:[%s492] sm:$0xff]
      %v546 = vld [vmem:[%s492 + $0x8] sm:$0xff]
      %v547 = vld [vmem:[%s492 + $0x10] sm:$0xff]
      %v548 = vld [vmem:[%s492 + $0x18] sm:$0xff]
      %v549 = vld [vmem:[%s492 + $0x20] sm:$0x3]
      %v550 = vld [vmem:[%s497] sm:$0xff]
      %v551 = vld [vmem:[%s497 + $0x8] sm:$0xff]
      %v552 = vld [vmem:[%s497 + $0x10] sm:$0xff]
      %v553 = vld [vmem:[%s497 + $0x18] sm:$0xff]
      %v554 = vld [vmem:[%s497 + $0x20] sm:$0xff]
      %v555 = vld [vmem:[%s497 + $0x28] sm:$0xff]
      %v556 = vld [vmem:[%s502] sm:$0xff]
      %v557 = vld [vmem:[%s502 + $0x8] sm:$0xff]
      %v558 = vld [vmem:[%s502 + $0x10] sm:$0xff]
      %v559 = vld [vmem:[%s502 + $0x18] sm:$0xff]
      %v560 = vld [vmem:[%s502 + $0x20] sm:$0x3]
      %vm561 = vcmask 392192
      %v563 = vsel %vm561, %v545, 0
      %v566 = vsel %vm561, %v546, 0
      %v569 = vsel %vm561, %v547, 0
      %v572 = vsel %vm561, %v548, 0
      %v575 = vsel %vm561, %v549, 0
      %577 = vmatprep.subr.mxu0 0.0
      %578 = vmatpush1.msra.mxu0 %v550
      %579 = vmatprep.subr.mxu0 0.0
      %580 = vmatpush1.msra.mxu0 %v551
      %581 = vmatprep.subr.mxu0 0.0
      %582 = vmatpush1.msra.mxu0 %v552
      %583 = vmatprep.subr.mxu0 0.0
      %584 = vmatpush1.msra.mxu0 %v553
      %585 = vmatprep.subr.mxu0 0.0
      %586 = vmatpush1.msra.mxu0 %v554
      %587 = vmatprep.subr.mxu0 0.0
      %588 = vmatpush1.msra.mxu0 %v555
      %589 = vmatprep.subr.mxu0 0.0
      %590 = vmatpush1.msra.mxu0 0.0
      %591 = vmatprep.subr.mxu0 0.0
      %592 = vmatpush1.msra.mxu0 0.0
      %593 = vmatprep.subr.mxu0 0.0
      %594 = vmatpush1.msra.mxu0 0.0
      %595 = vmatprep.subr.mxu0 0.0
      %596 = vmatpush1.msra.mxu0 0.0
      %597 = vmatprep.subr.mxu0 0.0
      %598 = vmatpush1.msra.mxu0 0.0
      %599 = vmatprep.subr.mxu0 0.0
      %600 = vmatpush1.msra.mxu0 0.0
      %601 = vmatprep.subr.mxu0 0.0
      %602 = vmatpush1.msra.mxu0 0.0
      %603 = vmatprep.subr.mxu0 0.0
      %604 = vmatpush1.msra.mxu0 0.0
      %605 = vmatprep.subr.mxu0 0.0
      %606 = vmatpush1.msra.mxu0 0.0
      %607 = vmatprep.subr.mxu0 0.0
      %608 = vmatpush1.msra.mxu0 0.0
      %609 = vmatprep.subr.mxu0 0.0
      %610 = vmatpush1.msra.mxu0 0.0
      %611 = vmatprep.subr.mxu0 0.0
      %612 = vmatpush1.msra.mxu0 0.0
      %613 = vmatprep.subr.mxu0 0.0
      %614 = vmatpush1.msra.mxu0 0.0
      %615 = vmatprep.subr.mxu0 0.0
      %616 = vmatpush1.msra.mxu0 0.0
      %617 = vmatprep.subr.mxu0 0.0
      %618 = vmatpush1.msra.mxu0 0.0
      %619 = vmatprep.subr.mxu0 0.0
      %620 = vmatpush1.msra.mxu0 0.0
      %621 = vmatprep.subr.mxu0 0.0
      %622 = vmatpush1.msra.mxu0 0.0
      %623 = vmatprep.subr.mxu0 0.0
      %624 = vmatpush1.msra.mxu0 0.0
      %625 = vmatprep.subr.mxu0 0.0
      %626 = vmatpush1.msra.mxu0 0.0
      %627 = vmatprep.subr.mxu0 0.0
      %628 = vmatpush1.msra.mxu0 0.0
      %629 = vmatprep.subr.mxu0 0.0
      %630 = vmatpush1.msra.mxu0 0.0
      %631 = vmatprep.subr.mxu0 0.0
      %632 = vmatpush1.msra.mxu0 0.0
      %633 = vmatprep.subr.mxu0 0.0
      %634 = vmatpush1.msra.mxu0 0.0
      %635 = vmatprep.subr.mxu0 0.0
      %636 = vmatpush1.msra.mxu0 0.0
      %637 = vmatprep.subr.mxu0 0.0
      %638 = vmatpush1.msra.mxu0 0.0
      %639 = vmatprep.subr.mxu0 0.0
      %640 = vmatpush1.msra.mxu0 0.0
      %641 = vmatprep.mubr.f32.mxu0 0.0
      %642 = vmatmul.mubr.f32.gmra.mrb[0].mxu0 %v563
      %v643 = vpop.f32.mrb[0].mxu0
      %v644 = vadd.f32 %v556, %v643
      %v645 = vpop.f32.mrb[0].mxu0
      %646 = vmatprep.mubr.f32.mxu0 0.0
      %647 = vmatmul.mubr.f32.gmra.mrb[0].mxu0 %v566
      %v648 = vpop.f32.mrb[0].mxu0
      %v649 = vadd.f32 %v557, %v648
      %v650 = vpop.f32.mrb[0].mxu0
      %651 = vmatprep.mubr.f32.mxu0 0.0
      %652 = vmatmul.mubr.f32.gmra.mrb[0].mxu0 %v569
      %v653 = vpop.f32.mrb[0].mxu0
      %v654 = vadd.f32 %v558, %v653
      %v655 = vpop.f32.mrb[0].mxu0
      %656 = vmatprep.mubr.f32.mxu0 0.0
      %657 = vmatmul.mubr.f32.gmra.mrb[0].mxu0 %v572
      %v658 = vpop.f32.mrb[0].mxu0
      %v659 = vadd.f32 %v559, %v658
      %v660 = vpop.f32.mrb[0].mxu0
      %661 = vmatprep.mubr.f32.mxu0 0.0
      %662 = vmatmul.mubr.f32.gmra.mrb[0].mxu0 %v575
      %v663 = vpop.f32.mrb[0].mxu0
      %v664 = vadd.f32 %v560, %v663
      %v665 = vpop.f32.mrb[0].mxu0
      %666 = vdwg.mxu0
      %vm667 = vcmask 261120
      %v668 = vsel %vm667, %v644, 0.0
      %669 = vadd.xlane.f32.xlu0 %v668
      %v670 = vpop.xlane.xlu0 %669
      %v671 = vsel %vm667, %v649, 0.0
      %672 = vadd.xlane.f32.xlu0 %v671
      %v673 = vpop.xlane.xlu0 %672
      %v674 = vsel %vm667, %v654, 0.0
      %675 = vadd.xlane.f32.xlu0 %v674
      %v676 = vpop.xlane.xlu0 %675
      %v677 = vsel %vm667, %v659, 0.0
      %678 = vadd.xlane.f32.xlu0 %v677
      %v679 = vpop.xlane.xlu0 %678
      %vm680 = vcmask 254976
      %v681 = vsel %vm680, %v664, 0.0
      %682 = vadd.xlane.f32.xlu0 %v681
      %v683 = vpop.xlane.xlu0 %682
      %v684 = vrcp.pop 32.0
      %v685 = vmul.f32 %v670, %v684
      %v686 = vmul.f32 %v673, %v684
      %v687 = vmul.f32 %v676, %v684
      %v688 = vmul.f32 %v679, %v684
      %v689 = vmul.f32 %v683, %v684
      %v690 = vsub.f32 %v644, %v685
      %v691 = vsub.f32 %v649, %v686
      %v692 = vsub.f32 %v654, %v687
      %v693 = vsub.f32 %v659, %v688
      %v694 = vsub.f32 %v664, %v689
      %v695 = vmul.f32 %v690, %v690
      %v696 = vmul.f32 %v691, %v691
      %v697 = vmul.f32 %v692, %v692
      %v698 = vmul.f32 %v693, %v693
      %v699 = vmul.f32 %v694, %v694
      %v700 = vsel %vm667, %v695, 0.0
      %701 = vadd.xlane.f32.xlu0 %v700
      %v702 = vpop.xlane.xlu0 %701
      %v703 = vsel %vm667, %v696, 0.0
      %704 = vadd.xlane.f32.xlu0 %v703
      %v705 = vpop.xlane.xlu0 %704
      %v706 = vsel %vm667, %v697, 0.0
      %707 = vadd.xlane.f32.xlu0 %v706
      %v708 = vpop.xlane.xlu0 %707
      %v709 = vsel %vm667, %v698, 0.0
      %710 = vadd.xlane.f32.xlu0 %v709
      %v711 = vpop.xlane.xlu0 %710
      %v712 = vsel %vm680, %v699, 0.0
      %713 = vadd.xlane.f32.xlu0 %v712
      %v714 = vpop.xlane.xlu0 %713
      %v715 = vmul.f32 %v702, %v684
      %v716 = vmul.f32 %v705, %v684
      %v717 = vmul.f32 %v708, %v684
      %v718 = vmul.f32 %v711, %v684
      %v719 = vmul.f32 %v714, %v684
      %v720 = vadd.f32 %v715, 1e-06
      %v721 = vadd.f32 %v716, 1e-06
      %v722 = vadd.f32 %v717, 1e-06
      %v723 = vadd.f32 %v718, 1e-06
      %v724 = vadd.f32 %v719, 1e-06
      %v725 = vrsqrt.pop %v720
      %v726 = vrsqrt.pop %v721
      %v727 = vrsqrt.pop %v722
      %v728 = vrsqrt.pop %v723
      %v729 = vrsqrt.pop %v724
      %v730 = vmul.f32 %v690, %v725
      %v731 = vmul.f32 %v691, %v726
      %v732 = vmul.f32 %v692, %v727
      %v733 = vmul.f32 %v693, %v728
      %v734 = vmul.f32 %v694, %v729
      %v735 = vlaneseq
      %v736 = vshrl.u32 %v735, 7
      %v737 = vsub.s32 0, %v736
      %v738 = vrot.slane %v542, %v737
      %v739 = vmul.f32 %v730, %v738
      %v740 = vmul.f32 %v731, %v738
      %v741 = vmul.f32 %v732, %v738
      %v742 = vmul.f32 %v733, %v738
      %v743 = vmul.f32 %v734, %v738
      %v744 = vlaneseq
      %v745 = vshrl.u32 %v744, 7
      %v746 = vsub.s32 1, %v745
      %v747 = vrot.slane %v542, %v746
      %v748 = vadd.f32 %v739, %v747
      %v749 = vadd.f32 %v740, %v747
      %v750 = vadd.f32 %v741, %v747
      %v751 = vadd.f32 %v742, %v747
      %v752 = vadd.f32 %v743, %v747
      %v753 = vld [vmem:[%s507] sm:$0xff]
      %v754 = vld [vmem:[%s507 + $0x8] sm:$0xff]
      %v755 = vld [vmem:[%s507 + $0x10] sm:$0xff]
      %v756 = vld [vmem:[%s507 + $0x18] sm:$0xff]
      %v757 = vld [vmem:[%s511] sm:$0x1]
      %v759 = vlaneseq
      %v760 = vshrl.u32 %v759, 7
      %v761 = vsub.s32 0, %v760
      %v762 = vrot.slane %v757, %v761
      %v765 = vsel %vm667, %v748, 0
      %v768 = vsel %vm667, %v749, 0
      %v771 = vsel %vm667, %v750, 0
      %v774 = vsel %vm667, %v751, 0
      %v777 = vsel %vm667, %v752, 0
      %779 = vmatprep.subr.mxu0 0.0
      %780 = vmatpush1.msra.mxu0 %v753
      %781 = vmatprep.subr.mxu0 0.0
      %782 = vmatpush1.msra.mxu0 %v754
      %783 = vmatprep.subr.mxu0 0.0
      %784 = vmatpush1.msra.mxu0 %v755
      %785 = vmatprep.subr.mxu0 0.0
      %786 = vmatpush1.msra.mxu0 %v756
      %787 = vmatprep.subr.mxu0 0.0
      %788 = vmatpush1.msra.mxu0 0.0
      %789 = vmatprep.subr.mxu0 0.0
      %790 = vmatpush1.msra.mxu0 0.0
      %791 = vmatprep.subr.mxu0 0.0
      %792 = vmatpush1.msra.mxu0 0.0
      %793 = vmatprep.subr.mxu0 0.0
      %794 = vmatpush1.msra.mxu0 0.0
      %795 = vmatprep.subr.mxu0 0.0
      %796 = vmatpush1.msra.mxu0 0.0
      %797 = vmatprep.subr.mxu0 0.0
      %798 = vmatpush1.msra.mxu0 0.0
      %799 = vmatprep.subr.mxu0 0.0
      %800 = vmatpush1.msra.mxu0 0.0
      %801 = vmatprep.subr.mxu0 0.0
      %802 = vmatpush1.msra.mxu0 0.0
      %803 = vmatprep.subr.mxu0 0.0
      %804 = vmatpush1.msra.mxu0 0.0
      %805 = vmatprep.subr.mxu0 0.0
      %806 = vmatpush1.msra.mxu0 0.0
      %807 = vmatprep.subr.mxu0 0.0
      %808 = vmatpush1.msra.mxu0 0.0
      %809 = vmatprep.subr.mxu0 0.0
      %810 = vmatpush1.msra.mxu0 0.0
      %811 = vmatprep.subr.mxu0 0.0
      %812 = vmatpush1.msra.mxu0 0.0
      %813 = vmatprep.subr.mxu0 0.0
      %814 = vmatpush1.msra.mxu0 0.0
      %815 = vmatprep.subr.mxu0 0.0
      %816 = vmatpush1.msra.mxu0 0.0
      %817 = vmatprep.subr.mxu0 0.0
      %818 = vmatpush1.msra.mxu0 0.0
      %819 = vmatprep.subr.mxu0 0.0
      %820 = vmatpush1.msra.mxu0 0.0
      %821 = vmatprep.subr.mxu0 0.0
      %822 = vmatpush1.msra.mxu0 0.0
      %823 = vmatprep.subr.mxu0 0.0
      %824 = vmatpush1.msra.mxu0 0.0
      %825 = vmatprep.subr.mxu0 0.0
      %826 = vmatpush1.msra.mxu0 0.0
      %827 = vmatprep.subr.mxu0 0.0
      %828 = vmatpush1.msra.mxu0 0.0
      %829 = vmatprep.subr.mxu0 0.0
      %830 = vmatpush1.msra.mxu0 0.0
      %831 = vmatprep.subr.mxu0 0.0
      %832 = vmatpush1.msra.mxu0 0.0
      %833 = vmatprep.subr.mxu0 0.0
      %834 = vmatpush1.msra.mxu0 0.0
      %835 = vmatprep.subr.mxu0 0.0
      %836 = vmatpush1.msra.mxu0 0.0
      %837 = vmatprep.subr.mxu0 0.0
      %838 = vmatpush1.msra.mxu0 0.0
      %839 = vmatprep.subr.mxu0 0.0
      %840 = vmatpush1.msra.mxu0 0.0
      %841 = vmatprep.subr.mxu0 0.0
      %842 = vmatpush1.msra.mxu0 0.0
      %843 = vmatprep.mubr.f32.mxu0 0.0
      %844 = vmatmul.mubr.f32.gmra.mrb[0].mxu0 %v765
      %v845 = vpop.f32.mrb[0].mxu0
      %v846 = vadd.f32 %v762, %v845
      %v847 = vpop.f32.mrb[0].mxu0
      %848 = vmatprep.mubr.f32.mxu0 0.0
      %849 = vmatmul.mubr.f32.gmra.mrb[0].mxu0 %v768
      %v850 = vpop.f32.mrb[0].mxu0
      %v851 = vadd.f32 %v762, %v850
      %v852 = vpop.f32.mrb[0].mxu0
      %853 = vmatprep.mubr.f32.mxu0 0.0
      %854 = vmatmul.mubr.f32.gmra.mrb[0].mxu0 %v771
      %v855 = vpop.f32.mrb[0].mxu0
      %v856 = vadd.f32 %v762, %v855
      %v857 = vpop.f32.mrb[0].mxu0
      %858 = vmatprep.mubr.f32.mxu0 0.0
      %859 = vmatmul.mubr.f32.gmra.mrb[0].mxu0 %v774
      %v860 = vpop.f32.mrb[0].mxu0
      %v861 = vadd.f32 %v762, %v860
      %v862 = vpop.f32.mrb[0].mxu0
      %863 = vmatprep.mubr.f32.mxu0 0.0
      %864 = vmatmul.mubr.f32.gmra.mrb[0].mxu0 %v777
      %v865 = vpop.f32.mrb[0].mxu0
      %v866 = vadd.f32 %v762, %v865
      %v867 = vpop.f32.mrb[0].mxu0
      %868 = vdwg.mxu0
      %872 = vrot.lane.b32.xlu0 %v846, 96
      %v873 = vpop.permute.xlu0 %872
      %874 = vrot.lane.b32.xlu0 %v851, 96
      %v875 = vpop.permute.xlu0 %874
      %876 = vrot.lane.b32.xlu0 %v856, 96
      %v877 = vpop.permute.xlu0 %876
      %vm878 = vcmask 130048
      %v879 = vsel %vm878, %v846, 0
      %v881 = vsel %vm878, %v851, 0
      %v883 = vsel %vm878, %v856, 0
      %v885 = vsel %vm878, %v873, 0
      %v887 = vsel %vm878, %v875, 0
      %v889 = vsel %vm878, %v877, 0
      %891 = vmatprep.subr.mxu0 0.0
      %892 = vmatpush1.xpose.msra.mxu0 %v885
      %893 = vmatprep.subr.mxu0 0.0
      %894 = vmatpush1.xpose.msra.mxu0 %v887
      %895 = vmatprep.subr.mxu0 0.0
      %896 = vmatpush1.xpose.msra.mxu0 %v889
      %897 = vmatprep.subr.mxu0 0.0
      %898 = vmatpush1.xpose.msra.mxu0 0.0
      %899 = vmatprep.subr.mxu0 0.0
      %900 = vmatpush1.xpose.msra.mxu0 0.0
      %901 = vmatprep.subr.mxu0 0.0
      %902 = vmatpush1.xpose.msra.mxu0 0.0
      %903 = vmatprep.subr.mxu0 0.0
      %904 = vmatpush1.xpose.msra.mxu0 0.0
      %905 = vmatprep.subr.mxu0 0.0
      %906 = vmatpush1.xpose.msra.mxu0 0.0
      %907 = vmatprep.subr.mxu0 0.0
      %908 = vmatpush1.xpose.msra.mxu0 0.0
      %909 = vmatprep.subr.mxu0 0.0
      %910 = vmatpush1.xpose.msra.mxu0 0.0
      %911 = vmatprep.subr.mxu0 0.0
      %912 = vmatpush1.xpose.msra.mxu0 0.0
      %913 = vmatprep.subr.mxu0 0.0
      %914 = vmatpush1.xpose.msra.mxu0 0.0
      %915 = vmatprep.subr.mxu0 0.0
      %916 = vmatpush1.xpose.msra.mxu0 0.0
      %917 = vmatprep.subr.mxu0 0.0
      %918 = vmatpush1.xpose.msra.mxu0 0.0
      %919 = vmatprep.subr.mxu0 0.0
      %920 = vmatpush1.xpose.msra.mxu0 0.0
      %921 = vmatprep.subr.mxu0 0.0
      %922 = vmatpush1.xpose.msra.mxu0 0.0
      %923 = vmatprep.subr.mxu0 0.0
      %924 = vmatpush1.xpose.msra.mxu0 0.0
      %925 = vmatprep.subr.mxu0 0.0
      %926 = vmatpush1.xpose.msra.mxu0 0.0
      %927 = vmatprep.subr.mxu0 0.0
      %928 = vmatpush1.xpose.msra.mxu0 0.0
      %929 = vmatprep.subr.mxu0 0.0
      %930 = vmatpush1.xpose.msra.mxu0 0.0
      %931 = vmatprep.subr.mxu0 0.0
      %932 = vmatpush1.xpose.msra.mxu0 0.0
      %933 = vmatprep.subr.mxu0 0.0
      %934 = vmatpush1.xpose.msra.mxu0 0.0
      %935 = vmatprep.subr.mxu0 0.0
      %936 = vmatpush1.xpose.msra.mxu0 0.0
      %937 = vmatprep.subr.mxu0 0.0
      %938 = vmatpush1.xpose.msra.mxu0 0.0
      %939 = vmatprep.subr.mxu0 0.0
      %940 = vmatpush1.xpose.msra.mxu0 0.0
      %941 = vmatprep.subr.mxu0 0.0
      %942 = vmatpush1.xpose.msra.mxu0 0.0
      %943 = vmatprep.subr.mxu0 0.0
      %944 = vmatpush1.xpose.msra.mxu0 0.0
      %945 = vmatprep.subr.mxu0 0.0
      %946 = vmatpush1.xpose.msra.mxu0 0.0
      %947 = vmatprep.subr.mxu0 0.0
      %948 = vmatpush1.xpose.msra.mxu0 0.0
      %949 = vmatprep.subr.mxu0 0.0
      %950 = vmatpush1.xpose.msra.mxu0 0.0
      %951 = vmatprep.subr.mxu0 0.0
      %952 = vmatpush1.xpose.msra.mxu0 0.0
      %953 = vmatprep.subr.mxu0 0.0
      %954 = vmatpush1.xpose.msra.mxu0 0.0
      %955 = vmatprep.mubr.f32.mxu0 0.0
      %956 = vmatmul.mubr.f32.gmra.mrb[0].mxu0 %v879
      %v957 = vpop.f32.mrb[0].mxu0
      %v958 = vadd.f32 0.0, %v957
      %v959 = vpop.f32.mrb[0].mxu0
      %960 = vmatprep.mubr.f32.mxu0 0.0
      %961 = vmatmul.mubr.f32.gmra.mrb[0].mxu0 %v881
      %v962 = vpop.f32.mrb[0].mxu0
      %v963 = vadd.f32 0.0, %v962
      %v964 = vpop.f32.mrb[0].mxu0
      %965 = vmatprep.mubr.f32.mxu0 0.0
      %966 = vmatmul.mubr.f32.gmra.mrb[0].mxu0 %v883
      %v967 = vpop.f32.mrb[0].mxu0
      %v968 = vadd.f32 0.0, %v967
      %v969 = vpop.f32.mrb[0].mxu0
      %970 = vdwg.mxu0
      %v971 = vmul.f32 %v958, 0.25
      %v972 = vmul.f32 %v963, 0.25
      %v973 = vmul.f32 %v968, 0.25
      %vm974 = vcmask 138240
      %v975 = vsel %vm974, %v971, -inf
      %976 = vmax.xlane.f32.xlu0 %v975
      %v977 = vpop.xlane.xlu0 %976
      %v978 = vsel %vm974, %v972, -inf
      %979 = vmax.xlane.f32.xlu0 %v978
      %v980 = vpop.xlane.xlu0 %979
      %vm981 = vcmask 131072
      %v982 = vsel %vm981, %v973, -inf
      %983 = vmax.xlane.f32.xlu0 %v982
      %v984 = vpop.xlane.xlu0 %983
      %v985 = vsub.f32 %v971, %v977
      %v986 = vsub.f32 %v972, %v980
      %v987 = vsub.f32 %v973, %v984
      %v988 = vmul.f32 %v985, 1.442695
      %v989 = vpow.pop %v988
      %v990 = vmul.f32 %v986, 1.442695
      %v991 = vpow.pop %v990
      %v992 = vmul.f32 %v987, 1.442695
      %v993 = vpow.pop %v992
      %v994 = vsel %vm974, %v989, 0.0
      %995 = vadd.xlane.f32.xlu0 %v994
      %v996 = vpop.xlane.xlu0 %995
      %v997 = vsel %vm974, %v991, 0.0
      %998 = vadd.xlane.f32.xlu0 %v997
      %v999 = vpop.xlane.xlu0 %998
      %v1000 = vsel %vm981, %v993, 0.0
      %1001 = vadd.xlane.f32.xlu0 %v1000
      %v1002 = vpop.xlane.xlu0 %1001
      %v1003 = vrcp.pop %v996
      %v1004 = vrcp.pop %v999
      %v1005 = vrcp.pop %v1002
      %v1006 = vmul.f32 %v989, %v1003
      %v1007 = vmul.f32 %v991, %v1004
      %v1008 = vmul.f32 %v993, %v1005
      %1009 = vrot.lane.b32.xlu0 %v846, 64
      %v1010 = vpop.permute.xlu0 %1009
      %1011 = vrot.lane.b32.xlu0 %v851, 64
      %v1012 = vpop.permute.xlu0 %1011
      %1013 = vrot.lane.b32.xlu0 %v856, 64
      %v1014 = vpop.permute.xlu0 %1013
      %v1018 = vsel %vm974, %v1006, 0
      %v1021 = vsel %vm974, %v1007, 0
      %v1024 = vsel %vm974, %v1008, 0
      %vm1026 = vcmask 1040384
      %v1027 = vsel %vm1026, %v1014, 0
      %1029 = vmatprep.subr.mxu0 0.0
      %1030 = vmatpush1.msra.mxu0 %v1010
      %1031 = vmatprep.subr.mxu0 0.0
      %1032 = vmatpush1.msra.mxu0 %v1012
      %1033 = vmatprep.subr.mxu0 0.0
      %1034 = vmatpush1.msra.mxu0 %v1027
      %1035 = vmatprep.subr.mxu0 0.0
      %1036 = vmatpush1.msra.mxu0 0.0
      %1037 = vmatprep.subr.mxu0 0.0
      %1038 = vmatpush1.msra.mxu0 0.0
      %1039 = vmatprep.subr.mxu0 0.0
      %1040 = vmatpush1.msra.mxu0 0.0
      %1041 = vmatprep.subr.mxu0 0.0
      %1042 = vmatpush1.msra.mxu0 0.0
      %1043 = vmatprep.subr.mxu0 0.0
      %1044 = vmatpush1.msra.mxu0 0.0
      %1045 = vmatprep.subr.mxu0 0.0
      %1046 = vmatpush1.msra.mxu0 0.0
      %1047 = vmatprep.subr.mxu0 0.0
      %1048 = vmatpush1.msra.mxu0 0.0
      %1049 = vmatprep.subr.mxu0 0.0
      %1050 = vmatpush1.msra.mxu0 0.0
      %1051 = vmatprep.subr.mxu0 0.0
      %1052 = vmatpush1.msra.mxu0 0.0
      %1053 = vmatprep.subr.mxu0 0.0
      %1054 = vmatpush1.msra.mxu0 0.0
      %1055 = vmatprep.subr.mxu0 0.0
      %1056 = vmatpush1.msra.mxu0 0.0
      %1057 = vmatprep.subr.mxu0 0.0
      %1058 = vmatpush1.msra.mxu0 0.0
      %1059 = vmatprep.subr.mxu0 0.0
      %1060 = vmatpush1.msra.mxu0 0.0
      %1061 = vmatprep.subr.mxu0 0.0
      %1062 = vmatpush1.msra.mxu0 0.0
      %1063 = vmatprep.subr.mxu0 0.0
      %1064 = vmatpush1.msra.mxu0 0.0
      %1065 = vmatprep.subr.mxu0 0.0
      %1066 = vmatpush1.msra.mxu0 0.0
      %1067 = vmatprep.subr.mxu0 0.0
      %1068 = vmatpush1.msra.mxu0 0.0
      %1069 = vmatprep.subr.mxu0 0.0
      %1070 = vmatpush1.msra.mxu0 0.0
      %1071 = vmatprep.subr.mxu0 0.0
      %1072 = vmatpush1.msra.mxu0 0.0
      %1073 = vmatprep.subr.mxu0 0.0
      %1074 = vmatpush1.msra.mxu0 0.0
      %1075 = vmatprep.subr.mxu0 0.0
      %1076 = vmatpush1.msra.mxu0 0.0
      %1077 = vmatprep.subr.mxu0 0.0
      %1078 = vmatpush1.msra.mxu0 0.0
      %1079 = vmatprep.subr.mxu0 0.0
      %1080 = vmatpush1.msra.mxu0 0.0
      %1081 = vmatprep.subr.mxu0 0.0
      %1082 = vmatpush1.msra.mxu0 0.0
      %1083 = vmatprep.subr.mxu0 0.0
      %1084 = vmatpush1.msra.mxu0 0.0
      %1085 = vmatprep.subr.mxu0 0.0
      %1086 = vmatpush1.msra.mxu0 0.0
      %1087 = vmatprep.subr.mxu0 0.0
      %1088 = vmatpush1.msra.mxu0 0.0
      %1089 = vmatprep.subr.mxu0 0.0
      %1090 = vmatpush1.msra.mxu0 0.0
      %1091 = vmatprep.subr.mxu0 0.0
      %1092 = vmatpush1.msra.mxu0 0.0
      %1093 = vmatprep.mubr.f32.mxu0 0.0
      %1094 = vmatmul.mubr.f32.gmra.mrb[0].mxu0 %v1018
      %v1095 = vpop.f32.mrb[0].mxu0
      %v1096 = vadd.f32 0.0, %v1095
      %v1097 = vpop.f32.mrb[0].mxu0
      %1098 = vmatprep.mubr.f32.mxu0 0.0
      %1099 = vmatmul.mubr.f32.gmra.mrb[0].mxu0 %v1021
      %v1100 = vpop.f32.mrb[0].mxu0
      %v1101 = vadd.f32 0.0, %v1100
      %v1102 = vpop.f32.mrb[0].mxu0
      %1103 = vmatprep.mubr.f32.mxu0 0.0
      %1104 = vmatmul.mubr.f32.gmra.mrb[0].mxu0 %v1024
      %v1105 = vpop.f32.mrb[0].mxu0
      %v1106 = vadd.f32 0.0, %v1105
      %v1107 = vpop.f32.mrb[0].mxu0
      %1108 = vdwg.mxu0
      %1109 = vrot.lane.b32.xlu0 %v846, 112
      %v1110 = vpop.permute.xlu0 %1109
      %1111 = vrot.lane.b32.xlu0 %v851, 112
      %v1112 = vpop.permute.xlu0 %1111
      %1113 = vrot.lane.b32.xlu0 %v856, 112
      %v1114 = vpop.permute.xlu0 %1113
      %1115 = vrot.lane.b32.xlu0 %v846, 80
      %v1116 = vpop.permute.xlu0 %1115
      %1117 = vrot.lane.b32.xlu0 %v851, 80
      %v1118 = vpop.permute.xlu0 %1117
      %1119 = vrot.lane.b32.xlu0 %v856, 80
      %v1120 = vpop.permute.xlu0 %1119
      %v1121 = vsel %vm878, %v1110, 0
      %v1123 = vsel %vm878, %v1112, 0
      %v1125 = vsel %vm878, %v1114, 0
      %v1127 = vsel %vm878, %v1116, 0
      %v1129 = vsel %vm878, %v1118, 0
      %v1131 = vsel %vm878, %v1120, 0
      %1133 = vmatprep.subr.mxu0 0.0
      %1134 = vmatpush1.xpose.msra.mxu0 %v1127
      %1135 = vmatprep.subr.mxu0 0.0
      %1136 = vmatpush1.xpose.msra.mxu0 %v1129
      %1137 = vmatprep.subr.mxu0 0.0
      %1138 = vmatpush1.xpose.msra.mxu0 %v1131
      %1139 = vmatprep.subr.mxu0 0.0
      %1140 = vmatpush1.xpose.msra.mxu0 0.0
      %1141 = vmatprep.subr.mxu0 0.0
      %1142 = vmatpush1.xpose.msra.mxu0 0.0
      %1143 = vmatprep.subr.mxu0 0.0
      %1144 = vmatpush1.xpose.msra.mxu0 0.0
      %1145 = vmatprep.subr.mxu0 0.0
      %1146 = vmatpush1.xpose.msra.mxu0 0.0
      %1147 = vmatprep.subr.mxu0 0.0
      %1148 = vmatpush1.xpose.msra.mxu0 0.0
      %1149 = vmatprep.subr.mxu0 0.0
      %1150 = vmatpush1.xpose.msra.mxu0 0.0
      %1151 = vmatprep.subr.mxu0 0.0
      %1152 = vmatpush1.xpose.msra.mxu0 0.0
      %1153 = vmatprep.subr.mxu0 0.0
      %1154 = vmatpush1.xpose.msra.mxu0 0.0
      %1155 = vmatprep.subr.mxu0 0.0
      %1156 = vmatpush1.xpose.msra.mxu0 0.0
      %1157 = vmatprep.subr.mxu0 0.0
      %1158 = vmatpush1.xpose.msra.mxu0 0.0
      %1159 = vmatprep.subr.mxu0 0.0
      %1160 = vmatpush1.xpose.msra.mxu0 0.0
      %1161 = vmatprep.subr.mxu0 0.0
      %1162 = vmatpush1.xpose.msra.mxu0 0.0
      %1163 = vmatprep.subr.mxu0 0.0
      %1164 = vmatpush1.xpose.msra.mxu0 0.0
      %1165 = vmatprep.subr.mxu0 0.0
      %1166 = vmatpush1.xpose.msra.mxu0 0.0
      %1167 = vmatprep.subr.mxu0 0.0
      %1168 = vmatpush1.xpose.msra.mxu0 0.0
      %1169 = vmatprep.subr.mxu0 0.0
      %1170 = vmatpush1.xpose.msra.mxu0 0.0
      %1171 = vmatprep.subr.mxu0 0.0
      %1172 = vmatpush1.xpose.msra.mxu0 0.0
      %1173 = vmatprep.subr.mxu0 0.0
      %1174 = vmatpush1.xpose.msra.mxu0 0.0
      %1175 = vmatprep.subr.mxu0 0.0
      %1176 = vmatpush1.xpose.msra.mxu0 0.0
      %1177 = vmatprep.subr.mxu0 0.0
      %1178 = vmatpush1.xpose.msra.mxu0 0.0
      %1179 = vmatprep.subr.mxu0 0.0
      %1180 = vmatpush1.xpose.msra.mxu0 0.0
      %1181 = vmatprep.subr.mxu0 0.0
      %1182 = vmatpush1.xpose.msra.mxu0 0.0
      %1183 = vmatprep.subr.mxu0 0.0
      %1184 = vmatpush1.xpose.msra.mxu0 0.0
      %1185 = vmatprep.subr.mxu0 0.0
      %1186 = vmatpush1.xpose.msra.mxu0 0.0
      %1187 = vmatprep.subr.mxu0 0.0
      %1188 = vmatpush1.xpose.msra.mxu0 0.0
      %1189 = vmatprep.subr.mxu0 0.0
      %1190 = vmatpush1.xpose.msra.mxu0 0.0
      %1191 = vmatprep.subr.mxu0 0.0
      %1192 = vmatpush1.xpose.msra.mxu0 0.0
      %1193 = vmatprep.subr.mxu0 0.0
      %1194 = vmatpush1.xpose.msra.mxu0 0.0
      %1195 = vmatprep.subr.mxu0 0.0
      %1196 = vmatpush1.xpose.msra.mxu0 0.0
      %1197 = vmatprep.mubr.f32.mxu0 0.0
      %1198 = vmatmul.mubr.f32.gmra.mrb[0].mxu0 %v1121
      %v1199 = vpop.f32.mrb[0].mxu0
      %v1200 = vadd.f32 0.0, %v1199
      %v1201 = vpop.f32.mrb[0].mxu0
      %1202 = vmatprep.mubr.f32.mxu0 0.0
      %1203 = vmatmul.mubr.f32.gmra.mrb[0].mxu0 %v1123
      %v1204 = vpop.f32.mrb[0].mxu0
      %v1205 = vadd.f32 0.0, %v1204
      %v1206 = vpop.f32.mrb[0].mxu0
      %1207 = vmatprep.mubr.f32.mxu0 0.0
      %1208 = vmatmul.mubr.f32.gmra.mrb[0].mxu0 %v1125
      %v1209 = vpop.f32.mrb[0].mxu0
      %v1210 = vadd.f32 0.0, %v1209
      %v1211 = vpop.f32.mrb[0].mxu0
      %1212 = vdwg.mxu0
      %v1213 = vmul.f32 %v1200, 0.25
      %v1214 = vmul.f32 %v1205, 0.25
      %v1215 = vmul.f32 %v1210, 0.25
      %v1216 = vsel %vm974, %v1213, -inf
      %1217 = vmax.xlane.f32.xlu0 %v1216
      %v1218 = vpop.xlane.xlu0 %1217
      %v1219 = vsel %vm974, %v1214, -inf
      %1220 = vmax.xlane.f32.xlu0 %v1219
      %v1221 = vpop.xlane.xlu0 %1220
      %v1222 = vsel %vm981, %v1215, -inf
      %1223 = vmax.xlane.f32.xlu0 %v1222
      %v1224 = vpop.xlane.xlu0 %1223
      %v1225 = vsub.f32 %v1213, %v1218
      %v1226 = vsub.f32 %v1214, %v1221
      %v1227 = vsub.f32 %v1215, %v1224
      %v1228 = vmul.f32 %v1225, 1.442695
      %v1229 = vpow.pop %v1228
      %v1230 = vmul.f32 %v1226, 1.442695
      %v1231 = vpow.pop %v1230
      %v1232 = vmul.f32 %v1227, 1.442695
      %v1233 = vpow.pop %v1232
      %v1234 = vsel %vm974, %v1229, 0.0
      %1235 = vadd.xlane.f32.xlu0 %v1234
      %v1236 = vpop.xlane.xlu0 %1235
      %v1237 = vsel %vm974, %v1231, 0.0
      %1238 = vadd.xlane.f32.xlu0 %v1237
      %v1239 = vpop.xlane.xlu0 %1238
      %v1240 = vsel %vm981, %v1233, 0.0
      %1241 = vadd.xlane.f32.xlu0 %v1240
      %v1242 = vpop.xlane.xlu0 %1241
      %v1243 = vrcp.pop %v1236
      %v1244 = vrcp.pop %v1239
      %v1245 = vrcp.pop %v1242
      %v1246 = vmul.f32 %v1229, %v1243
      %v1247 = vmul.f32 %v1231, %v1244
      %v1248 = vmul.f32 %v1233, %v1245
      %1249 = vrot.lane.b32.xlu0 %v846, 48
      %v1250 = vpop.permute.xlu0 %1249
      %1251 = vrot.lane.b32.xlu0 %v851, 48
      %v1252 = vpop.permute.xlu0 %1251
      %1253 = vrot.lane.b32.xlu0 %v856, 48
      %v1254 = vpop.permute.xlu0 %1253
      %v1258 = vsel %vm974, %v1246, 0
      %v1261 = vsel %vm974, %v1247, 0
      %v1264 = vsel %vm974, %v1248, 0
      %v1266 = vsel %vm1026, %v1254, 0
      %1268 = vmatprep.subr.mxu0 0.0
      %1269 = vmatpush1.msra.mxu0 %v1250
      %1270 = vmatprep.subr.mxu0 0.0
      %1271 = vmatpush1.msra.mxu0 %v1252
      %1272 = vmatprep.subr.mxu0 0.0
      %1273 = vmatpush1.msra.mxu0 %v1266
      %1274 = vmatprep.subr.mxu0 0.0
      %1275 = vmatpush1.msra.mxu0 0.0
      %1276 = vmatprep.subr.mxu0 0.0
      %1277 = vmatpush1.msra.mxu0 0.0
      %1278 = vmatprep.subr.mxu0 0.0
      %1279 = vmatpush1.msra.mxu0 0.0
      %1280 = vmatprep.subr.mxu0 0.0
      %1281 = vmatpush1.msra.mxu0 0.0
      %1282 = vmatprep.subr.mxu0 0.0
      %1283 = vmatpush1.msra.mxu0 0.0
      %1284 = vmatprep.subr.mxu0 0.0
      %1285 = vmatpush1.msra.mxu0 0.0
      %1286 = vmatprep.subr.mxu0 0.0
      %1287 = vmatpush1.msra.mxu0 0.0
      %1288 = vmatprep.subr.mxu0 0.0
      %1289 = vmatpush1.msra.mxu0 0.0
      %1290 = vmatprep.subr.mxu0 0.0
      %1291 = vmatpush1.msra.mxu0 0.0
      %1292 = vmatprep.subr.mxu0 0.0
      %1293 = vmatpush1.msra.mxu0 0.0
      %1294 = vmatprep.subr.mxu0 0.0
      %1295 = vmatpush1.msra.mxu0 0.0
      %1296 = vmatprep.subr.mxu0 0.0
      %1297 = vmatpush1.msra.mxu0 0.0
      %1298 = vmatprep.subr.mxu0 0.0
      %1299 = vmatpush1.msra.mxu0 0.0
      %1300 = vmatprep.subr.mxu0 0.0
      %1301 = vmatpush1.msra.mxu0 0.0
      %1302 = vmatprep.subr.mxu0 0.0
      %1303 = vmatpush1.msra.mxu0 0.0
      %1304 = vmatprep.subr.mxu0 0.0
      %1305 = vmatpush1.msra.mxu0 0.0
      %1306 = vmatprep.subr.mxu0 0.0
      %1307 = vmatpush1.msra.mxu0 0.0
      %1308 = vmatprep.subr.mxu0 0.0
      %1309 = vmatpush1.msra.mxu0 0.0
      %1310 = vmatprep.subr.mxu0 0.0
      %1311 = vmatpush1.msra.mxu0 0.0
      %1312 = vmatprep.subr.mxu0 0.0
      %1313 = vmatpush1.msra.mxu0 0.0
      %1314 = vmatprep.subr.mxu0 0.0
      %1315 = vmatpush1.msra.mxu0 0.0
      %1316 = vmatprep.subr.mxu0 0.0
      %1317 = vmatpush1.msra.mxu0 0.0
      %1318 = vmatprep.subr.mxu0 0.0
      %1319 = vmatpush1.msra.mxu0 0.0
      %1320 = vmatprep.subr.mxu0 0.0
      %1321 = vmatpush1.msra.mxu0 0.0
      %1322 = vmatprep.subr.mxu0 0.0
      %1323 = vmatpush1.msra.mxu0 0.0
      %1324 = vmatprep.subr.mxu0 0.0
      %1325 = vmatpush1.msra.mxu0 0.0
      %1326 = vmatprep.subr.mxu0 0.0
      %1327 = vmatpush1.msra.mxu0 0.0
      %1328 = vmatprep.subr.mxu0 0.0
      %1329 = vmatpush1.msra.mxu0 0.0
      %1330 = vmatprep.subr.mxu0 0.0
      %1331 = vmatpush1.msra.mxu0 0.0
      %1332 = vmatprep.mubr.f32.mxu0 0.0
      %1333 = vmatmul.mubr.f32.gmra.mrb[0].mxu0 %v1258
      %v1334 = vpop.f32.mrb[0].mxu0
      %v1335 = vadd.f32 0.0, %v1334
      %v1336 = vpop.f32.mrb[0].mxu0
      %1337 = vmatprep.mubr.f32.mxu0 0.0
      %1338 = vmatmul.mubr.f32.gmra.mrb[0].mxu0 %v1261
      %v1339 = vpop.f32.mrb[0].mxu0
      %v1340 = vadd.f32 0.0, %v1339
      %v1341 = vpop.f32.mrb[0].mxu0
      %1342 = vmatprep.mubr.f32.mxu0 0.0
      %1343 = vmatmul.mubr.f32.gmra.mrb[0].mxu0 %v1264
      %v1344 = vpop.f32.mrb[0].mxu0
      %v1345 = vadd.f32 0.0, %v1344
      %v1346 = vpop.f32.mrb[0].mxu0
      %1347 = vdwg.mxu0
      %1351 = vrot.lane.b32.xlu0 %v1335, 16
      %v1352 = vpop.permute.xlu0 %1351
      %1353 = vrot.lane.b32.xlu0 %v1340, 16
      %v1354 = vpop.permute.xlu0 %1353
      %1355 = vrot.lane.b32.xlu0 %v1345, 16
      %v1356 = vpop.permute.xlu0 %1355
      %v1360 = vsel %vm878, %v1096, %v1352
      %v1361 = vsel %vm878, %v1101, %v1354
      %v1362 = vsel %vm878, %v1106, %v1356
      %vm1365 = vcmask 1046528
      %v1366 = vrot.slane %v856, 1
      %v1367 = vrot.slane %v861, 1
      %v1368 = vsel %vm1365, %v1366, %v1367
      %v1369 = vrot.slane %v866, 1
      %v1370 = vsel %vm1365, %v1367, %v1369
      %1371 = vrot.lane.b32.xlu0 %v1368, 96
      %v1372 = vpop.permute.xlu0 %1371
      %1373 = vrot.lane.b32.xlu0 %v1370, 96
      %v1374 = vpop.permute.xlu0 %1373
      %1375 = vrot.lane.b32.xlu0 %v1369, 96
      %v1376 = vpop.permute.xlu0 %1375
      %v1377 = vsel %vm878, %v1368, 0
      %v1379 = vsel %vm878, %v1370, 0
      %v1381 = vsel %vm878, %v1369, 0
      %v1383 = vsel %vm878, %v1372, 0
      %v1385 = vsel %vm878, %v1374, 0
      %v1387 = vsel %vm878, %v1376, 0
      %1389 = vmatprep.subr.mxu0 0.0
      %1390 = vmatpush1.xpose.msra.mxu0 %v1383
      %1391 = vmatprep.subr.mxu0 0.0
      %1392 = vmatpush1.xpose.msra.mxu0 %v1385
      %1393 = vmatprep.subr.mxu0 0.0
      %1394 = vmatpush1.xpose.msra.mxu0 %v1387
      %1395 = vmatprep.subr.mxu0 0.0
      %1396 = vmatpush1.xpose.msra.mxu0 0.0
      %1397 = vmatprep.subr.mxu0 0.0
      %1398 = vmatpush1.xpose.msra.mxu0 0.0
      %1399 = vmatprep.subr.mxu0 0.0
      %1400 = vmatpush1.xpose.msra.mxu0 0.0
      %1401 = vmatprep.subr.mxu0 0.0
      %1402 = vmatpush1.xpose.msra.mxu0 0.0
      %1403 = vmatprep.subr.mxu0 0.0
      %1404 = vmatpush1.xpose.msra.mxu0 0.0
      %1405 = vmatprep.subr.mxu0 0.0
      %1406 = vmatpush1.xpose.msra.mxu0 0.0
      %1407 = vmatprep.subr.mxu0 0.0
      %1408 = vmatpush1.xpose.msra.mxu0 0.0
      %1409 = vmatprep.subr.mxu0 0.0
      %1410 = vmatpush1.xpose.msra.mxu0 0.0
      %1411 = vmatprep.subr.mxu0 0.0
      %1412 = vmatpush1.xpose.msra.mxu0 0.0
      %1413 = vmatprep.subr.mxu0 0.0
      %1414 = vmatpush1.xpose.msra.mxu0 0.0
      %1415 = vmatprep.subr.mxu0 0.0
      %1416 = vmatpush1.xpose.msra.mxu0 0.0
      %1417 = vmatprep.subr.mxu0 0.0
      %1418 = vmatpush1.xpose.msra.mxu0 0.0
      %1419 = vmatprep.subr.mxu0 0.0
      %1420 = vmatpush1.xpose.msra.mxu0 0.0
      %1421 = vmatprep.subr.mxu0 0.0
      %1422 = vmatpush1.xpose.msra.mxu0 0.0
      %1423 = vmatprep.subr.mxu0 0.0
      %1424 = vmatpush1.xpose.msra.mxu0 0.0
      %1425 = vmatprep.subr.mxu0 0.0
      %1426 = vmatpush1.xpose.msra.mxu0 0.0
      %1427 = vmatprep.subr.mxu0 0.0
      %1428 = vmatpush1.xpose.msra.mxu0 0.0
      %1429 = vmatprep.subr.mxu0 0.0
      %1430 = vmatpush1.xpose.msra.mxu0 0.0
      %1431 = vmatprep.subr.mxu0 0.0
      %1432 = vmatpush1.xpose.msra.mxu0 0.0
      %1433 = vmatprep.subr.mxu0 0.0
      %1434 = vmatpush1.xpose.msra.mxu0 0.0
      %1435 = vmatprep.subr.mxu0 0.0
      %1436 = vmatpush1.xpose.msra.mxu0 0.0
      %1437 = vmatprep.subr.mxu0 0.0
      %1438 = vmatpush1.xpose.msra.mxu0 0.0
      %1439 = vmatprep.subr.mxu0 0.0
      %1440 = vmatpush1.xpose.msra.mxu0 0.0
      %1441 = vmatprep.subr.mxu0 0.0
      %1442 = vmatpush1.xpose.msra.mxu0 0.0
      %1443 = vmatprep.subr.mxu0 0.0
      %1444 = vmatpush1.xpose.msra.mxu0 0.0
      %1445 = vmatprep.subr.mxu0 0.0
      %1446 = vmatpush1.xpose.msra.mxu0 0.0
      %1447 = vmatprep.subr.mxu0 0.0
      %1448 = vmatpush1.xpose.msra.mxu0 0.0
      %1449 = vmatprep.subr.mxu0 0.0
      %1450 = vmatpush1.xpose.msra.mxu0 0.0
      %1451 = vmatprep.subr.mxu0 0.0
      %1452 = vmatpush1.xpose.msra.mxu0 0.0
      %1453 = vmatprep.mubr.f32.mxu0 0.0
      %1454 = vmatmul.mubr.f32.gmra.mrb[0].mxu0 %v1377
      %v1455 = vpop.f32.mrb[0].mxu0
      %v1456 = vadd.f32 0.0, %v1455
      %v1457 = vpop.f32.mrb[0].mxu0
      %1458 = vmatprep.mubr.f32.mxu0 0.0
      %1459 = vmatmul.mubr.f32.gmra.mrb[0].mxu0 %v1379
      %v1460 = vpop.f32.mrb[0].mxu0
      %v1461 = vadd.f32 0.0, %v1460
      %v1462 = vpop.f32.mrb[0].mxu0
      %1463 = vmatprep.mubr.f32.mxu0 0.0
      %1464 = vmatmul.mubr.f32.gmra.mrb[0].mxu0 %v1381
      %v1465 = vpop.f32.mrb[0].mxu0
      %v1466 = vadd.f32 0.0, %v1465
      %v1467 = vpop.f32.mrb[0].mxu0
      %1468 = vdwg.mxu0
      %v1469 = vmul.f32 %v1456, 0.25
      %v1470 = vmul.f32 %v1461, 0.25
      %v1471 = vmul.f32 %v1466, 0.25
      %v1472 = vsel %vm974, %v1469, -inf
      %1473 = vmax.xlane.f32.xlu0 %v1472
      %v1474 = vpop.xlane.xlu0 %1473
      %v1475 = vsel %vm974, %v1470, -inf
      %1476 = vmax.xlane.f32.xlu0 %v1475
      %v1477 = vpop.xlane.xlu0 %1476
      %v1478 = vsel %vm981, %v1471, -inf
      %1479 = vmax.xlane.f32.xlu0 %v1478
      %v1480 = vpop.xlane.xlu0 %1479
      %v1481 = vsub.f32 %v1469, %v1474
      %v1482 = vsub.f32 %v1470, %v1477
      %v1483 = vsub.f32 %v1471, %v1480
      %v1484 = vmul.f32 %v1481, 1.442695
      %v1485 = vpow.pop %v1484
      %v1486 = vmul.f32 %v1482, 1.442695
      %v1487 = vpow.pop %v1486
      %v1488 = vmul.f32 %v1483, 1.442695
      %v1489 = vpow.pop %v1488
      %v1490 = vsel %vm974, %v1485, 0.0
      %1491 = vadd.xlane.f32.xlu0 %v1490
      %v1492 = vpop.xlane.xlu0 %1491
      %v1493 = vsel %vm974, %v1487, 0.0
      %1494 = vadd.xlane.f32.xlu0 %v1493
      %v1495 = vpop.xlane.xlu0 %1494
      %v1496 = vsel %vm981, %v1489, 0.0
      %1497 = vadd.xlane.f32.xlu0 %v1496
      %v1498 = vpop.xlane.xlu0 %1497
      %v1499 = vrcp.pop %v1492
      %v1500 = vrcp.pop %v1495
      %v1501 = vrcp.pop %v1498
      %v1502 = vmul.f32 %v1485, %v1499
      %v1503 = vmul.f32 %v1487, %v1500
      %v1504 = vmul.f32 %v1489, %v1501
      %1505 = vrot.lane.b32.xlu0 %v1368, 64
      %v1506 = vpop.permute.xlu0 %1505
      %1507 = vrot.lane.b32.xlu0 %v1370, 64
      %v1508 = vpop.permute.xlu0 %1507
      %1509 = vrot.lane.b32.xlu0 %v1369, 64
      %v1510 = vpop.permute.xlu0 %1509
      %v1514 = vsel %vm974, %v1502, 0
      %v1517 = vsel %vm974, %v1503, 0
      %v1520 = vsel %vm974, %v1504, 0
      %v1522 = vsel %vm1026, %v1510, 0
      %1524 = vmatprep.subr.mxu0 0.0
      %1525 = vmatpush1.msra.mxu0 %v1506
      %1526 = vmatprep.subr.mxu0 0.0
      %1527 = vmatpush1.msra.mxu0 %v1508
      %1528 = vmatprep.subr.mxu0 0.0
      %1529 = vmatpush1.msra.mxu0 %v1522
      %1530 = vmatprep.subr.mxu0 0.0
      %1531 = vmatpush1.msra.mxu0 0.0
      %1532 = vmatprep.subr.mxu0 0.0
      %1533 = vmatpush1.msra.mxu0 0.0
      %1534 = vmatprep.subr.mxu0 0.0
      %1535 = vmatpush1.msra.mxu0 0.0
      %1536 = vmatprep.subr.mxu0 0.0
      %1537 = vmatpush1.msra.mxu0 0.0
      %1538 = vmatprep.subr.mxu0 0.0
      %1539 = vmatpush1.msra.mxu0 0.0
      %1540 = vmatprep.subr.mxu0 0.0
      %1541 = vmatpush1.msra.mxu0 0.0
      %1542 = vmatprep.subr.mxu0 0.0
      %1543 = vmatpush1.msra.mxu0 0.0
      %1544 = vmatprep.subr.mxu0 0.0
      %1545 = vmatpush1.msra.mxu0 0.0
      %1546 = vmatprep.subr.mxu0 0.0
      %1547 = vmatpush1.msra.mxu0 0.0
      %1548 = vmatprep.subr.mxu0 0.0
      %1549 = vmatpush1.msra.mxu0 0.0
      %1550 = vmatprep.subr.mxu0 0.0
      %1551 = vmatpush1.msra.mxu0 0.0
      %1552 = vmatprep.subr.mxu0 0.0
      %1553 = vmatpush1.msra.mxu0 0.0
      %1554 = vmatprep.subr.mxu0 0.0
      %1555 = vmatpush1.msra.mxu0 0.0
      %1556 = vmatprep.subr.mxu0 0.0
      %1557 = vmatpush1.msra.mxu0 0.0
      %1558 = vmatprep.subr.mxu0 0.0
      %1559 = vmatpush1.msra.mxu0 0.0
      %1560 = vmatprep.subr.mxu0 0.0
      %1561 = vmatpush1.msra.mxu0 0.0
      %1562 = vmatprep.subr.mxu0 0.0
      %1563 = vmatpush1.msra.mxu0 0.0
      %1564 = vmatprep.subr.mxu0 0.0
      %1565 = vmatpush1.msra.mxu0 0.0
      %1566 = vmatprep.subr.mxu0 0.0
      %1567 = vmatpush1.msra.mxu0 0.0
      %1568 = vmatprep.subr.mxu0 0.0
      %1569 = vmatpush1.msra.mxu0 0.0
      %1570 = vmatprep.subr.mxu0 0.0
      %1571 = vmatpush1.msra.mxu0 0.0
      %1572 = vmatprep.subr.mxu0 0.0
      %1573 = vmatpush1.msra.mxu0 0.0
      %1574 = vmatprep.subr.mxu0 0.0
      %1575 = vmatpush1.msra.mxu0 0.0
      %1576 = vmatprep.subr.mxu0 0.0
      %1577 = vmatpush1.msra.mxu0 0.0
      %1578 = vmatprep.subr.mxu0 0.0
      %1579 = vmatpush1.msra.mxu0 0.0
      %1580 = vmatprep.subr.mxu0 0.0
      %1581 = vmatpush1.msra.mxu0 0.0
      %1582 = vmatprep.subr.mxu0 0.0
      %1583 = vmatpush1.msra.mxu0 0.0
      %1584 = vmatprep.subr.mxu0 0.0
      %1585 = vmatpush1.msra.mxu0 0.0
      %1586 = vmatprep.subr.mxu0 0.0
      %1587 = vmatpush1.msra.mxu0 0.0
      %1588 = vmatprep.mubr.f32.mxu0 0.0
      %1589 = vmatmul.mubr.f32.gmra.mrb[0].mxu0 %v1514
      %v1590 = vpop.f32.mrb[0].mxu0
      %v1591 = vadd.f32 0.0, %v1590
      %v1592 = vpop.f32.mrb[0].mxu0
      %1593 = vmatprep.mubr.f32.mxu0 0.0
      %1594 = vmatmul.mubr.f32.gmra.mrb[0].mxu0 %v1517
      %v1595 = vpop.f32.mrb[0].mxu0
      %v1596 = vadd.f32 0.0, %v1595
      %v1597 = vpop.f32.mrb[0].mxu0
      %1598 = vmatprep.mubr.f32.mxu0 0.0
      %1599 = vmatmul.mubr.f32.gmra.mrb[0].mxu0 %v1520
      %v1600 = vpop.f32.mrb[0].mxu0
      %v1601 = vadd.f32 0.0, %v1600
      %v1602 = vpop.f32.mrb[0].mxu0
      %1603 = vdwg.mxu0
      %1604 = vrot.lane.b32.xlu0 %v1368, 112
      %v1605 = vpop.permute.xlu0 %1604
      %1606 = vrot.lane.b32.xlu0 %v1370, 112
      %v1607 = vpop.permute.xlu0 %1606
      %1608 = vrot.lane.b32.xlu0 %v1369, 112
      %v1609 = vpop.permute.xlu0 %1608
      %1610 = vrot.lane.b32.xlu0 %v1368, 80
      %v1611 = vpop.permute.xlu0 %1610
      %1612 = vrot.lane.b32.xlu0 %v1370, 80
      %v1613 = vpop.permute.xlu0 %1612
      %1614 = vrot.lane.b32.xlu0 %v1369, 80
      %v1615 = vpop.permute.xlu0 %1614
      %v1616 = vsel %vm878, %v1605, 0
      %v1618 = vsel %vm878, %v1607, 0
      %v1620 = vsel %vm878, %v1609, 0
      %v1622 = vsel %vm878, %v1611, 0
      %v1624 = vsel %vm878, %v1613, 0
      %v1626 = vsel %vm878, %v1615, 0
      %1628 = vmatprep.subr.mxu0 0.0
      %1629 = vmatpush1.xpose.msra.mxu0 %v1622
      %1630 = vmatprep.subr.mxu0 0.0
      %1631 = vmatpush1.xpose.msra.mxu0 %v1624
      %1632 = vmatprep.subr.mxu0 0.0
      %1633 = vmatpush1.xpose.msra.mxu0 %v1626
      %1634 = vmatprep.subr.mxu0 0.0
      %1635 = vmatpush1.xpose.msra.mxu0 0.0
      %1636 = vmatprep.subr.mxu0 0.0
      %1637 = vmatpush1.xpose.msra.mxu0 0.0
      %1638 = vmatprep.subr.mxu0 0.0
      %1639 = vmatpush1.xpose.msra.mxu0 0.0
      %1640 = vmatprep.subr.mxu0 0.0
      %1641 = vmatpush1.xpose.msra.mxu0 0.0
      %1642 = vmatprep.subr.mxu0 0.0
      %1643 = vmatpush1.xpose.msra.mxu0 0.0
      %1644 = vmatprep.subr.mxu0 0.0
      %1645 = vmatpush1.xpose.msra.mxu0 0.0
      %1646 = vmatprep.subr.mxu0 0.0
      %1647 = vmatpush1.xpose.msra.mxu0 0.0
      %1648 = vmatprep.subr.mxu0 0.0
      %1649 = vmatpush1.xpose.msra.mxu0 0.0
      %1650 = vmatprep.subr.mxu0 0.0
      %1651 = vmatpush1.xpose.msra.mxu0 0.0
      %1652 = vmatprep.subr.mxu0 0.0
      %1653 = vmatpush1.xpose.msra.mxu0 0.0
      %1654 = vmatprep.subr.mxu0 0.0
      %1655 = vmatpush1.xpose.msra.mxu0 0.0
      %1656 = vmatprep.subr.mxu0 0.0
      %1657 = vmatpush1.xpose.msra.mxu0 0.0
      %1658 = vmatprep.subr.mxu0 0.0
      %1659 = vmatpush1.xpose.msra.mxu0 0.0
      %1660 = vmatprep.subr.mxu0 0.0
      %1661 = vmatpush1.xpose.msra.mxu0 0.0
      %1662 = vmatprep.subr.mxu0 0.0
      %1663 = vmatpush1.xpose.msra.mxu0 0.0
      %1664 = vmatprep.subr.mxu0 0.0
      %1665 = vmatpush1.xpose.msra.mxu0 0.0
      %1666 = vmatprep.subr.mxu0 0.0
      %1667 = vmatpush1.xpose.msra.mxu0 0.0
      %1668 = vmatprep.subr.mxu0 0.0
      %1669 = vmatpush1.xpose.msra.mxu0 0.0
      %1670 = vmatprep.subr.mxu0 0.0
      %1671 = vmatpush1.xpose.msra.mxu0 0.0
      %1672 = vmatprep.subr.mxu0 0.0
      %1673 = vmatpush1.xpose.msra.mxu0 0.0
      %1674 = vmatprep.subr.mxu0 0.0
      %1675 = vmatpush1.xpose.msra.mxu0 0.0
      %1676 = vmatprep.subr.mxu0 0.0
      %1677 = vmatpush1.xpose.msra.mxu0 0.0
      %1678 = vmatprep.subr.mxu0 0.0
      %1679 = vmatpush1.xpose.msra.mxu0 0.0
      %1680 = vmatprep.subr.mxu0 0.0
      %1681 = vmatpush1.xpose.msra.mxu0 0.0
      %1682 = vmatprep.subr.mxu0 0.0
      %1683 = vmatpush1.xpose.msra.mxu0 0.0
      %1684 = vmatprep.subr.mxu0 0.0
      %1685 = vmatpush1.xpose.msra.mxu0 0.0
      %1686 = vmatprep.subr.mxu0 0.0
      %1687 = vmatpush1.xpose.msra.mxu0 0.0
      %1688 = vmatprep.subr.mxu0 0.0
      %1689 = vmatpush1.xpose.msra.mxu0 0.0
      %1690 = vmatprep.subr.mxu0 0.0
      %1691 = vmatpush1.xpose.msra.mxu0 0.0
      %1692 = vmatprep.mubr.f32.mxu0 0.0
      %1693 = vmatmul.mubr.f32.gmra.mrb[0].mxu0 %v1616
      %v1694 = vpop.f32.mrb[0].mxu0
      %v1695 = vadd.f32 0.0, %v1694
      %v1696 = vpop.f32.mrb[0].mxu0
      %1697 = vmatprep.mubr.f32.mxu0 0.0
      %1698 = vmatmul.mubr.f32.gmra.mrb[0].mxu0 %v1618
      %v1699 = vpop.f32.mrb[0].mxu0
      %v1700 = vadd.f32 0.0, %v1699
      %v1701 = vpop.f32.mrb[0].mxu0
      %1702 = vmatprep.mubr.f32.mxu0 0.0
      %1703 = vmatmul.mubr.f32.gmra.mrb[0].mxu0 %v1620
      %v1704 = vpop.f32.mrb[0].mxu0
      %v1705 = vadd.f32 0.0, %v1704
      %v1706 = vpop.f32.mrb[0].mxu0
      %1707 = vdwg.mxu0
      %v1708 = vmul.f32 %v1695, 0.25
      %v1709 = vmul.f32 %v1700, 0.25
      %v1710 = vmul.f32 %v1705, 0.25
      %v1711 = vsel %vm974, %v1708, -inf
      %1712 = vmax.xlane.f32.xlu0 %v1711
      %v1713 = vpop.xlane.xlu0 %1712
      %v1714 = vsel %vm974, %v1709, -inf
      %1715 = vmax.xlane.f32.xlu0 %v1714
      %v1716 = vpop.xlane.xlu0 %1715
      %v1717 = vsel %vm981, %v1710, -inf
      %1718 = vmax.xlane.f32.xlu0 %v1717
      %v1719 = vpop.xlane.xlu0 %1718
      %v1720 = vsub.f32 %v1708, %v1713
      %v1721 = vsub.f32 %v1709, %v1716
      %v1722 = vsub.f32 %v1710, %v1719
      %v1723 = vmul.f32 %v1720, 1.442695
      %v1724 = vpow.pop %v1723
      %v1725 = vmul.f32 %v1721, 1.442695
      %v1726 = vpow.pop %v1725
      %v1727 = vmul.f32 %v1722, 1.442695
      %v1728 = vpow.pop %v1727
      %v1729 = vsel %vm974, %v1724, 0.0
      %1730 = vadd.xlane.f32.xlu0 %v1729
      %v1731 = vpop.xlane.xlu0 %1730
      %v1732 = vsel %vm974, %v1726, 0.0
      %1733 = vadd.xlane.f32.xlu0 %v1732
      %v1734 = vpop.xlane.xlu0 %1733
      %v1735 = vsel %vm981, %v1728, 0.0
      %1736 = vadd.xlane.f32.xlu0 %v1735
      %v1737 = vpop.xlane.xlu0 %1736
      %v1738 = vrcp.pop %v1731
      %v1739 = vrcp.pop %v1734
      %v1740 = vrcp.pop %v1737
      %v1741 = vmul.f32 %v1724, %v1738
      %v1742 = vmul.f32 %v1726, %v1739
      %v1743 = vmul.f32 %v1728, %v1740
      %1744 = vrot.lane.b32.xlu0 %v1368, 48
      %v1745 = vpop.permute.xlu0 %1744
      %1746 = vrot.lane.b32.xlu0 %v1370, 48
      %v1747 = vpop.permute.xlu0 %1746
      %1748 = vrot.lane.b32.xlu0 %v1369, 48
      %v1749 = vpop.permute.xlu0 %1748
      %v1753 = vsel %vm974, %v1741, 0
      %v1756 = vsel %vm974, %v1742, 0
      %v1759 = vsel %vm974, %v1743, 0
      %v1761 = vsel %vm1026, %v1749, 0
      %1763 = vmatprep.subr.mxu0 0.0
      %1764 = vmatpush1.msra.mxu0 %v1745
      %1765 = vmatprep.subr.mxu0 0.0
      %1766 = vmatpush1.msra.mxu0 %v1747
      %1767 = vmatprep.subr.mxu0 0.0
      %1768 = vmatpush1.msra.mxu0 %v1761
      %1769 = vmatprep.subr.mxu0 0.0
      %1770 = vmatpush1.msra.mxu0 0.0
      %1771 = vmatprep.subr.mxu0 0.0
      %1772 = vmatpush1.msra.mxu0 0.0
      %1773 = vmatprep.subr.mxu0 0.0
      %1774 = vmatpush1.msra.mxu0 0.0
      %1775 = vmatprep.subr.mxu0 0.0
      %1776 = vmatpush1.msra.mxu0 0.0
      %1777 = vmatprep.subr.mxu0 0.0
      %1778 = vmatpush1.msra.mxu0 0.0
      %1779 = vmatprep.subr.mxu0 0.0
      %1780 = vmatpush1.msra.mxu0 0.0
      %1781 = vmatprep.subr.mxu0 0.0
      %1782 = vmatpush1.msra.mxu0 0.0
      %1783 = vmatprep.subr.mxu0 0.0
      %1784 = vmatpush1.msra.mxu0 0.0
      %1785 = vmatprep.subr.mxu0 0.0
      %1786 = vmatpush1.msra.mxu0 0.0
      %1787 = vmatprep.subr.mxu0 0.0
      %1788 = vmatpush1.msra.mxu0 0.0
      %1789 = vmatprep.subr.mxu0 0.0
      %1790 = vmatpush1.msra.mxu0 0.0
      %1791 = vmatprep.subr.mxu0 0.0
      %1792 = vmatpush1.msra.mxu0 0.0
      %1793 = vmatprep.subr.mxu0 0.0
      %1794 = vmatpush1.msra.mxu0 0.0
      %1795 = vmatprep.subr.mxu0 0.0
      %1796 = vmatpush1.msra.mxu0 0.0
      %1797 = vmatprep.subr.mxu0 0.0
      %1798 = vmatpush1.msra.mxu0 0.0
      %1799 = vmatprep.subr.mxu0 0.0
      %1800 = vmatpush1.msra.mxu0 0.0
      %1801 = vmatprep.subr.mxu0 0.0
      %1802 = vmatpush1.msra.mxu0 0.0
      %1803 = vmatprep.subr.mxu0 0.0
      %1804 = vmatpush1.msra.mxu0 0.0
      %1805 = vmatprep.subr.mxu0 0.0
      %1806 = vmatpush1.msra.mxu0 0.0
      %1807 = vmatprep.subr.mxu0 0.0
      %1808 = vmatpush1.msra.mxu0 0.0
      %1809 = vmatprep.subr.mxu0 0.0
      %1810 = vmatpush1.msra.mxu0 0.0
      %1811 = vmatprep.subr.mxu0 0.0
      %1812 = vmatpush1.msra.mxu0 0.0
      %1813 = vmatprep.subr.mxu0 0.0
      %1814 = vmatpush1.msra.mxu0 0.0
      %1815 = vmatprep.subr.mxu0 0.0
      %1816 = vmatpush1.msra.mxu0 0.0
      %1817 = vmatprep.subr.mxu0 0.0
      %1818 = vmatpush1.msra.mxu0 0.0
      %1819 = vmatprep.subr.mxu0 0.0
      %1820 = vmatpush1.msra.mxu0 0.0
      %1821 = vmatprep.subr.mxu0 0.0
      %1822 = vmatpush1.msra.mxu0 0.0
      %1823 = vmatprep.subr.mxu0 0.0
      %1824 = vmatpush1.msra.mxu0 0.0
      %1825 = vmatprep.subr.mxu0 0.0
      %1826 = vmatpush1.msra.mxu0 0.0
      %1827 = vmatprep.mubr.f32.mxu0 0.0
      %1828 = vmatmul.mubr.f32.gmra.mrb[0].mxu0 %v1753
      %v1829 = vpop.f32.mrb[0].mxu0
      %v1830 = vadd.f32 0.0, %v1829
      %v1831 = vpop.f32.mrb[0].mxu0
      %1832 = vmatprep.mubr.f32.mxu0 0.0
      %1833 = vmatmul.mubr.f32.gmra.mrb[0].mxu0 %v1756
      %v1834 = vpop.f32.mrb[0].mxu0
      %v1835 = vadd.f32 0.0, %v1834
      %v1836 = vpop.f32.mrb[0].mxu0
      %1837 = vmatprep.mubr.f32.mxu0 0.0
      %1838 = vmatmul.mubr.f32.gmra.mrb[0].mxu0 %v1759
      %v1839 = vpop.f32.mrb[0].mxu0
      %v1840 = vadd.f32 0.0, %v1839
      %v1841 = vpop.f32.mrb[0].mxu0
      %1842 = vdwg.mxu0
      %1846 = vrot.lane.b32.xlu0 %v1830, 16
      %v1847 = vpop.permute.xlu0 %1846
      %1848 = vrot.lane.b32.xlu0 %v1835, 16
      %v1849 = vpop.permute.xlu0 %1848
      %1850 = vrot.lane.b32.xlu0 %v1840, 16
      %v1851 = vpop.permute.xlu0 %1850
      %v1855 = vsel %vm878, %v1591, %v1847
      %v1856 = vsel %vm878, %v1596, %v1849
      %v1857 = vsel %vm878, %v1601, %v1851
      %v1861 = vrot.slane %v1855, 7
      %v1862 = vrot.slane %v1856, 7
      %v1863 = vsel %vm1026, %v1861, %v1862
      %v1864 = vrot.slane %v1857, 7
      %v1865 = vsel %vm1026, %v1862, %v1864
      %v1867 = vsel %vm1026, %v1362, %v1861
      %v1868 = vld [vmem:[%s516] sm:$0xff]
      %v1869 = vld [vmem:[%s516 + $0x8] sm:$0xff]
      %v1870 = vld [vmem:[%s516 + $0x10] sm:$0xff]
      %v1871 = vld [vmem:[%s516 + $0x18] sm:$0xff]
      %v1872 = vlaneseq
      %v1873 = vshrl.u32 %v1872, 7
      %v1874 = vsub.s32 4, %v1873
      %v1875 = vrot.slane %v542, %v1874
      %v1877 = vsel %vm667, %v1360, 0
      %v1880 = vsel %vm667, %v1361, 0
      %v1883 = vsel %vm667, %v1867, 0
      %v1885 = vsel %vm667, %v1863, 0
      %v1887 = vsel %vm667, %v1865, 0
      %1889 = vmatprep.subr.mxu0 0.0
      %1890 = vmatpush1.msra.mxu0 %v1868
      %1891 = vmatprep.subr.mxu0 0.0
      %1892 = vmatpush1.msra.mxu0 %v1869
      %1893 = vmatprep.subr.mxu0 0.0
      %1894 = vmatpush1.msra.mxu0 %v1870
      %1895 = vmatprep.subr.mxu0 0.0
      %1896 = vmatpush1.msra.mxu0 %v1871
      %1897 = vmatprep.subr.mxu0 0.0
      %1898 = vmatpush1.msra.mxu0 0.0
      %1899 = vmatprep.subr.mxu0 0.0
      %1900 = vmatpush1.msra.mxu0 0.0
      %1901 = vmatprep.subr.mxu0 0.0
      %1902 = vmatpush1.msra.mxu0 0.0
      %1903 = vmatprep.subr.mxu0 0.0
      %1904 = vmatpush1.msra.mxu0 0.0
      %1905 = vmatprep.subr.mxu0 0.0
      %1906 = vmatpush1.msra.mxu0 0.0
      %1907 = vmatprep.subr.mxu0 0.0
      %1908 = vmatpush1.msra.mxu0 0.0
      %1909 = vmatprep.subr.mxu0 0.0
      %1910 = vmatpush1.msra.mxu0 0.0
      %1911 = vmatprep.subr.mxu0 0.0
      %1912 = vmatpush1.msra.mxu0 0.0
      %1913 = vmatprep.subr.mxu0 0.0
      %1914 = vmatpush1.msra.mxu0 0.0
      %1915 = vmatprep.subr.mxu0 0.0
      %1916 = vmatpush1.msra.mxu0 0.0
      %1917 = vmatprep.subr.mxu0 0.0
      %1918 = vmatpush1.msra.mxu0 0.0
      %1919 = vmatprep.subr.mxu0 0.0
      %1920 = vmatpush1.msra.mxu0 0.0
      %1921 = vmatprep.subr.mxu0 0.0
      %1922 = vmatpush1.msra.mxu0 0.0
      %1923 = vmatprep.subr.mxu0 0.0
      %1924 = vmatpush1.msra.mxu0 0.0
      %1925 = vmatprep.subr.mxu0 0.0
      %1926 = vmatpush1.msra.mxu0 0.0
      %1927 = vmatprep.subr.mxu0 0.0
      %1928 = vmatpush1.msra.mxu0 0.0
      %1929 = vmatprep.subr.mxu0 0.0
      %1930 = vmatpush1.msra.mxu0 0.0
      %1931 = vmatprep.subr.mxu0 0.0
      %1932 = vmatpush1.msra.mxu0 0.0
      %1933 = vmatprep.subr.mxu0 0.0
      %1934 = vmatpush1.msra.mxu0 0.0
      %1935 = vmatprep.subr.mxu0 0.0
      %1936 = vmatpush1.msra.mxu0 0.0
      %1937 = vmatprep.subr.mxu0 0.0
      %1938 = vmatpush1.msra.mxu0 0.0
      %1939 = vmatprep.subr.mxu0 0.0
      %1940 = vmatpush1.msra.mxu0 0.0
      %1941 = vmatprep.subr.mxu0 0.0
      %1942 = vmatpush1.msra.mxu0 0.0
      %1943 = vmatprep.subr.mxu0 0.0
      %1944 = vmatpush1.msra.mxu0 0.0
      %1945 = vmatprep.subr.mxu0 0.0
      %1946 = vmatpush1.msra.mxu0 0.0
      %1947 = vmatprep.subr.mxu0 0.0
      %1948 = vmatpush1.msra.mxu0 0.0
      %1949 = vmatprep.subr.mxu0 0.0
      %1950 = vmatpush1.msra.mxu0 0.0
      %1951 = vmatprep.subr.mxu0 0.0
      %1952 = vmatpush1.msra.mxu0 0.0
      %1953 = vmatprep.mubr.f32.mxu0 0.0
      %1954 = vmatmul.mubr.f32.gmra.mrb[0].mxu0 %v1877
      %v1955 = vpop.f32.mrb[0].mxu0
      %v1956 = vadd.f32 %v1875, %v1955
      %v1957 = vpop.f32.mrb[0].mxu0
      %1958 = vmatprep.mubr.f32.mxu0 0.0
      %1959 = vmatmul.mubr.f32.gmra.mrb[0].mxu0 %v1880
      %v1960 = vpop.f32.mrb[0].mxu0
      %v1961 = vadd.f32 %v1875, %v1960
      %v1962 = vpop.f32.mrb[0].mxu0
      %1963 = vmatprep.mubr.f32.mxu0 0.0
      %1964 = vmatmul.mubr.f32.gmra.mrb[0].mxu0 %v1883
      %v1965 = vpop.f32.mrb[0].mxu0
      %v1966 = vadd.f32 %v1875, %v1965
      %v1967 = vpop.f32.mrb[0].mxu0
      %1968 = vmatprep.mubr.f32.mxu0 0.0
      %1969 = vmatmul.mubr.f32.gmra.mrb[0].mxu0 %v1885
      %v1970 = vpop.f32.mrb[0].mxu0
      %v1971 = vadd.f32 %v1875, %v1970
      %v1972 = vpop.f32.mrb[0].mxu0
      %1973 = vmatprep.mubr.f32.mxu0 0.0
      %1974 = vmatmul.mubr.f32.gmra.mrb[0].mxu0 %v1887
      %v1975 = vpop.f32.mrb[0].mxu0
      %v1976 = vadd.f32 %v1875, %v1975
      %v1977 = vpop.f32.mrb[0].mxu0
      %1978 = vdwg.mxu0
      %v1979 = vadd.f32 %v644, %v1956
      %v1980 = vadd.f32 %v649, %v1961
      %v1981 = vadd.f32 %v654, %v1966
      %v1982 = vadd.f32 %v659, %v1971
      %v1983 = vadd.f32 %v664, %v1976
      %v1984 = vsel %vm667, %v1979, 0.0
      %1985 = vadd.xlane.f32.xlu0 %v1984
      %v1986 = vpop.xlane.xlu0 %1985
      %v1987 = vsel %vm667, %v1980, 0.0
      %1988 = vadd.xlane.f32.xlu0 %v1987
      %v1989 = vpop.xlane.xlu0 %1988
      %v1990 = vsel %vm667, %v1981, 0.0
      %1991 = vadd.xlane.f32.xlu0 %v1990
      %v1992 = vpop.xlane.xlu0 %1991
      %v1993 = vsel %vm667, %v1982, 0.0
      %1994 = vadd.xlane.f32.xlu0 %v1993
      %v1995 = vpop.xlane.xlu0 %1994
      %v1996 = vsel %vm680, %v1983, 0.0
      %1997 = vadd.xlane.f32.xlu0 %v1996
      %v1998 = vpop.xlane.xlu0 %1997
      %v1999 = vmul.f32 %v1986, %v684
      %v2000 = vmul.f32 %v1989, %v684
      %v2001 = vmul.f32 %v1992, %v684
      %v2002 = vmul.f32 %v1995, %v684
      %v2003 = vmul.f32 %v1998, %v684
      %v2004 = vsub.f32 %v1979, %v1999
      %v2005 = vsub.f32 %v1980, %v2000
      %v2006 = vsub.f32 %v1981, %v2001
      %v2007 = vsub.f32 %v1982, %v2002
      %v2008 = vsub.f32 %v1983, %v2003
      %v2009 = vmul.f32 %v2004, %v2004
      %v2010 = vmul.f32 %v2005, %v2005
      %v2011 = vmul.f32 %v2006, %v2006
      %v2012 = vmul.f32 %v2007, %v2007
      %v2013 = vmul.f32 %v2008, %v2008
      %v2014 = vsel %vm667, %v2009, 0.0
      %2015 = vadd.xlane.f32.xlu0 %v2014
      %v2016 = vpop.xlane.xlu0 %2015
      %v2017 = vsel %vm667, %v2010, 0.0
      %2018 = vadd.xlane.f32.xlu0 %v2017
      %v2019 = vpop.xlane.xlu0 %2018
      %v2020 = vsel %vm667, %v2011, 0.0
      %2021 = vadd.xlane.f32.xlu0 %v2020
      %v2022 = vpop.xlane.xlu0 %2021
      %v2023 = vsel %vm667, %v2012, 0.0
      %2024 = vadd.xlane.f32.xlu0 %v2023
      %v2025 = vpop.xlane.xlu0 %2024
      %v2026 = vsel %vm680, %v2013, 0.0
      %2027 = vadd.xlane.f32.xlu0 %v2026
      %v2028 = vpop.xlane.xlu0 %2027
      %v2029 = vmul.f32 %v2016, %v684
      %v2030 = vmul.f32 %v2019, %v684
      %v2031 = vmul.f32 %v2022, %v684
      %v2032 = vmul.f32 %v2025, %v684
      %v2033 = vmul.f32 %v2028, %v684
      %v2034 = vadd.f32 %v2029, 1e-06
      %v2035 = vadd.f32 %v2030, 1e-06
      %v2036 = vadd.f32 %v2031, 1e-06
      %v2037 = vadd.f32 %v2032, 1e-06
      %v2038 = vadd.f32 %v2033, 1e-06
      %v2039 = vrsqrt.pop %v2034
      %v2040 = vrsqrt.pop %v2035
      %v2041 = vrsqrt.pop %v2036
      %v2042 = vrsqrt.pop %v2037
      %v2043 = vrsqrt.pop %v2038
      %v2044 = vmul.f32 %v2004, %v2039
      %v2045 = vmul.f32 %v2005, %v2040
      %v2046 = vmul.f32 %v2006, %v2041
      %v2047 = vmul.f32 %v2007, %v2042
      %v2048 = vmul.f32 %v2008, %v2043
      %v2049 = vlaneseq
      %v2050 = vshrl.u32 %v2049, 7
      %v2051 = vsub.s32 2, %v2050
      %v2052 = vrot.slane %v542, %v2051
      %v2053 = vmul.f32 %v2044, %v2052
      %v2054 = vmul.f32 %v2045, %v2052
      %v2055 = vmul.f32 %v2046, %v2052
      %v2056 = vmul.f32 %v2047, %v2052
      %v2057 = vmul.f32 %v2048, %v2052
      %v2058 = vlaneseq
      %v2059 = vshrl.u32 %v2058, 7
      %v2060 = vsub.s32 3, %v2059
      %v2061 = vrot.slane %v542, %v2060
      %v2062 = vadd.f32 %v2053, %v2061
      %v2063 = vadd.f32 %v2054, %v2061
      %v2064 = vadd.f32 %v2055, %v2061
      %v2065 = vadd.f32 %v2056, %v2061
      %v2066 = vadd.f32 %v2057, %v2061
      %v2067 = vld [vmem:[%s521] sm:$0xff]
      %v2068 = vld [vmem:[%s521 + $0x8] sm:$0xff]
      %v2069 = vld [vmem:[%s521 + $0x10] sm:$0xff]
      %v2070 = vld [vmem:[%s521 + $0x18] sm:$0xff]
      %v2071 = vld [vmem:[%s525] sm:$0x1]
      %v2073 = vlaneseq
      %v2074 = vshrl.u32 %v2073, 7
      %v2075 = vsub.s32 0, %v2074
      %v2076 = vrot.slane %v2071, %v2075
      %v2079 = vsel %vm667, %v2062, 0
      %v2082 = vsel %vm667, %v2063, 0
      %v2085 = vsel %vm667, %v2064, 0
      %v2088 = vsel %vm667, %v2065, 0
      %v2091 = vsel %vm667, %v2066, 0
      %2093 = vmatprep.subr.mxu0 0.0
      %2094 = vmatpush1.msra.mxu0 %v2067
      %2095 = vmatprep.subr.mxu0 0.0
      %2096 = vmatpush1.msra.mxu0 %v2068
      %2097 = vmatprep.subr.mxu0 0.0
      %2098 = vmatpush1.msra.mxu0 %v2069
      %2099 = vmatprep.subr.mxu0 0.0
      %2100 = vmatpush1.msra.mxu0 %v2070
      %2101 = vmatprep.subr.mxu0 0.0
      %2102 = vmatpush1.msra.mxu0 0.0
      %2103 = vmatprep.subr.mxu0 0.0
      %2104 = vmatpush1.msra.mxu0 0.0
      %2105 = vmatprep.subr.mxu0 0.0
      %2106 = vmatpush1.msra.mxu0 0.0
      %2107 = vmatprep.subr.mxu0 0.0
      %2108 = vmatpush1.msra.mxu0 0.0
      %2109 = vmatprep.subr.mxu0 0.0
      %2110 = vmatpush1.msra.mxu0 0.0
      %2111 = vmatprep.subr.mxu0 0.0
      %2112 = vmatpush1.msra.mxu0 0.0
      %2113 = vmatprep.subr.mxu0 0.0
      %2114 = vmatpush1.msra.mxu0 0.0
      %2115 = vmatprep.subr.mxu0 0.0
      %2116 = vmatpush1.msra.mxu0 0.0
      %2117 = vmatprep.subr.mxu0 0.0
      %2118 = vmatpush1.msra.mxu0 0.0
      %2119 = vmatprep.subr.mxu0 0.0
      %2120 = vmatpush1.msra.mxu0 0.0
      %2121 = vmatprep.subr.mxu0 0.0
      %2122 = vmatpush1.msra.mxu0 0.0
      %2123 = vmatprep.subr.mxu0 0.0
      %2124 = vmatpush1.msra.mxu0 0.0
      %2125 = vmatprep.subr.mxu0 0.0
      %2126 = vmatpush1.msra.mxu0 0.0
      %2127 = vmatprep.subr.mxu0 0.0
      %2128 = vmatpush1.msra.mxu0 0.0
      %2129 = vmatprep.subr.mxu0 0.0
      %2130 = vmatpush1.msra.mxu0 0.0
      %2131 = vmatprep.subr.mxu0 0.0
      %2132 = vmatpush1.msra.mxu0 0.0
      %2133 = vmatprep.subr.mxu0 0.0
      %2134 = vmatpush1.msra.mxu0 0.0
      %2135 = vmatprep.subr.mxu0 0.0
      %2136 = vmatpush1.msra.mxu0 0.0
      %2137 = vmatprep.subr.mxu0 0.0
      %2138 = vmatpush1.msra.mxu0 0.0
      %2139 = vmatprep.subr.mxu0 0.0
      %2140 = vmatpush1.msra.mxu0 0.0
      %2141 = vmatprep.subr.mxu0 0.0
      %2142 = vmatpush1.msra.mxu0 0.0
      %2143 = vmatprep.subr.mxu0 0.0
      %2144 = vmatpush1.msra.mxu0 0.0
      %2145 = vmatprep.subr.mxu0 0.0
      %2146 = vmatpush1.msra.mxu0 0.0
      %2147 = vmatprep.subr.mxu0 0.0
      %2148 = vmatpush1.msra.mxu0 0.0
      %2149 = vmatprep.subr.mxu0 0.0
      %2150 = vmatpush1.msra.mxu0 0.0
      %2151 = vmatprep.subr.mxu0 0.0
      %2152 = vmatpush1.msra.mxu0 0.0
      %2153 = vmatprep.subr.mxu0 0.0
      %2154 = vmatpush1.msra.mxu0 0.0
      %2155 = vmatprep.subr.mxu0 0.0
      %2156 = vmatpush1.msra.mxu0 0.0
      %2157 = vmatprep.mubr.f32.mxu0 0.0
      %2158 = vmatmul.mubr.f32.gmra.mrb[0].mxu0 %v2079
      %v2159 = vpop.f32.mrb[0].mxu0
      %v2160 = vadd.f32 %v2076, %v2159
      %v2161 = vpop.f32.mrb[0].mxu0
      %2162 = vmatprep.mubr.f32.mxu0 0.0
      %2163 = vmatmul.mubr.f32.gmra.mrb[0].mxu0 %v2082
      %v2164 = vpop.f32.mrb[0].mxu0
      %v2165 = vadd.f32 %v2076, %v2164
      %v2166 = vpop.f32.mrb[0].mxu0
      %2167 = vmatprep.mubr.f32.mxu0 0.0
      %2168 = vmatmul.mubr.f32.gmra.mrb[0].mxu0 %v2085
      %v2169 = vpop.f32.mrb[0].mxu0
      %v2170 = vadd.f32 %v2076, %v2169
      %v2171 = vpop.f32.mrb[0].mxu0
      %2172 = vmatprep.mubr.f32.mxu0 0.0
      %2173 = vmatmul.mubr.f32.gmra.mrb[0].mxu0 %v2088
      %v2174 = vpop.f32.mrb[0].mxu0
      %v2175 = vadd.f32 %v2076, %v2174
      %v2176 = vpop.f32.mrb[0].mxu0
      %2177 = vmatprep.mubr.f32.mxu0 0.0
      %2178 = vmatmul.mubr.f32.gmra.mrb[0].mxu0 %v2091
      %v2179 = vpop.f32.mrb[0].mxu0
      %v2180 = vadd.f32 %v2076, %v2179
      %v2181 = vpop.f32.mrb[0].mxu0
      %2182 = vdwg.mxu0
      %v2183 = vmul.f32 %v2160, %v2160
      %v2184 = vmul.f32 %v2165, %v2165
      %v2185 = vmul.f32 %v2170, %v2170
      %v2186 = vmul.f32 %v2175, %v2175
      %v2187 = vmul.f32 %v2180, %v2180
      %v2188 = vmul.f32 %v2160, %v2183
      %v2189 = vmul.f32 %v2165, %v2184
      %v2190 = vmul.f32 %v2170, %v2185
      %v2191 = vmul.f32 %v2175, %v2186
      %v2192 = vmul.f32 %v2180, %v2187
      %v2193 = vmul.f32 %v2188, 0.044715
      %v2194 = vmul.f32 %v2189, 0.044715
      %v2195 = vmul.f32 %v2190, 0.044715
      %v2196 = vmul.f32 %v2191, 0.044715
      %v2197 = vmul.f32 %v2192, 0.044715
      %v2198 = vadd.f32 %v2160, %v2193
      %v2199 = vadd.f32 %v2165, %v2194
      %v2200 = vadd.f32 %v2170, %v2195
      %v2201 = vadd.f32 %v2175, %v2196
      %v2202 = vadd.f32 %v2180, %v2197
      %v2203 = vmul.f32 %v2198, 0.7978846
      %v2204 = vmul.f32 %v2199, 0.7978846
      %v2205 = vmul.f32 %v2200, 0.7978846
      %v2206 = vmul.f32 %v2201, 0.7978846
      %v2207 = vmul.f32 %v2202, 0.7978846
      %v2208 = vtanh.pop %v2203
      %v2209 = vtanh.pop %v2204
      %v2210 = vtanh.pop %v2205
      %v2211 = vtanh.pop %v2206
      %v2212 = vtanh.pop %v2207
      %v2213 = vadd.f32 %v2208, 1.0
      %v2214 = vadd.f32 %v2209, 1.0
      %v2215 = vadd.f32 %v2210, 1.0
      %v2216 = vadd.f32 %v2211, 1.0
      %v2217 = vadd.f32 %v2212, 1.0
      %v2218 = vmul.f32 %v2213, 0.5
      %v2219 = vmul.f32 %v2214, 0.5
      %v2220 = vmul.f32 %v2215, 0.5
      %v2221 = vmul.f32 %v2216, 0.5
      %v2222 = vmul.f32 %v2217, 0.5
      %v2223 = vmul.f32 %v2160, %v2218
      %v2224 = vmul.f32 %v2165, %v2219
      %v2225 = vmul.f32 %v2170, %v2220
      %v2226 = vmul.f32 %v2175, %v2221
      %v2227 = vmul.f32 %v2180, %v2222
      %v2228 = vld [vmem:[%s530] sm:$0xff]
      %v2229 = vld [vmem:[%s530 + $0x8] sm:$0xff]
      %v2230 = vld [vmem:[%s530 + $0x10] sm:$0xff]
      %v2231 = vld [vmem:[%s530 + $0x18] sm:$0xff]
      %v2232 = vld [vmem:[%s530 + $0x20] sm:$0xff]
      %v2233 = vld [vmem:[%s530 + $0x28] sm:$0xff]
      %v2234 = vld [vmem:[%s530 + $0x30] sm:$0xff]
      %v2235 = vld [vmem:[%s530 + $0x38] sm:$0xff]
      %v2236 = vld [vmem:[%s530 + $0x40] sm:$0xff]
      %v2237 = vld [vmem:[%s530 + $0x48] sm:$0xff]
      %v2238 = vld [vmem:[%s530 + $0x50] sm:$0xff]
      %v2239 = vld [vmem:[%s530 + $0x58] sm:$0xff]
      %v2240 = vld [vmem:[%s530 + $0x60] sm:$0xff]
      %v2241 = vld [vmem:[%s530 + $0x68] sm:$0xff]
      %v2242 = vld [vmem:[%s530 + $0x70] sm:$0xff]
      %v2243 = vld [vmem:[%s530 + $0x78] sm:$0xff]
      %v2244 = vlaneseq
      %v2245 = vshrl.u32 %v2244, 7
      %v2246 = vsub.s32 5, %v2245
      %v2247 = vrot.slane %v542, %v2246
      %2248 = vmatprep.subr.mxu0 0.0
      %2249 = vmatpush1.msra.mxu0 %v2228
      %2250 = vmatprep.subr.mxu0 0.0
      %2251 = vmatpush1.msra.mxu0 %v2229
      %2252 = vmatprep.subr.mxu0 0.0
      %2253 = vmatpush1.msra.mxu0 %v2230
      %2254 = vmatprep.subr.mxu0 0.0
      %2255 = vmatpush1.msra.mxu0 %v2231
      %2256 = vmatprep.subr.mxu0 0.0
      %2257 = vmatpush1.msra.mxu0 %v2232
      %2258 = vmatprep.subr.mxu0 0.0
      %2259 = vmatpush1.msra.mxu0 %v2233
      %2260 = vmatprep.subr.mxu0 0.0
      %2261 = vmatpush1.msra.mxu0 %v2234
      %2262 = vmatprep.subr.mxu0 0.0
      %2263 = vmatpush1.msra.mxu0 %v2235
      %2264 = vmatprep.subr.mxu0 0.0
      %2265 = vmatpush1.msra.mxu0 %v2236
      %2266 = vmatprep.subr.mxu0 0.0
      %2267 = vmatpush1.msra.mxu0 %v2237
      %2268 = vmatprep.subr.mxu0 0.0
      %2269 = vmatpush1.msra.mxu0 %v2238
      %2270 = vmatprep.subr.mxu0 0.0
      %2271 = vmatpush1.msra.mxu0 %v2239
      %2272 = vmatprep.subr.mxu0 0.0
      %2273 = vmatpush1.msra.mxu0 %v2240
      %2274 = vmatprep.subr.mxu0 0.0
      %2275 = vmatpush1.msra.mxu0 %v2241
      %2276 = vmatprep.subr.mxu0 0.0
      %2277 = vmatpush1.msra.mxu0 %v2242
      %2278 = vmatprep.subr.mxu0 0.0
      %2279 = vmatpush1.msra.mxu0 %v2243
      %2280 = vmatprep.subr.mxu0 0.0
      %2281 = vmatpush1.msra.mxu0 0.0
      %2282 = vmatprep.subr.mxu0 0.0
      %2283 = vmatpush1.msra.mxu0 0.0
      %2284 = vmatprep.subr.mxu0 0.0
      %2285 = vmatpush1.msra.mxu0 0.0
      %2286 = vmatprep.subr.mxu0 0.0
      %2287 = vmatpush1.msra.mxu0 0.0
      %2288 = vmatprep.subr.mxu0 0.0
      %2289 = vmatpush1.msra.mxu0 0.0
      %2290 = vmatprep.subr.mxu0 0.0
      %2291 = vmatpush1.msra.mxu0 0.0
      %2292 = vmatprep.subr.mxu0 0.0
      %2293 = vmatpush1.msra.mxu0 0.0
      %2294 = vmatprep.subr.mxu0 0.0
      %2295 = vmatpush1.msra.mxu0 0.0
      %2296 = vmatprep.subr.mxu0 0.0
      %2297 = vmatpush1.msra.mxu0 0.0
      %2298 = vmatprep.subr.mxu0 0.0
      %2299 = vmatpush1.msra.mxu0 0.0
      %2300 = vmatprep.subr.mxu0 0.0
      %2301 = vmatpush1.msra.mxu0 0.0
      %2302 = vmatprep.subr.mxu0 0.0
      %2303 = vmatpush1.msra.mxu0 0.0
      %2304 = vmatprep.subr.mxu0 0.0
      %2305 = vmatpush1.msra.mxu0 0.0
      %2306 = vmatprep.subr.mxu0 0.0
      %2307 = vmatpush1.msra.mxu0 0.0
      %2308 = vmatprep.subr.mxu0 0.0
      %2309 = vmatpush1.msra.mxu0 0.0
      %2310 = vmatprep.subr.mxu0 0.0
      %2311 = vmatpush1.msra.mxu0 0.0
      %2312 = vmatprep.mubr.f32.mxu0 0.0
      %2313 = vmatmul.mubr.f32.gmra.mrb[0].mxu0 %v2223
      %v2314 = vpop.f32.mrb[0].mxu0
      %v2315 = vadd.f32 %v2247, %v2314
      %v2316 = vpop.f32.mrb[0].mxu0
      %2317 = vmatprep.mubr.f32.mxu0 0.0
      %2318 = vmatmul.mubr.f32.gmra.mrb[0].mxu0 %v2224
      %v2319 = vpop.f32.mrb[0].mxu0
      %v2320 = vadd.f32 %v2247, %v2319
      %v2321 = vpop.f32.mrb[0].mxu0
      %2322 = vmatprep.mubr.f32.mxu0 0.0
      %2323 = vmatmul.mubr.f32.gmra.mrb[0].mxu0 %v2225
      %v2324 = vpop.f32.mrb[0].mxu0
      %v2325 = vadd.f32 %v2247, %v2324
      %v2326 = vpop.f32.mrb[0].mxu0
      %2327 = vmatprep.mubr.f32.mxu0 0.0
      %2328 = vmatmul.mubr.f32.gmra.mrb[0].mxu0 %v2226
      %v2329 = vpop.f32.mrb[0].mxu0
      %v2330 = vadd.f32 %v2247, %v2329
      %v2331 = vpop.f32.mrb[0].mxu0
      %2332 = vmatprep.mubr.f32.mxu0 0.0
      %2333 = vmatmul.mubr.f32.gmra.mrb[0].mxu0 %v2227
      %v2334 = vpop.f32.mrb[0].mxu0
      %v2335 = vadd.f32 %v2247, %v2334
      %v2336 = vpop.f32.mrb[0].mxu0
      %2337 = vdwg.mxu0
      %v2338 = vadd.f32 %v1979, %v2315
      %v2339 = vadd.f32 %v1980, %v2320
      %v2340 = vadd.f32 %v1981, %v2325
      %v2341 = vadd.f32 %v1982, %v2330
      %v2342 = vadd.f32 %v1983, %v2335
      %p2343 = scmp.eq.s32.totalorder %s541, 0
      // Predicated region
      $region61: #{two_dino_forward.1} parent=59 // pred_check
        %p2344 = pneg %p2343
      $region62: #{two_dino_forward.1} parent=59 // pred_check_branch
        %2346 = sbr.rel (%p2344) target = $region64
      $region63: #{two_dino_forward.1} parent=59 // pred_region
        %v2347 = vmul.f32 %v846, %v846
        %v2348 = vmul.f32 %v851, %v851
        %v2349 = vmul.f32 %v856, %v856
        %v2350 = vmul.f32 %v861, %v861
        %v2351 = vmul.f32 %v866, %v866
        %v2352 = vsel %vm667, %v2347, 0.0
        %2353 = vadd.xlane.f32.xlu0 %v2352
        %v2354 = vpop.xlane.xlu0 %2353
        %v2355 = vsel %vm667, %v2348, 0.0
        %2356 = vadd.xlane.f32.xlu0 %v2355
        %v2357 = vpop.xlane.xlu0 %2356
        %v2358 = vsel %vm667, %v2349, 0.0
        %2359 = vadd.xlane.f32.xlu0 %v2358
        %v2360 = vpop.xlane.xlu0 %2359
        %v2361 = vsel %vm667, %v2350, 0.0
        %2362 = vadd.xlane.f32.xlu0 %v2361
        %v2363 = vpop.xlane.xlu0 %2362
        %v2364 = vsel %vm680, %v2351, 0.0
        %2365 = vadd.xlane.f32.xlu0 %v2364
        %v2366 = vpop.xlane.xlu0 %2365
        %v2367 = vmax.f32 %v2354, 1e-24
        %v2368 = vmax.f32 %v2357, 1e-24
        %v2369 = vmax.f32 %v2360, 1e-24
        %v2370 = vmax.f32 %v2363, 1e-24
        %v2371 = vmax.f32 %v2366, 1e-24
        %v2372 = vrsqrt.pop %v2367
        %v2373 = vrsqrt.pop %v2368
        %v2374 = vrsqrt.pop %v2369
        %v2375 = vrsqrt.pop %v2370
        %v2376 = vrsqrt.pop %v2371
        %v2377 = vmul.f32 %v846, %v2372
        %v2378 = vmul.f32 %v851, %v2373
        %v2379 = vmul.f32 %v856, %v2374
        %v2380 = vmul.f32 %v861, %v2375
        %v2381 = vmul.f32 %v866, %v2376
        %2387 = vrot.lane.b32.xlu0 %v2347, 96
        %v2388 = vpop.permute.xlu0 %2387
        %2389 = vrot.lane.b32.xlu0 %v2348, 96
        %v2390 = vpop.permute.xlu0 %2389
        %2391 = vrot.lane.b32.xlu0 %v2349, 96
        %v2392 = vpop.permute.xlu0 %2391
        %2393 = vrot.lane.b32.xlu0 %v2350, 96
        %v2394 = vpop.permute.xlu0 %2393
        %2395 = vrot.lane.b32.xlu0 %v2351, 96
        %v2396 = vpop.permute.xlu0 %2395
        %v2402 = vsel %vm667, %v2388, 0.0
        %2403 = vadd.xlane.f32.xlu0 %v2402
        %v2404 = vpop.xlane.xlu0 %2403
        %v2405 = vsel %vm667, %v2390, 0.0
        %2406 = vadd.xlane.f32.xlu0 %v2405
        %v2407 = vpop.xlane.xlu0 %2406
        %v2408 = vsel %vm667, %v2392, 0.0
        %2409 = vadd.xlane.f32.xlu0 %v2408
        %v2410 = vpop.xlane.xlu0 %2409
        %v2411 = vsel %vm667, %v2394, 0.0
        %2412 = vadd.xlane.f32.xlu0 %v2411
        %v2413 = vpop.xlane.xlu0 %2412
        %v2414 = vsel %vm680, %v2396, 0.0
        %2415 = vadd.xlane.f32.xlu0 %v2414
        %v2416 = vpop.xlane.xlu0 %2415
        %v2417 = vmax.f32 %v2404, 1e-24
        %v2418 = vmax.f32 %v2407, 1e-24
        %v2419 = vmax.f32 %v2410, 1e-24
        %v2420 = vmax.f32 %v2413, 1e-24
        %v2421 = vmax.f32 %v2416, 1e-24
        %v2422 = vrsqrt.pop %v2417
        %v2423 = vrsqrt.pop %v2418
        %v2424 = vrsqrt.pop %v2419
        %v2425 = vrsqrt.pop %v2420
        %v2426 = vrsqrt.pop %v2421
        %v2427 = vmul.f32 %v846, %v2422
        %v2428 = vmul.f32 %v851, %v2423
        %v2429 = vmul.f32 %v856, %v2424
        %v2430 = vmul.f32 %v861, %v2425
        %v2431 = vmul.f32 %v866, %v2426
        %2432 = vrot.lane.b32.xlu0 %v2347, 64
        %v2433 = vpop.permute.xlu0 %2432
        %2434 = vrot.lane.b32.xlu0 %v2348, 64
        %v2435 = vpop.permute.xlu0 %2434
        %2436 = vrot.lane.b32.xlu0 %v2349, 64
        %v2437 = vpop.permute.xlu0 %2436
        %2438 = vrot.lane.b32.xlu0 %v2350, 64
        %v2439 = vpop.permute.xlu0 %2438
        %2440 = vrot.lane.b32.xlu0 %v2351, 64
        %v2441 = vpop.permute.xlu0 %2440
        %v2447 = vsel %vm667, %v2433, 0.0
        %2448 = vadd.xlane.f32.xlu0 %v2447
        %v2449 = vpop.xlane.xlu0 %2448
        %v2450 = vsel %vm667, %v2435, 0.0
        %2451 = vadd.xlane.f32.xlu0 %v2450
        %v2452 = vpop.xlane.xlu0 %2451
        %v2453 = vsel %vm667, %v2437, 0.0
        %2454 = vadd.xlane.f32.xlu0 %v2453
        %v2455 = vpop.xlane.xlu0 %2454
        %v2456 = vsel %vm667, %v2439, 0.0
        %2457 = vadd.xlane.f32.xlu0 %v2456
        %v2458 = vpop.xlane.xlu0 %2457
        %v2459 = vsel %vm680, %v2441, 0.0
        %2460 = vadd.xlane.f32.xlu0 %v2459
        %v2461 = vpop.xlane.xlu0 %2460
        %v2462 = vmax.f32 %v2449, 1e-24
        %v2463 = vmax.f32 %v2452, 1e-24
        %v2464 = vmax.f32 %v2455, 1e-24
        %v2465 = vmax.f32 %v2458, 1e-24
        %v2466 = vmax.f32 %v2461, 1e-24
        %v2467 = vrsqrt.pop %v2462
        %v2468 = vrsqrt.pop %v2463
        %v2469 = vrsqrt.pop %v2464
        %v2470 = vrsqrt.pop %v2465
        %v2471 = vrsqrt.pop %v2466
        %v2472 = vmul.f32 %v846, %v2467
        %v2473 = vmul.f32 %v851, %v2468
        %v2474 = vmul.f32 %v856, %v2469
        %v2475 = vmul.f32 %v861, %v2470
        %v2476 = vmul.f32 %v866, %v2471
        %v2477 = vmul.f32 %v2338, %v2338
        %v2478 = vmul.f32 %v2339, %v2339
        %v2479 = vmul.f32 %v2340, %v2340
        %v2480 = vmul.f32 %v2341, %v2341
        %v2481 = vmul.f32 %v2342, %v2342
        %v2482 = vsel %vm667, %v2477, 0.0
        %2483 = vadd.xlane.f32.xlu0 %v2482
        %v2484 = vpop.xlane.xlu0 %2483
        %v2485 = vsel %vm667, %v2478, 0.0
        %2486 = vadd.xlane.f32.xlu0 %v2485
        %v2487 = vpop.xlane.xlu0 %2486
        %v2488 = vsel %vm667, %v2479, 0.0
        %2489 = vadd.xlane.f32.xlu0 %v2488
        %v2490 = vpop.xlane.xlu0 %2489
        %v2491 = vsel %vm667, %v2480, 0.0
        %2492 = vadd.xlane.f32.xlu0 %v2491
        %v2493 = vpop.xlane.xlu0 %2492
        %v2494 = vsel %vm680, %v2481, 0.0
        %2495 = vadd.xlane.f32.xlu0 %v2494
        %v2496 = vpop.xlane.xlu0 %2495
        %v2497 = vmax.f32 %v2484, 1e-24
        %v2498 = vmax.f32 %v2487, 1e-24
        %v2499 = vmax.f32 %v2490, 1e-24
        %v2500 = vmax.f32 %v2493, 1e-24
        %v2501 = vmax.f32 %v2496, 1e-24
        %v2502 = vrsqrt.pop %v2497
        %v2503 = vrsqrt.pop %v2498
        %v2504 = vrsqrt.pop %v2499
        %v2505 = vrsqrt.pop %v2500
        %v2506 = vrsqrt.pop %v2501
        %v2507 = vmul.f32 %v2338, %v2502
        %v2508 = vmul.f32 %v2339, %v2503
        %v2509 = vmul.f32 %v2340, %v2504
        %v2510 = vmul.f32 %v2341, %v2505
        %v2511 = vmul.f32 %v2342, %v2506
        %2517 = vrot.lane.b32.xlu0 %v2507, 96
        %v2518 = vpop.permute.xlu0 %2517
        %2519 = vrot.lane.b32.xlu0 %v2508, 96
        %v2520 = vpop.permute.xlu0 %2519
        %2521 = vrot.lane.b32.xlu0 %v2509, 96
        %v2522 = vpop.permute.xlu0 %2521
        %2523 = vrot.lane.b32.xlu0 %v2510, 96
        %v2524 = vpop.permute.xlu0 %2523
        %2525 = vrot.lane.b32.xlu0 %v2511, 96
        %v2526 = vpop.permute.xlu0 %2525
        %v2532 = vsel %vm667, %v2377, %v2427
        %v2533 = vsel %vm667, %v2378, %v2428
        %v2534 = vsel %vm667, %v2379, %v2429
        %v2535 = vsel %vm667, %v2380, %v2430
        %v2536 = vsel %vm667, %v2381, %v2431
        %vm2537 = vcmask 523264
        %v2538 = vsel %vm2537, %v2532, %v2472
        %v2539 = vsel %vm2537, %v2533, %v2473
        %v2540 = vsel %vm2537, %v2534, %v2474
        %v2541 = vsel %vm2537, %v2535, %v2475
        %v2542 = vsel %vm2537, %v2536, %v2476
        %vm2543 = vcmask 785408
        %v2544 = vsel %vm2543, %v2538, %v2518
        %v2545 = vsel %vm2543, %v2539, %v2520
        %v2546 = vsel %vm2543, %v2540, %v2522
        %v2547 = vsel %vm2543, %v2541, %v2524
        %v2548 = vsel %vm2543, %v2542, %v2526
        %2549 = vst [vmem:[%s540] sm:$0xff] %v2544
        %2550 = vst [vmem:[%s540 + $0x8] sm:$0xff] %v2545
        %2551 = vst [vmem:[%s540 + $0x10] sm:$0xff] %v2546
        %2552 = vst [vmem:[%s540 + $0x18] sm:$0xff] %v2547
        %2553 = vst [vmem:[%s540 + $0x20] sm:$0x3] %v2548
      $region64: #{two_dino_forward.1} parent=59 // pred_fallthru
        _
      %v2554 = vsel %vm667, %v2338, 0.0
      %2555 = vadd.xlane.f32.xlu0 %v2554
      %v2556 = vpop.xlane.xlu0 %2555
      %v2557 = vsel %vm667, %v2339, 0.0
      %2558 = vadd.xlane.f32.xlu0 %v2557
      %v2559 = vpop.xlane.xlu0 %2558
      %v2560 = vsel %vm667, %v2340, 0.0
      %2561 = vadd.xlane.f32.xlu0 %v2560
      %v2562 = vpop.xlane.xlu0 %2561
      %v2563 = vsel %vm667, %v2341, 0.0
      %2564 = vadd.xlane.f32.xlu0 %v2563
      %v2565 = vpop.xlane.xlu0 %2564
      %v2566 = vsel %vm680, %v2342, 0.0
      %2567 = vadd.xlane.f32.xlu0 %v2566
      %v2568 = vpop.xlane.xlu0 %2567
      %v2569 = vmul.f32 %v2556, %v684
      %v2570 = vmul.f32 %v2559, %v684
      %v2571 = vmul.f32 %v2562, %v684
      %v2572 = vmul.f32 %v2565, %v684
      %v2573 = vmul.f32 %v2568, %v684
      %v2574 = vsub.f32 %v2338, %v2569
      %v2575 = vsub.f32 %v2339, %v2570
      %v2576 = vsub.f32 %v2340, %v2571
      %v2577 = vsub.f32 %v2341, %v2572
      %v2578 = vsub.f32 %v2342, %v2573
      %v2579 = vmul.f32 %v2574, %v2574
      %v2580 = vmul.f32 %v2575, %v2575
      %v2581 = vmul.f32 %v2576, %v2576
      %v2582 = vmul.f32 %v2577, %v2577
      %v2583 = vmul.f32 %v2578, %v2578
      %v2584 = vsel %vm667, %v2579, 0.0
      %2585 = vadd.xlane.f32.xlu0 %v2584
      %v2586 = vpop.xlane.xlu0 %2585
      %v2587 = vsel %vm667, %v2580, 0.0
      %2588 = vadd.xlane.f32.xlu0 %v2587
      %v2589 = vpop.xlane.xlu0 %2588
      %v2590 = vsel %vm667, %v2581, 0.0
      %2591 = vadd.xlane.f32.xlu0 %v2590
      %v2592 = vpop.xlane.xlu0 %2591
      %v2593 = vsel %vm667, %v2582, 0.0
      %2594 = vadd.xlane.f32.xlu0 %v2593
      %v2595 = vpop.xlane.xlu0 %2594
      %v2596 = vsel %vm680, %v2583, 0.0
      %2597 = vadd.xlane.f32.xlu0 %v2596
      %v2598 = vpop.xlane.xlu0 %2597
      %v2599 = vmul.f32 %v2586, %v684
      %v2600 = vmul.f32 %v2589, %v684
      %v2601 = vmul.f32 %v2592, %v684
      %v2602 = vmul.f32 %v2595, %v684
      %v2603 = vmul.f32 %v2598, %v684
      %v2604 = vadd.f32 %v2599, 1e-06
      %v2605 = vadd.f32 %v2600, 1e-06
      %v2606 = vadd.f32 %v2601, 1e-06
      %v2607 = vadd.f32 %v2602, 1e-06
      %v2608 = vadd.f32 %v2603, 1e-06
      %v2609 = vrsqrt.pop %v2604
      %v2610 = vrsqrt.pop %v2605
      %v2611 = vrsqrt.pop %v2606
      %v2612 = vrsqrt.pop %v2607
      %v2613 = vrsqrt.pop %v2608
      %v2614 = vmul.f32 %v2574, %v2609
      %v2615 = vmul.f32 %v2575, %v2610
      %v2616 = vmul.f32 %v2576, %v2611
      %v2617 = vmul.f32 %v2577, %v2612
      %v2618 = vmul.f32 %v2578, %v2613
      %v2619 = vlaneseq
      %v2620 = vshrl.u32 %v2619, 7
      %v2621 = vsub.s32 6, %v2620
      %v2622 = vrot.slane %v542, %v2621
      %v2623 = vmul.f32 %v2614, %v2622
      %v2624 = vmul.f32 %v2615, %v2622
      %v2625 = vmul.f32 %v2616, %v2622
      %v2626 = vmul.f32 %v2617, %v2622
      %v2627 = vmul.f32 %v2618, %v2622
      %v2628 = vlaneseq
      %v2629 = vshrl.u32 %v2628, 7
      %v2630 = vsub.s32 7, %v2629
      %v2631 = vrot.slane %v542, %v2630
      %v2632 = vadd.f32 %v2623, %v2631
      %v2633 = vadd.f32 %v2624, %v2631
      %v2634 = vadd.f32 %v2625, %v2631
      %v2635 = vadd.f32 %v2626, %v2631
      %v2636 = vadd.f32 %v2627, %v2631
      %s2637 = scalar_lea.vmem %s507, 32
      %v2638 = vld [vmem:[%s2637] sm:$0xff]
      %v2639 = vld [vmem:[%s2637 + $0x8] sm:$0xff]
      %v2640 = vld [vmem:[%s2637 + $0x10] sm:$0xff]
      %v2641 = vld [vmem:[%s2637 + $0x18] sm:$0xff]
      %s2642 = scalar_lea.vmem %s511, 1
      %v2643 = vld [vmem:[%s2642] sm:$0x1]
      %v2645 = vlaneseq
      %v2646 = vshrl.u32 %v2645, 7
      %v2647 = vsub.s32 0, %v2646
      %v2648 = vrot.slane %v2643, %v2647
      %v2651 = vsel %vm667, %v2632, 0
      %v2654 = vsel %vm667, %v2633, 0
      %v2657 = vsel %vm667, %v2634, 0
      %v2660 = vsel %vm667, %v2635, 0
      %v2663 = vsel %vm667, %v2636, 0
      %2665 = vmatprep.subr.mxu0 0.0
      %2666 = vmatpush1.msra.mxu0 %v2638
      %2667 = vmatprep.subr.mxu0 0.0
      %2668 = vmatpush1.msra.mxu0 %v2639
      %2669 = vmatprep.subr.mxu0 0.0
      %2670 = vmatpush1.msra.mxu0 %v2640
      %2671 = vmatprep.subr.mxu0 0.0
      %2672 = vmatpush1.msra.mxu0 %v2641
      %2673 = vmatprep.subr.mxu0 0.0
      %2674 = vmatpush1.msra.mxu0 0.0
      %2675 = vmatprep.subr.mxu0 0.0
      %2676 = vmatpush1.msra.mxu0 0.0
      %2677 = vmatprep.subr.mxu0 0.0
      %2678 = vmatpush1.msra.mxu0 0.0
      %2679 = vmatprep.subr.mxu0 0.0
      %2680 = vmatpush1.msra.mxu0 0.0
      %2681 = vmatprep.subr.mxu0 0.0
      %2682 = vmatpush1.msra.mxu0 0.0
      %2683 = vmatprep.subr.mxu0 0.0
      %2684 = vmatpush1.msra.mxu0 0.0
      %2685 = vmatprep.subr.mxu0 0.0
      %2686 = vmatpush1.msra.mxu0 0.0
      %2687 = vmatprep.subr.mxu0 0.0
      %2688 = vmatpush1.msra.mxu0 0.0
      %2689 = vmatprep.subr.mxu0 0.0
      %2690 = vmatpush1.msra.mxu0 0.0
      %2691 = vmatprep.subr.mxu0 0.0
      %2692 = vmatpush1.msra.mxu0 0.0
      %2693 = vmatprep.subr.mxu0 0.0
      %2694 = vmatpush1.msra.mxu0 0.0
      %2695 = vmatprep.subr.mxu0 0.0
      %2696 = vmatpush1.msra.mxu0 0.0
      %2697 = vmatprep.subr.mxu0 0.0
      %2698 = vmatpush1.msra.mxu0 0.0
      %2699 = vmatprep.subr.mxu0 0.0
      %2700 = vmatpush1.msra.mxu0 0.0
      %2701 = vmatprep.subr.mxu0 0.0
      %2702 = vmatpush1.msra.mxu0 0.0
      %2703 = vmatprep.subr.mxu0 0.0
      %2704 = vmatpush1.msra.mxu0 0.0
      %2705 = vmatprep.subr.mxu0 0.0
      %2706 = vmatpush1.msra.mxu0 0.0
      %2707 = vmatprep.subr.mxu0 0.0
      %2708 = vmatpush1.msra.mxu0 0.0
      %2709 = vmatprep.subr.mxu0 0.0
      %2710 = vmatpush1.msra.mxu0 0.0
      %2711 = vmatprep.subr.mxu0 0.0
      %2712 = vmatpush1.msra.mxu0 0.0
      %2713 = vmatprep.subr.mxu0 0.0
      %2714 = vmatpush1.msra.mxu0 0.0
      %2715 = vmatprep.subr.mxu0 0.0
      %2716 = vmatpush1.msra.mxu0 0.0
      %2717 = vmatprep.subr.mxu0 0.0
      %2718 = vmatpush1.msra.mxu0 0.0
      %2719 = vmatprep.subr.mxu0 0.0
      %2720 = vmatpush1.msra.mxu0 0.0
      %2721 = vmatprep.subr.mxu0 0.0
      %2722 = vmatpush1.msra.mxu0 0.0
      %2723 = vmatprep.subr.mxu0 0.0
      %2724 = vmatpush1.msra.mxu0 0.0
      %2725 = vmatprep.subr.mxu0 0.0
      %2726 = vmatpush1.msra.mxu0 0.0
      %2727 = vmatprep.subr.mxu0 0.0
      %2728 = vmatpush1.msra.mxu0 0.0
      %2729 = vmatprep.mubr.f32.mxu0 0.0
      %2730 = vmatmul.mubr.f32.gmra.mrb[0].mxu0 %v2651
      %v2731 = vpop.f32.mrb[0].mxu0
      %v2732 = vadd.f32 %v2648, %v2731
      %v2733 = vpop.f32.mrb[0].mxu0
      %2734 = vmatprep.mubr.f32.mxu0 0.0
      %2735 = vmatmul.mubr.f32.gmra.mrb[0].mxu0 %v2654
      %v2736 = vpop.f32.mrb[0].mxu0
      %v2737 = vadd.f32 %v2648, %v2736
      %v2738 = vpop.f32.mrb[0].mxu0
      %2739 = vmatprep.mubr.f32.mxu0 0.0
      %2740 = vmatmul.mubr.f32.gmra.mrb[0].mxu0 %v2657
      %v2741 = vpop.f32.mrb[0].mxu0
      %v2742 = vadd.f32 %v2648, %v2741
      %v2743 = vpop.f32.mrb[0].mxu0
      %2744 = vmatprep.mubr.f32.mxu0 0.0
      %2745 = vmatmul.mubr.f32.gmra.mrb[0].mxu0 %v2660
      %v2746 = vpop.f32.mrb[0].mxu0
      %v2747 = vadd.f32 %v2648, %v2746
      %v2748 = vpop.f32.mrb[0].mxu0
      %2749 = vmatprep.mubr.f32.mxu0 0.0
      %2750 = vmatmul.mubr.f32.gmra.mrb[0].mxu0 %v2663
      %v2751 = vpop.f32.mrb[0].mxu0
      %v2752 = vadd.f32 %v2648, %v2751
      %v2753 = vpop.f32.mrb[0].mxu0
      %2754 = vdwg.mxu0
      %2758 = vrot.lane.b32.xlu0 %v2732, 96
      %v2759 = vpop.permute.xlu0 %2758
      %2760 = vrot.lane.b32.xlu0 %v2737, 96
      %v2761 = vpop.permute.xlu0 %2760
      %2762 = vrot.lane.b32.xlu0 %v2742, 96
      %v2763 = vpop.permute.xlu0 %2762
      %v2764 = vsel %vm878, %v2732, 0
      %v2766 = vsel %vm878, %v2737, 0
      %v2768 = vsel %vm878, %v2742, 0
      %v2770 = vsel %vm878, %v2759, 0
      %v2772 = vsel %vm878, %v2761, 0
      %v2774 = vsel %vm878, %v2763, 0
      %2776 = vmatprep.subr.mxu0 0.0
      %2777 = vmatpush1.xpose.msra.mxu0 %v2770
      %2778 = vmatprep.subr.mxu0 0.0
      %2779 = vmatpush1.xpose.msra.mxu0 %v2772
      %2780 = vmatprep.subr.mxu0 0.0
      %2781 = vmatpush1.xpose.msra.mxu0 %v2774
      %2782 = vmatprep.subr.mxu0 0.0
      %2783 = vmatpush1.xpose.msra.mxu0 0.0
      %2784 = vmatprep.subr.mxu0 0.0
      %2785 = vmatpush1.xpose.msra.mxu0 0.0
      %2786 = vmatprep.subr.mxu0 0.0
      %2787 = vmatpush1.xpose.msra.mxu0 0.0
      %2788 = vmatprep.subr.mxu0 0.0
      %2789 = vmatpush1.xpose.msra.mxu0 0.0
      %2790 = vmatprep.subr.mxu0 0.0
      %2791 = vmatpush1.xpose.msra.mxu0 0.0
      %2792 = vmatprep.subr.mxu0 0.0
      %2793 = vmatpush1.xpose.msra.mxu0 0.0
      %2794 = vmatprep.subr.mxu0 0.0
      %2795 = vmatpush1.xpose.msra.mxu0 0.0
      %2796 = vmatprep.subr.mxu0 0.0
      %2797 = vmatpush1.xpose.msra.mxu0 0.0
      %2798 = vmatprep.subr.mxu0 0.0
      %2799 = vmatpush1.xpose.msra.mxu0 0.0
      %2800 = vmatprep.subr.mxu0 0.0
      %2801 = vmatpush1.xpose.msra.mxu0 0.0
      %2802 = vmatprep.subr.mxu0 0.0
      %2803 = vmatpush1.xpose.msra.mxu0 0.0
      %2804 = vmatprep.subr.mxu0 0.0
      %2805 = vmatpush1.xpose.msra.mxu0 0.0
      %2806 = vmatprep.subr.mxu0 0.0
      %2807 = vmatpush1.xpose.msra.mxu0 0.0
      %2808 = vmatprep.subr.mxu0 0.0
      %2809 = vmatpush1.xpose.msra.mxu0 0.0
      %2810 = vmatprep.subr.mxu0 0.0
      %2811 = vmatpush1.xpose.msra.mxu0 0.0
      %2812 = vmatprep.subr.mxu0 0.0
      %2813 = vmatpush1.xpose.msra.mxu0 0.0
      %2814 = vmatprep.subr.mxu0 0.0
      %2815 = vmatpush1.xpose.msra.mxu0 0.0
      %2816 = vmatprep.subr.mxu0 0.0
      %2817 = vmatpush1.xpose.msra.mxu0 0.0
      %2818 = vmatprep.subr.mxu0 0.0
      %2819 = vmatpush1.xpose.msra.mxu0 0.0
      %2820 = vmatprep.subr.mxu0 0.0
      %2821 = vmatpush1.xpose.msra.mxu0 0.0
      %2822 = vmatprep.subr.mxu0 0.0
      %2823 = vmatpush1.xpose.msra.mxu0 0.0
      %2824 = vmatprep.subr.mxu0 0.0
      %2825 = vmatpush1.xpose.msra.mxu0 0.0
      %2826 = vmatprep.subr.mxu0 0.0
      %2827 = vmatpush1.xpose.msra.mxu0 0.0
      %2828 = vmatprep.subr.mxu0 0.0
      %2829 = vmatpush1.xpose.msra.mxu0 0.0
      %2830 = vmatprep.subr.mxu0 0.0
      %2831 = vmatpush1.xpose.msra.mxu0 0.0
      %2832 = vmatprep.subr.mxu0 0.0
      %2833 = vmatpush1.xpose.msra.mxu0 0.0
      %2834 = vmatprep.subr.mxu0 0.0
      %2835 = vmatpush1.xpose.msra.mxu0 0.0
      %2836 = vmatprep.subr.mxu0 0.0
      %2837 = vmatpush1.xpose.msra.mxu0 0.0
      %2838 = vmatprep.subr.mxu0 0.0
      %2839 = vmatpush1.xpose.msra.mxu0 0.0
      %2840 = vmatprep.mubr.f32.mxu0 0.0
      %2841 = vmatmul.mubr.f32.gmra.mrb[0].mxu0 %v2764
      %v2842 = vpop.f32.mrb[0].mxu0
      %v2843 = vadd.f32 0.0, %v2842
      %v2844 = vpop.f32.mrb[0].mxu0
      %2845 = vmatprep.mubr.f32.mxu0 0.0
      %2846 = vmatmul.mubr.f32.gmra.mrb[0].mxu0 %v2766
      %v2847 = vpop.f32.mrb[0].mxu0
      %v2848 = vadd.f32 0.0, %v2847
      %v2849 = vpop.f32.mrb[0].mxu0
      %2850 = vmatprep.mubr.f32.mxu0 0.0
      %2851 = vmatmul.mubr.f32.gmra.mrb[0].mxu0 %v2768
      %v2852 = vpop.f32.mrb[0].mxu0
      %v2853 = vadd.f32 0.0, %v2852
      %v2854 = vpop.f32.mrb[0].mxu0
      %2855 = vdwg.mxu0
      %v2856 = vmul.f32 %v2843, 0.25
      %v2857 = vmul.f32 %v2848, 0.25
      %v2858 = vmul.f32 %v2853, 0.25
      %v2859 = vsel %vm974, %v2856, -inf
      %2860 = vmax.xlane.f32.xlu0 %v2859
      %v2861 = vpop.xlane.xlu0 %2860
      %v2862 = vsel %vm974, %v2857, -inf
      %2863 = vmax.xlane.f32.xlu0 %v2862
      %v2864 = vpop.xlane.xlu0 %2863
      %v2865 = vsel %vm981, %v2858, -inf
      %2866 = vmax.xlane.f32.xlu0 %v2865
      %v2867 = vpop.xlane.xlu0 %2866
      %v2868 = vsub.f32 %v2856, %v2861
      %v2869 = vsub.f32 %v2857, %v2864
      %v2870 = vsub.f32 %v2858, %v2867
      %v2871 = vmul.f32 %v2868, 1.442695
      %v2872 = vpow.pop %v2871
      %v2873 = vmul.f32 %v2869, 1.442695
      %v2874 = vpow.pop %v2873
      %v2875 = vmul.f32 %v2870, 1.442695
      %v2876 = vpow.pop %v2875
      %v2877 = vsel %vm974, %v2872, 0.0
      %2878 = vadd.xlane.f32.xlu0 %v2877
      %v2879 = vpop.xlane.xlu0 %2878
      %v2880 = vsel %vm974, %v2874, 0.0
      %2881 = vadd.xlane.f32.xlu0 %v2880
      %v2882 = vpop.xlane.xlu0 %2881
      %v2883 = vsel %vm981, %v2876, 0.0
      %2884 = vadd.xlane.f32.xlu0 %v2883
      %v2885 = vpop.xlane.xlu0 %2884
      %v2886 = vrcp.pop %v2879
      %v2887 = vrcp.pop %v2882
      %v2888 = vrcp.pop %v2885
      %v2889 = vmul.f32 %v2872, %v2886
      %v2890 = vmul.f32 %v2874, %v2887
      %v2891 = vmul.f32 %v2876, %v2888
      %2892 = vrot.lane.b32.xlu0 %v2732, 64
      %v2893 = vpop.permute.xlu0 %2892
      %2894 = vrot.lane.b32.xlu0 %v2737, 64
      %v2895 = vpop.permute.xlu0 %2894
      %2896 = vrot.lane.b32.xlu0 %v2742, 64
      %v2897 = vpop.permute.xlu0 %2896
      %v2901 = vsel %vm974, %v2889, 0
      %v2904 = vsel %vm974, %v2890, 0
      %v2907 = vsel %vm974, %v2891, 0
      %v2909 = vsel %vm1026, %v2897, 0
      %2911 = vmatprep.subr.mxu0 0.0
      %2912 = vmatpush1.msra.mxu0 %v2893
      %2913 = vmatprep.subr.mxu0 0.0
      %2914 = vmatpush1.msra.mxu0 %v2895
      %2915 = vmatprep.subr.mxu0 0.0
      %2916 = vmatpush1.msra.mxu0 %v2909
      %2917 = vmatprep.subr.mxu0 0.0
      %2918 = vmatpush1.msra.mxu0 0.0
      %2919 = vmatprep.subr.mxu0 0.0
      %2920 = vmatpush1.msra.mxu0 0.0
      %2921 = vmatprep.subr.mxu0 0.0
      %2922 = vmatpush1.msra.mxu0 0.0
      %2923 = vmatprep.subr.mxu0 0.0
      %2924 = vmatpush1.msra.mxu0 0.0
      %2925 = vmatprep.subr.mxu0 0.0
      %2926 = vmatpush1.msra.mxu0 0.0
      %2927 = vmatprep.subr.mxu0 0.0
      %2928 = vmatpush1.msra.mxu0 0.0
      %2929 = vmatprep.subr.mxu0 0.0
      %2930 = vmatpush1.msra.mxu0 0.0
      %2931 = vmatprep.subr.mxu0 0.0
      %2932 = vmatpush1.msra.mxu0 0.0
      %2933 = vmatprep.subr.mxu0 0.0
      %2934 = vmatpush1.msra.mxu0 0.0
      %2935 = vmatprep.subr.mxu0 0.0
      %2936 = vmatpush1.msra.mxu0 0.0
      %2937 = vmatprep.subr.mxu0 0.0
      %2938 = vmatpush1.msra.mxu0 0.0
      %2939 = vmatprep.subr.mxu0 0.0
      %2940 = vmatpush1.msra.mxu0 0.0
      %2941 = vmatprep.subr.mxu0 0.0
      %2942 = vmatpush1.msra.mxu0 0.0
      %2943 = vmatprep.subr.mxu0 0.0
      %2944 = vmatpush1.msra.mxu0 0.0
      %2945 = vmatprep.subr.mxu0 0.0
      %2946 = vmatpush1.msra.mxu0 0.0
      %2947 = vmatprep.subr.mxu0 0.0
      %2948 = vmatpush1.msra.mxu0 0.0
      %2949 = vmatprep.subr.mxu0 0.0
      %2950 = vmatpush1.msra.mxu0 0.0
      %2951 = vmatprep.subr.mxu0 0.0
      %2952 = vmatpush1.msra.mxu0 0.0
      %2953 = vmatprep.subr.mxu0 0.0
      %2954 = vmatpush1.msra.mxu0 0.0
      %2955 = vmatprep.subr.mxu0 0.0
      %2956 = vmatpush1.msra.mxu0 0.0
      %2957 = vmatprep.subr.mxu0 0.0
      %2958 = vmatpush1.msra.mxu0 0.0
      %2959 = vmatprep.subr.mxu0 0.0
      %2960 = vmatpush1.msra.mxu0 0.0
      %2961 = vmatprep.subr.mxu0 0.0
      %2962 = vmatpush1.msra.mxu0 0.0
      %2963 = vmatprep.subr.mxu0 0.0
      %2964 = vmatpush1.msra.mxu0 0.0
      %2965 = vmatprep.subr.mxu0 0.0
      %2966 = vmatpush1.msra.mxu0 0.0
      %2967 = vmatprep.subr.mxu0 0.0
      %2968 = vmatpush1.msra.mxu0 0.0
      %2969 = vmatprep.subr.mxu0 0.0
      %2970 = vmatpush1.msra.mxu0 0.0
      %2971 = vmatprep.subr.mxu0 0.0
      %2972 = vmatpush1.msra.mxu0 0.0
      %2973 = vmatprep.subr.mxu0 0.0
      %2974 = vmatpush1.msra.mxu0 0.0
      %2975 = vmatprep.mubr.f32.mxu0 0.0
      %2976 = vmatmul.mubr.f32.gmra.mrb[0].mxu0 %v2901
      %v2977 = vpop.f32.mrb[0].mxu0
      %v2978 = vadd.f32 0.0, %v2977
      %v2979 = vpop.f32.mrb[0].mxu0
      %2980 = vmatprep.mubr.f32.mxu0 0.0
      %2981 = vmatmul.mubr.f32.gmra.mrb[0].mxu0 %v2904
      %v2982 = vpop.f32.mrb[0].mxu0
      %v2983 = vadd.f32 0.0, %v2982
      %v2984 = vpop.f32.mrb[0].mxu0
      %2985 = vmatprep.mubr.f32.mxu0 0.0
      %2986 = vmatmul.mubr.f32.gmra.mrb[0].mxu0 %v2907
      %v2987 = vpop.f32.mrb[0].mxu0
      %v2988 = vadd.f32 0.0, %v2987
      %v2989 = vpop.f32.mrb[0].mxu0
      %2990 = vdwg.mxu0
      %2991 = vrot.lane.b32.xlu0 %v2732, 112
      %v2992 = vpop.permute.xlu0 %2991
      %2993 = vrot.lane.b32.xlu0 %v2737, 112
      %v2994 = vpop.permute.xlu0 %2993
      %2995 = vrot.lane.b32.xlu0 %v2742, 112
      %v2996 = vpop.permute.xlu0 %2995
      %2997 = vrot.lane.b32.xlu0 %v2732, 80
      %v2998 = vpop.permute.xlu0 %2997
      %2999 = vrot.lane.b32.xlu0 %v2737, 80
      %v3000 = vpop.permute.xlu0 %2999
      %3001 = vrot.lane.b32.xlu0 %v2742, 80
      %v3002 = vpop.permute.xlu0 %3001
      %v3003 = vsel %vm878, %v2992, 0
      %v3005 = vsel %vm878, %v2994, 0
      %v3007 = vsel %vm878, %v2996, 0
      %v3009 = vsel %vm878, %v2998, 0
      %v3011 = vsel %vm878, %v3000, 0
      %v3013 = vsel %vm878, %v3002, 0
      %3015 = vmatprep.subr.mxu0 0.0
      %3016 = vmatpush1.xpose.msra.mxu0 %v3009
      %3017 = vmatprep.subr.mxu0 0.0
      %3018 = vmatpush1.xpose.msra.mxu0 %v3011
      %3019 = vmatprep.subr.mxu0 0.0
      %3020 = vmatpush1.xpose.msra.mxu0 %v3013
      %3021 = vmatprep.subr.mxu0 0.0
      %3022 = vmatpush1.xpose.msra.mxu0 0.0
      %3023 = vmatprep.subr.mxu0 0.0
      %3024 = vmatpush1.xpose.msra.mxu0 0.0
      %3025 = vmatprep.subr.mxu0 0.0
      %3026 = vmatpush1.xpose.msra.mxu0 0.0
      %3027 = vmatprep.subr.mxu0 0.0
      %3028 = vmatpush1.xpose.msra.mxu0 0.0
      %3029 = vmatprep.subr.mxu0 0.0
      %3030 = vmatpush1.xpose.msra.mxu0 0.0
      %3031 = vmatprep.subr.mxu0 0.0
      %3032 = vmatpush1.xpose.msra.mxu0 0.0
      %3033 = vmatprep.subr.mxu0 0.0
      %3034 = vmatpush1.xpose.msra.mxu0 0.0
      %3035 = vmatprep.subr.mxu0 0.0
      %3036 = vmatpush1.xpose.msra.mxu0 0.0
      %3037 = vmatprep.subr.mxu0 0.0
      %3038 = vmatpush1.xpose.msra.mxu0 0.0
      %3039 = vmatprep.subr.mxu0 0.0
      %3040 = vmatpush1.xpose.msra.mxu0 0.0
      %3041 = vmatprep.subr.mxu0 0.0
      %3042 = vmatpush1.xpose.msra.mxu0 0.0
      %3043 = vmatprep.subr.mxu0 0.0
      %3044 = vmatpush1.xpose.msra.mxu0 0.0
      %3045 = vmatprep.subr.mxu0 0.0
      %3046 = vmatpush1.xpose.msra.mxu0 0.0
      %3047 = vmatprep.subr.mxu0 0.0
      %3048 = vmatpush1.xpose.msra.mxu0 0.0
      %3049 = vmatprep.subr.mxu0 0.0
      %3050 = vmatpush1.xpose.msra.mxu0 0.0
      %3051 = vmatprep.subr.mxu0 0.0
      %3052 = vmatpush1.xpose.msra.mxu0 0.0
      %3053 = vmatprep.subr.mxu0 0.0
      %3054 = vmatpush1.xpose.msra.mxu0 0.0
      %3055 = vmatprep.subr.mxu0 0.0
      %3056 = vmatpush1.xpose.msra.mxu0 0.0
      %3057 = vmatprep.subr.mxu0 0.0
      %3058 = vmatpush1.xpose.msra.mxu0 0.0
      %3059 = vmatprep.subr.mxu0 0.0
      %3060 = vmatpush1.xpose.msra.mxu0 0.0
      %3061 = vmatprep.subr.mxu0 0.0
      %3062 = vmatpush1.xpose.msra.mxu0 0.0
      %3063 = vmatprep.subr.mxu0 0.0
      %3064 = vmatpush1.xpose.msra.mxu0 0.0
      %3065 = vmatprep.subr.mxu0 0.0
      %3066 = vmatpush1.xpose.msra.mxu0 0.0
      %3067 = vmatprep.subr.mxu0 0.0
      %3068 = vmatpush1.xpose.msra.mxu0 0.0
      %3069 = vmatprep.subr.mxu0 0.0
      %3070 = vmatpush1.xpose.msra.mxu0 0.0
      %3071 = vmatprep.subr.mxu0 0.0
      %3072 = vmatpush1.xpose.msra.mxu0 0.0
      %3073 = vmatprep.subr.mxu0 0.0
      %3074 = vmatpush1.xpose.msra.mxu0 0.0
      %3075 = vmatprep.subr.mxu0 0.0
      %3076 = vmatpush1.xpose.msra.mxu0 0.0
      %3077 = vmatprep.subr.mxu0 0.0
      %3078 = vmatpush1.xpose.msra.mxu0 0.0
      %3079 = vmatprep.mubr.f32.mxu0 0.0
      %3080 = vmatmul.mubr.f32.gmra.mrb[0].mxu0 %v3003
      %v3081 = vpop.f32.mrb[0].mxu0
      %v3082 = vadd.f32 0.0, %v3081
      %v3083 = vpop.f32.mrb[0].mxu0
      %3084 = vmatprep.mubr.f32.mxu0 0.0
      %3085 = vmatmul.mubr.f32.gmra.mrb[0].mxu0 %v3005
      %v3086 = vpop.f32.mrb[0].mxu0
      %v3087 = vadd.f32 0.0, %v3086
      %v3088 = vpop.f32.mrb[0].mxu0
      %3089 = vmatprep.mubr.f32.mxu0 0.0
      %3090 = vmatmul.mubr.f32.gmra.mrb[0].mxu0 %v3007
      %v3091 = vpop.f32.mrb[0].mxu0
      %v3092 = vadd.f32 0.0, %v3091
      %v3093 = vpop.f32.mrb[0].mxu0
      %3094 = vdwg.mxu0
      %v3095 = vmul.f32 %v3082, 0.25
      %v3096 = vmul.f32 %v3087, 0.25
      %v3097 = vmul.f32 %v3092, 0.25
      %v3098 = vsel %vm974, %v3095, -inf
      %3099 = vmax.xlane.f32.xlu0 %v3098
      %v3100 = vpop.xlane.xlu0 %3099
      %v3101 = vsel %vm974, %v3096, -inf
      %3102 = vmax.xlane.f32.xlu0 %v3101
      %v3103 = vpop.xlane.xlu0 %3102
      %v3104 = vsel %vm981, %v3097, -inf
      %3105 = vmax.xlane.f32.xlu0 %v3104
      %v3106 = vpop.xlane.xlu0 %3105
      %v3107 = vsub.f32 %v3095, %v3100
      %v3108 = vsub.f32 %v3096, %v3103
      %v3109 = vsub.f32 %v3097, %v3106
      %v3110 = vmul.f32 %v3107, 1.442695
      %v3111 = vpow.pop %v3110
      %v3112 = vmul.f32 %v3108, 1.442695
      %v3113 = vpow.pop %v3112
      %v3114 = vmul.f32 %v3109, 1.442695
      %v3115 = vpow.pop %v3114
      %v3116 = vsel %vm974, %v3111, 0.0
      %3117 = vadd.xlane.f32.xlu0 %v3116
      %v3118 = vpop.xlane.xlu0 %3117
      %v3119 = vsel %vm974, %v3113, 0.0
      %3120 = vadd.xlane.f32.xlu0 %v3119
      %v3121 = vpop.xlane.xlu0 %3120
      %v3122 = vsel %vm981, %v3115, 0.0
      %3123 = vadd.xlane.f32.xlu0 %v3122
      %v3124 = vpop.xlane.xlu0 %3123
      %v3125 = vrcp.pop %v3118
      %v3126 = vrcp.pop %v3121
      %v3127 = vrcp.pop %v3124
      %v3128 = vmul.f32 %v3111, %v3125
      %v3129 = vmul.f32 %v3113, %v3126
      %v3130 = vmul.f32 %v3115, %v3127
      %3131 = vrot.lane.b32.xlu0 %v2732, 48
      %v3132 = vpop.permute.xlu0 %3131
      %3133 = vrot.lane.b32.xlu0 %v2737, 48
      %v3134 = vpop.permute.xlu0 %3133
      %3135 = vrot.lane.b32.xlu0 %v2742, 48
      %v3136 = vpop.permute.xlu0 %3135
      %v3140 = vsel %vm974, %v3128, 0
      %v3143 = vsel %vm974, %v3129, 0
      %v3146 = vsel %vm974, %v3130, 0
      %v3148 = vsel %vm1026, %v3136, 0
      %3150 = vmatprep.subr.mxu0 0.0
      %3151 = vmatpush1.msra.mxu0 %v3132
      %3152 = vmatprep.subr.mxu0 0.0
      %3153 = vmatpush1.msra.mxu0 %v3134
      %3154 = vmatprep.subr.mxu0 0.0
      %3155 = vmatpush1.msra.mxu0 %v3148
      %3156 = vmatprep.subr.mxu0 0.0
      %3157 = vmatpush1.msra.mxu0 0.0
      %3158 = vmatprep.subr.mxu0 0.0
      %3159 = vmatpush1.msra.mxu0 0.0
      %3160 = vmatprep.subr.mxu0 0.0
      %3161 = vmatpush1.msra.mxu0 0.0
      %3162 = vmatprep.subr.mxu0 0.0
      %3163 = vmatpush1.msra.mxu0 0.0
      %3164 = vmatprep.subr.mxu0 0.0
      %3165 = vmatpush1.msra.mxu0 0.0
      %3166 = vmatprep.subr.mxu0 0.0
      %3167 = vmatpush1.msra.mxu0 0.0
      %3168 = vmatprep.subr.mxu0 0.0
      %3169 = vmatpush1.msra.mxu0 0.0
      %3170 = vmatprep.subr.mxu0 0.0
      %3171 = vmatpush1.msra.mxu0 0.0
      %3172 = vmatprep.subr.mxu0 0.0
      %3173 = vmatpush1.msra.mxu0 0.0
      %3174 = vmatprep.subr.mxu0 0.0
      %3175 = vmatpush1.msra.mxu0 0.0
      %3176 = vmatprep.subr.mxu0 0.0
      %3177 = vmatpush1.msra.mxu0 0.0
      %3178 = vmatprep.subr.mxu0 0.0
      %3179 = vmatpush1.msra.mxu0 0.0
      %3180 = vmatprep.subr.mxu0 0.0
      %3181 = vmatpush1.msra.mxu0 0.0
      %3182 = vmatprep.subr.mxu0 0.0
      %3183 = vmatpush1.msra.mxu0 0.0
      %3184 = vmatprep.subr.mxu0 0.0
      %3185 = vmatpush1.msra.mxu0 0.0
      %3186 = vmatprep.subr.mxu0 0.0
      %3187 = vmatpush1.msra.mxu0 0.0
      %3188 = vmatprep.subr.mxu0 0.0
      %3189 = vmatpush1.msra.mxu0 0.0
      %3190 = vmatprep.subr.mxu0 0.0
      %3191 = vmatpush1.msra.mxu0 0.0
      %3192 = vmatprep.subr.mxu0 0.0
      %3193 = vmatpush1.msra.mxu0 0.0
      %3194 = vmatprep.subr.mxu0 0.0
      %3195 = vmatpush1.msra.mxu0 0.0
      %3196 = vmatprep.subr.mxu0 0.0
      %3197 = vmatpush1.msra.mxu0 0.0
      %3198 = vmatprep.subr.mxu0 0.0
      %3199 = vmatpush1.msra.mxu0 0.0
      %3200 = vmatprep.subr.mxu0 0.0
      %3201 = vmatpush1.msra.mxu0 0.0
      %3202 = vmatprep.subr.mxu0 0.0
      %3203 = vmatpush1.msra.mxu0 0.0
      %3204 = vmatprep.subr.mxu0 0.0
      %3205 = vmatpush1.msra.mxu0 0.0
      %3206 = vmatprep.subr.mxu0 0.0
      %3207 = vmatpush1.msra.mxu0 0.0
      %3208 = vmatprep.subr.mxu0 0.0
      %3209 = vmatpush1.msra.mxu0 0.0
      %3210 = vmatprep.subr.mxu0 0.0
      %3211 = vmatpush1.msra.mxu0 0.0
      %3212 = vmatprep.subr.mxu0 0.0
      %3213 = vmatpush1.msra.mxu0 0.0
      %3214 = vmatprep.mubr.f32.mxu0 0.0
      %3215 = vmatmul.mubr.f32.gmra.mrb[0].mxu0 %v3140
      %v3216 = vpop.f32.mrb[0].mxu0
      %v3217 = vadd.f32 0.0, %v3216
      %v3218 = vpop.f32.mrb[0].mxu0
      %3219 = vmatprep.mubr.f32.mxu0 0.0
      %3220 = vmatmul.mubr.f32.gmra.mrb[0].mxu0 %v3143
      %v3221 = vpop.f32.mrb[0].mxu0
      %v3222 = vadd.f32 0.0, %v3221
      %v3223 = vpop.f32.mrb[0].mxu0
      %3224 = vmatprep.mubr.f32.mxu0 0.0
      %3225 = vmatmul.mubr.f32.gmra.mrb[0].mxu0 %v3146
      %v3226 = vpop.f32.mrb[0].mxu0
      %v3227 = vadd.f32 0.0, %v3226
      %v3228 = vpop.f32.mrb[0].mxu0
      %3229 = vdwg.mxu0
      %3233 = vrot.lane.b32.xlu0 %v3217, 16
      %v3234 = vpop.permute.xlu0 %3233
      %3235 = vrot.lane.b32.xlu0 %v3222, 16
      %v3236 = vpop.permute.xlu0 %3235
      %3237 = vrot.lane.b32.xlu0 %v3227, 16
      %v3238 = vpop.permute.xlu0 %3237
      %v3242 = vsel %vm878, %v2978, %v3234
      %v3243 = vsel %vm878, %v2983, %v3236
      %v3244 = vsel %vm878, %v2988, %v3238
      %v3247 = vrot.slane %v2742, 1
      %v3248 = vrot.slane %v2747, 1
      %v3249 = vsel %vm1365, %v3247, %v3248
      %v3250 = vrot.slane %v2752, 1
      %v3251 = vsel %vm1365, %v3248, %v3250
      %3252 = vrot.lane.b32.xlu0 %v3249, 96
      %v3253 = vpop.permute.xlu0 %3252
      %3254 = vrot.lane.b32.xlu0 %v3251, 96
      %v3255 = vpop.permute.xlu0 %3254
      %3256 = vrot.lane.b32.xlu0 %v3250, 96
      %v3257 = vpop.permute.xlu0 %3256
      %v3258 = vsel %vm878, %v3249, 0
      %v3260 = vsel %vm878, %v3251, 0
      %v3262 = vsel %vm878, %v3250, 0
      %v3264 = vsel %vm878, %v3253, 0
      %v3266 = vsel %vm878, %v3255, 0
      %v3268 = vsel %vm878, %v3257, 0
      %3270 = vmatprep.subr.mxu0 0.0
      %3271 = vmatpush1.xpose.msra.mxu0 %v3264
      %3272 = vmatprep.subr.mxu0 0.0
      %3273 = vmatpush1.xpose.msra.mxu0 %v3266
      %3274 = vmatprep.subr.mxu0 0.0
      %3275 = vmatpush1.xpose.msra.mxu0 %v3268
      %3276 = vmatprep.subr.mxu0 0.0
      %3277 = vmatpush1.xpose.msra.mxu0 0.0
      %3278 = vmatprep.subr.mxu0 0.0
      %3279 = vmatpush1.xpose.msra.mxu0 0.0
      %3280 = vmatprep.subr.mxu0 0.0
      %3281 = vmatpush1.xpose.msra.mxu0 0.0
      %3282 = vmatprep.subr.mxu0 0.0
      %3283 = vmatpush1.xpose.msra.mxu0 0.0
      %3284 = vmatprep.subr.mxu0 0.0
      %3285 = vmatpush1.xpose.msra.mxu0 0.0
      %3286 = vmatprep.subr.mxu0 0.0
      %3287 = vmatpush1.xpose.msra.mxu0 0.0
      %3288 = vmatprep.subr.mxu0 0.0
      %3289 = vmatpush1.xpose.msra.mxu0 0.0
      %3290 = vmatprep.subr.mxu0 0.0
      %3291 = vmatpush1.xpose.msra.mxu0 0.0
      %3292 = vmatprep.subr.mxu0 0.0
      %3293 = vmatpush1.xpose.msra.mxu0 0.0
      %3294 = vmatprep.subr.mxu0 0.0
      %3295 = vmatpush1.xpose.msra.mxu0 0.0
      %3296 = vmatprep.subr.mxu0 0.0
      %3297 = vmatpush1.xpose.msra.mxu0 0.0
      %3298 = vmatprep.subr.mxu0 0.0
      %3299 = vmatpush1.xpose.msra.mxu0 0.0
      %3300 = vmatprep.subr.mxu0 0.0
      %3301 = vmatpush1.xpose.msra.mxu0 0.0
      %3302 = vmatprep.subr.mxu0 0.0
      %3303 = vmatpush1.xpose.msra.mxu0 0.0
      %3304 = vmatprep.subr.mxu0 0.0
      %3305 = vmatpush1.xpose.msra.mxu0 0.0
      %3306 = vmatprep.subr.mxu0 0.0
      %3307 = vmatpush1.xpose.msra.mxu0 0.0
      %3308 = vmatprep.subr.mxu0 0.0
      %3309 = vmatpush1.xpose.msra.mxu0 0.0
      %3310 = vmatprep.subr.mxu0 0.0
      %3311 = vmatpush1.xpose.msra.mxu0 0.0
      %3312 = vmatprep.subr.mxu0 0.0
      %3313 = vmatpush1.xpose.msra.mxu0 0.0
      %3314 = vmatprep.subr.mxu0 0.0
      %3315 = vmatpush1.xpose.msra.mxu0 0.0
      %3316 = vmatprep.subr.mxu0 0.0
      %3317 = vmatpush1.xpose.msra.mxu0 0.0
      %3318 = vmatprep.subr.mxu0 0.0
      %3319 = vmatpush1.xpose.msra.mxu0 0.0
      %3320 = vmatprep.subr.mxu0 0.0
      %3321 = vmatpush1.xpose.msra.mxu0 0.0
      %3322 = vmatprep.subr.mxu0 0.0
      %3323 = vmatpush1.xpose.msra.mxu0 0.0
      %3324 = vmatprep.subr.mxu0 0.0
      %3325 = vmatpush1.xpose.msra.mxu0 0.0
      %3326 = vmatprep.subr.mxu0 0.0
      %3327 = vmatpush1.xpose.msra.mxu0 0.0
      %3328 = vmatprep.subr.mxu0 0.0
      %3329 = vmatpush1.xpose.msra.mxu0 0.0
      %3330 = vmatprep.subr.mxu0 0.0
      %3331 = vmatpush1.xpose.msra.mxu0 0.0
      %3332 = vmatprep.subr.mxu0 0.0
      %3333 = vmatpush1.xpose.msra.mxu0 0.0
      %3334 = vmatprep.mubr.f32.mxu0 0.0
      %3335 = vmatmul.mubr.f32.gmra.mrb[0].mxu0 %v3258
      %v3336 = vpop.f32.mrb[0].mxu0
      %v3337 = vadd.f32 0.0, %v3336
      %v3338 = vpop.f32.mrb[0].mxu0
      %3339 = vmatprep.mubr.f32.mxu0 0.0
      %3340 = vmatmul.mubr.f32.gmra.mrb[0].mxu0 %v3260
      %v3341 = vpop.f32.mrb[0].mxu0
      %v3342 = vadd.f32 0.0, %v3341
      %v3343 = vpop.f32.mrb[0].mxu0
      %3344 = vmatprep.mubr.f32.mxu0 0.0
      %3345 = vmatmul.mubr.f32.gmra.mrb[0].mxu0 %v3262
      %v3346 = vpop.f32.mrb[0].mxu0
      %v3347 = vadd.f32 0.0, %v3346
      %v3348 = vpop.f32.mrb[0].mxu0
      %3349 = vdwg.mxu0
      %v3350 = vmul.f32 %v3337, 0.25
      %v3351 = vmul.f32 %v3342, 0.25
      %v3352 = vmul.f32 %v3347, 0.25
      %v3353 = vsel %vm974, %v3350, -inf
      %3354 = vmax.xlane.f32.xlu0 %v3353
      %v3355 = vpop.xlane.xlu0 %3354
      %v3356 = vsel %vm974, %v3351, -inf
      %3357 = vmax.xlane.f32.xlu0 %v3356
      %v3358 = vpop.xlane.xlu0 %3357
      %v3359 = vsel %vm981, %v3352, -inf
      %3360 = vmax.xlane.f32.xlu0 %v3359
      %v3361 = vpop.xlane.xlu0 %3360
      %v3362 = vsub.f32 %v3350, %v3355
      %v3363 = vsub.f32 %v3351, %v3358
      %v3364 = vsub.f32 %v3352, %v3361
      %v3365 = vmul.f32 %v3362, 1.442695
      %v3366 = vpow.pop %v3365
      %v3367 = vmul.f32 %v3363, 1.442695
      %v3368 = vpow.pop %v3367
      %v3369 = vmul.f32 %v3364, 1.442695
      %v3370 = vpow.pop %v3369
      %v3371 = vsel %vm974, %v3366, 0.0
      %3372 = vadd.xlane.f32.xlu0 %v3371
      %v3373 = vpop.xlane.xlu0 %3372
      %v3374 = vsel %vm974, %v3368, 0.0
      %3375 = vadd.xlane.f32.xlu0 %v3374
      %v3376 = vpop.xlane.xlu0 %3375
      %v3377 = vsel %vm981, %v3370, 0.0
      %3378 = vadd.xlane.f32.xlu0 %v3377
      %v3379 = vpop.xlane.xlu0 %3378
      %v3380 = vrcp.pop %v3373
      %v3381 = vrcp.pop %v3376
      %v3382 = vrcp.pop %v3379
      %v3383 = vmul.f32 %v3366, %v3380
      %v3384 = vmul.f32 %v3368, %v3381
      %v3385 = vmul.f32 %v3370, %v3382
      %3386 = vrot.lane.b32.xlu0 %v3249, 64
      %v3387 = vpop.permute.xlu0 %3386
      %3388 = vrot.lane.b32.xlu0 %v3251, 64
      %v3389 = vpop.permute.xlu0 %3388
      %3390 = vrot.lane.b32.xlu0 %v3250, 64
      %v3391 = vpop.permute.xlu0 %3390
      %v3395 = vsel %vm974, %v3383, 0
      %v3398 = vsel %vm974, %v3384, 0
      %v3401 = vsel %vm974, %v3385, 0
      %v3403 = vsel %vm1026, %v3391, 0
      %3405 = vmatprep.subr.mxu0 0.0
      %3406 = vmatpush1.msra.mxu0 %v3387
      %3407 = vmatprep.subr.mxu0 0.0
      %3408 = vmatpush1.msra.mxu0 %v3389
      %3409 = vmatprep.subr.mxu0 0.0
      %3410 = vmatpush1.msra.mxu0 %v3403
      %3411 = vmatprep.subr.mxu0 0.0
      %3412 = vmatpush1.msra.mxu0 0.0
      %3413 = vmatprep.subr.mxu0 0.0
      %3414 = vmatpush1.msra.mxu0 0.0
      %3415 = vmatprep.subr.mxu0 0.0
      %3416 = vmatpush1.msra.mxu0 0.0
      %3417 = vmatprep.subr.mxu0 0.0
      %3418 = vmatpush1.msra.mxu0 0.0
      %3419 = vmatprep.subr.mxu0 0.0
      %3420 = vmatpush1.msra.mxu0 0.0
      %3421 = vmatprep.subr.mxu0 0.0
      %3422 = vmatpush1.msra.mxu0 0.0
      %3423 = vmatprep.subr.mxu0 0.0
      %3424 = vmatpush1.msra.mxu0 0.0
      %3425 = vmatprep.subr.mxu0 0.0
      %3426 = vmatpush1.msra.mxu0 0.0
      %3427 = vmatprep.subr.mxu0 0.0
      %3428 = vmatpush1.msra.mxu0 0.0
      %3429 = vmatprep.subr.mxu0 0.0
      %3430 = vmatpush1.msra.mxu0 0.0
      %3431 = vmatprep.subr.mxu0 0.0
      %3432 = vmatpush1.msra.mxu0 0.0
      %3433 = vmatprep.subr.mxu0 0.0
      %3434 = vmatpush1.msra.mxu0 0.0
      %3435 = vmatprep.subr.mxu0 0.0
      %3436 = vmatpush1.msra.mxu0 0.0
      %3437 = vmatprep.subr.mxu0 0.0
      %3438 = vmatpush1.msra.mxu0 0.0
      %3439 = vmatprep.subr.mxu0 0.0
      %3440 = vmatpush1.msra.mxu0 0.0
      %3441 = vmatprep.subr.mxu0 0.0
      %3442 = vmatpush1.msra.mxu0 0.0
      %3443 = vmatprep.subr.mxu0 0.0
      %3444 = vmatpush1.msra.mxu0 0.0
      %3445 = vmatprep.subr.mxu0 0.0
      %3446 = vmatpush1.msra.mxu0 0.0
      %3447 = vmatprep.subr.mxu0 0.0
      %3448 = vmatpush1.msra.mxu0 0.0
      %3449 = vmatprep.subr.mxu0 0.0
      %3450 = vmatpush1.msra.mxu0 0.0
      %3451 = vmatprep.subr.mxu0 0.0
      %3452 = vmatpush1.msra.mxu0 0.0
      %3453 = vmatprep.subr.mxu0 0.0
      %3454 = vmatpush1.msra.mxu0 0.0
      %3455 = vmatprep.subr.mxu0 0.0
      %3456 = vmatpush1.msra.mxu0 0.0
      %3457 = vmatprep.subr.mxu0 0.0
      %3458 = vmatpush1.msra.mxu0 0.0
      %3459 = vmatprep.subr.mxu0 0.0
      %3460 = vmatpush1.msra.mxu0 0.0
      %3461 = vmatprep.subr.mxu0 0.0
      %3462 = vmatpush1.msra.mxu0 0.0
      %3463 = vmatprep.subr.mxu0 0.0
      %3464 = vmatpush1.msra.mxu0 0.0
      %3465 = vmatprep.subr.mxu0 0.0
      %3466 = vmatpush1.msra.mxu0 0.0
      %3467 = vmatprep.subr.mxu0 0.0
      %3468 = vmatpush1.msra.mxu0 0.0
      %3469 = vmatprep.mubr.f32.mxu0 0.0
      %3470 = vmatmul.mubr.f32.gmra.mrb[0].mxu0 %v3395
      %v3471 = vpop.f32.mrb[0].mxu0
      %v3472 = vadd.f32 0.0, %v3471
      %v3473 = vpop.f32.mrb[0].mxu0
      %3474 = vmatprep.mubr.f32.mxu0 0.0
      %3475 = vmatmul.mubr.f32.gmra.mrb[0].mxu0 %v3398
      %v3476 = vpop.f32.mrb[0].mxu0
      %v3477 = vadd.f32 0.0, %v3476
      %v3478 = vpop.f32.mrb[0].mxu0
      %3479 = vmatprep.mubr.f32.mxu0 0.0
      %3480 = vmatmul.mubr.f32.gmra.mrb[0].mxu0 %v3401
      %v3481 = vpop.f32.mrb[0].mxu0
      %v3482 = vadd.f32 0.0, %v3481
      %v3483 = vpop.f32.mrb[0].mxu0
      %3484 = vdwg.mxu0
      %3485 = vrot.lane.b32.xlu0 %v3249, 112
      %v3486 = vpop.permute.xlu0 %3485
      %3487 = vrot.lane.b32.xlu0 %v3251, 112
      %v3488 = vpop.permute.xlu0 %3487
      %3489 = vrot.lane.b32.xlu0 %v3250, 112
      %v3490 = vpop.permute.xlu0 %3489
      %3491 = vrot.lane.b32.xlu0 %v3249, 80
      %v3492 = vpop.permute.xlu0 %3491
      %3493 = vrot.lane.b32.xlu0 %v3251, 80
      %v3494 = vpop.permute.xlu0 %3493
      %3495 = vrot.lane.b32.xlu0 %v3250, 80
      %v3496 = vpop.permute.xlu0 %3495
      %v3497 = vsel %vm878, %v3486, 0
      %v3499 = vsel %vm878, %v3488, 0
      %v3501 = vsel %vm878, %v3490, 0
      %v3503 = vsel %vm878, %v3492, 0
      %v3505 = vsel %vm878, %v3494, 0
      %v3507 = vsel %vm878, %v3496, 0
      %3509 = vmatprep.subr.mxu0 0.0
      %3510 = vmatpush1.xpose.msra.mxu0 %v3503
      %3511 = vmatprep.subr.mxu0 0.0
      %3512 = vmatpush1.xpose.msra.mxu0 %v3505
      %3513 = vmatprep.subr.mxu0 0.0
      %3514 = vmatpush1.xpose.msra.mxu0 %v3507
      %3515 = vmatprep.subr.mxu0 0.0
      %3516 = vmatpush1.xpose.msra.mxu0 0.0
      %3517 = vmatprep.subr.mxu0 0.0
      %3518 = vmatpush1.xpose.msra.mxu0 0.0
      %3519 = vmatprep.subr.mxu0 0.0
      %3520 = vmatpush1.xpose.msra.mxu0 0.0
      %3521 = vmatprep.subr.mxu0 0.0
      %3522 = vmatpush1.xpose.msra.mxu0 0.0
      %3523 = vmatprep.subr.mxu0 0.0
      %3524 = vmatpush1.xpose.msra.mxu0 0.0
      %3525 = vmatprep.subr.mxu0 0.0
      %3526 = vmatpush1.xpose.msra.mxu0 0.0
      %3527 = vmatprep.subr.mxu0 0.0
      %3528 = vmatpush1.xpose.msra.mxu0 0.0
      %3529 = vmatprep.subr.mxu0 0.0
      %3530 = vmatpush1.xpose.msra.mxu0 0.0
      %3531 = vmatprep.subr.mxu0 0.0
      %3532 = vmatpush1.xpose.msra.mxu0 0.0
      %3533 = vmatprep.subr.mxu0 0.0
      %3534 = vmatpush1.xpose.msra.mxu0 0.0
      %3535 = vmatprep.subr.mxu0 0.0
      %3536 = vmatpush1.xpose.msra.mxu0 0.0
      %3537 = vmatprep.subr.mxu0 0.0
      %3538 = vmatpush1.xpose.msra.mxu0 0.0
      %3539 = vmatprep.subr.mxu0 0.0
      %3540 = vmatpush1.xpose.msra.mxu0 0.0
      %3541 = vmatprep.subr.mxu0 0.0
      %3542 = vmatpush1.xpose.msra.mxu0 0.0
      %3543 = vmatprep.subr.mxu0 0.0
      %3544 = vmatpush1.xpose.msra.mxu0 0.0
      %3545 = vmatprep.subr.mxu0 0.0
      %3546 = vmatpush1.xpose.msra.mxu0 0.0
      %3547 = vmatprep.subr.mxu0 0.0
      %3548 = vmatpush1.xpose.msra.mxu0 0.0
      %3549 = vmatprep.subr.mxu0 0.0
      %3550 = vmatpush1.xpose.msra.mxu0 0.0
      %3551 = vmatprep.subr.mxu0 0.0
      %3552 = vmatpush1.xpose.msra.mxu0 0.0
      %3553 = vmatprep.subr.mxu0 0.0
      %3554 = vmatpush1.xpose.msra.mxu0 0.0
      %3555 = vmatprep.subr.mxu0 0.0
      %3556 = vmatpush1.xpose.msra.mxu0 0.0
      %3557 = vmatprep.subr.mxu0 0.0
      %3558 = vmatpush1.xpose.msra.mxu0 0.0
      %3559 = vmatprep.subr.mxu0 0.0
      %3560 = vmatpush1.xpose.msra.mxu0 0.0
      %3561 = vmatprep.subr.mxu0 0.0
      %3562 = vmatpush1.xpose.msra.mxu0 0.0
      %3563 = vmatprep.subr.mxu0 0.0
      %3564 = vmatpush1.xpose.msra.mxu0 0.0
      %3565 = vmatprep.subr.mxu0 0.0
      %3566 = vmatpush1.xpose.msra.mxu0 0.0
      %3567 = vmatprep.subr.mxu0 0.0
      %3568 = vmatpush1.xpose.msra.mxu0 0.0
      %3569 = vmatprep.subr.mxu0 0.0
      %3570 = vmatpush1.xpose.msra.mxu0 0.0
      %3571 = vmatprep.subr.mxu0 0.0
      %3572 = vmatpush1.xpose.msra.mxu0 0.0
      %3573 = vmatprep.mubr.f32.mxu0 0.0
      %3574 = vmatmul.mubr.f32.gmra.mrb[0].mxu0 %v3497
      %v3575 = vpop.f32.mrb[0].mxu0
      %v3576 = vadd.f32 0.0, %v3575
      %v3577 = vpop.f32.mrb[0].mxu0
      %3578 = vmatprep.mubr.f32.mxu0 0.0
      %3579 = vmatmul.mubr.f32.gmra.mrb[0].mxu0 %v3499
      %v3580 = vpop.f32.mrb[0].mxu0
      %v3581 = vadd.f32 0.0, %v3580
      %v3582 = vpop.f32.mrb[0].mxu0
      %3583 = vmatprep.mubr.f32.mxu0 0.0
      %3584 = vmatmul.mubr.f32.gmra.mrb[0].mxu0 %v3501
      %v3585 = vpop.f32.mrb[0].mxu0
      %v3586 = vadd.f32 0.0, %v3585
      %v3587 = vpop.f32.mrb[0].mxu0
      %3588 = vdwg.mxu0
      %v3589 = vmul.f32 %v3576, 0.25
      %v3590 = vmul.f32 %v3581, 0.25
      %v3591 = vmul.f32 %v3586, 0.25
      %v3592 = vsel %vm974, %v3589, -inf
      %3593 = vmax.xlane.f32.xlu0 %v3592
      %v3594 = vpop.xlane.xlu0 %3593
      %v3595 = vsel %vm974, %v3590, -inf
      %3596 = vmax.xlane.f32.xlu0 %v3595
      %v3597 = vpop.xlane.xlu0 %3596
      %v3598 = vsel %vm981, %v3591, -inf
      %3599 = vmax.xlane.f32.xlu0 %v3598
      %v3600 = vpop.xlane.xlu0 %3599
      %v3601 = vsub.f32 %v3589, %v3594
      %v3602 = vsub.f32 %v3590, %v3597
      %v3603 = vsub.f32 %v3591, %v3600
      %v3604 = vmul.f32 %v3601, 1.442695
      %v3605 = vpow.pop %v3604
      %v3606 = vmul.f32 %v3602, 1.442695
      %v3607 = vpow.pop %v3606
      %v3608 = vmul.f32 %v3603, 1.442695
      %v3609 = vpow.pop %v3608
      %v3610 = vsel %vm974, %v3605, 0.0
      %3611 = vadd.xlane.f32.xlu0 %v3610
      %v3612 = vpop.xlane.xlu0 %3611
      %v3613 = vsel %vm974, %v3607, 0.0
      %3614 = vadd.xlane.f32.xlu0 %v3613
      %v3615 = vpop.xlane.xlu0 %3614
      %v3616 = vsel %vm981, %v3609, 0.0
      %3617 = vadd.xlane.f32.xlu0 %v3616
      %v3618 = vpop.xlane.xlu0 %3617
      %v3619 = vrcp.pop %v3612
      %v3620 = vrcp.pop %v3615
      %v3621 = vrcp.pop %v3618
      %v3622 = vmul.f32 %v3605, %v3619
      %v3623 = vmul.f32 %v3607, %v3620
      %v3624 = vmul.f32 %v3609, %v3621
      %3625 = vrot.lane.b32.xlu0 %v3249, 48
      %v3626 = vpop.permute.xlu0 %3625
      %3627 = vrot.lane.b32.xlu0 %v3251, 48
      %v3628 = vpop.permute.xlu0 %3627
      %3629 = vrot.lane.b32.xlu0 %v3250, 48
      %v3630 = vpop.permute.xlu0 %3629
      %v3634 = vsel %vm974, %v3622, 0
      %v3637 = vsel %vm974, %v3623, 0
      %v3640 = vsel %vm974, %v3624, 0
      %v3642 = vsel %vm1026, %v3630, 0
      %3644 = vmatprep.subr.mxu0 0.0
      %3645 = vmatpush1.msra.mxu0 %v3626
      %3646 = vmatprep.subr.mxu0 0.0
      %3647 = vmatpush1.msra.mxu0 %v3628
      %3648 = vmatprep.subr.mxu0 0.0
      %3649 = vmatpush1.msra.mxu0 %v3642
      %3650 = vmatprep.subr.mxu0 0.0
      %3651 = vmatpush1.msra.mxu0 0.0
      %3652 = vmatprep.subr.mxu0 0.0
      %3653 = vmatpush1.msra.mxu0 0.0
      %3654 = vmatprep.subr.mxu0 0.0
      %3655 = vmatpush1.msra.mxu0 0.0
      %3656 = vmatprep.subr.mxu0 0.0
      %3657 = vmatpush1.msra.mxu0 0.0
      %3658 = vmatprep.subr.mxu0 0.0
      %3659 = vmatpush1.msra.mxu0 0.0
      %3660 = vmatprep.subr.mxu0 0.0
      %3661 = vmatpush1.msra.mxu0 0.0
      %3662 = vmatprep.subr.mxu0 0.0
      %3663 = vmatpush1.msra.mxu0 0.0
      %3664 = vmatprep.subr.mxu0 0.0
      %3665 = vmatpush1.msra.mxu0 0.0
      %3666 = vmatprep.subr.mxu0 0.0
      %3667 = vmatpush1.msra.mxu0 0.0
      %3668 = vmatprep.subr.mxu0 0.0
      %3669 = vmatpush1.msra.mxu0 0.0
      %3670 = vmatprep.subr.mxu0 0.0
      %3671 = vmatpush1.msra.mxu0 0.0
      %3672 = vmatprep.subr.mxu0 0.0
      %3673 = vmatpush1.msra.mxu0 0.0
      %3674 = vmatprep.subr.mxu0 0.0
      %3675 = vmatpush1.msra.mxu0 0.0
      %3676 = vmatprep.subr.mxu0 0.0
      %3677 = vmatpush1.msra.mxu0 0.0
      %3678 = vmatprep.subr.mxu0 0.0
      %3679 = vmatpush1.msra.mxu0 0.0
      %3680 = vmatprep.subr.mxu0 0.0
      %3681 = vmatpush1.msra.mxu0 0.0
      %3682 = vmatprep.subr.mxu0 0.0
      %3683 = vmatpush1.msra.mxu0 0.0
      %3684 = vmatprep.subr.mxu0 0.0
      %3685 = vmatpush1.msra.mxu0 0.0
      %3686 = vmatprep.subr.mxu0 0.0
      %3687 = vmatpush1.msra.mxu0 0.0
      %3688 = vmatprep.subr.mxu0 0.0
      %3689 = vmatpush1.msra.mxu0 0.0
      %3690 = vmatprep.subr.mxu0 0.0
      %3691 = vmatpush1.msra.mxu0 0.0
      %3692 = vmatprep.subr.mxu0 0.0
      %3693 = vmatpush1.msra.mxu0 0.0
      %3694 = vmatprep.subr.mxu0 0.0
      %3695 = vmatpush1.msra.mxu0 0.0
      %3696 = vmatprep.subr.mxu0 0.0
      %3697 = vmatpush1.msra.mxu0 0.0
      %3698 = vmatprep.subr.mxu0 0.0
      %3699 = vmatpush1.msra.mxu0 0.0
      %3700 = vmatprep.subr.mxu0 0.0
      %3701 = vmatpush1.msra.mxu0 0.0
      %3702 = vmatprep.subr.mxu0 0.0
      %3703 = vmatpush1.msra.mxu0 0.0
      %3704 = vmatprep.subr.mxu0 0.0
      %3705 = vmatpush1.msra.mxu0 0.0
      %3706 = vmatprep.subr.mxu0 0.0
      %3707 = vmatpush1.msra.mxu0 0.0
      %3708 = vmatprep.mubr.f32.mxu0 0.0
      %3709 = vmatmul.mubr.f32.gmra.mrb[0].mxu0 %v3634
      %v3710 = vpop.f32.mrb[0].mxu0
      %v3711 = vadd.f32 0.0, %v3710
      %v3712 = vpop.f32.mrb[0].mxu0
      %3713 = vmatprep.mubr.f32.mxu0 0.0
      %3714 = vmatmul.mubr.f32.gmra.mrb[0].mxu0 %v3637
      %v3715 = vpop.f32.mrb[0].mxu0
      %v3716 = vadd.f32 0.0, %v3715
      %v3717 = vpop.f32.mrb[0].mxu0
      %3718 = vmatprep.mubr.f32.mxu0 0.0
      %3719 = vmatmul.mubr.f32.gmra.mrb[0].mxu0 %v3640
      %v3720 = vpop.f32.mrb[0].mxu0
      %v3721 = vadd.f32 0.0, %v3720
      %v3722 = vpop.f32.mrb[0].mxu0
      %3723 = vdwg.mxu0
      %3727 = vrot.lane.b32.xlu0 %v3711, 16
      %v3728 = vpop.permute.xlu0 %3727
      %3729 = vrot.lane.b32.xlu0 %v3716, 16
      %v3730 = vpop.permute.xlu0 %3729
      %3731 = vrot.lane.b32.xlu0 %v3721, 16
      %v3732 = vpop.permute.xlu0 %3731
      %v3736 = vsel %vm878, %v3472, %v3728
      %v3737 = vsel %vm878, %v3477, %v3730
      %v3738 = vsel %vm878, %v3482, %v3732
      %v3742 = vrot.slane %v3736, 7
      %v3743 = vrot.slane %v3737, 7
      %v3744 = vsel %vm1026, %v3742, %v3743
      %v3745 = vrot.slane %v3738, 7
      %v3746 = vsel %vm1026, %v3743, %v3745
      %v3748 = vsel %vm1026, %v3244, %v3742
      %s3749 = scalar_lea.vmem %s516, 32
      %v3750 = vld [vmem:[%s3749] sm:$0xff]
      %v3751 = vld [vmem:[%s3749 + $0x8] sm:$0xff]
      %v3752 = vld [vmem:[%s3749 + $0x10] sm:$0xff]
      %v3753 = vld [vmem:[%s3749 + $0x18] sm:$0xff]
      %v3754 = vlaneseq
      %v3755 = vshrl.u32 %v3754, 7
      %v3756 = vsub.s32 2, %v3755
      %v3757 = vrot.slane %v543, %v3756
      %v3759 = vsel %vm667, %v3242, 0
      %v3762 = vsel %vm667, %v3243, 0
      %v3765 = vsel %vm667, %v3748, 0
      %v3767 = vsel %vm667, %v3744, 0
      %v3769 = vsel %vm667, %v3746, 0
      %3771 = vmatprep.subr.mxu0 0.0
      %3772 = vmatpush1.msra.mxu0 %v3750
      %3773 = vmatprep.subr.mxu0 0.0
      %3774 = vmatpush1.msra.mxu0 %v3751
      %3775 = vmatprep.subr.mxu0 0.0
      %3776 = vmatpush1.msra.mxu0 %v3752
      %3777 = vmatprep.subr.mxu0 0.0
      %3778 = vmatpush1.msra.mxu0 %v3753
      %3779 = vmatprep.subr.mxu0 0.0
      %3780 = vmatpush1.msra.mxu0 0.0
      %3781 = vmatprep.subr.mxu0 0.0
      %3782 = vmatpush1.msra.mxu0 0.0
      %3783 = vmatprep.subr.mxu0 0.0
      %3784 = vmatpush1.msra.mxu0 0.0
      %3785 = vmatprep.subr.mxu0 0.0
      %3786 = vmatpush1.msra.mxu0 0.0
      %3787 = vmatprep.subr.mxu0 0.0
      %3788 = vmatpush1.msra.mxu0 0.0
      %3789 = vmatprep.subr.mxu0 0.0
      %3790 = vmatpush1.msra.mxu0 0.0
      %3791 = vmatprep.subr.mxu0 0.0
      %3792 = vmatpush1.msra.mxu0 0.0
      %3793 = vmatprep.subr.mxu0 0.0
      %3794 = vmatpush1.msra.mxu0 0.0
      %3795 = vmatprep.subr.mxu0 0.0
      %3796 = vmatpush1.msra.mxu0 0.0
      %3797 = vmatprep.subr.mxu0 0.0
      %3798 = vmatpush1.msra.mxu0 0.0
      %3799 = vmatprep.subr.mxu0 0.0
      %3800 = vmatpush1.msra.mxu0 0.0
      %3801 = vmatprep.subr.mxu0 0.0
      %3802 = vmatpush1.msra.mxu0 0.0
      %3803 = vmatprep.subr.mxu0 0.0
      %3804 = vmatpush1.msra.mxu0 0.0
      %3805 = vmatprep.subr.mxu0 0.0
      %3806 = vmatpush1.msra.mxu0 0.0
      %3807 = vmatprep.subr.mxu0 0.0
      %3808 = vmatpush1.msra.mxu0 0.0
      %3809 = vmatprep.subr.mxu0 0.0
      %3810 = vmatpush1.msra.mxu0 0.0
      %3811 = vmatprep.subr.mxu0 0.0
      %3812 = vmatpush1.msra.mxu0 0.0
      %3813 = vmatprep.subr.mxu0 0.0
      %3814 = vmatpush1.msra.mxu0 0.0
      %3815 = vmatprep.subr.mxu0 0.0
      %3816 = vmatpush1.msra.mxu0 0.0
      %3817 = vmatprep.subr.mxu0 0.0
      %3818 = vmatpush1.msra.mxu0 0.0
      %3819 = vmatprep.subr.mxu0 0.0
      %3820 = vmatpush1.msra.mxu0 0.0
      %3821 = vmatprep.subr.mxu0 0.0
      %3822 = vmatpush1.msra.mxu0 0.0
      %3823 = vmatprep.subr.mxu0 0.0
      %3824 = vmatpush1.msra.mxu0 0.0
      %3825 = vmatprep.subr.mxu0 0.0
      %3826 = vmatpush1.msra.mxu0 0.0
      %3827 = vmatprep.subr.mxu0 0.0
      %3828 = vmatpush1.msra.mxu0 0.0
      %3829 = vmatprep.subr.mxu0 0.0
      %3830 = vmatpush1.msra.mxu0 0.0
      %3831 = vmatprep.subr.mxu0 0.0
      %3832 = vmatpush1.msra.mxu0 0.0
      %3833 = vmatprep.subr.mxu0 0.0
      %3834 = vmatpush1.msra.mxu0 0.0
      %3835 = vmatprep.mubr.f32.mxu0 0.0
      %3836 = vmatmul.mubr.f32.gmra.mrb[0].mxu0 %v3759
      %v3837 = vpop.f32.mrb[0].mxu0
      %v3838 = vadd.f32 %v3757, %v3837
      %v3839 = vpop.f32.mrb[0].mxu0
      %3840 = vmatprep.mubr.f32.mxu0 0.0
      %3841 = vmatmul.mubr.f32.gmra.mrb[0].mxu0 %v3762
      %v3842 = vpop.f32.mrb[0].mxu0
      %v3843 = vadd.f32 %v3757, %v3842
      %v3844 = vpop.f32.mrb[0].mxu0
      %3845 = vmatprep.mubr.f32.mxu0 0.0
      %3846 = vmatmul.mubr.f32.gmra.mrb[0].mxu0 %v3765
      %v3847 = vpop.f32.mrb[0].mxu0
      %v3848 = vadd.f32 %v3757, %v3847
      %v3849 = vpop.f32.mrb[0].mxu0
      %3850 = vmatprep.mubr.f32.mxu0 0.0
      %3851 = vmatmul.mubr.f32.gmra.mrb[0].mxu0 %v3767
      %v3852 = vpop.f32.mrb[0].mxu0
      %v3853 = vadd.f32 %v3757, %v3852
      %v3854 = vpop.f32.mrb[0].mxu0
      %3855 = vmatprep.mubr.f32.mxu0 0.0
      %3856 = vmatmul.mubr.f32.gmra.mrb[0].mxu0 %v3769
      %v3857 = vpop.f32.mrb[0].mxu0
      %v3858 = vadd.f32 %v3757, %v3857
      %v3859 = vpop.f32.mrb[0].mxu0
      %3860 = vdwg.mxu0
      %v3861 = vadd.f32 %v2338, %v3838
      %v3862 = vadd.f32 %v2339, %v3843
      %v3863 = vadd.f32 %v2340, %v3848
      %v3864 = vadd.f32 %v2341, %v3853
      %v3865 = vadd.f32 %v2342, %v3858
      %v3866 = vsel %vm667, %v3861, 0.0
      %3867 = vadd.xlane.f32.xlu0 %v3866
      %v3868 = vpop.xlane.xlu0 %3867
      %v3869 = vsel %vm667, %v3862, 0.0
      %3870 = vadd.xlane.f32.xlu0 %v3869
      %v3871 = vpop.xlane.xlu0 %3870
      %v3872 = vsel %vm667, %v3863, 0.0
      %3873 = vadd.xlane.f32.xlu0 %v3872
      %v3874 = vpop.xlane.xlu0 %3873
      %v3875 = vsel %vm667, %v3864, 0.0
      %3876 = vadd.xlane.f32.xlu0 %v3875
      %v3877 = vpop.xlane.xlu0 %3876
      %v3878 = vsel %vm680, %v3865, 0.0
      %3879 = vadd.xlane.f32.xlu0 %v3878
      %v3880 = vpop.xlane.xlu0 %3879
      %v3881 = vmul.f32 %v3868, %v684
      %v3882 = vmul.f32 %v3871, %v684
      %v3883 = vmul.f32 %v3874, %v684
      %v3884 = vmul.f32 %v3877, %v684
      %v3885 = vmul.f32 %v3880, %v684
      %v3886 = vsub.f32 %v3861, %v3881
      %v3887 = vsub.f32 %v3862, %v3882
      %v3888 = vsub.f32 %v3863, %v3883
      %v3889 = vsub.f32 %v3864, %v3884
      %v3890 = vsub.f32 %v3865, %v3885
      %v3891 = vmul.f32 %v3886, %v3886
      %v3892 = vmul.f32 %v3887, %v3887
      %v3893 = vmul.f32 %v3888, %v3888
      %v3894 = vmul.f32 %v3889, %v3889
      %v3895 = vmul.f32 %v3890, %v3890
      %v3896 = vsel %vm667, %v3891, 0.0
      %3897 = vadd.xlane.f32.xlu0 %v3896
      %v3898 = vpop.xlane.xlu0 %3897
      %v3899 = vsel %vm667, %v3892, 0.0
      %3900 = vadd.xlane.f32.xlu0 %v3899
      %v3901 = vpop.xlane.xlu0 %3900
      %v3902 = vsel %vm667, %v3893, 0.0
      %3903 = vadd.xlane.f32.xlu0 %v3902
      %v3904 = vpop.xlane.xlu0 %3903
      %v3905 = vsel %vm667, %v3894, 0.0
      %3906 = vadd.xlane.f32.xlu0 %v3905
      %v3907 = vpop.xlane.xlu0 %3906
      %v3908 = vsel %vm680, %v3895, 0.0
      %3909 = vadd.xlane.f32.xlu0 %v3908
      %v3910 = vpop.xlane.xlu0 %3909
      %v3911 = vmul.f32 %v3898, %v684
      %v3912 = vmul.f32 %v3901, %v684
      %v3913 = vmul.f32 %v3904, %v684
      %v3914 = vmul.f32 %v3907, %v684
      %v3915 = vmul.f32 %v3910, %v684
      %v3916 = vadd.f32 %v3911, 1e-06
      %v3917 = vadd.f32 %v3912, 1e-06
      %v3918 = vadd.f32 %v3913, 1e-06
      %v3919 = vadd.f32 %v3914, 1e-06
      %v3920 = vadd.f32 %v3915, 1e-06
      %v3921 = vrsqrt.pop %v3916
      %v3922 = vrsqrt.pop %v3917
      %v3923 = vrsqrt.pop %v3918
      %v3924 = vrsqrt.pop %v3919
      %v3925 = vrsqrt.pop %v3920
      %v3926 = vmul.f32 %v3886, %v3921
      %v3927 = vmul.f32 %v3887, %v3922
      %v3928 = vmul.f32 %v3888, %v3923
      %v3929 = vmul.f32 %v3889, %v3924
      %v3930 = vmul.f32 %v3890, %v3925
      %v3931 = vlaneseq
      %v3932 = vshrl.u32 %v3931, 7
      %v3933 = vsub.s32 0, %v3932
      %v3934 = vrot.slane %v543, %v3933
      %v3935 = vmul.f32 %v3926, %v3934
      %v3936 = vmul.f32 %v3927, %v3934
      %v3937 = vmul.f32 %v3928, %v3934
      %v3938 = vmul.f32 %v3929, %v3934
      %v3939 = vmul.f32 %v3930, %v3934
      %v3940 = vlaneseq
      %v3941 = vshrl.u32 %v3940, 7
      %v3942 = vsub.s32 1, %v3941
      %v3943 = vrot.slane %v543, %v3942
      %v3944 = vadd.f32 %v3935, %v3943
      %v3945 = vadd.f32 %v3936, %v3943
      %v3946 = vadd.f32 %v3937, %v3943
      %v3947 = vadd.f32 %v3938, %v3943
      %v3948 = vadd.f32 %v3939, %v3943
      %s3949 = scalar_lea.vmem %s521, 32
      %v3950 = vld [vmem:[%s3949] sm:$0xff]
      %v3951 = vld [vmem:[%s3949 + $0x8] sm:$0xff]
      %v3952 = vld [vmem:[%s3949 + $0x10] sm:$0xff]
      %v3953 = vld [vmem:[%s3949 + $0x18] sm:$0xff]
      %s3954 = scalar_lea.vmem %s525, 1
      %v3955 = vld [vmem:[%s3954] sm:$0x1]
      %v3957 = vlaneseq
      %v3958 = vshrl.u32 %v3957, 7
      %v3959 = vsub.s32 0, %v3958
      %v3960 = vrot.slane %v3955, %v3959
      %v3963 = vsel %vm667, %v3944, 0
      %v3966 = vsel %vm667, %v3945, 0
      %v3969 = vsel %vm667, %v3946, 0
      %v3972 = vsel %vm667, %v3947, 0
      %v3975 = vsel %vm667, %v3948, 0
      %3977 = vmatprep.subr.mxu0 0.0
      %3978 = vmatpush1.msra.mxu0 %v3950
      %3979 = vmatprep.subr.mxu0 0.0
      %3980 = vmatpush1.msra.mxu0 %v3951
      %3981 = vmatprep.subr.mxu0 0.0
      %3982 = vmatpush1.msra.mxu0 %v3952
      %3983 = vmatprep.subr.mxu0 0.0
      %3984 = vmatpush1.msra.mxu0 %v3953
      %3985 = vmatprep.subr.mxu0 0.0
      %3986 = vmatpush1.msra.mxu0 0.0
      %3987 = vmatprep.subr.mxu0 0.0
      %3988 = vmatpush1.msra.mxu0 0.0
      %3989 = vmatprep.subr.mxu0 0.0
      %3990 = vmatpush1.msra.mxu0 0.0
      %3991 = vmatprep.subr.mxu0 0.0
      %3992 = vmatpush1.msra.mxu0 0.0
      %3993 = vmatprep.subr.mxu0 0.0
      %3994 = vmatpush1.msra.mxu0 0.0
      %3995 = vmatprep.subr.mxu0 0.0
      %3996 = vmatpush1.msra.mxu0 0.0
      %3997 = vmatprep.subr.mxu0 0.0
      %3998 = vmatpush1.msra.mxu0 0.0
      %3999 = vmatprep.subr.mxu0 0.0
      %4000 = vmatpush1.msra.mxu0 0.0
      %4001 = vmatprep.subr.mxu0 0.0
      %4002 = vmatpush1.msra.mxu0 0.0
      %4003 = vmatprep.subr.mxu0 0.0
      %4004 = vmatpush1.msra.mxu0 0.0
      %4005 = vmatprep.subr.mxu0 0.0
      %4006 = vmatpush1.msra.mxu0 0.0
      %4007 = vmatprep.subr.mxu0 0.0
      %4008 = vmatpush1.msra.mxu0 0.0
      %4009 = vmatprep.subr.mxu0 0.0
      %4010 = vmatpush1.msra.mxu0 0.0
      %4011 = vmatprep.subr.mxu0 0.0
      %4012 = vmatpush1.msra.mxu0 0.0
      %4013 = vmatprep.subr.mxu0 0.0
      %4014 = vmatpush1.msra.mxu0 0.0
      %4015 = vmatprep.subr.mxu0 0.0
      %4016 = vmatpush1.msra.mxu0 0.0
      %4017 = vmatprep.subr.mxu0 0.0
      %4018 = vmatpush1.msra.mxu0 0.0
      %4019 = vmatprep.subr.mxu0 0.0
      %4020 = vmatpush1.msra.mxu0 0.0
      %4021 = vmatprep.subr.mxu0 0.0
      %4022 = vmatpush1.msra.mxu0 0.0
      %4023 = vmatprep.subr.mxu0 0.0
      %4024 = vmatpush1.msra.mxu0 0.0
      %4025 = vmatprep.subr.mxu0 0.0
      %4026 = vmatpush1.msra.mxu0 0.0
      %4027 = vmatprep.subr.mxu0 0.0
      %4028 = vmatpush1.msra.mxu0 0.0
      %4029 = vmatprep.subr.mxu0 0.0
      %4030 = vmatpush1.msra.mxu0 0.0
      %4031 = vmatprep.subr.mxu0 0.0
      %4032 = vmatpush1.msra.mxu0 0.0
      %4033 = vmatprep.subr.mxu0 0.0
      %4034 = vmatpush1.msra.mxu0 0.0
      %4035 = vmatprep.subr.mxu0 0.0
      %4036 = vmatpush1.msra.mxu0 0.0
      %4037 = vmatprep.subr.mxu0 0.0
      %4038 = vmatpush1.msra.mxu0 0.0
      %4039 = vmatprep.subr.mxu0 0.0
      %4040 = vmatpush1.msra.mxu0 0.0
      %4041 = vmatprep.mubr.f32.mxu0 0.0
      %4042 = vmatmul.mubr.f32.gmra.mrb[0].mxu0 %v3963
      %v4043 = vpop.f32.mrb[0].mxu0
      %v4044 = vadd.f32 %v3960, %v4043
      %v4045 = vpop.f32.mrb[0].mxu0
      %4046 = vmatprep.mubr.f32.mxu0 0.0
      %4047 = vmatmul.mubr.f32.gmra.mrb[0].mxu0 %v3966
      %v4048 = vpop.f32.mrb[0].mxu0
      %v4049 = vadd.f32 %v3960, %v4048
      %v4050 = vpop.f32.mrb[0].mxu0
      %4051 = vmatprep.mubr.f32.mxu0 0.0
      %4052 = vmatmul.mubr.f32.gmra.mrb[0].mxu0 %v3969
      %v4053 = vpop.f32.mrb[0].mxu0
      %v4054 = vadd.f32 %v3960, %v4053
      %v4055 = vpop.f32.mrb[0].mxu0
      %4056 = vmatprep.mubr.f32.mxu0 0.0
      %4057 = vmatmul.mubr.f32.gmra.mrb[0].mxu0 %v3972
      %v4058 = vpop.f32.mrb[0].mxu0
      %v4059 = vadd.f32 %v3960, %v4058
      %v4060 = vpop.f32.mrb[0].mxu0
      %4061 = vmatprep.mubr.f32.mxu0 0.0
      %4062 = vmatmul.mubr.f32.gmra.mrb[0].mxu0 %v3975
      %v4063 = vpop.f32.mrb[0].mxu0
      %v4064 = vadd.f32 %v3960, %v4063
      %v4065 = vpop.f32.mrb[0].mxu0
      %4066 = vdwg.mxu0
      %v4067 = vmul.f32 %v4044, %v4044
      %v4068 = vmul.f32 %v4049, %v4049
      %v4069 = vmul.f32 %v4054, %v4054
      %v4070 = vmul.f32 %v4059, %v4059
      %v4071 = vmul.f32 %v4064, %v4064
      %v4072 = vmul.f32 %v4044, %v4067
      %v4073 = vmul.f32 %v4049, %v4068
      %v4074 = vmul.f32 %v4054, %v4069
      %v4075 = vmul.f32 %v4059, %v4070
      %v4076 = vmul.f32 %v4064, %v4071
      %v4077 = vmul.f32 %v4072, 0.044715
      %v4078 = vmul.f32 %v4073, 0.044715
      %v4079 = vmul.f32 %v4074, 0.044715
      %v4080 = vmul.f32 %v4075, 0.044715
      %v4081 = vmul.f32 %v4076, 0.044715
      %v4082 = vadd.f32 %v4044, %v4077
      %v4083 = vadd.f32 %v4049, %v4078
      %v4084 = vadd.f32 %v4054, %v4079
      %v4085 = vadd.f32 %v4059, %v4080
      %v4086 = vadd.f32 %v4064, %v4081
      %v4087 = vmul.f32 %v4082, 0.7978846
      %v4088 = vmul.f32 %v4083, 0.7978846
      %v4089 = vmul.f32 %v4084, 0.7978846
      %v4090 = vmul.f32 %v4085, 0.7978846
      %v4091 = vmul.f32 %v4086, 0.7978846
      %v4092 = vtanh.pop %v4087
      %v4093 = vtanh.pop %v4088
      %v4094 = vtanh.pop %v4089
      %v4095 = vtanh.pop %v4090
      %v4096 = vtanh.pop %v4091
      %v4097 = vadd.f32 %v4092, 1.0
      %v4098 = vadd.f32 %v4093, 1.0
      %v4099 = vadd.f32 %v4094, 1.0
      %v4100 = vadd.f32 %v4095, 1.0
      %v4101 = vadd.f32 %v4096, 1.0
      %v4102 = vmul.f32 %v4097, 0.5
      %v4103 = vmul.f32 %v4098, 0.5
      %v4104 = vmul.f32 %v4099, 0.5
      %v4105 = vmul.f32 %v4100, 0.5
      %v4106 = vmul.f32 %v4101, 0.5
      %v4107 = vmul.f32 %v4044, %v4102
      %v4108 = vmul.f32 %v4049, %v4103
      %v4109 = vmul.f32 %v4054, %v4104
      %v4110 = vmul.f32 %v4059, %v4105
      %v4111 = vmul.f32 %v4064, %v4106
      %s4112 = scalar_lea.vmem %s530, 128
      %v4113 = vld [vmem:[%s4112] sm:$0xff]
      %v4114 = vld [vmem:[%s4112 + $0x8] sm:$0xff]
      %v4115 = vld [vmem:[%s4112 + $0x10] sm:$0xff]
      %v4116 = vld [vmem:[%s4112 + $0x18] sm:$0xff]
      %v4117 = vld [vmem:[%s4112 + $0x20] sm:$0xff]
      %v4118 = vld [vmem:[%s4112 + $0x28] sm:$0xff]
      %v4119 = vld [vmem:[%s4112 + $0x30] sm:$0xff]
      %v4120 = vld [vmem:[%s4112 + $0x38] sm:$0xff]
      %v4121 = vld [vmem:[%s4112 + $0x40] sm:$0xff]
      %v4122 = vld [vmem:[%s4112 + $0x48] sm:$0xff]
      %v4123 = vld [vmem:[%s4112 + $0x50] sm:$0xff]
      %v4124 = vld [vmem:[%s4112 + $0x58] sm:$0xff]
      %v4125 = vld [vmem:[%s4112 + $0x60] sm:$0xff]
      %v4126 = vld [vmem:[%s4112 + $0x68] sm:$0xff]
      %v4127 = vld [vmem:[%s4112 + $0x70] sm:$0xff]
      %v4128 = vld [vmem:[%s4112 + $0x78] sm:$0xff]
      %v4129 = vlaneseq
      %v4130 = vshrl.u32 %v4129, 7
      %v4131 = vsub.s32 3, %v4130
      %v4132 = vrot.slane %v543, %v4131
      %4133 = vmatprep.subr.mxu0 0.0
      %4134 = vmatpush1.msra.mxu0 %v4113
      %4135 = vmatprep.subr.mxu0 0.0
      %4136 = vmatpush1.msra.mxu0 %v4114
      %4137 = vmatprep.subr.mxu0 0.0
      %4138 = vmatpush1.msra.mxu0 %v4115
      %4139 = vmatprep.subr.mxu0 0.0
      %4140 = vmatpush1.msra.mxu0 %v4116
      %4141 = vmatprep.subr.mxu0 0.0
      %4142 = vmatpush1.msra.mxu0 %v4117
      %4143 = vmatprep.subr.mxu0 0.0
      %4144 = vmatpush1.msra.mxu0 %v4118
      %4145 = vmatprep.subr.mxu0 0.0
      %4146 = vmatpush1.msra.mxu0 %v4119
      %4147 = vmatprep.subr.mxu0 0.0
      %4148 = vmatpush1.msra.mxu0 %v4120
      %4149 = vmatprep.subr.mxu0 0.0
      %4150 = vmatpush1.msra.mxu0 %v4121
      %4151 = vmatprep.subr.mxu0 0.0
      %4152 = vmatpush1.msra.mxu0 %v4122
      %4153 = vmatprep.subr.mxu0 0.0
      %4154 = vmatpush1.msra.mxu0 %v4123
      %4155 = vmatprep.subr.mxu0 0.0
      %4156 = vmatpush1.msra.mxu0 %v4124
      %4157 = vmatprep.subr.mxu0 0.0
      %4158 = vmatpush1.msra.mxu0 %v4125
      %4159 = vmatprep.subr.mxu0 0.0
      %4160 = vmatpush1.msra.mxu0 %v4126
      %4161 = vmatprep.subr.mxu0 0.0
      %4162 = vmatpush1.msra.mxu0 %v4127
      %4163 = vmatprep.subr.mxu0 0.0
      %4164 = vmatpush1.msra.mxu0 %v4128
      %4165 = vmatprep.subr.mxu0 0.0
      %4166 = vmatpush1.msra.mxu0 0.0
      %4167 = vmatprep.subr.mxu0 0.0
      %4168 = vmatpush1.msra.mxu0 0.0
      %4169 = vmatprep.subr.mxu0 0.0
      %4170 = vmatpush1.msra.mxu0 0.0
      %4171 = vmatprep.subr.mxu0 0.0
      %4172 = vmatpush1.msra.mxu0 0.0
      %4173 = vmatprep.subr.mxu0 0.0
      %4174 = vmatpush1.msra.mxu0 0.0
      %4175 = vmatprep.subr.mxu0 0.0
      %4176 = vmatpush1.msra.mxu0 0.0
      %4177 = vmatprep.subr.mxu0 0.0
      %4178 = vmatpush1.msra.mxu0 0.0
      %4179 = vmatprep.subr.mxu0 0.0
      %4180 = vmatpush1.msra.mxu0 0.0
      %4181 = vmatprep.subr.mxu0 0.0
      %4182 = vmatpush1.msra.mxu0 0.0
      %4183 = vmatprep.subr.mxu0 0.0
      %4184 = vmatpush1.msra.mxu0 0.0
      %4185 = vmatprep.subr.mxu0 0.0
      %4186 = vmatpush1.msra.mxu0 0.0
      %4187 = vmatprep.subr.mxu0 0.0
      %4188 = vmatpush1.msra.mxu0 0.0
      %4189 = vmatprep.subr.mxu0 0.0
      %4190 = vmatpush1.msra.mxu0 0.0
      %4191 = vmatprep.subr.mxu0 0.0
      %4192 = vmatpush1.msra.mxu0 0.0
      %4193 = vmatprep.subr.mxu0 0.0
      %4194 = vmatpush1.msra.mxu0 0.0
      %4195 = vmatprep.subr.mxu0 0.0
      %4196 = vmatpush1.msra.mxu0 0.0
      %4197 = vmatprep.mubr.f32.mxu0 0.0
      %4198 = vmatmul.mubr.f32.gmra.mrb[0].mxu0 %v4107
      %v4199 = vpop.f32.mrb[0].mxu0
      %v4200 = vadd.f32 %v4132, %v4199
      %v4201 = vpop.f32.mrb[0].mxu0
      %4202 = vmatprep.mubr.f32.mxu0 0.0
      %4203 = vmatmul.mubr.f32.gmra.mrb[0].mxu0 %v4108
      %v4204 = vpop.f32.mrb[0].mxu0
      %v4205 = vadd.f32 %v4132, %v4204
      %v4206 = vpop.f32.mrb[0].mxu0
      %4207 = vmatprep.mubr.f32.mxu0 0.0
      %4208 = vmatmul.mubr.f32.gmra.mrb[0].mxu0 %v4109
      %v4209 = vpop.f32.mrb[0].mxu0
      %v4210 = vadd.f32 %v4132, %v4209
      %v4211 = vpop.f32.mrb[0].mxu0
      %4212 = vmatprep.mubr.f32.mxu0 0.0
      %4213 = vmatmul.mubr.f32.gmra.mrb[0].mxu0 %v4110
      %v4214 = vpop.f32.mrb[0].mxu0
      %v4215 = vadd.f32 %v4132, %v4214
      %v4216 = vpop.f32.mrb[0].mxu0
      %4217 = vmatprep.mubr.f32.mxu0 0.0
      %4218 = vmatmul.mubr.f32.gmra.mrb[0].mxu0 %v4111
      %v4219 = vpop.f32.mrb[0].mxu0
      %v4220 = vadd.f32 %v4132, %v4219
      %v4221 = vpop.f32.mrb[0].mxu0
      %4222 = vdwg.mxu0
      %v4223 = vadd.f32 %v3861, %v4200
      %v4224 = vadd.f32 %v3862, %v4205
      %v4225 = vadd.f32 %v3863, %v4210
      %v4226 = vadd.f32 %v3864, %v4215
      %v4227 = vadd.f32 %v3865, %v4220
      %p4228 = scmp.eq.s32.totalorder %s541, 1
      // Predicated region
      $region65: #{two_dino_forward.1} parent=59 // pred_check
        %p4229 = pneg %p4228
      $region66: #{two_dino_forward.1} parent=59 // pred_check_branch
        %4231 = sbr.rel (%p4229) target = $region68
      $region67: #{two_dino_forward.1} parent=59 // pred_region
        %v4232 = vmul.f32 %v2732, %v2732
        %v4233 = vmul.f32 %v2737, %v2737
        %v4234 = vmul.f32 %v2742, %v2742
        %v4235 = vmul.f32 %v2747, %v2747
        %v4236 = vmul.f32 %v2752, %v2752
        %v4237 = vsel %vm667, %v4232, 0.0
        %4238 = vadd.xlane.f32.xlu0 %v4237
        %v4239 = vpop.xlane.xlu0 %4238
        %v4240 = vsel %vm667, %v4233, 0.0
        %4241 = vadd.xlane.f32.xlu0 %v4240
        %v4242 = vpop.xlane.xlu0 %4241
        %v4243 = vsel %vm667, %v4234, 0.0
        %4244 = vadd.xlane.f32.xlu0 %v4243
        %v4245 = vpop.xlane.xlu0 %4244
        %v4246 = vsel %vm667, %v4235, 0.0
        %4247 = vadd.xlane.f32.xlu0 %v4246
        %v4248 = vpop.xlane.xlu0 %4247
        %v4249 = vsel %vm680, %v4236, 0.0
        %4250 = vadd.xlane.f32.xlu0 %v4249
        %v4251 = vpop.xlane.xlu0 %4250
        %v4252 = vmax.f32 %v4239, 1e-24
        %v4253 = vmax.f32 %v4242, 1e-24
        %v4254 = vmax.f32 %v4245, 1e-24
        %v4255 = vmax.f32 %v4248, 1e-24
        %v4256 = vmax.f32 %v4251, 1e-24
        %v4257 = vrsqrt.pop %v4252
        %v4258 = vrsqrt.pop %v4253
        %v4259 = vrsqrt.pop %v4254
        %v4260 = vrsqrt.pop %v4255
        %v4261 = vrsqrt.pop %v4256
        %v4262 = vmul.f32 %v2732, %v4257
        %v4263 = vmul.f32 %v2737, %v4258
        %v4264 = vmul.f32 %v2742, %v4259
        %v4265 = vmul.f32 %v2747, %v4260
        %v4266 = vmul.f32 %v2752, %v4261
        %4272 = vrot.lane.b32.xlu0 %v4232, 96
        %v4273 = vpop.permute.xlu0 %4272
        %4274 = vrot.lane.b32.xlu0 %v4233, 96
        %v4275 = vpop.permute.xlu0 %4274
        %4276 = vrot.lane.b32.xlu0 %v4234, 96
        %v4277 = vpop.permute.xlu0 %4276
        %4278 = vrot.lane.b32.xlu0 %v4235, 96
        %v4279 = vpop.permute.xlu0 %4278
        %4280 = vrot.lane.b32.xlu0 %v4236, 96
        %v4281 = vpop.permute.xlu0 %4280
        %v4287 = vsel %vm667, %v4273, 0.0
        %4288 = vadd.xlane.f32.xlu0 %v4287
        %v4289 = vpop.xlane.xlu0 %4288
        %v4290 = vsel %vm667, %v4275, 0.0
        %4291 = vadd.xlane.f32.xlu0 %v4290
        %v4292 = vpop.xlane.xlu0 %4291
        %v4293 = vsel %vm667, %v4277, 0.0
        %4294 = vadd.xlane.f32.xlu0 %v4293
        %v4295 = vpop.xlane.xlu0 %4294
        %v4296 = vsel %vm667, %v4279, 0.0
        %4297 = vadd.xlane.f32.xlu0 %v4296
        %v4298 = vpop.xlane.xlu0 %4297
        %v4299 = vsel %vm680, %v4281, 0.0
        %4300 = vadd.xlane.f32.xlu0 %v4299
        %v4301 = vpop.xlane.xlu0 %4300
        %v4302 = vmax.f32 %v4289, 1e-24
        %v4303 = vmax.f32 %v4292, 1e-24
        %v4304 = vmax.f32 %v4295, 1e-24
        %v4305 = vmax.f32 %v4298, 1e-24
        %v4306 = vmax.f32 %v4301, 1e-24
        %v4307 = vrsqrt.pop %v4302
        %v4308 = vrsqrt.pop %v4303
        %v4309 = vrsqrt.pop %v4304
        %v4310 = vrsqrt.pop %v4305
        %v4311 = vrsqrt.pop %v4306
        %v4312 = vmul.f32 %v2732, %v4307
        %v4313 = vmul.f32 %v2737, %v4308
        %v4314 = vmul.f32 %v2742, %v4309
        %v4315 = vmul.f32 %v2747, %v4310
        %v4316 = vmul.f32 %v2752, %v4311
        %4317 = vrot.lane.b32.xlu0 %v4232, 64
        %v4318 = vpop.permute.xlu0 %4317
        %4319 = vrot.lane.b32.xlu0 %v4233, 64
        %v4320 = vpop.permute.xlu0 %4319
        %4321 = vrot.lane.b32.xlu0 %v4234, 64
        %v4322 = vpop.permute.xlu0 %4321
        %4323 = vrot.lane.b32.xlu0 %v4235, 64
        %v4324 = vpop.permute.xlu0 %4323
        %4325 = vrot.lane.b32.xlu0 %v4236, 64
        %v4326 = vpop.permute.xlu0 %4325
        %v4332 = vsel %vm667, %v4318, 0.0
        %4333 = vadd.xlane.f32.xlu0 %v4332
        %v4334 = vpop.xlane.xlu0 %4333
        %v4335 = vsel %vm667, %v4320, 0.0
        %4336 = vadd.xlane.f32.xlu0 %v4335
        %v4337 = vpop.xlane.xlu0 %4336
        %v4338 = vsel %vm667, %v4322, 0.0
        %4339 = vadd.xlane.f32.xlu0 %v4338
        %v4340 = vpop.xlane.xlu0 %4339
        %v4341 = vsel %vm667, %v4324, 0.0
        %4342 = vadd.xlane.f32.xlu0 %v4341
        %v4343 = vpop.xlane.xlu0 %4342
        %v4344 = vsel %vm680, %v4326, 0.0
        %4345 = vadd.xlane.f32.xlu0 %v4344
        %v4346 = vpop.xlane.xlu0 %4345
        %v4347 = vmax.f32 %v4334, 1e-24
        %v4348 = vmax.f32 %v4337, 1e-24
        %v4349 = vmax.f32 %v4340, 1e-24
        %v4350 = vmax.f32 %v4343, 1e-24
        %v4351 = vmax.f32 %v4346, 1e-24
        %v4352 = vrsqrt.pop %v4347
        %v4353 = vrsqrt.pop %v4348
        %v4354 = vrsqrt.pop %v4349
        %v4355 = vrsqrt.pop %v4350
        %v4356 = vrsqrt.pop %v4351
        %v4357 = vmul.f32 %v2732, %v4352
        %v4358 = vmul.f32 %v2737, %v4353
        %v4359 = vmul.f32 %v2742, %v4354
        %v4360 = vmul.f32 %v2747, %v4355
        %v4361 = vmul.f32 %v2752, %v4356
        %v4362 = vmul.f32 %v4223, %v4223
        %v4363 = vmul.f32 %v4224, %v4224
        %v4364 = vmul.f32 %v4225, %v4225
        %v4365 = vmul.f32 %v4226, %v4226
        %v4366 = vmul.f32 %v4227, %v4227
        %v4367 = vsel %vm667, %v4362, 0.0
        %4368 = vadd.xlane.f32.xlu0 %v4367
        %v4369 = vpop.xlane.xlu0 %4368
        %v4370 = vsel %vm667, %v4363, 0.0
        %4371 = vadd.xlane.f32.xlu0 %v4370
        %v4372 = vpop.xlane.xlu0 %4371
        %v4373 = vsel %vm667, %v4364, 0.0
        %4374 = vadd.xlane.f32.xlu0 %v4373
        %v4375 = vpop.xlane.xlu0 %4374
        %v4376 = vsel %vm667, %v4365, 0.0
        %4377 = vadd.xlane.f32.xlu0 %v4376
        %v4378 = vpop.xlane.xlu0 %4377
        %v4379 = vsel %vm680, %v4366, 0.0
        %4380 = vadd.xlane.f32.xlu0 %v4379
        %v4381 = vpop.xlane.xlu0 %4380
        %v4382 = vmax.f32 %v4369, 1e-24
        %v4383 = vmax.f32 %v4372, 1e-24
        %v4384 = vmax.f32 %v4375, 1e-24
        %v4385 = vmax.f32 %v4378, 1e-24
        %v4386 = vmax.f32 %v4381, 1e-24
        %v4387 = vrsqrt.pop %v4382
        %v4388 = vrsqrt.pop %v4383
        %v4389 = vrsqrt.pop %v4384
        %v4390 = vrsqrt.pop %v4385
        %v4391 = vrsqrt.pop %v4386
        %v4392 = vmul.f32 %v4223, %v4387
        %v4393 = vmul.f32 %v4224, %v4388
        %v4394 = vmul.f32 %v4225, %v4389
        %v4395 = vmul.f32 %v4226, %v4390
        %v4396 = vmul.f32 %v4227, %v4391
        %4402 = vrot.lane.b32.xlu0 %v4392, 96
        %v4403 = vpop.permute.xlu0 %4402
        %4404 = vrot.lane.b32.xlu0 %v4393, 96
        %v4405 = vpop.permute.xlu0 %4404
        %4406 = vrot.lane.b32.xlu0 %v4394, 96
        %v4407 = vpop.permute.xlu0 %4406
        %4408 = vrot.lane.b32.xlu0 %v4395, 96
        %v4409 = vpop.permute.xlu0 %4408
        %4410 = vrot.lane.b32.xlu0 %v4396, 96
        %v4411 = vpop.permute.xlu0 %4410
        %v4417 = vsel %vm667, %v4262, %v4312
        %v4418 = vsel %vm667, %v4263, %v4313
        %v4419 = vsel %vm667, %v4264, %v4314
        %v4420 = vsel %vm667, %v4265, %v4315
        %v4421 = vsel %vm667, %v4266, %v4316
        %vm4422 = vcmask 523264
        %v4423 = vsel %vm4422, %v4417, %v4357
        %v4424 = vsel %vm4422, %v4418, %v4358
        %v4425 = vsel %vm4422, %v4419, %v4359
        %v4426 = vsel %vm4422, %v4420, %v4360
        %v4427 = vsel %vm4422, %v4421, %v4361
        %vm4428 = vcmask 785408
        %v4429 = vsel %vm4428, %v4423, %v4403
        %v4430 = vsel %vm4428, %v4424, %v4405
        %v4431 = vsel %vm4428, %v4425, %v4407
        %v4432 = vsel %vm4428, %v4426, %v4409
        %v4433 = vsel %vm4428, %v4427, %v4411
        %4434 = vst [vmem:[%s540] sm:$0xff] %v4429
        %4435 = vst [vmem:[%s540 + $0x8] sm:$0xff] %v4430
        %4436 = vst [vmem:[%s540 + $0x10] sm:$0xff] %v4431
        %4437 = vst [vmem:[%s540 + $0x18] sm:$0xff] %v4432
        %4438 = vst [vmem:[%s540 + $0x20] sm:$0x3] %v4433
      $region68: #{two_dino_forward.1} parent=59 // pred_fallthru
        _
      %v4439 = vsel %vm667, %v4223, 0.0
      %4440 = vadd.xlane.f32.xlu0 %v4439
      %v4441 = vpop.xlane.xlu0 %4440
      %v4442 = vsel %vm667, %v4224, 0.0
      %4443 = vadd.xlane.f32.xlu0 %v4442
      %v4444 = vpop.xlane.xlu0 %4443
      %v4445 = vsel %vm667, %v4225, 0.0
      %4446 = vadd.xlane.f32.xlu0 %v4445
      %v4447 = vpop.xlane.xlu0 %4446
      %v4448 = vsel %vm667, %v4226, 0.0
      %4449 = vadd.xlane.f32.xlu0 %v4448
      %v4450 = vpop.xlane.xlu0 %4449
      %v4451 = vsel %vm680, %v4227, 0.0
      %4452 = vadd.xlane.f32.xlu0 %v4451
      %v4453 = vpop.xlane.xlu0 %4452
      %v4454 = vmul.f32 %v4441, %v684
      %v4455 = vmul.f32 %v4444, %v684
      %v4456 = vmul.f32 %v4447, %v684
      %v4457 = vmul.f32 %v4450, %v684
      %v4458 = vmul.f32 %v4453, %v684
      %v4459 = vsub.f32 %v4223, %v4454
      %v4460 = vsub.f32 %v4224, %v4455
      %v4461 = vsub.f32 %v4225, %v4456
      %v4462 = vsub.f32 %v4226, %v4457
      %v4463 = vsub.f32 %v4227, %v4458
      %v4464 = vmul.f32 %v4459, %v4459
      %v4465 = vmul.f32 %v4460, %v4460
      %v4466 = vmul.f32 %v4461, %v4461
      %v4467 = vmul.f32 %v4462, %v4462
      %v4468 = vmul.f32 %v4463, %v4463
      %v4469 = vsel %vm667, %v4464, 0.0
      %4470 = vadd.xlane.f32.xlu0 %v4469
      %v4471 = vpop.xlane.xlu0 %4470
      %v4472 = vsel %vm667, %v4465, 0.0
      %4473 = vadd.xlane.f32.xlu0 %v4472
      %v4474 = vpop.xlane.xlu0 %4473
      %v4475 = vsel %vm667, %v4466, 0.0
      %4476 = vadd.xlane.f32.xlu0 %v4475
      %v4477 = vpop.xlane.xlu0 %4476
      %v4478 = vsel %vm667, %v4467, 0.0
      %4479 = vadd.xlane.f32.xlu0 %v4478
      %v4480 = vpop.xlane.xlu0 %4479
      %v4481 = vsel %vm680, %v4468, 0.0
      %4482 = vadd.xlane.f32.xlu0 %v4481
      %v4483 = vpop.xlane.xlu0 %4482
      %v4484 = vmul.f32 %v4471, %v684
      %v4485 = vmul.f32 %v4474, %v684
      %v4486 = vmul.f32 %v4477, %v684
      %v4487 = vmul.f32 %v4480, %v684
      %v4488 = vmul.f32 %v4483, %v684
      %v4489 = vadd.f32 %v4484, 1e-06
      %v4490 = vadd.f32 %v4485, 1e-06
      %v4491 = vadd.f32 %v4486, 1e-06
      %v4492 = vadd.f32 %v4487, 1e-06
      %v4493 = vadd.f32 %v4488, 1e-06
      %v4494 = vrsqrt.pop %v4489
      %v4495 = vrsqrt.pop %v4490
      %v4496 = vrsqrt.pop %v4491
      %v4497 = vrsqrt.pop %v4492
      %v4498 = vrsqrt.pop %v4493
      %v4499 = vmul.f32 %v4459, %v4494
      %v4500 = vmul.f32 %v4460, %v4495
      %v4501 = vmul.f32 %v4461, %v4496
      %v4502 = vmul.f32 %v4462, %v4497
      %v4503 = vmul.f32 %v4463, %v4498
      %v4504 = vlaneseq
      %v4505 = vshrl.u32 %v4504, 7
      %v4506 = vsub.s32 4, %v4505
      %v4507 = vrot.slane %v543, %v4506
      %v4508 = vmul.f32 %v4499, %v4507
      %v4509 = vmul.f32 %v4500, %v4507
      %v4510 = vmul.f32 %v4501, %v4507
      %v4511 = vmul.f32 %v4502, %v4507
      %v4512 = vmul.f32 %v4503, %v4507
      %v4513 = vlaneseq
      %v4514 = vshrl.u32 %v4513, 7
      %v4515 = vsub.s32 5, %v4514
      %v4516 = vrot.slane %v543, %v4515
      %v4517 = vadd.f32 %v4508, %v4516
      %v4518 = vadd.f32 %v4509, %v4516
      %v4519 = vadd.f32 %v4510, %v4516
      %v4520 = vadd.f32 %v4511, %v4516
      %v4521 = vadd.f32 %v4512, %v4516
      %s4522 = scalar_lea.vmem %s507, 64
      %v4523 = vld [vmem:[%s4522] sm:$0xff]
      %v4524 = vld [vmem:[%s4522 + $0x8] sm:$0xff]
      %v4525 = vld [vmem:[%s4522 + $0x10] sm:$0xff]
      %v4526 = vld [vmem:[%s4522 + $0x18] sm:$0xff]
      %s4527 = scalar_lea.vmem %s511, 2
      %v4528 = vld [vmem:[%s4527] sm:$0x1]
      %v4530 = vlaneseq
      %v4531 = vshrl.u32 %v4530, 7
      %v4532 = vsub.s32 0, %v4531
      %v4533 = vrot.slane %v4528, %v4532
      %v4536 = vsel %vm667, %v4517, 0
      %v4539 = vsel %vm667, %v4518, 0
      %v4542 = vsel %vm667, %v4519, 0
      %v4545 = vsel %vm667, %v4520, 0
      %v4548 = vsel %vm667, %v4521, 0
      %4550 = vmatprep.subr.mxu0 0.0
      %4551 = vmatpush1.msra.mxu0 %v4523
      %4552 = vmatprep.subr.mxu0 0.0
      %4553 = vmatpush1.msra.mxu0 %v4524
      %4554 = vmatprep.subr.mxu0 0.0
      %4555 = vmatpush1.msra.mxu0 %v4525
      %4556 = vmatprep.subr.mxu0 0.0
      %4557 = vmatpush1.msra.mxu0 %v4526
      %4558 = vmatprep.subr.mxu0 0.0
      %4559 = vmatpush1.msra.mxu0 0.0
      %4560 = vmatprep.subr.mxu0 0.0
      %4561 = vmatpush1.msra.mxu0 0.0
      %4562 = vmatprep.subr.mxu0 0.0
      %4563 = vmatpush1.msra.mxu0 0.0
      %4564 = vmatprep.subr.mxu0 0.0
      %4565 = vmatpush1.msra.mxu0 0.0
      %4566 = vmatprep.subr.mxu0 0.0
      %4567 = vmatpush1.msra.mxu0 0.0
      %4568 = vmatprep.subr.mxu0 0.0
      %4569 = vmatpush1.msra.mxu0 0.0
      %4570 = vmatprep.subr.mxu0 0.0
      %4571 = vmatpush1.msra.mxu0 0.0
      %4572 = vmatprep.subr.mxu0 0.0
      %4573 = vmatpush1.msra.mxu0 0.0
      %4574 = vmatprep.subr.mxu0 0.0
      %4575 = vmatpush1.msra.mxu0 0.0
      %4576 = vmatprep.subr.mxu0 0.0
      %4577 = vmatpush1.msra.mxu0 0.0
      %4578 = vmatprep.subr.mxu0 0.0
      %4579 = vmatpush1.msra.mxu0 0.0
      %4580 = vmatprep.subr.mxu0 0.0
      %4581 = vmatpush1.msra.mxu0 0.0
      %4582 = vmatprep.subr.mxu0 0.0
      %4583 = vmatpush1.msra.mxu0 0.0
      %4584 = vmatprep.subr.mxu0 0.0
      %4585 = vmatpush1.msra.mxu0 0.0
      %4586 = vmatprep.subr.mxu0 0.0
      %4587 = vmatpush1.msra.mxu0 0.0
      %4588 = vmatprep.subr.mxu0 0.0
      %4589 = vmatpush1.msra.mxu0 0.0
      %4590 = vmatprep.subr.mxu0 0.0
      %4591 = vmatpush1.msra.mxu0 0.0
      %4592 = vmatprep.subr.mxu0 0.0
      %4593 = vmatpush1.msra.mxu0 0.0
      %4594 = vmatprep.subr.mxu0 0.0
      %4595 = vmatpush1.msra.mxu0 0.0
      %4596 = vmatprep.subr.mxu0 0.0
      %4597 = vmatpush1.msra.mxu0 0.0
      %4598 = vmatprep.subr.mxu0 0.0
      %4599 = vmatpush1.msra.mxu0 0.0
      %4600 = vmatprep.subr.mxu0 0.0
      %4601 = vmatpush1.msra.mxu0 0.0
      %4602 = vmatprep.subr.mxu0 0.0
      %4603 = vmatpush1.msra.mxu0 0.0
      %4604 = vmatprep.subr.mxu0 0.0
      %4605 = vmatpush1.msra.mxu0 0.0
      %4606 = vmatprep.subr.mxu0 0.0
      %4607 = vmatpush1.msra.mxu0 0.0
      %4608 = vmatprep.subr.mxu0 0.0
      %4609 = vmatpush1.msra.mxu0 0.0
      %4610 = vmatprep.subr.mxu0 0.0
      %4611 = vmatpush1.msra.mxu0 0.0
      %4612 = vmatprep.subr.mxu0 0.0
      %4613 = vmatpush1.msra.mxu0 0.0
      %4614 = vmatprep.mubr.f32.mxu0 0.0
      %4615 = vmatmul.mubr.f32.gmra.mrb[0].mxu0 %v4536
      %v4616 = vpop.f32.mrb[0].mxu0
      %v4617 = vadd.f32 %v4533, %v4616
      %v4618 = vpop.f32.mrb[0].mxu0
      %4619 = vmatprep.mubr.f32.mxu0 0.0
      %4620 = vmatmul.mubr.f32.gmra.mrb[0].mxu0 %v4539
      %v4621 = vpop.f32.mrb[0].mxu0
      %v4622 = vadd.f32 %v4533, %v4621
      %v4623 = vpop.f32.mrb[0].mxu0
      %4624 = vmatprep.mubr.f32.mxu0 0.0
      %4625 = vmatmul.mubr.f32.gmra.mrb[0].mxu0 %v4542
      %v4626 = vpop.f32.mrb[0].mxu0
      %v4627 = vadd.f32 %v4533, %v4626
      %v4628 = vpop.f32.mrb[0].mxu0
      %4629 = vmatprep.mubr.f32.mxu0 0.0
      %4630 = vmatmul.mubr.f32.gmra.mrb[0].mxu0 %v4545
      %v4631 = vpop.f32.mrb[0].mxu0
      %v4632 = vadd.f32 %v4533, %v4631
      %v4633 = vpop.f32.mrb[0].mxu0
      %4634 = vmatprep.mubr.f32.mxu0 0.0
      %4635 = vmatmul.mubr.f32.gmra.mrb[0].mxu0 %v4548
      %v4636 = vpop.f32.mrb[0].mxu0
      %v4637 = vadd.f32 %v4533, %v4636
      %v4638 = vpop.f32.mrb[0].mxu0
      %4639 = vdwg.mxu0
      %4643 = vrot.lane.b32.xlu0 %v4617, 96
      %v4644 = vpop.permute.xlu0 %4643
      %4645 = vrot.lane.b32.xlu0 %v4622, 96
      %v4646 = vpop.permute.xlu0 %4645
      %4647 = vrot.lane.b32.xlu0 %v4627, 96
      %v4648 = vpop.permute.xlu0 %4647
      %v4649 = vsel %vm878, %v4617, 0
      %v4651 = vsel %vm878, %v4622, 0
      %v4653 = vsel %vm878, %v4627, 0
      %v4655 = vsel %vm878, %v4644, 0
      %v4657 = vsel %vm878, %v4646, 0
      %v4659 = vsel %vm878, %v4648, 0
      %4661 = vmatprep.subr.mxu0 0.0
      %4662 = vmatpush1.xpose.msra.mxu0 %v4655
      %4663 = vmatprep.subr.mxu0 0.0
      %4664 = vmatpush1.xpose.msra.mxu0 %v4657
      %4665 = vmatprep.subr.mxu0 0.0
      %4666 = vmatpush1.xpose.msra.mxu0 %v4659
      %4667 = vmatprep.subr.mxu0 0.0
      %4668 = vmatpush1.xpose.msra.mxu0 0.0
      %4669 = vmatprep.subr.mxu0 0.0
      %4670 = vmatpush1.xpose.msra.mxu0 0.0
      %4671 = vmatprep.subr.mxu0 0.0
      %4672 = vmatpush1.xpose.msra.mxu0 0.0
      %4673 = vmatprep.subr.mxu0 0.0
      %4674 = vmatpush1.xpose.msra.mxu0 0.0
      %4675 = vmatprep.subr.mxu0 0.0
      %4676 = vmatpush1.xpose.msra.mxu0 0.0
      %4677 = vmatprep.subr.mxu0 0.0
      %4678 = vmatpush1.xpose.msra.mxu0 0.0
      %4679 = vmatprep.subr.mxu0 0.0
      %4680 = vmatpush1.xpose.msra.mxu0 0.0
      %4681 = vmatprep.subr.mxu0 0.0
      %4682 = vmatpush1.xpose.msra.mxu0 0.0
      %4683 = vmatprep.subr.mxu0 0.0
      %4684 = vmatpush1.xpose.msra.mxu0 0.0
      %4685 = vmatprep.subr.mxu0 0.0
      %4686 = vmatpush1.xpose.msra.mxu0 0.0
      %4687 = vmatprep.subr.mxu0 0.0
      %4688 = vmatpush1.xpose.msra.mxu0 0.0
      %4689 = vmatprep.subr.mxu0 0.0
      %4690 = vmatpush1.xpose.msra.mxu0 0.0
      %4691 = vmatprep.subr.mxu0 0.0
      %4692 = vmatpush1.xpose.msra.mxu0 0.0
      %4693 = vmatprep.subr.mxu0 0.0
      %4694 = vmatpush1.xpose.msra.mxu0 0.0
      %4695 = vmatprep.subr.mxu0 0.0
      %4696 = vmatpush1.xpose.msra.mxu0 0.0
      %4697 = vmatprep.subr.mxu0 0.0
      %4698 = vmatpush1.xpose.msra.mxu0 0.0
      %4699 = vmatprep.subr.mxu0 0.0
      %4700 = vmatpush1.xpose.msra.mxu0 0.0
      %4701 = vmatprep.subr.mxu0 0.0
      %4702 = vmatpush1.xpose.msra.mxu0 0.0
      %4703 = vmatprep.subr.mxu0 0.0
      %4704 = vmatpush1.xpose.msra.mxu0 0.0
      %4705 = vmatprep.subr.mxu0 0.0
      %4706 = vmatpush1.xpose.msra.mxu0 0.0
      %4707 = vmatprep.subr.mxu0 0.0
      %4708 = vmatpush1.xpose.msra.mxu0 0.0
      %4709 = vmatprep.subr.mxu0 0.0
      %4710 = vmatpush1.xpose.msra.mxu0 0.0
      %4711 = vmatprep.subr.mxu0 0.0
      %4712 = vmatpush1.xpose.msra.mxu0 0.0
      %4713 = vmatprep.subr.mxu0 0.0
      %4714 = vmatpush1.xpose.msra.mxu0 0.0
      %4715 = vmatprep.subr.mxu0 0.0
      %4716 = vmatpush1.xpose.msra.mxu0 0.0
      %4717 = vmatprep.subr.mxu0 0.0
      %4718 = vmatpush1.xpose.msra.mxu0 0.0
      %4719 = vmatprep.subr.mxu0 0.0
      %4720 = vmatpush1.xpose.msra.mxu0 0.0
      %4721 = vmatprep.subr.mxu0 0.0
      %4722 = vmatpush1.xpose.msra.mxu0 0.0
      %4723 = vmatprep.subr.mxu0 0.0
      %4724 = vmatpush1.xpose.msra.mxu0 0.0
      %4725 = vmatprep.mubr.f32.mxu0 0.0
      %4726 = vmatmul.mubr.f32.gmra.mrb[0].mxu0 %v4649
      %v4727 = vpop.f32.mrb[0].mxu0
      %v4728 = vadd.f32 0.0, %v4727
      %v4729 = vpop.f32.mrb[0].mxu0
      %4730 = vmatprep.mubr.f32.mxu0 0.0
      %4731 = vmatmul.mubr.f32.gmra.mrb[0].mxu0 %v4651
      %v4732 = vpop.f32.mrb[0].mxu0
      %v4733 = vadd.f32 0.0, %v4732
      %v4734 = vpop.f32.mrb[0].mxu0
      %4735 = vmatprep.mubr.f32.mxu0 0.0
      %4736 = vmatmul.mubr.f32.gmra.mrb[0].mxu0 %v4653
      %v4737 = vpop.f32.mrb[0].mxu0
      %v4738 = vadd.f32 0.0, %v4737
      %v4739 = vpop.f32.mrb[0].mxu0
      %4740 = vdwg.mxu0
      %v4741 = vmul.f32 %v4728, 0.25
      %v4742 = vmul.f32 %v4733, 0.25
      %v4743 = vmul.f32 %v4738, 0.25
      %v4744 = vsel %vm974, %v4741, -inf
      %4745 = vmax.xlane.f32.xlu0 %v4744
      %v4746 = vpop.xlane.xlu0 %4745
      %v4747 = vsel %vm974, %v4742, -inf
      %4748 = vmax.xlane.f32.xlu0 %v4747
      %v4749 = vpop.xlane.xlu0 %4748
      %v4750 = vsel %vm981, %v4743, -inf
      %4751 = vmax.xlane.f32.xlu0 %v4750
      %v4752 = vpop.xlane.xlu0 %4751
      %v4753 = vsub.f32 %v4741, %v4746
      %v4754 = vsub.f32 %v4742, %v4749
      %v4755 = vsub.f32 %v4743, %v4752
      %v4756 = vmul.f32 %v4753, 1.442695
      %v4757 = vpow.pop %v4756
      %v4758 = vmul.f32 %v4754, 1.442695
      %v4759 = vpow.pop %v4758
      %v4760 = vmul.f32 %v4755, 1.442695
      %v4761 = vpow.pop %v4760
      %v4762 = vsel %vm974, %v4757, 0.0
      %4763 = vadd.xlane.f32.xlu0 %v4762
      %v4764 = vpop.xlane.xlu0 %4763
      %v4765 = vsel %vm974, %v4759, 0.0
      %4766 = vadd.xlane.f32.xlu0 %v4765
      %v4767 = vpop.xlane.xlu0 %4766
      %v4768 = vsel %vm981, %v4761, 0.0
      %4769 = vadd.xlane.f32.xlu0 %v4768
      %v4770 = vpop.xlane.xlu0 %4769
      %v4771 = vrcp.pop %v4764
      %v4772 = vrcp.pop %v4767
      %v4773 = vrcp.pop %v4770
      %v4774 = vmul.f32 %v4757, %v4771
      %v4775 = vmul.f32 %v4759, %v4772
      %v4776 = vmul.f32 %v4761, %v4773
      %4777 = vrot.lane.b32.xlu0 %v4617, 64
      %v4778 = vpop.permute.xlu0 %4777
      %4779 = vrot.lane.b32.xlu0 %v4622, 64
      %v4780 = vpop.permute.xlu0 %4779
      %4781 = vrot.lane.b32.xlu0 %v4627, 64
      %v4782 = vpop.permute.xlu0 %4781
      %v4786 = vsel %vm974, %v4774, 0
      %v4789 = vsel %vm974, %v4775, 0
      %v4792 = vsel %vm974, %v4776, 0
      %v4794 = vsel %vm1026, %v4782, 0
      %4796 = vmatprep.subr.mxu0 0.0
      %4797 = vmatpush1.msra.mxu0 %v4778
      %4798 = vmatprep.subr.mxu0 0.0
      %4799 = vmatpush1.msra.mxu0 %v4780
      %4800 = vmatprep.subr.mxu0 0.0
      %4801 = vmatpush1.msra.mxu0 %v4794
      %4802 = vmatprep.subr.mxu0 0.0
      %4803 = vmatpush1.msra.mxu0 0.0
      %4804 = vmatprep.subr.mxu0 0.0
      %4805 = vmatpush1.msra.mxu0 0.0
      %4806 = vmatprep.subr.mxu0 0.0
      %4807 = vmatpush1.msra.mxu0 0.0
      %4808 = vmatprep.subr.mxu0 0.0
      %4809 = vmatpush1.msra.mxu0 0.0
      %4810 = vmatprep.subr.mxu0 0.0
      %4811 = vmatpush1.msra.mxu0 0.0
      %4812 = vmatprep.subr.mxu0 0.0
      %4813 = vmatpush1.msra.mxu0 0.0
      %4814 = vmatprep.subr.mxu0 0.0
      %4815 = vmatpush1.msra.mxu0 0.0
      %4816 = vmatprep.subr.mxu0 0.0
      %4817 = vmatpush1.msra.mxu0 0.0
      %4818 = vmatprep.subr.mxu0 0.0
      %4819 = vmatpush1.msra.mxu0 0.0
      %4820 = vmatprep.subr.mxu0 0.0
      %4821 = vmatpush1.msra.mxu0 0.0
      %4822 = vmatprep.subr.mxu0 0.0
      %4823 = vmatpush1.msra.mxu0 0.0
      %4824 = vmatprep.subr.mxu0 0.0
      %4825 = vmatpush1.msra.mxu0 0.0
      %4826 = vmatprep.subr.mxu0 0.0
      %4827 = vmatpush1.msra.mxu0 0.0
      %4828 = vmatprep.subr.mxu0 0.0
      %4829 = vmatpush1.msra.mxu0 0.0
      %4830 = vmatprep.subr.mxu0 0.0
      %4831 = vmatpush1.msra.mxu0 0.0
      %4832 = vmatprep.subr.mxu0 0.0
      %4833 = vmatpush1.msra.mxu0 0.0
      %4834 = vmatprep.subr.mxu0 0.0
      %4835 = vmatpush1.msra.mxu0 0.0
      %4836 = vmatprep.subr.mxu0 0.0
      %4837 = vmatpush1.msra.mxu0 0.0
      %4838 = vmatprep.subr.mxu0 0.0
      %4839 = vmatpush1.msra.mxu0 0.0
      %4840 = vmatprep.subr.mxu0 0.0
      %4841 = vmatpush1.msra.mxu0 0.0
      %4842 = vmatprep.subr.mxu0 0.0
      %4843 = vmatpush1.msra.mxu0 0.0
      %4844 = vmatprep.subr.mxu0 0.0
      %4845 = vmatpush1.msra.mxu0 0.0
      %4846 = vmatprep.subr.mxu0 0.0
      %4847 = vmatpush1.msra.mxu0 0.0
      %4848 = vmatprep.subr.mxu0 0.0
      %4849 = vmatpush1.msra.mxu0 0.0
      %4850 = vmatprep.subr.mxu0 0.0
      %4851 = vmatpush1.msra.mxu0 0.0
      %4852 = vmatprep.subr.mxu0 0.0
      %4853 = vmatpush1.msra.mxu0 0.0
      %4854 = vmatprep.subr.mxu0 0.0
      %4855 = vmatpush1.msra.mxu0 0.0
      %4856 = vmatprep.subr.mxu0 0.0
      %4857 = vmatpush1.msra.mxu0 0.0
      %4858 = vmatprep.subr.mxu0 0.0
      %4859 = vmatpush1.msra.mxu0 0.0
      %4860 = vmatprep.mubr.f32.mxu0 0.0
      %4861 = vmatmul.mubr.f32.gmra.mrb[0].mxu0 %v4786
      %v4862 = vpop.f32.mrb[0].mxu0
      %v4863 = vadd.f32 0.0, %v4862
      %v4864 = vpop.f32.mrb[0].mxu0
      %4865 = vmatprep.mubr.f32.mxu0 0.0
      %4866 = vmatmul.mubr.f32.gmra.mrb[0].mxu0 %v4789
      %v4867 = vpop.f32.mrb[0].mxu0
      %v4868 = vadd.f32 0.0, %v4867
      %v4869 = vpop.f32.mrb[0].mxu0
      %4870 = vmatprep.mubr.f32.mxu0 0.0
      %4871 = vmatmul.mubr.f32.gmra.mrb[0].mxu0 %v4792
      %v4872 = vpop.f32.mrb[0].mxu0
      %v4873 = vadd.f32 0.0, %v4872
      %v4874 = vpop.f32.mrb[0].mxu0
      %4875 = vdwg.mxu0
      %4876 = vrot.lane.b32.xlu0 %v4617, 112
      %v4877 = vpop.permute.xlu0 %4876
      %4878 = vrot.lane.b32.xlu0 %v4622, 112
      %v4879 = vpop.permute.xlu0 %4878
      %4880 = vrot.lane.b32.xlu0 %v4627, 112
      %v4881 = vpop.permute.xlu0 %4880
      %4882 = vrot.lane.b32.xlu0 %v4617, 80
      %v4883 = vpop.permute.xlu0 %4882
      %4884 = vrot.lane.b32.xlu0 %v4622, 80
      %v4885 = vpop.permute.xlu0 %4884
      %4886 = vrot.lane.b32.xlu0 %v4627, 80
      %v4887 = vpop.permute.xlu0 %4886
      %v4888 = vsel %vm878, %v4877, 0
      %v4890 = vsel %vm878, %v4879, 0
      %v4892 = vsel %vm878, %v4881, 0
      %v4894 = vsel %vm878, %v4883, 0
      %v4896 = vsel %vm878, %v4885, 0
      %v4898 = vsel %vm878, %v4887, 0
      %4900 = vmatprep.subr.mxu0 0.0
      %4901 = vmatpush1.xpose.msra.mxu0 %v4894
      %4902 = vmatprep.subr.mxu0 0.0
      %4903 = vmatpush1.xpose.msra.mxu0 %v4896
      %4904 = vmatprep.subr.mxu0 0.0
      %4905 = vmatpush1.xpose.msra.mxu0 %v4898
      %4906 = vmatprep.subr.mxu0 0.0
      %4907 = vmatpush1.xpose.msra.mxu0 0.0
      %4908 = vmatprep.subr.mxu0 0.0
      %4909 = vmatpush1.xpose.msra.mxu0 0.0
      %4910 = vmatprep.subr.mxu0 0.0
      %4911 = vmatpush1.xpose.msra.mxu0 0.0
      %4912 = vmatprep.subr.mxu0 0.0
      %4913 = vmatpush1.xpose.msra.mxu0 0.0
      %4914 = vmatprep.subr.mxu0 0.0
      %4915 = vmatpush1.xpose.msra.mxu0 0.0
      %4916 = vmatprep.subr.mxu0 0.0
      %4917 = vmatpush1.xpose.msra.mxu0 0.0
      %4918 = vmatprep.subr.mxu0 0.0
      %4919 = vmatpush1.xpose.msra.mxu0 0.0
      %4920 = vmatprep.subr.mxu0 0.0
      %4921 = vmatpush1.xpose.msra.mxu0 0.0
      %4922 = vmatprep.subr.mxu0 0.0
      %4923 = vmatpush1.xpose.msra.mxu0 0.0
      %4924 = vmatprep.subr.mxu0 0.0
      %4925 = vmatpush1.xpose.msra.mxu0 0.0
      %4926 = vmatprep.subr.mxu0 0.0
      %4927 = vmatpush1.xpose.msra.mxu0 0.0
      %4928 = vmatprep.subr.mxu0 0.0
      %4929 = vmatpush1.xpose.msra.mxu0 0.0
      %4930 = vmatprep.subr.mxu0 0.0
      %4931 = vmatpush1.xpose.msra.mxu0 0.0
      %4932 = vmatprep.subr.mxu0 0.0
      %4933 = vmatpush1.xpose.msra.mxu0 0.0
      %4934 = vmatprep.subr.mxu0 0.0
      %4935 = vmatpush1.xpose.msra.mxu0 0.0
      %4936 = vmatprep.subr.mxu0 0.0
      %4937 = vmatpush1.xpose.msra.mxu0 0.0
      %4938 = vmatprep.subr.mxu0 0.0
      %4939 = vmatpush1.xpose.msra.mxu0 0.0
      %4940 = vmatprep.subr.mxu0 0.0
      %4941 = vmatpush1.xpose.msra.mxu0 0.0
      %4942 = vmatprep.subr.mxu0 0.0
      %4943 = vmatpush1.xpose.msra.mxu0 0.0
      %4944 = vmatprep.subr.mxu0 0.0
      %4945 = vmatpush1.xpose.msra.mxu0 0.0
      %4946 = vmatprep.subr.mxu0 0.0
      %4947 = vmatpush1.xpose.msra.mxu0 0.0
      %4948 = vmatprep.subr.mxu0 0.0
      %4949 = vmatpush1.xpose.msra.mxu0 0.0
      %4950 = vmatprep.subr.mxu0 0.0
      %4951 = vmatpush1.xpose.msra.mxu0 0.0
      %4952 = vmatprep.subr.mxu0 0.0
      %4953 = vmatpush1.xpose.msra.mxu0 0.0
      %4954 = vmatprep.subr.mxu0 0.0
      %4955 = vmatpush1.xpose.msra.mxu0 0.0
      %4956 = vmatprep.subr.mxu0 0.0
      %4957 = vmatpush1.xpose.msra.mxu0 0.0
      %4958 = vmatprep.subr.mxu0 0.0
      %4959 = vmatpush1.xpose.msra.mxu0 0.0
      %4960 = vmatprep.subr.mxu0 0.0
      %4961 = vmatpush1.xpose.msra.mxu0 0.0
      %4962 = vmatprep.subr.mxu0 0.0
      %4963 = vmatpush1.xpose.msra.mxu0 0.0
      %4964 = vmatprep.mubr.f32.mxu0 0.0
      %4965 = vmatmul.mubr.f32.gmra.mrb[0].mxu0 %v4888
      %v4966 = vpop.f32.mrb[0].mxu0
      %v4967 = vadd.f32 0.0, %v4966
      %v4968 = vpop.f32.mrb[0].mxu0
      %4969 = vmatprep.mubr.f32.mxu0 0.0
      %4970 = vmatmul.mubr.f32.gmra.mrb[0].mxu0 %v4890
      %v4971 = vpop.f32.mrb[0].mxu0
      %v4972 = vadd.f32 0.0, %v4971
      %v4973 = vpop.f32.mrb[0].mxu0
      %4974 = vmatprep.mubr.f32.mxu0 0.0
      %4975 = vmatmul.mubr.f32.gmra.mrb[0].mxu0 %v4892
      %v4976 = vpop.f32.mrb[0].mxu0
      %v4977 = vadd.f32 0.0, %v4976
      %v4978 = vpop.f32.mrb[0].mxu0
      %4979 = vdwg.mxu0
      %v4980 = vmul.f32 %v4967, 0.25
      %v4981 = vmul.f32 %v4972, 0.25
      %v4982 = vmul.f32 %v4977, 0.25
      %v4983 = vsel %vm974, %v4980, -inf
      %4984 = vmax.xlane.f32.xlu0 %v4983
      %v4985 = vpop.xlane.xlu0 %4984
      %v4986 = vsel %vm974, %v4981, -inf
      %4987 = vmax.xlane.f32.xlu0 %v4986
      %v4988 = vpop.xlane.xlu0 %4987
      %v4989 = vsel %vm981, %v4982, -inf
      %4990 = vmax.xlane.f32.xlu0 %v4989
      %v4991 = vpop.xlane.xlu0 %4990
      %v4992 = vsub.f32 %v4980, %v4985
      %v4993 = vsub.f32 %v4981, %v4988
      %v4994 = vsub.f32 %v4982, %v4991
      %v4995 = vmul.f32 %v4992, 1.442695
      %v4996 = vpow.pop %v4995
      %v4997 = vmul.f32 %v4993, 1.442695
      %v4998 = vpow.pop %v4997
      %v4999 = vmul.f32 %v4994, 1.442695
      %v5000 = vpow.pop %v4999
      %v5001 = vsel %vm974, %v4996, 0.0
      %5002 = vadd.xlane.f32.xlu0 %v5001
      %v5003 = vpop.xlane.xlu0 %5002
      %v5004 = vsel %vm974, %v4998, 0.0
      %5005 = vadd.xlane.f32.xlu0 %v5004
      %v5006 = vpop.xlane.xlu0 %5005
      %v5007 = vsel %vm981, %v5000, 0.0
      %5008 = vadd.xlane.f32.xlu0 %v5007
      %v5009 = vpop.xlane.xlu0 %5008
      %v5010 = vrcp.pop %v5003
      %v5011 = vrcp.pop %v5006
      %v5012 = vrcp.pop %v5009
      %v5013 = vmul.f32 %v4996, %v5010
      %v5014 = vmul.f32 %v4998, %v5011
      %v5015 = vmul.f32 %v5000, %v5012
      %5016 = vrot.lane.b32.xlu0 %v4617, 48
      %v5017 = vpop.permute.xlu0 %5016
      %5018 = vrot.lane.b32.xlu0 %v4622, 48
      %v5019 = vpop.permute.xlu0 %5018
      %5020 = vrot.lane.b32.xlu0 %v4627, 48
      %v5021 = vpop.permute.xlu0 %5020
      %v5025 = vsel %vm974, %v5013, 0
      %v5028 = vsel %vm974, %v5014, 0
      %v5031 = vsel %vm974, %v5015, 0
      %v5033 = vsel %vm1026, %v5021, 0
      %5035 = vmatprep.subr.mxu0 0.0
      %5036 = vmatpush1.msra.mxu0 %v5017
      %5037 = vmatprep.subr.mxu0 0.0
      %5038 = vmatpush1.msra.mxu0 %v5019
      %5039 = vmatprep.subr.mxu0 0.0
      %5040 = vmatpush1.msra.mxu0 %v5033
      %5041 = vmatprep.subr.mxu0 0.0
      %5042 = vmatpush1.msra.mxu0 0.0
      %5043 = vmatprep.subr.mxu0 0.0
      %5044 = vmatpush1.msra.mxu0 0.0
      %5045 = vmatprep.subr.mxu0 0.0
      %5046 = vmatpush1.msra.mxu0 0.0
      %5047 = vmatprep.subr.mxu0 0.0
      %5048 = vmatpush1.msra.mxu0 0.0
      %5049 = vmatprep.subr.mxu0 0.0
      %5050 = vmatpush1.msra.mxu0 0.0
      %5051 = vmatprep.subr.mxu0 0.0
      %5052 = vmatpush1.msra.mxu0 0.0
      %5053 = vmatprep.subr.mxu0 0.0
      %5054 = vmatpush1.msra.mxu0 0.0
      %5055 = vmatprep.subr.mxu0 0.0
      %5056 = vmatpush1.msra.mxu0 0.0
      %5057 = vmatprep.subr.mxu0 0.0
      %5058 = vmatpush1.msra.mxu0 0.0
      %5059 = vmatprep.subr.mxu0 0.0
      %5060 = vmatpush1.msra.mxu0 0.0
      %5061 = vmatprep.subr.mxu0 0.0
      %5062 = vmatpush1.msra.mxu0 0.0
      %5063 = vmatprep.subr.mxu0 0.0
      %5064 = vmatpush1.msra.mxu0 0.0
      %5065 = vmatprep.subr.mxu0 0.0
      %5066 = vmatpush1.msra.mxu0 0.0
      %5067 = vmatprep.subr.mxu0 0.0
      %5068 = vmatpush1.msra.mxu0 0.0
      %5069 = vmatprep.subr.mxu0 0.0
      %5070 = vmatpush1.msra.mxu0 0.0
      %5071 = vmatprep.subr.mxu0 0.0
      %5072 = vmatpush1.msra.mxu0 0.0
      %5073 = vmatprep.subr.mxu0 0.0
      %5074 = vmatpush1.msra.mxu0 0.0
      %5075 = vmatprep.subr.mxu0 0.0
      %5076 = vmatpush1.msra.mxu0 0.0
      %5077 = vmatprep.subr.mxu0 0.0
      %5078 = vmatpush1.msra.mxu0 0.0
      %5079 = vmatprep.subr.mxu0 0.0
      %5080 = vmatpush1.msra.mxu0 0.0
      %5081 = vmatprep.subr.mxu0 0.0
      %5082 = vmatpush1.msra.mxu0 0.0
      %5083 = vmatprep.subr.mxu0 0.0
      %5084 = vmatpush1.msra.mxu0 0.0
      %5085 = vmatprep.subr.mxu0 0.0
      %5086 = vmatpush1.msra.mxu0 0.0
      %5087 = vmatprep.subr.mxu0 0.0
      %5088 = vmatpush1.msra.mxu0 0.0
      %5089 = vmatprep.subr.mxu0 0.0
      %5090 = vmatpush1.msra.mxu0 0.0
      %5091 = vmatprep.subr.mxu0 0.0
      %5092 = vmatpush1.msra.mxu0 0.0
      %5093 = vmatprep.subr.mxu0 0.0
      %5094 = vmatpush1.msra.mxu0 0.0
      %5095 = vmatprep.subr.mxu0 0.0
      %5096 = vmatpush1.msra.mxu0 0.0
      %5097 = vmatprep.subr.mxu0 0.0
      %5098 = vmatpush1.msra.mxu0 0.0
      %5099 = vmatprep.mubr.f32.mxu0 0.0
      %5100 = vmatmul.mubr.f32.gmra.mrb[0].mxu0 %v5025
      %v5101 = vpop.f32.mrb[0].mxu0
      %v5102 = vadd.f32 0.0, %v5101
      %v5103 = vpop.f32.mrb[0].mxu0
      %5104 = vmatprep.mubr.f32.mxu0 0.0
      %5105 = vmatmul.mubr.f32.gmra.mrb[0].mxu0 %v5028
      %v5106 = vpop.f32.mrb[0].mxu0
      %v5107 = vadd.f32 0.0, %v5106
      %v5108 = vpop.f32.mrb[0].mxu0
      %5109 = vmatprep.mubr.f32.mxu0 0.0
      %5110 = vmatmul.mubr.f32.gmra.mrb[0].mxu0 %v5031
      %v5111 = vpop.f32.mrb[0].mxu0
      %v5112 = vadd.f32 0.0, %v5111
      %v5113 = vpop.f32.mrb[0].mxu0
      %5114 = vdwg.mxu0
      %5118 = vrot.lane.b32.xlu0 %v5102, 16
      %v5119 = vpop.permute.xlu0 %5118
      %5120 = vrot.lane.b32.xlu0 %v5107, 16
      %v5121 = vpop.permute.xlu0 %5120
      %5122 = vrot.lane.b32.xlu0 %v5112, 16
      %v5123 = vpop.permute.xlu0 %5122
      %v5127 = vsel %vm878, %v4863, %v5119
      %v5128 = vsel %vm878, %v4868, %v5121
      %v5129 = vsel %vm878, %v4873, %v5123
      %v5132 = vrot.slane %v4627, 1
      %v5133 = vrot.slane %v4632, 1
      %v5134 = vsel %vm1365, %v5132, %v5133
      %v5135 = vrot.slane %v4637, 1
      %v5136 = vsel %vm1365, %v5133, %v5135
      %5137 = vrot.lane.b32.xlu0 %v5134, 96
      %v5138 = vpop.permute.xlu0 %5137
      %5139 = vrot.lane.b32.xlu0 %v5136, 96
      %v5140 = vpop.permute.xlu0 %5139
      %5141 = vrot.lane.b32.xlu0 %v5135, 96
      %v5142 = vpop.permute.xlu0 %5141
      %v5143 = vsel %vm878, %v5134, 0
      %v5145 = vsel %vm878, %v5136, 0
      %v5147 = vsel %vm878, %v5135, 0
      %v5149 = vsel %vm878, %v5138, 0
      %v5151 = vsel %vm878, %v5140, 0
      %v5153 = vsel %vm878, %v5142, 0
      %5155 = vmatprep.subr.mxu0 0.0
      %5156 = vmatpush1.xpose.msra.mxu0 %v5149
      %5157 = vmatprep.subr.mxu0 0.0
      %5158 = vmatpush1.xpose.msra.mxu0 %v5151
      %5159 = vmatprep.subr.mxu0 0.0
      %5160 = vmatpush1.xpose.msra.mxu0 %v5153
      %5161 = vmatprep.subr.mxu0 0.0
      %5162 = vmatpush1.xpose.msra.mxu0 0.0
      %5163 = vmatprep.subr.mxu0 0.0
      %5164 = vmatpush1.xpose.msra.mxu0 0.0
      %5165 = vmatprep.subr.mxu0 0.0
      %5166 = vmatpush1.xpose.msra.mxu0 0.0
      %5167 = vmatprep.subr.mxu0 0.0
      %5168 = vmatpush1.xpose.msra.mxu0 0.0
      %5169 = vmatprep.subr.mxu0 0.0
      %5170 = vmatpush1.xpose.msra.mxu0 0.0
      %5171 = vmatprep.subr.mxu0 0.0
      %5172 = vmatpush1.xpose.msra.mxu0 0.0
      %5173 = vmatprep.subr.mxu0 0.0
      %5174 = vmatpush1.xpose.msra.mxu0 0.0
      %5175 = vmatprep.subr.mxu0 0.0
      %5176 = vmatpush1.xpose.msra.mxu0 0.0
      %5177 = vmatprep.subr.mxu0 0.0
      %5178 = vmatpush1.xpose.msra.mxu0 0.0
      %5179 = vmatprep.subr.mxu0 0.0
      %5180 = vmatpush1.xpose.msra.mxu0 0.0
      %5181 = vmatprep.subr.mxu0 0.0
      %5182 = vmatpush1.xpose.msra.mxu0 0.0
      %5183 = vmatprep.subr.mxu0 0.0
      %5184 = vmatpush1.xpose.msra.mxu0 0.0
      %5185 = vmatprep.subr.mxu0 0.0
      %5186 = vmatpush1.xpose.msra.mxu0 0.0
      %5187 = vmatprep.subr.mxu0 0.0
      %5188 = vmatpush1.xpose.msra.mxu0 0.0
      %5189 = vmatprep.subr.mxu0 0.0
      %5190 = vmatpush1.xpose.msra.mxu0 0.0
      %5191 = vmatprep.subr.mxu0 0.0
      %5192 = vmatpush1.xpose.msra.mxu0 0.0
      %5193 = vmatprep.subr.mxu0 0.0
      %5194 = vmatpush1.xpose.msra.mxu0 0.0
      %5195 = vmatprep.subr.mxu0 0.0
      %5196 = vmatpush1.xpose.msra.mxu0 0.0
      %5197 = vmatprep.subr.mxu0 0.0
      %5198 = vmatpush1.xpose.msra.mxu0 0.0
      %5199 = vmatprep.subr.mxu0 0.0
      %5200 = vmatpush1.xpose.msra.mxu0 0.0
      %5201 = vmatprep.subr.mxu0 0.0
      %5202 = vmatpush1.xpose.msra.mxu0 0.0
      %5203 = vmatprep.subr.mxu0 0.0
      %5204 = vmatpush1.xpose.msra.mxu0 0.0
      %5205 = vmatprep.subr.mxu0 0.0
      %5206 = vmatpush1.xpose.msra.mxu0 0.0
      %5207 = vmatprep.subr.mxu0 0.0
      %5208 = vmatpush1.xpose.msra.mxu0 0.0
      %5209 = vmatprep.subr.mxu0 0.0
      %5210 = vmatpush1.xpose.msra.mxu0 0.0
      %5211 = vmatprep.subr.mxu0 0.0
      %5212 = vmatpush1.xpose.msra.mxu0 0.0
      %5213 = vmatprep.subr.mxu0 0.0
      %5214 = vmatpush1.xpose.msra.mxu0 0.0
      %5215 = vmatprep.subr.mxu0 0.0
      %5216 = vmatpush1.xpose.msra.mxu0 0.0
      %5217 = vmatprep.subr.mxu0 0.0
      %5218 = vmatpush1.xpose.msra.mxu0 0.0
      %5219 = vmatprep.mubr.f32.mxu0 0.0
      %5220 = vmatmul.mubr.f32.gmra.mrb[0].mxu0 %v5143
      %v5221 = vpop.f32.mrb[0].mxu0
      %v5222 = vadd.f32 0.0, %v5221
      %v5223 = vpop.f32.mrb[0].mxu0
      %5224 = vmatprep.mubr.f32.mxu0 0.0
      %5225 = vmatmul.mubr.f32.gmra.mrb[0].mxu0 %v5145
      %v5226 = vpop.f32.mrb[0].mxu0
      %v5227 = vadd.f32 0.0, %v5226
      %v5228 = vpop.f32.mrb[0].mxu0
      %5229 = vmatprep.mubr.f32.mxu0 0.0
      %5230 = vmatmul.mubr.f32.gmra.mrb[0].mxu0 %v5147
      %v5231 = vpop.f32.mrb[0].mxu0
      %v5232 = vadd.f32 0.0, %v5231
      %v5233 = vpop.f32.mrb[0].mxu0
      %5234 = vdwg.mxu0
      %v5235 = vmul.f32 %v5222, 0.25
      %v5236 = vmul.f32 %v5227, 0.25
      %v5237 = vmul.f32 %v5232, 0.25
      %v5238 = vsel %vm974, %v5235, -inf
      %5239 = vmax.xlane.f32.xlu0 %v5238
      %v5240 = vpop.xlane.xlu0 %5239
      %v5241 = vsel %vm974, %v5236, -inf
      %5242 = vmax.xlane.f32.xlu0 %v5241
      %v5243 = vpop.xlane.xlu0 %5242
      %v5244 = vsel %vm981, %v5237, -inf
      %5245 = vmax.xlane.f32.xlu0 %v5244
      %v5246 = vpop.xlane.xlu0 %5245
      %v5247 = vsub.f32 %v5235, %v5240
      %v5248 = vsub.f32 %v5236, %v5243
      %v5249 = vsub.f32 %v5237, %v5246
      %v5250 = vmul.f32 %v5247, 1.442695
      %v5251 = vpow.pop %v5250
      %v5252 = vmul.f32 %v5248, 1.442695
      %v5253 = vpow.pop %v5252
      %v5254 = vmul.f32 %v5249, 1.442695
      %v5255 = vpow.pop %v5254
      %v5256 = vsel %vm974, %v5251, 0.0
      %5257 = vadd.xlane.f32.xlu0 %v5256
      %v5258 = vpop.xlane.xlu0 %5257
      %v5259 = vsel %vm974, %v5253, 0.0
      %5260 = vadd.xlane.f32.xlu0 %v5259
      %v5261 = vpop.xlane.xlu0 %5260
      %v5262 = vsel %vm981, %v5255, 0.0
      %5263 = vadd.xlane.f32.xlu0 %v5262
      %v5264 = vpop.xlane.xlu0 %5263
      %v5265 = vrcp.pop %v5258
      %v5266 = vrcp.pop %v5261
      %v5267 = vrcp.pop %v5264
      %v5268 = vmul.f32 %v5251, %v5265
      %v5269 = vmul.f32 %v5253, %v5266
      %v5270 = vmul.f32 %v5255, %v5267
      %5271 = vrot.lane.b32.xlu0 %v5134, 64
      %v5272 = vpop.permute.xlu0 %5271
      %5273 = vrot.lane.b32.xlu0 %v5136, 64
      %v5274 = vpop.permute.xlu0 %5273
      %5275 = vrot.lane.b32.xlu0 %v5135, 64
      %v5276 = vpop.permute.xlu0 %5275
      %v5280 = vsel %vm974, %v5268, 0
      %v5283 = vsel %vm974, %v5269, 0
      %v5286 = vsel %vm974, %v5270, 0
      %v5288 = vsel %vm1026, %v5276, 0
      %5290 = vmatprep.subr.mxu0 0.0
      %5291 = vmatpush1.msra.mxu0 %v5272
      %5292 = vmatprep.subr.mxu0 0.0
      %5293 = vmatpush1.msra.mxu0 %v5274
      %5294 = vmatprep.subr.mxu0 0.0
      %5295 = vmatpush1.msra.mxu0 %v5288
      %5296 = vmatprep.subr.mxu0 0.0
      %5297 = vmatpush1.msra.mxu0 0.0
      %5298 = vmatprep.subr.mxu0 0.0
      %5299 = vmatpush1.msra.mxu0 0.0
      %5300 = vmatprep.subr.mxu0 0.0
      %5301 = vmatpush1.msra.mxu0 0.0
      %5302 = vmatprep.subr.mxu0 0.0
      %5303 = vmatpush1.msra.mxu0 0.0
      %5304 = vmatprep.subr.mxu0 0.0
      %5305 = vmatpush1.msra.mxu0 0.0
      %5306 = vmatprep.subr.mxu0 0.0
      %5307 = vmatpush1.msra.mxu0 0.0
      %5308 = vmatprep.subr.mxu0 0.0
      %5309 = vmatpush1.msra.mxu0 0.0
      %5310 = vmatprep.subr.mxu0 0.0
      %5311 = vmatpush1.msra.mxu0 0.0
      %5312 = vmatprep.subr.mxu0 0.0
      %5313 = vmatpush1.msra.mxu0 0.0
      %5314 = vmatprep.subr.mxu0 0.0
      %5315 = vmatpush1.msra.mxu0 0.0
      %5316 = vmatprep.subr.mxu0 0.0
      %5317 = vmatpush1.msra.mxu0 0.0
      %5318 = vmatprep.subr.mxu0 0.0
      %5319 = vmatpush1.msra.mxu0 0.0
      %5320 = vmatprep.subr.mxu0 0.0
      %5321 = vmatpush1.msra.mxu0 0.0
      %5322 = vmatprep.subr.mxu0 0.0
      %5323 = vmatpush1.msra.mxu0 0.0
      %5324 = vmatprep.subr.mxu0 0.0
      %5325 = vmatpush1.msra.mxu0 0.0
      %5326 = vmatprep.subr.mxu0 0.0
      %5327 = vmatpush1.msra.mxu0 0.0
      %5328 = vmatprep.subr.mxu0 0.0
      %5329 = vmatpush1.msra.mxu0 0.0
      %5330 = vmatprep.subr.mxu0 0.0
      %5331 = vmatpush1.msra.mxu0 0.0
      %5332 = vmatprep.subr.mxu0 0.0
      %5333 = vmatpush1.msra.mxu0 0.0
      %5334 = vmatprep.subr.mxu0 0.0
      %5335 = vmatpush1.msra.mxu0 0.0
      %5336 = vmatprep.subr.mxu0 0.0
      %5337 = vmatpush1.msra.mxu0 0.0
      %5338 = vmatprep.subr.mxu0 0.0
      %5339 = vmatpush1.msra.mxu0 0.0
      %5340 = vmatprep.subr.mxu0 0.0
      %5341 = vmatpush1.msra.mxu0 0.0
      %5342 = vmatprep.subr.mxu0 0.0
      %5343 = vmatpush1.msra.mxu0 0.0
      %5344 = vmatprep.subr.mxu0 0.0
      %5345 = vmatpush1.msra.mxu0 0.0
      %5346 = vmatprep.subr.mxu0 0.0
      %5347 = vmatpush1.msra.mxu0 0.0
      %5348 = vmatprep.subr.mxu0 0.0
      %5349 = vmatpush1.msra.mxu0 0.0
      %5350 = vmatprep.subr.mxu0 0.0
      %5351 = vmatpush1.msra.mxu0 0.0
      %5352 = vmatprep.subr.mxu0 0.0
      %5353 = vmatpush1.msra.mxu0 0.0
      %5354 = vmatprep.mubr.f32.mxu0 0.0
      %5355 = vmatmul.mubr.f32.gmra.mrb[0].mxu0 %v5280
      %v5356 = vpop.f32.mrb[0].mxu0
      %v5357 = vadd.f32 0.0, %v5356
      %v5358 = vpop.f32.mrb[0].mxu0
      %5359 = vmatprep.mubr.f32.mxu0 0.0
      %5360 = vmatmul.mubr.f32.gmra.mrb[0].mxu0 %v5283
      %v5361 = vpop.f32.mrb[0].mxu0
      %v5362 = vadd.f32 0.0, %v5361
      %v5363 = vpop.f32.mrb[0].mxu0
      %5364 = vmatprep.mubr.f32.mxu0 0.0
      %5365 = vmatmul.mubr.f32.gmra.mrb[0].mxu0 %v5286
      %v5366 = vpop.f32.mrb[0].mxu0
      %v5367 = vadd.f32 0.0, %v5366
      %v5368 = vpop.f32.mrb[0].mxu0
      %5369 = vdwg.mxu0
      %5370 = vrot.lane.b32.xlu0 %v5134, 112
      %v5371 = vpop.permute.xlu0 %5370
      %5372 = vrot.lane.b32.xlu0 %v5136, 112
      %v5373 = vpop.permute.xlu0 %5372
      %5374 = vrot.lane.b32.xlu0 %v5135, 112
      %v5375 = vpop.permute.xlu0 %5374
      %5376 = vrot.lane.b32.xlu0 %v5134, 80
      %v5377 = vpop.permute.xlu0 %5376
      %5378 = vrot.lane.b32.xlu0 %v5136, 80
      %v5379 = vpop.permute.xlu0 %5378
      %5380 = vrot.lane.b32.xlu0 %v5135, 80
      %v5381 = vpop.permute.xlu0 %5380
      %v5382 = vsel %vm878, %v5371, 0
      %v5384 = vsel %vm878, %v5373, 0
      %v5386 = vsel %vm878, %v5375, 0
      %v5388 = vsel %vm878, %v5377, 0
      %v5390 = vsel %vm878, %v5379, 0
      %v5392 = vsel %vm878, %v5381, 0
      %5394 = vmatprep.subr.mxu0 0.0
      %5395 = vmatpush1.xpose.msra.mxu0 %v5388
      %5396 = vmatprep.subr.mxu0 0.0
      %5397 = vmatpush1.xpose.msra.mxu0 %v5390
      %5398 = vmatprep.subr.mxu0 0.0
      %5399 = vmatpush1.xpose.msra.mxu0 %v5392
      %5400 = vmatprep.subr.mxu0 0.0
      %5401 = vmatpush1.xpose.msra.mxu0 0.0
      %5402 = vmatprep.subr.mxu0 0.0
      %5403 = vmatpush1.xpose.msra.mxu0 0.0
      %5404 = vmatprep.subr.mxu0 0.0
      %5405 = vmatpush1.xpose.msra.mxu0 0.0
      %5406 = vmatprep.subr.mxu0 0.0
      %5407 = vmatpush1.xpose.msra.mxu0 0.0
      %5408 = vmatprep.subr.mxu0 0.0
      %5409 = vmatpush1.xpose.msra.mxu0 0.0
      %5410 = vmatprep.subr.mxu0 0.0
      %5411 = vmatpush1.xpose.msra.mxu0 0.0
      %5412 = vmatprep.subr.mxu0 0.0
      %5413 = vmatpush1.xpose.msra.mxu0 0.0
      %5414 = vmatprep.subr.mxu0 0.0
      %5415 = vmatpush1.xpose.msra.mxu0 0.0
      %5416 = vmatprep.subr.mxu0 0.0
      %5417 = vmatpush1.xpose.msra.mxu0 0.0
      %5418 = vmatprep.subr.mxu0 0.0
      %5419 = vmatpush1.xpose.msra.mxu0 0.0
      %5420 = vmatprep.subr.mxu0 0.0
      %5421 = vmatpush1.xpose.msra.mxu0 0.0
      %5422 = vmatprep.subr.mxu0 0.0
      %5423 = vmatpush1.xpose.msra.mxu0 0.0
      %5424 = vmatprep.subr.mxu0 0.0
      %5425 = vmatpush1.xpose.msra.mxu0 0.0
      %5426 = vmatprep.subr.mxu0 0.0
      %5427 = vmatpush1.xpose.msra.mxu0 0.0
      %5428 = vmatprep.subr.mxu0 0.0
      %5429 = vmatpush1.xpose.msra.mxu0 0.0
      %5430 = vmatprep.subr.mxu0 0.0
      %5431 = vmatpush1.xpose.msra.mxu0 0.0
      %5432 = vmatprep.subr.mxu0 0.0
      %5433 = vmatpush1.xpose.msra.mxu0 0.0
      %5434 = vmatprep.subr.mxu0 0.0
      %5435 = vmatpush1.xpose.msra.mxu0 0.0
      %5436 = vmatprep.subr.mxu0 0.0
      %5437 = vmatpush1.xpose.msra.mxu0 0.0
      %5438 = vmatprep.subr.mxu0 0.0
      %5439 = vmatpush1.xpose.msra.mxu0 0.0
      %5440 = vmatprep.subr.mxu0 0.0
      %5441 = vmatpush1.xpose.msra.mxu0 0.0
      %5442 = vmatprep.subr.mxu0 0.0
      %5443 = vmatpush1.xpose.msra.mxu0 0.0
      %5444 = vmatprep.subr.mxu0 0.0
      %5445 = vmatpush1.xpose.msra.mxu0 0.0
      %5446 = vmatprep.subr.mxu0 0.0
      %5447 = vmatpush1.xpose.msra.mxu0 0.0
      %5448 = vmatprep.subr.mxu0 0.0
      %5449 = vmatpush1.xpose.msra.mxu0 0.0
      %5450 = vmatprep.subr.mxu0 0.0
      %5451 = vmatpush1.xpose.msra.mxu0 0.0
      %5452 = vmatprep.subr.mxu0 0.0
      %5453 = vmatpush1.xpose.msra.mxu0 0.0
      %5454 = vmatprep.subr.mxu0 0.0
      %5455 = vmatpush1.xpose.msra.mxu0 0.0
      %5456 = vmatprep.subr.mxu0 0.0
      %5457 = vmatpush1.xpose.msra.mxu0 0.0
      %5458 = vmatprep.mubr.f32.mxu0 0.0
      %5459 = vmatmul.mubr.f32.gmra.mrb[0].mxu0 %v5382
      %v5460 = vpop.f32.mrb[0].mxu0
      %v5461 = vadd.f32 0.0, %v5460
      %v5462 = vpop.f32.mrb[0].mxu0
      %5463 = vmatprep.mubr.f32.mxu0 0.0
      %5464 = vmatmul.mubr.f32.gmra.mrb[0].mxu0 %v5384
      %v5465 = vpop.f32.mrb[0].mxu0
      %v5466 = vadd.f32 0.0, %v5465
      %v5467 = vpop.f32.mrb[0].mxu0
      %5468 = vmatprep.mubr.f32.mxu0 0.0
      %5469 = vmatmul.mubr.f32.gmra.mrb[0].mxu0 %v5386
      %v5470 = vpop.f32.mrb[0].mxu0
      %v5471 = vadd.f32 0.0, %v5470
      %v5472 = vpop.f32.mrb[0].mxu0
      %5473 = vdwg.mxu0
      %v5474 = vmul.f32 %v5461, 0.25
      %v5475 = vmul.f32 %v5466, 0.25
      %v5476 = vmul.f32 %v5471, 0.25
      %v5477 = vsel %vm974, %v5474, -inf
      %5478 = vmax.xlane.f32.xlu0 %v5477
      %v5479 = vpop.xlane.xlu0 %5478
      %v5480 = vsel %vm974, %v5475, -inf
      %5481 = vmax.xlane.f32.xlu0 %v5480
      %v5482 = vpop.xlane.xlu0 %5481
      %v5483 = vsel %vm981, %v5476, -inf
      %5484 = vmax.xlane.f32.xlu0 %v5483
      %v5485 = vpop.xlane.xlu0 %5484
      %v5486 = vsub.f32 %v5474, %v5479
      %v5487 = vsub.f32 %v5475, %v5482
      %v5488 = vsub.f32 %v5476, %v5485
      %v5489 = vmul.f32 %v5486, 1.442695
      %v5490 = vpow.pop %v5489
      %v5491 = vmul.f32 %v5487, 1.442695
      %v5492 = vpow.pop %v5491
      %v5493 = vmul.f32 %v5488, 1.442695
      %v5494 = vpow.pop %v5493
      %v5495 = vsel %vm974, %v5490, 0.0
      %5496 = vadd.xlane.f32.xlu0 %v5495
      %v5497 = vpop.xlane.xlu0 %5496
      %v5498 = vsel %vm974, %v5492, 0.0
      %5499 = vadd.xlane.f32.xlu0 %v5498
      %v5500 = vpop.xlane.xlu0 %5499
      %v5501 = vsel %vm981, %v5494, 0.0
      %5502 = vadd.xlane.f32.xlu0 %v5501
      %v5503 = vpop.xlane.xlu0 %5502
      %v5504 = vrcp.pop %v5497
      %v5505 = vrcp.pop %v5500
      %v5506 = vrcp.pop %v5503
      %v5507 = vmul.f32 %v5490, %v5504
      %v5508 = vmul.f32 %v5492, %v5505
      %v5509 = vmul.f32 %v5494, %v5506
      %5510 = vrot.lane.b32.xlu0 %v5134, 48
      %v5511 = vpop.permute.xlu0 %5510
      %5512 = vrot.lane.b32.xlu0 %v5136, 48
      %v5513 = vpop.permute.xlu0 %5512
      %5514 = vrot.lane.b32.xlu0 %v5135, 48
      %v5515 = vpop.permute.xlu0 %5514
      %v5519 = vsel %vm974, %v5507, 0
      %v5522 = vsel %vm974, %v5508, 0
      %v5525 = vsel %vm974, %v5509, 0
      %v5527 = vsel %vm1026, %v5515, 0
      %5529 = vmatprep.subr.mxu0 0.0
      %5530 = vmatpush1.msra.mxu0 %v5511
      %5531 = vmatprep.subr.mxu0 0.0
      %5532 = vmatpush1.msra.mxu0 %v5513
      %5533 = vmatprep.subr.mxu0 0.0
      %5534 = vmatpush1.msra.mxu0 %v5527
      %5535 = vmatprep.subr.mxu0 0.0
      %5536 = vmatpush1.msra.mxu0 0.0
      %5537 = vmatprep.subr.mxu0 0.0
      %5538 = vmatpush1.msra.mxu0 0.0
      %5539 = vmatprep.subr.mxu0 0.0
      %5540 = vmatpush1.msra.mxu0 0.0
      %5541 = vmatprep.subr.mxu0 0.0
      %5542 = vmatpush1.msra.mxu0 0.0
      %5543 = vmatprep.subr.mxu0 0.0
      %5544 = vmatpush1.msra.mxu0 0.0
      %5545 = vmatprep.subr.mxu0 0.0
      %5546 = vmatpush1.msra.mxu0 0.0
      %5547 = vmatprep.subr.mxu0 0.0
      %5548 = vmatpush1.msra.mxu0 0.0
      %5549 = vmatprep.subr.mxu0 0.0
      %5550 = vmatpush1.msra.mxu0 0.0
      %5551 = vmatprep.subr.mxu0 0.0
      %5552 = vmatpush1.msra.mxu0 0.0
      %5553 = vmatprep.subr.mxu0 0.0
      %5554 = vmatpush1.msra.mxu0 0.0
      %5555 = vmatprep.subr.mxu0 0.0
      %5556 = vmatpush1.msra.mxu0 0.0
      %5557 = vmatprep.subr.mxu0 0.0
      %5558 = vmatpush1.msra.mxu0 0.0
      %5559 = vmatprep.subr.mxu0 0.0
      %5560 = vmatpush1.msra.mxu0 0.0
      %5561 = vmatprep.subr.mxu0 0.0
      %5562 = vmatpush1.msra.mxu0 0.0
      %5563 = vmatprep.subr.mxu0 0.0
      %5564 = vmatpush1.msra.mxu0 0.0
      %5565 = vmatprep.subr.mxu0 0.0
      %5566 = vmatpush1.msra.mxu0 0.0
      %5567 = vmatprep.subr.mxu0 0.0
      %5568 = vmatpush1.msra.mxu0 0.0
      %5569 = vmatprep.subr.mxu0 0.0
      %5570 = vmatpush1.msra.mxu0 0.0
      %5571 = vmatprep.subr.mxu0 0.0
      %5572 = vmatpush1.msra.mxu0 0.0
      %5573 = vmatprep.subr.mxu0 0.0
      %5574 = vmatpush1.msra.mxu0 0.0
      %5575 = vmatprep.subr.mxu0 0.0
      %5576 = vmatpush1.msra.mxu0 0.0
      %5577 = vmatprep.subr.mxu0 0.0
      %5578 = vmatpush1.msra.mxu0 0.0
      %5579 = vmatprep.subr.mxu0 0.0
      %5580 = vmatpush1.msra.mxu0 0.0
      %5581 = vmatprep.subr.mxu0 0.0
      %5582 = vmatpush1.msra.mxu0 0.0
      %5583 = vmatprep.subr.mxu0 0.0
      %5584 = vmatpush1.msra.mxu0 0.0
      %5585 = vmatprep.subr.mxu0 0.0
      %5586 = vmatpush1.msra.mxu0 0.0
      %5587 = vmatprep.subr.mxu0 0.0
      %5588 = vmatpush1.msra.mxu0 0.0
      %5589 = vmatprep.subr.mxu0 0.0
      %5590 = vmatpush1.msra.mxu0 0.0
      %5591 = vmatprep.subr.mxu0 0.0
      %5592 = vmatpush1.msra.mxu0 0.0
      %5593 = vmatprep.mubr.f32.mxu0 0.0
      %5594 = vmatmul.mubr.f32.gmra.mrb[0].mxu0 %v5519
      %v5595 = vpop.f32.mrb[0].mxu0
      %v5596 = vadd.f32 0.0, %v5595
      %v5597 = vpop.f32.mrb[0].mxu0
      %5598 = vmatprep.mubr.f32.mxu0 0.0
      %5599 = vmatmul.mubr.f32.gmra.mrb[0].mxu0 %v5522
      %v5600 = vpop.f32.mrb[0].mxu0
      %v5601 = vadd.f32 0.0, %v5600
      %v5602 = vpop.f32.mrb[0].mxu0
      %5603 = vmatprep.mubr.f32.mxu0 0.0
      %5604 = vmatmul.mubr.f32.gmra.mrb[0].mxu0 %v5525
      %v5605 = vpop.f32.mrb[0].mxu0
      %v5606 = vadd.f32 0.0, %v5605
      %v5607 = vpop.f32.mrb[0].mxu0
      %5608 = vdwg.mxu0
      %5612 = vrot.lane.b32.xlu0 %v5596, 16
      %v5613 = vpop.permute.xlu0 %5612
      %5614 = vrot.lane.b32.xlu0 %v5601, 16
      %v5615 = vpop.permute.xlu0 %5614
      %5616 = vrot.lane.b32.xlu0 %v5606, 16
      %v5617 = vpop.permute.xlu0 %5616
      %v5621 = vsel %vm878, %v5357, %v5613
      %v5622 = vsel %vm878, %v5362, %v5615
      %v5623 = vsel %vm878, %v5367, %v5617
      %v5627 = vrot.slane %v5621, 7
      %v5628 = vrot.slane %v5622, 7
      %v5629 = vsel %vm1026, %v5627, %v5628
      %v5630 = vrot.slane %v5623, 7
      %v5631 = vsel %vm1026, %v5628, %v5630
      %v5633 = vsel %vm1026, %v5129, %v5627
      %s5634 = scalar_lea.vmem %s516, 64
      %v5635 = vld [vmem:[%s5634] sm:$0xff]
      %v5636 = vld [vmem:[%s5634 + $0x8] sm:$0xff]
      %v5637 = vld [vmem:[%s5634 + $0x10] sm:$0xff]
      %v5638 = vld [vmem:[%s5634 + $0x18] sm:$0xff]
      %v5639 = vlaneseq
      %v5640 = vshrl.u32 %v5639, 7
      %v5641 = vsub.s32 0, %v5640
      %v5642 = vrot.slane %v544, %v5641
      %v5644 = vsel %vm667, %v5127, 0
      %v5647 = vsel %vm667, %v5128, 0
      %v5650 = vsel %vm667, %v5633, 0
      %v5652 = vsel %vm667, %v5629, 0
      %v5654 = vsel %vm667, %v5631, 0
      %5656 = vmatprep.subr.mxu0 0.0
      %5657 = vmatpush1.msra.mxu0 %v5635
      %5658 = vmatprep.subr.mxu0 0.0
      %5659 = vmatpush1.msra.mxu0 %v5636
      %5660 = vmatprep.subr.mxu0 0.0
      %5661 = vmatpush1.msra.mxu0 %v5637
      %5662 = vmatprep.subr.mxu0 0.0
      %5663 = vmatpush1.msra.mxu0 %v5638
      %5664 = vmatprep.subr.mxu0 0.0
      %5665 = vmatpush1.msra.mxu0 0.0
      %5666 = vmatprep.subr.mxu0 0.0
      %5667 = vmatpush1.msra.mxu0 0.0
      %5668 = vmatprep.subr.mxu0 0.0
      %5669 = vmatpush1.msra.mxu0 0.0
      %5670 = vmatprep.subr.mxu0 0.0
      %5671 = vmatpush1.msra.mxu0 0.0
      %5672 = vmatprep.subr.mxu0 0.0
      %5673 = vmatpush1.msra.mxu0 0.0
      %5674 = vmatprep.subr.mxu0 0.0
      %5675 = vmatpush1.msra.mxu0 0.0
      %5676 = vmatprep.subr.mxu0 0.0
      %5677 = vmatpush1.msra.mxu0 0.0
      %5678 = vmatprep.subr.mxu0 0.0
      %5679 = vmatpush1.msra.mxu0 0.0
      %5680 = vmatprep.subr.mxu0 0.0
      %5681 = vmatpush1.msra.mxu0 0.0
      %5682 = vmatprep.subr.mxu0 0.0
      %5683 = vmatpush1.msra.mxu0 0.0
      %5684 = vmatprep.subr.mxu0 0.0
      %5685 = vmatpush1.msra.mxu0 0.0
      %5686 = vmatprep.subr.mxu0 0.0
      %5687 = vmatpush1.msra.mxu0 0.0
      %5688 = vmatprep.subr.mxu0 0.0
      %5689 = vmatpush1.msra.mxu0 0.0
      %5690 = vmatprep.subr.mxu0 0.0
      %5691 = vmatpush1.msra.mxu0 0.0
      %5692 = vmatprep.subr.mxu0 0.0
      %5693 = vmatpush1.msra.mxu0 0.0
      %5694 = vmatprep.subr.mxu0 0.0
      %5695 = vmatpush1.msra.mxu0 0.0
      %5696 = vmatprep.subr.mxu0 0.0
      %5697 = vmatpush1.msra.mxu0 0.0
      %5698 = vmatprep.subr.mxu0 0.0
      %5699 = vmatpush1.msra.mxu0 0.0
      %5700 = vmatprep.subr.mxu0 0.0
      %5701 = vmatpush1.msra.mxu0 0.0
      %5702 = vmatprep.subr.mxu0 0.0
      %5703 = vmatpush1.msra.mxu0 0.0
      %5704 = vmatprep.subr.mxu0 0.0
      %5705 = vmatpush1.msra.mxu0 0.0
      %5706 = vmatprep.subr.mxu0 0.0
      %5707 = vmatpush1.msra.mxu0 0.0
      %5708 = vmatprep.subr.mxu0 0.0
      %5709 = vmatpush1.msra.mxu0 0.0
      %5710 = vmatprep.subr.mxu0 0.0
      %5711 = vmatpush1.msra.mxu0 0.0
      %5712 = vmatprep.subr.mxu0 0.0
      %5713 = vmatpush1.msra.mxu0 0.0
      %5714 = vmatprep.subr.mxu0 0.0
      %5715 = vmatpush1.msra.mxu0 0.0
      %5716 = vmatprep.subr.mxu0 0.0
      %5717 = vmatpush1.msra.mxu0 0.0
      %5718 = vmatprep.subr.mxu0 0.0
      %5719 = vmatpush1.msra.mxu0 0.0
      %5720 = vmatprep.mubr.f32.mxu0 0.0
      %5721 = vmatmul.mubr.f32.gmra.mrb[0].mxu0 %v5644
      %v5722 = vpop.f32.mrb[0].mxu0
      %v5723 = vadd.f32 %v5642, %v5722
      %v5724 = vpop.f32.mrb[0].mxu0
      %5725 = vmatprep.mubr.f32.mxu0 0.0
      %5726 = vmatmul.mubr.f32.gmra.mrb[0].mxu0 %v5647
      %v5727 = vpop.f32.mrb[0].mxu0
      %v5728 = vadd.f32 %v5642, %v5727
      %v5729 = vpop.f32.mrb[0].mxu0
      %5730 = vmatprep.mubr.f32.mxu0 0.0
      %5731 = vmatmul.mubr.f32.gmra.mrb[0].mxu0 %v5650
      %v5732 = vpop.f32.mrb[0].mxu0
      %v5733 = vadd.f32 %v5642, %v5732
      %v5734 = vpop.f32.mrb[0].mxu0
      %5735 = vmatprep.mubr.f32.mxu0 0.0
      %5736 = vmatmul.mubr.f32.gmra.mrb[0].mxu0 %v5652
      %v5737 = vpop.f32.mrb[0].mxu0
      %v5738 = vadd.f32 %v5642, %v5737
      %v5739 = vpop.f32.mrb[0].mxu0
      %5740 = vmatprep.mubr.f32.mxu0 0.0
      %5741 = vmatmul.mubr.f32.gmra.mrb[0].mxu0 %v5654
      %v5742 = vpop.f32.mrb[0].mxu0
      %v5743 = vadd.f32 %v5642, %v5742
      %v5744 = vpop.f32.mrb[0].mxu0
      %5745 = vdwg.mxu0
      %v5746 = vadd.f32 %v4223, %v5723
      %v5747 = vadd.f32 %v4224, %v5728
      %v5748 = vadd.f32 %v4225, %v5733
      %v5749 = vadd.f32 %v4226, %v5738
      %v5750 = vadd.f32 %v4227, %v5743
      %v5751 = vsel %vm667, %v5746, 0.0
      %5752 = vadd.xlane.f32.xlu0 %v5751
      %v5753 = vpop.xlane.xlu0 %5752
      %v5754 = vsel %vm667, %v5747, 0.0
      %5755 = vadd.xlane.f32.xlu0 %v5754
      %v5756 = vpop.xlane.xlu0 %5755
      %v5757 = vsel %vm667, %v5748, 0.0
      %5758 = vadd.xlane.f32.xlu0 %v5757
      %v5759 = vpop.xlane.xlu0 %5758
      %v5760 = vsel %vm667, %v5749, 0.0
      %5761 = vadd.xlane.f32.xlu0 %v5760
      %v5762 = vpop.xlane.xlu0 %5761
      %v5763 = vsel %vm680, %v5750, 0.0
      %5764 = vadd.xlane.f32.xlu0 %v5763
      %v5765 = vpop.xlane.xlu0 %5764
      %v5766 = vmul.f32 %v5753, %v684
      %v5767 = vmul.f32 %v5756, %v684
      %v5768 = vmul.f32 %v5759, %v684
      %v5769 = vmul.f32 %v5762, %v684
      %v5770 = vmul.f32 %v5765, %v684
      %v5771 = vsub.f32 %v5746, %v5766
      %v5772 = vsub.f32 %v5747, %v5767
      %v5773 = vsub.f32 %v5748, %v5768
      %v5774 = vsub.f32 %v5749, %v5769
      %v5775 = vsub.f32 %v5750, %v5770
      %v5776 = vmul.f32 %v5771, %v5771
      %v5777 = vmul.f32 %v5772, %v5772
      %v5778 = vmul.f32 %v5773, %v5773
      %v5779 = vmul.f32 %v5774, %v5774
      %v5780 = vmul.f32 %v5775, %v5775
      %v5781 = vsel %vm667, %v5776, 0.0
      %5782 = vadd.xlane.f32.xlu0 %v5781
      %v5783 = vpop.xlane.xlu0 %5782
      %v5784 = vsel %vm667, %v5777, 0.0
      %5785 = vadd.xlane.f32.xlu0 %v5784
      %v5786 = vpop.xlane.xlu0 %5785
      %v5787 = vsel %vm667, %v5778, 0.0
      %5788 = vadd.xlane.f32.xlu0 %v5787
      %v5789 = vpop.xlane.xlu0 %5788
      %v5790 = vsel %vm667, %v5779, 0.0
      %5791 = vadd.xlane.f32.xlu0 %v5790
      %v5792 = vpop.xlane.xlu0 %5791
      %v5793 = vsel %vm680, %v5780, 0.0
      %5794 = vadd.xlane.f32.xlu0 %v5793
      %v5795 = vpop.xlane.xlu0 %5794
      %v5796 = vmul.f32 %v5783, %v684
      %v5797 = vmul.f32 %v5786, %v684
      %v5798 = vmul.f32 %v5789, %v684
      %v5799 = vmul.f32 %v5792, %v684
      %v5800 = vmul.f32 %v5795, %v684
      %v5801 = vadd.f32 %v5796, 1e-06
      %v5802 = vadd.f32 %v5797, 1e-06
      %v5803 = vadd.f32 %v5798, 1e-06
      %v5804 = vadd.f32 %v5799, 1e-06
      %v5805 = vadd.f32 %v5800, 1e-06
      %v5806 = vrsqrt.pop %v5801
      %v5807 = vrsqrt.pop %v5802
      %v5808 = vrsqrt.pop %v5803
      %v5809 = vrsqrt.pop %v5804
      %v5810 = vrsqrt.pop %v5805
      %v5811 = vmul.f32 %v5771, %v5806
      %v5812 = vmul.f32 %v5772, %v5807
      %v5813 = vmul.f32 %v5773, %v5808
      %v5814 = vmul.f32 %v5774, %v5809
      %v5815 = vmul.f32 %v5775, %v5810
      %v5816 = vlaneseq
      %v5817 = vshrl.u32 %v5816, 7
      %v5818 = vsub.s32 6, %v5817
      %v5819 = vrot.slane %v543, %v5818
      %v5820 = vmul.f32 %v5811, %v5819
      %v5821 = vmul.f32 %v5812, %v5819
      %v5822 = vmul.f32 %v5813, %v5819
      %v5823 = vmul.f32 %v5814, %v5819
      %v5824 = vmul.f32 %v5815, %v5819
      %v5825 = vlaneseq
      %v5826 = vshrl.u32 %v5825, 7
      %v5827 = vsub.s32 7, %v5826
      %v5828 = vrot.slane %v543, %v5827
      %v5829 = vadd.f32 %v5820, %v5828
      %v5830 = vadd.f32 %v5821, %v5828
      %v5831 = vadd.f32 %v5822, %v5828
      %v5832 = vadd.f32 %v5823, %v5828
      %v5833 = vadd.f32 %v5824, %v5828
      %s5834 = scalar_lea.vmem %s521, 64
      %v5835 = vld [vmem:[%s5834] sm:$0xff]
      %v5836 = vld [vmem:[%s5834 + $0x8] sm:$0xff]
      %v5837 = vld [vmem:[%s5834 + $0x10] sm:$0xff]
      %v5838 = vld [vmem:[%s5834 + $0x18] sm:$0xff]
      %s5839 = scalar_lea.vmem %s525, 2
      %v5840 = vld [vmem:[%s5839] sm:$0x1]
      %v5842 = vlaneseq
      %v5843 = vshrl.u32 %v5842, 7
      %v5844 = vsub.s32 0, %v5843
      %v5845 = vrot.slane %v5840, %v5844
      %v5848 = vsel %vm667, %v5829, 0
      %v5851 = vsel %vm667, %v5830, 0
      %v5854 = vsel %vm667, %v5831, 0
      %v5857 = vsel %vm667, %v5832, 0
      %v5860 = vsel %vm667, %v5833, 0
      %5862 = vmatprep.subr.mxu0 0.0
      %5863 = vmatpush1.msra.mxu0 %v5835
      %5864 = vmatprep.subr.mxu0 0.0
      %5865 = vmatpush1.msra.mxu0 %v5836
      %5866 = vmatprep.subr.mxu0 0.0
      %5867 = vmatpush1.msra.mxu0 %v5837
      %5868 = vmatprep.subr.mxu0 0.0
      %5869 = vmatpush1.msra.mxu0 %v5838
      %5870 = vmatprep.subr.mxu0 0.0
      %5871 = vmatpush1.msra.mxu0 0.0
      %5872 = vmatprep.subr.mxu0 0.0
      %5873 = vmatpush1.msra.mxu0 0.0
      %5874 = vmatprep.subr.mxu0 0.0
      %5875 = vmatpush1.msra.mxu0 0.0
      %5876 = vmatprep.subr.mxu0 0.0
      %5877 = vmatpush1.msra.mxu0 0.0
      %5878 = vmatprep.subr.mxu0 0.0
      %5879 = vmatpush1.msra.mxu0 0.0
      %5880 = vmatprep.subr.mxu0 0.0
      %5881 = vmatpush1.msra.mxu0 0.0
      %5882 = vmatprep.subr.mxu0 0.0
      %5883 = vmatpush1.msra.mxu0 0.0
      %5884 = vmatprep.subr.mxu0 0.0
      %5885 = vmatpush1.msra.mxu0 0.0
      %5886 = vmatprep.subr.mxu0 0.0
      %5887 = vmatpush1.msra.mxu0 0.0
      %5888 = vmatprep.subr.mxu0 0.0
      %5889 = vmatpush1.msra.mxu0 0.0
      %5890 = vmatprep.subr.mxu0 0.0
      %5891 = vmatpush1.msra.mxu0 0.0
      %5892 = vmatprep.subr.mxu0 0.0
      %5893 = vmatpush1.msra.mxu0 0.0
      %5894 = vmatprep.subr.mxu0 0.0
      %5895 = vmatpush1.msra.mxu0 0.0
      %5896 = vmatprep.subr.mxu0 0.0
      %5897 = vmatpush1.msra.mxu0 0.0
      %5898 = vmatprep.subr.mxu0 0.0
      %5899 = vmatpush1.msra.mxu0 0.0
      %5900 = vmatprep.subr.mxu0 0.0
      %5901 = vmatpush1.msra.mxu0 0.0
      %5902 = vmatprep.subr.mxu0 0.0
      %5903 = vmatpush1.msra.mxu0 0.0
      %5904 = vmatprep.subr.mxu0 0.0
      %5905 = vmatpush1.msra.mxu0 0.0
      %5906 = vmatprep.subr.mxu0 0.0
      %5907 = vmatpush1.msra.mxu0 0.0
      %5908 = vmatprep.subr.mxu0 0.0
      %5909 = vmatpush1.msra.mxu0 0.0
      %5910 = vmatprep.subr.mxu0 0.0
      %5911 = vmatpush1.msra.mxu0 0.0
      %5912 = vmatprep.subr.mxu0 0.0
      %5913 = vmatpush1.msra.mxu0 0.0
      %5914 = vmatprep.subr.mxu0 0.0
      %5915 = vmatpush1.msra.mxu0 0.0
      %5916 = vmatprep.subr.mxu0 0.0
      %5917 = vmatpush1.msra.mxu0 0.0
      %5918 = vmatprep.subr.mxu0 0.0
      %5919 = vmatpush1.msra.mxu0 0.0
      %5920 = vmatprep.subr.mxu0 0.0
      %5921 = vmatpush1.msra.mxu0 0.0
      %5922 = vmatprep.subr.mxu0 0.0
      %5923 = vmatpush1.msra.mxu0 0.0
      %5924 = vmatprep.subr.mxu0 0.0
      %5925 = vmatpush1.msra.mxu0 0.0
      %5926 = vmatprep.mubr.f32.mxu0 0.0
      %5927 = vmatmul.mubr.f32.gmra.mrb[0].mxu0 %v5848
      %v5928 = vpop.f32.mrb[0].mxu0
      %v5929 = vadd.f32 %v5845, %v5928
      %v5930 = vpop.f32.mrb[0].mxu0
      %5931 = vmatprep.mubr.f32.mxu0 0.0
      %5932 = vmatmul.mubr.f32.gmra.mrb[0].mxu0 %v5851
      %v5933 = vpop.f32.mrb[0].mxu0
      %v5934 = vadd.f32 %v5845, %v5933
      %v5935 = vpop.f32.mrb[0].mxu0
      %5936 = vmatprep.mubr.f32.mxu0 0.0
      %5937 = vmatmul.mubr.f32.gmra.mrb[0].mxu0 %v5854
      %v5938 = vpop.f32.mrb[0].mxu0
      %v5939 = vadd.f32 %v5845, %v5938
      %v5940 = vpop.f32.mrb[0].mxu0
      %5941 = vmatprep.mubr.f32.mxu0 0.0
      %5942 = vmatmul.mubr.f32.gmra.mrb[0].mxu0 %v5857
      %v5943 = vpop.f32.mrb[0].mxu0
      %v5944 = vadd.f32 %v5845, %v5943
      %v5945 = vpop.f32.mrb[0].mxu0
      %5946 = vmatprep.mubr.f32.mxu0 0.0
      %5947 = vmatmul.mubr.f32.gmra.mrb[0].mxu0 %v5860
      %v5948 = vpop.f32.mrb[0].mxu0
      %v5949 = vadd.f32 %v5845, %v5948
      %v5950 = vpop.f32.mrb[0].mxu0
      %5951 = vdwg.mxu0
      %v5952 = vmul.f32 %v5929, %v5929
      %v5953 = vmul.f32 %v5934, %v5934
      %v5954 = vmul.f32 %v5939, %v5939
      %v5955 = vmul.f32 %v5944, %v5944
      %v5956 = vmul.f32 %v5949, %v5949
      %v5957 = vmul.f32 %v5929, %v5952
      %v5958 = vmul.f32 %v5934, %v5953
      %v5959 = vmul.f32 %v5939, %v5954
      %v5960 = vmul.f32 %v5944, %v5955
      %v5961 = vmul.f32 %v5949, %v5956
      %v5962 = vmul.f32 %v5957, 0.044715
      %v5963 = vmul.f32 %v5958, 0.044715
      %v5964 = vmul.f32 %v5959, 0.044715
      %v5965 = vmul.f32 %v5960, 0.044715
      %v5966 = vmul.f32 %v5961, 0.044715
      %v5967 = vadd.f32 %v5929, %v5962
      %v5968 = vadd.f32 %v5934, %v5963
      %v5969 = vadd.f32 %v5939, %v5964
      %v5970 = vadd.f32 %v5944, %v5965
      %v5971 = vadd.f32 %v5949, %v5966
      %v5972 = vmul.f32 %v5967, 0.7978846
      %v5973 = vmul.f32 %v5968, 0.7978846
      %v5974 = vmul.f32 %v5969, 0.7978846
      %v5975 = vmul.f32 %v5970, 0.7978846
      %v5976 = vmul.f32 %v5971, 0.7978846
      %v5977 = vtanh.pop %v5972
      %v5978 = vtanh.pop %v5973
      %v5979 = vtanh.pop %v5974
      %v5980 = vtanh.pop %v5975
      %v5981 = vtanh.pop %v5976
      %v5982 = vadd.f32 %v5977, 1.0
      %v5983 = vadd.f32 %v5978, 1.0
      %v5984 = vadd.f32 %v5979, 1.0
      %v5985 = vadd.f32 %v5980, 1.0
      %v5986 = vadd.f32 %v5981, 1.0
      %v5987 = vmul.f32 %v5982, 0.5
      %v5988 = vmul.f32 %v5983, 0.5
      %v5989 = vmul.f32 %v5984, 0.5
      %v5990 = vmul.f32 %v5985, 0.5
      %v5991 = vmul.f32 %v5986, 0.5
      %v5992 = vmul.f32 %v5929, %v5987
      %v5993 = vmul.f32 %v5934, %v5988
      %v5994 = vmul.f32 %v5939, %v5989
      %v5995 = vmul.f32 %v5944, %v5990
      %v5996 = vmul.f32 %v5949, %v5991
      %s5997 = scalar_lea.vmem %s530, 256
      %v5998 = vld [vmem:[%s5997] sm:$0xff]
      %v5999 = vld [vmem:[%s5997 + $0x8] sm:$0xff]
      %v6000 = vld [vmem:[%s5997 + $0x10] sm:$0xff]
      %v6001 = vld [vmem:[%s5997 + $0x18] sm:$0xff]
      %v6002 = vld [vmem:[%s5997 + $0x20] sm:$0xff]
      %v6003 = vld [vmem:[%s5997 + $0x28] sm:$0xff]
      %v6004 = vld [vmem:[%s5997 + $0x30] sm:$0xff]
      %v6005 = vld [vmem:[%s5997 + $0x38] sm:$0xff]
      %v6006 = vld [vmem:[%s5997 + $0x40] sm:$0xff]
      %v6007 = vld [vmem:[%s5997 + $0x48] sm:$0xff]
      %v6008 = vld [vmem:[%s5997 + $0x50] sm:$0xff]
      %v6009 = vld [vmem:[%s5997 + $0x58] sm:$0xff]
      %v6010 = vld [vmem:[%s5997 + $0x60] sm:$0xff]
      %v6011 = vld [vmem:[%s5997 + $0x68] sm:$0xff]
      %v6012 = vld [vmem:[%s5997 + $0x70] sm:$0xff]
      %v6013 = vld [vmem:[%s5997 + $0x78] sm:$0xff]
      %v6014 = vlaneseq
      %v6015 = vshrl.u32 %v6014, 7
      %v6016 = vsub.s32 1, %v6015
      %v6017 = vrot.slane %v544, %v6016
      %6018 = vmatprep.subr.mxu0 0.0
      %6019 = vmatpush1.msra.mxu0 %v5998
      %6020 = vmatprep.subr.mxu0 0.0
      %6021 = vmatpush1.msra.mxu0 %v5999
      %6022 = vmatprep.subr.mxu0 0.0
      %6023 = vmatpush1.msra.mxu0 %v6000
      %6024 = vmatprep.subr.mxu0 0.0
      %6025 = vmatpush1.msra.mxu0 %v6001
      %6026 = vmatprep.subr.mxu0 0.0
      %6027 = vmatpush1.msra.mxu0 %v6002
      %6028 = vmatprep.subr.mxu0 0.0
      %6029 = vmatpush1.msra.mxu0 %v6003
      %6030 = vmatprep.subr.mxu0 0.0
      %6031 = vmatpush1.msra.mxu0 %v6004
      %6032 = vmatprep.subr.mxu0 0.0
      %6033 = vmatpush1.msra.mxu0 %v6005
      %6034 = vmatprep.subr.mxu0 0.0
      %6035 = vmatpush1.msra.mxu0 %v6006
      %6036 = vmatprep.subr.mxu0 0.0
      %6037 = vmatpush1.msra.mxu0 %v6007
      %6038 = vmatprep.subr.mxu0 0.0
      %6039 = vmatpush1.msra.mxu0 %v6008
      %6040 = vmatprep.subr.mxu0 0.0
      %6041 = vmatpush1.msra.mxu0 %v6009
      %6042 = vmatprep.subr.mxu0 0.0
      %6043 = vmatpush1.msra.mxu0 %v6010
      %6044 = vmatprep.subr.mxu0 0.0
      %6045 = vmatpush1.msra.mxu0 %v6011
      %6046 = vmatprep.subr.mxu0 0.0
      %6047 = vmatpush1.msra.mxu0 %v6012
      %6048 = vmatprep.subr.mxu0 0.0
      %6049 = vmatpush1.msra.mxu0 %v6013
      %6050 = vmatprep.subr.mxu0 0.0
      %6051 = vmatpush1.msra.mxu0 0.0
      %6052 = vmatprep.subr.mxu0 0.0
      %6053 = vmatpush1.msra.mxu0 0.0
      %6054 = vmatprep.subr.mxu0 0.0
      %6055 = vmatpush1.msra.mxu0 0.0
      %6056 = vmatprep.subr.mxu0 0.0
      %6057 = vmatpush1.msra.mxu0 0.0
      %6058 = vmatprep.subr.mxu0 0.0
      %6059 = vmatpush1.msra.mxu0 0.0
      %6060 = vmatprep.subr.mxu0 0.0
      %6061 = vmatpush1.msra.mxu0 0.0
      %6062 = vmatprep.subr.mxu0 0.0
      %6063 = vmatpush1.msra.mxu0 0.0
      %6064 = vmatprep.subr.mxu0 0.0
      %6065 = vmatpush1.msra.mxu0 0.0
      %6066 = vmatprep.subr.mxu0 0.0
      %6067 = vmatpush1.msra.mxu0 0.0
      %6068 = vmatprep.subr.mxu0 0.0
      %6069 = vmatpush1.msra.mxu0 0.0
      %6070 = vmatprep.subr.mxu0 0.0
      %6071 = vmatpush1.msra.mxu0 0.0
      %6072 = vmatprep.subr.mxu0 0.0
      %6073 = vmatpush1.msra.mxu0 0.0
      %6074 = vmatprep.subr.mxu0 0.0
      %6075 = vmatpush1.msra.mxu0 0.0
      %6076 = vmatprep.subr.mxu0 0.0
      %6077 = vmatpush1.msra.mxu0 0.0
      %6078 = vmatprep.subr.mxu0 0.0
      %6079 = vmatpush1.msra.mxu0 0.0
      %6080 = vmatprep.subr.mxu0 0.0
      %6081 = vmatpush1.msra.mxu0 0.0
      %6082 = vmatprep.mubr.f32.mxu0 0.0
      %6083 = vmatmul.mubr.f32.gmra.mrb[0].mxu0 %v5992
      %v6084 = vpop.f32.mrb[0].mxu0
      %v6085 = vadd.f32 %v6017, %v6084
      %v6086 = vpop.f32.mrb[0].mxu0
      %6087 = vmatprep.mubr.f32.mxu0 0.0
      %6088 = vmatmul.mubr.f32.gmra.mrb[0].mxu0 %v5993
      %v6089 = vpop.f32.mrb[0].mxu0
      %v6090 = vadd.f32 %v6017, %v6089
      %v6091 = vpop.f32.mrb[0].mxu0
      %6092 = vmatprep.mubr.f32.mxu0 0.0
      %6093 = vmatmul.mubr.f32.gmra.mrb[0].mxu0 %v5994
      %v6094 = vpop.f32.mrb[0].mxu0
      %v6095 = vadd.f32 %v6017, %v6094
      %v6096 = vpop.f32.mrb[0].mxu0
      %6097 = vmatprep.mubr.f32.mxu0 0.0
      %6098 = vmatmul.mubr.f32.gmra.mrb[0].mxu0 %v5995
      %v6099 = vpop.f32.mrb[0].mxu0
      %v6100 = vadd.f32 %v6017, %v6099
      %v6101 = vpop.f32.mrb[0].mxu0
      %6102 = vmatprep.mubr.f32.mxu0 0.0
      %6103 = vmatmul.mubr.f32.gmra.mrb[0].mxu0 %v5996
      %v6104 = vpop.f32.mrb[0].mxu0
      %v6105 = vadd.f32 %v6017, %v6104
      %v6106 = vpop.f32.mrb[0].mxu0
      %6107 = vdwg.mxu0
      %v6108 = vadd.f32 %v5746, %v6085
      %v6109 = vadd.f32 %v5747, %v6090
      %v6110 = vadd.f32 %v5748, %v6095
      %v6111 = vadd.f32 %v5749, %v6100
      %v6112 = vadd.f32 %v5750, %v6105
      %p6113 = scmp.eq.s32.totalorder %s541, 2
      // Predicated region
      $region69: #{two_dino_forward.1} parent=59 // pred_check
        %p6114 = pneg %p6113
      $region70: #{two_dino_forward.1} parent=59 // pred_check_branch
        %6116 = sbr.rel (%p6114) target = $region72
      $region71: #{two_dino_forward.1} parent=59 // pred_region
        %v6117 = vmul.f32 %v4617, %v4617
        %v6118 = vmul.f32 %v4622, %v4622
        %v6119 = vmul.f32 %v4627, %v4627
        %v6120 = vmul.f32 %v4632, %v4632
        %v6121 = vmul.f32 %v4637, %v4637
        %v6122 = vsel %vm667, %v6117, 0.0
        %6123 = vadd.xlane.f32.xlu0 %v6122
        %v6124 = vpop.xlane.xlu0 %6123
        %v6125 = vsel %vm667, %v6118, 0.0
        %6126 = vadd.xlane.f32.xlu0 %v6125
        %v6127 = vpop.xlane.xlu0 %6126
        %v6128 = vsel %vm667, %v6119, 0.0
        %6129 = vadd.xlane.f32.xlu0 %v6128
        %v6130 = vpop.xlane.xlu0 %6129
        %v6131 = vsel %vm667, %v6120, 0.0
        %6132 = vadd.xlane.f32.xlu0 %v6131
        %v6133 = vpop.xlane.xlu0 %6132
        %v6134 = vsel %vm680, %v6121, 0.0
        %6135 = vadd.xlane.f32.xlu0 %v6134
        %v6136 = vpop.xlane.xlu0 %6135
        %v6137 = vmax.f32 %v6124, 1e-24
        %v6138 = vmax.f32 %v6127, 1e-24
        %v6139 = vmax.f32 %v6130, 1e-24
        %v6140 = vmax.f32 %v6133, 1e-24
        %v6141 = vmax.f32 %v6136, 1e-24
        %v6142 = vrsqrt.pop %v6137
        %v6143 = vrsqrt.pop %v6138
        %v6144 = vrsqrt.pop %v6139
        %v6145 = vrsqrt.pop %v6140
        %v6146 = vrsqrt.pop %v6141
        %v6147 = vmul.f32 %v4617, %v6142
        %v6148 = vmul.f32 %v4622, %v6143
        %v6149 = vmul.f32 %v4627, %v6144
        %v6150 = vmul.f32 %v4632, %v6145
        %v6151 = vmul.f32 %v4637, %v6146
        %6157 = vrot.lane.b32.xlu0 %v6117, 96
        %v6158 = vpop.permute.xlu0 %6157
        %6159 = vrot.lane.b32.xlu0 %v6118, 96
        %v6160 = vpop.permute.xlu0 %6159
        %6161 = vrot.lane.b32.xlu0 %v6119, 96
        %v6162 = vpop.permute.xlu0 %6161
        %6163 = vrot.lane.b32.xlu0 %v6120, 96
        %v6164 = vpop.permute.xlu0 %6163
        %6165 = vrot.lane.b32.xlu0 %v6121, 96
        %v6166 = vpop.permute.xlu0 %6165
        %v6172 = vsel %vm667, %v6158, 0.0
        %6173 = vadd.xlane.f32.xlu0 %v6172
        %v6174 = vpop.xlane.xlu0 %6173
        %v6175 = vsel %vm667, %v6160, 0.0
        %6176 = vadd.xlane.f32.xlu0 %v6175
        %v6177 = vpop.xlane.xlu0 %6176
        %v6178 = vsel %vm667, %v6162, 0.0
        %6179 = vadd.xlane.f32.xlu0 %v6178
        %v6180 = vpop.xlane.xlu0 %6179
        %v6181 = vsel %vm667, %v6164, 0.0
        %6182 = vadd.xlane.f32.xlu0 %v6181
        %v6183 = vpop.xlane.xlu0 %6182
        %v6184 = vsel %vm680, %v6166, 0.0
        %6185 = vadd.xlane.f32.xlu0 %v6184
        %v6186 = vpop.xlane.xlu0 %6185
        %v6187 = vmax.f32 %v6174, 1e-24
        %v6188 = vmax.f32 %v6177, 1e-24
        %v6189 = vmax.f32 %v6180, 1e-24
        %v6190 = vmax.f32 %v6183, 1e-24
        %v6191 = vmax.f32 %v6186, 1e-24
        %v6192 = vrsqrt.pop %v6187
        %v6193 = vrsqrt.pop %v6188
        %v6194 = vrsqrt.pop %v6189
        %v6195 = vrsqrt.pop %v6190
        %v6196 = vrsqrt.pop %v6191
        %v6197 = vmul.f32 %v4617, %v6192
        %v6198 = vmul.f32 %v4622, %v6193
        %v6199 = vmul.f32 %v4627, %v6194
        %v6200 = vmul.f32 %v4632, %v6195
        %v6201 = vmul.f32 %v4637, %v6196
        %6202 = vrot.lane.b32.xlu0 %v6117, 64
        %v6203 = vpop.permute.xlu0 %6202
        %6204 = vrot.lane.b32.xlu0 %v6118, 64
        %v6205 = vpop.permute.xlu0 %6204
        %6206 = vrot.lane.b32.xlu0 %v6119, 64
        %v6207 = vpop.permute.xlu0 %6206
        %6208 = vrot.lane.b32.xlu0 %v6120, 64
        %v6209 = vpop.permute.xlu0 %6208
        %6210 = vrot.lane.b32.xlu0 %v6121, 64
        %v6211 = vpop.permute.xlu0 %6210
        %v6217 = vsel %vm667, %v6203, 0.0
        %6218 = vadd.xlane.f32.xlu0 %v6217
        %v6219 = vpop.xlane.xlu0 %6218
        %v6220 = vsel %vm667, %v6205, 0.0
        %6221 = vadd.xlane.f32.xlu0 %v6220
        %v6222 = vpop.xlane.xlu0 %6221
        %v6223 = vsel %vm667, %v6207, 0.0
        %6224 = vadd.xlane.f32.xlu0 %v6223
        %v6225 = vpop.xlane.xlu0 %6224
        %v6226 = vsel %vm667, %v6209, 0.0
        %6227 = vadd.xlane.f32.xlu0 %v6226
        %v6228 = vpop.xlane.xlu0 %6227
        %v6229 = vsel %vm680, %v6211, 0.0
        %6230 = vadd.xlane.f32.xlu0 %v6229
        %v6231 = vpop.xlane.xlu0 %6230
        %v6232 = vmax.f32 %v6219, 1e-24
        %v6233 = vmax.f32 %v6222, 1e-24
        %v6234 = vmax.f32 %v6225, 1e-24
        %v6235 = vmax.f32 %v6228, 1e-24
        %v6236 = vmax.f32 %v6231, 1e-24
        %v6237 = vrsqrt.pop %v6232
        %v6238 = vrsqrt.pop %v6233
        %v6239 = vrsqrt.pop %v6234
        %v6240 = vrsqrt.pop %v6235
        %v6241 = vrsqrt.pop %v6236
        %v6242 = vmul.f32 %v4617, %v6237
        %v6243 = vmul.f32 %v4622, %v6238
        %v6244 = vmul.f32 %v4627, %v6239
        %v6245 = vmul.f32 %v4632, %v6240
        %v6246 = vmul.f32 %v4637, %v6241
        %v6247 = vmul.f32 %v6108, %v6108
        %v6248 = vmul.f32 %v6109, %v6109
        %v6249 = vmul.f32 %v6110, %v6110
        %v6250 = vmul.f32 %v6111, %v6111
        %v6251 = vmul.f32 %v6112, %v6112
        %v6252 = vsel %vm667, %v6247, 0.0
        %6253 = vadd.xlane.f32.xlu0 %v6252
        %v6254 = vpop.xlane.xlu0 %6253
        %v6255 = vsel %vm667, %v6248, 0.0
        %6256 = vadd.xlane.f32.xlu0 %v6255
        %v6257 = vpop.xlane.xlu0 %6256
        %v6258 = vsel %vm667, %v6249, 0.0
        %6259 = vadd.xlane.f32.xlu0 %v6258
        %v6260 = vpop.xlane.xlu0 %6259
        %v6261 = vsel %vm667, %v6250, 0.0
        %6262 = vadd.xlane.f32.xlu0 %v6261
        %v6263 = vpop.xlane.xlu0 %6262
        %v6264 = vsel %vm680, %v6251, 0.0
        %6265 = vadd.xlane.f32.xlu0 %v6264
        %v6266 = vpop.xlane.xlu0 %6265
        %v6267 = vmax.f32 %v6254, 1e-24
        %v6268 = vmax.f32 %v6257, 1e-24
        %v6269 = vmax.f32 %v6260, 1e-24
        %v6270 = vmax.f32 %v6263, 1e-24
        %v6271 = vmax.f32 %v6266, 1e-24
        %v6272 = vrsqrt.pop %v6267
        %v6273 = vrsqrt.pop %v6268
        %v6274 = vrsqrt.pop %v6269
        %v6275 = vrsqrt.pop %v6270
        %v6276 = vrsqrt.pop %v6271
        %v6277 = vmul.f32 %v6108, %v6272
        %v6278 = vmul.f32 %v6109, %v6273
        %v6279 = vmul.f32 %v6110, %v6274
        %v6280 = vmul.f32 %v6111, %v6275
        %v6281 = vmul.f32 %v6112, %v6276
        %6287 = vrot.lane.b32.xlu0 %v6277, 96
        %v6288 = vpop.permute.xlu0 %6287
        %6289 = vrot.lane.b32.xlu0 %v6278, 96
        %v6290 = vpop.permute.xlu0 %6289
        %6291 = vrot.lane.b32.xlu0 %v6279, 96
        %v6292 = vpop.permute.xlu0 %6291
        %6293 = vrot.lane.b32.xlu0 %v6280, 96
        %v6294 = vpop.permute.xlu0 %6293
        %6295 = vrot.lane.b32.xlu0 %v6281, 96
        %v6296 = vpop.permute.xlu0 %6295
        %v6302 = vsel %vm667, %v6147, %v6197
        %v6303 = vsel %vm667, %v6148, %v6198
        %v6304 = vsel %vm667, %v6149, %v6199
        %v6305 = vsel %vm667, %v6150, %v6200
        %v6306 = vsel %vm667, %v6151, %v6201
        %vm6307 = vcmask 523264
        %v6308 = vsel %vm6307, %v6302, %v6242
        %v6309 = vsel %vm6307, %v6303, %v6243
        %v6310 = vsel %vm6307, %v6304, %v6244
        %v6311 = vsel %vm6307, %v6305, %v6245
        %v6312 = vsel %vm6307, %v6306, %v6246
        %vm6313 = vcmask 785408
        %v6314 = vsel %vm6313, %v6308, %v6288
        %v6315 = vsel %vm6313, %v6309, %v6290
        %v6316 = vsel %vm6313, %v6310, %v6292
        %v6317 = vsel %vm6313, %v6311, %v6294
        %v6318 = vsel %vm6313, %v6312, %v6296
        %6319 = vst [vmem:[%s540] sm:$0xff] %v6314
        %6320 = vst [vmem:[%s540 + $0x8] sm:$0xff] %v6315
        %6321 = vst [vmem:[%s540 + $0x10] sm:$0xff] %v6316
        %6322 = vst [vmem:[%s540 + $0x18] sm:$0xff] %v6317
        %6323 = vst [vmem:[%s540 + $0x20] sm:$0x3] %v6318
      $region72: #{two_dino_forward.1} parent=59 // pred_fallthru
        _
      %vm6324 = vcmask 253952
      %v6325 = vsel %vm6324, %v6108, 0.0
      %6326 = vadd.xlane.f32.xlu0 %v6325
      %v6327 = vpop.xlane.xlu0 %6326
      %v6328 = vmul.f32 %v6327, %v684
      %v6329 = vsub.f32 %v6108, %v6328
      %v6330 = vmul.f32 %v6329, %v6329
      %v6331 = vsel %vm6324, %v6330, 0.0
      %6332 = vadd.xlane.f32.xlu0 %v6331
      %v6333 = vpop.xlane.xlu0 %6332
      %v6334 = vmul.f32 %v6333, %v684
      %v6335 = vadd.f32 %v6334, 1e-06
      %v6336 = vrsqrt.pop %v6335
      %v6337 = vmul.f32 %v6329, %v6336
      %v6339 = vrot.slane %v544, 2
      %v6341 = vmul.f32 %v6337, %v6339
      %v6342 = vrot.slane %v544, 3
      %v6344 = vadd.f32 %v6341, %v6342
      %v6345 = vmul.f32 %v6344, %v6344
      %v6346 = vsel %vm6324, %v6345, 0.0
      %6347 = vadd.xlane.f32.xlu0 %v6346
      %v6348 = vpop.xlane.xlu0 %6347
      %v6349 = vmax.f32 %v6348, 1e-24
      %v6350 = vrsqrt.pop %v6349
      %v6351 = vmul.f32 %v6344, %v6350
      %6353 = vrot.lane.b32.xlu0 %v6351, 32
      %v6354 = vpop.permute.xlu0 %6353
      %6356 = vrot.lane.b32.xlu0 %v6351, 64
      %v6357 = vpop.permute.xlu0 %6356
      %6359 = vrot.lane.b32.xlu0 %v6351, 96
      %v6360 = vpop.permute.xlu0 %6359
      %v6362 = vsel %vm667, %v6351, %v6354
      %vm6363 = vcmask 523264
      %v6364 = vsel %vm6363, %v6362, %v6357
      %vm6365 = vcmask 785408
      %v6366 = vsel %vm6365, %v6364, %v6360
      %6367 = vst [vmem:[%s540] sm:$0x1] %v6366
      %vm6368 = vcmask 254977
      %v6369 = vsel %vm6368, %v6110, 0.0
      %6370 = vadd.xlane.f32.xlu0 %v6369
      %v6371 = vpop.xlane.xlu0 %6370
      %v6372 = vmul.f32 %v6371, %v684
      %v6373 = vsub.f32 %v6110, %v6372
      %v6374 = vmul.f32 %v6373, %v6373
      %v6375 = vsel %vm6368, %v6374, 0.0
      %6376 = vadd.xlane.f32.xlu0 %v6375
      %v6377 = vpop.xlane.xlu0 %6376
      %v6378 = vmul.f32 %v6377, %v684
      %v6379 = vadd.f32 %v6378, 1e-06
      %v6380 = vrsqrt.pop %v6379
      %v6381 = vmul.f32 %v6373, %v6380
      %v6382 = vrot.slane %v544, 1
      %v6384 = vmul.f32 %v6381, %v6382
      %v6385 = vadd.f32 %v6384, %v6339
      %v6386 = vmul.f32 %v6385, %v6385
      %v6387 = vsel %vm6368, %v6386, 0.0
      %6388 = vadd.xlane.f32.xlu0 %v6387
      %v6389 = vpop.xlane.xlu0 %6388
      %v6390 = vmax.f32 %v6389, 1e-24
      %v6391 = vrsqrt.pop %v6390
      %v6392 = vmul.f32 %v6385, %v6391
      %6394 = vrot.lane.b32.xlu0 %v6392, 32
      %v6395 = vpop.permute.xlu0 %6394
      %6397 = vrot.lane.b32.xlu0 %v6392, 64
      %v6398 = vpop.permute.xlu0 %6397
      %6400 = vrot.lane.b32.xlu0 %v6392, 96
      %v6401 = vpop.permute.xlu0 %6400
      %v6403 = vsel %vm667, %v6392, %v6395
      %v6404 = vsel %vm6363, %v6403, %v6398
      %v6405 = vsel %vm6365, %v6404, %v6401
      %6406 = vst [vmem:[%s540 + $0x10] sm:$0x2] %v6405
      %p6407 = scmp.lt.s32.totalorder %s28, 1
      %s6408 = scalar_select %p6407, %s28, 1
      %s6409 = smul.addr %s6408, 5
      %s6410 = smul.addr %s6409, 8
      %s6411 = scalar_lea.vmem %s11, %s6410
      // Predicated region
      $region73: #{two_dino_forward.1} parent=59 // pred_check
        %p6412 = pneg %p306
      $region74: #{two_dino_forward.1} parent=59 // pred_check_branch
        %6414 = sbr.rel (%p6412) target = $region76
      $region75: #{two_dino_forward.1} parent=59 // pred_region
        _
      $region76: #{two_dino_forward.1} parent=59 // pred_fallthru
        _
    $region60: #{two_dino_forward.1} parent=5 // pred_fallthru
      _
    %p6415 = scmp.le.s32.totalorder 2, %s23
    // Predicated region
    $region77: #{two_dino_forward.1} parent=5 // pred_check
      %p6416 = pneg %p6415
    $region78: #{two_dino_forward.1} parent=5 // pred_check_branch
      %6418 = sbr.rel (%p6416) target = $region80
    $region79: #{two_dino_forward.1} parent=5 // pred_region
      %s6419 = ssub.s32 %s23, 2
      // Predicated region
      $region81: #{two_dino_forward.1} parent=79 // pred_check
        %p6420 = pneg %p312
      $region82: #{two_dino_forward.1} parent=79 // pred_check_branch
        %6422 = sbr.rel (%p6420) target = $region84
      $region83: #{two_dino_forward.1} parent=79 // pred_region
        %p6423 = scmp.lt.s32.totalorder %s29, 1
        %s6424 = scalar_select %p6423, %s29, 1
        %s6425 = smul.addr %s6424, 5
        %s6426 = smul.addr %s6425, 8
        %s6427 = scalar_lea.vmem %s11, %s6426
      $region84: #{two_dino_forward.1} parent=79 // pred_fallthru
        _
    $region80: #{two_dino_forward.1} parent=5 // pred_fallthru
      _
  $region6: #{two_dino_forward.1} parent=0 // loop_footer
    %s27 = sadd.s32 1, %s23
  $region7: #{two_dino_forward.1} parent=0 // loop_footer_branch
    %22 = sbr.rel target = $region3
  $region8: #{two_dino_forward.1} parent=0 // loop_exit
    _

</llo_original>
